<compile_context>
chip_gen: v6e
topology: v6e:2x2x1
jax: 0.10.0
libtpu: 0.0.40
codegen_flags: <defaults>
</compile_context>

<pallas_src>
import functools

import jax
import jax.numpy as jnp
import numpy as np
from jax.experimental import pallas as pl
from jax.experimental.pallas import tpu as pltpu


# ------------------------------ fused kernel --------------------------------

def _rec_gnn_fused_kernel(
    # inputs
    mvv_ref, mvc_ref, mvct_ref, vh0_ref, ch0_ref,
    wv_ref, bv_ref, wc_ref, bc_ref,
    cm_w1_ref, cm_b1_ref, cm_w2_ref, cm_b2_ref,
    vm_w1_ref, vm_b1_ref, vm_w2_ref, vm_b2_ref,
    # output (doubles as the resident vh state)
    vh_out_ref,
    # scratch (resident state across timesteps)
    ch_s, vmem_s, cmem_s,
    *, timesteps, B, V, C, D):
    G = 4 * D

    # ---- initialize resident state in VMEM ----
    vh_out_ref[...] = vh0_ref[...]
    ch_s[...] = ch0_ref[...]
    vmem_s[...] = jnp.zeros_like(vmem_s)
    cmem_s[...] = jnp.zeros_like(cmem_s)

    # ---- hoist every loop-invariant load / broadcast out of the time loop ----
    mvv = mvv_ref[...]                        # (B*V, V)
    mvc = mvc_ref[...]                        # (B*V, C)
    mvct = mvct_ref[...]                      # (B*C, V)
    wv = wv_ref[...]                          # (3D, 4D)  [wih_mc; wih_mv; whh]
    wc = wc_ref[...]                          # (2D, 4D)  [wih; whh]
    bv = jnp.broadcast_to(bv_ref[...], (B * V, G))
    bc = jnp.broadcast_to(bc_ref[...], (B * C, G))
    cm_w1 = cm_w1_ref[...]; cm_w2 = cm_w2_ref[...]
    vm_w1 = vm_w1_ref[...]; vm_w2 = vm_w2_ref[...]
    Hp = cm_w1.shape[1]                       # padded MLP hidden (128)
    cm_b1 = jnp.broadcast_to(cm_b1_ref[...], (B * C, Hp))
    cm_b2 = jnp.broadcast_to(cm_b2_ref[...], (B * C, D))
    vm_b1 = jnp.broadcast_to(vm_b1_ref[...], (V, Hp))
    vm_b2 = jnp.broadcast_to(vm_b2_ref[...], (V, D))

    # Per-lane gate scale: 2.0 on the g (cell candidate) lanes so a single
    # full-width sigmoid covers i/f/o and, via tanh(x) = 2*sigmoid(2x) - 1, g.
    lane = jax.lax.broadcasted_iota(jnp.int32, (1, G), 1)
    g_lanes = (lane >= 2 * D) & (lane < 3 * D)
    scale_row = jnp.where(g_lanes, 2.0, 1.0).astype(jnp.float32)
    scale_v = jnp.broadcast_to(scale_row, (B * V, G))
    scale_c = jnp.broadcast_to(scale_row, (B * C, G))

    def f32dot(a, b):
        return jnp.dot(a, b, preferred_element_type=jnp.float32)

    def lstm_update(gates, c_prev, scale):
        sig = jax.nn.sigmoid(gates * scale)          # ONE (N, 4D) transcendental
        i = sig[:, 0:D]
        f = sig[:, D:2 * D]
        g = 2.0 * sig[:, 2 * D:3 * D] - 1.0          # == tanh(gates_g)
        o = sig[:, 3 * D:4 * D]
        c_new = f * c_prev + i * g
        h_new = o * jnp.tanh(c_new)
        return h_new, c_new

    def timestep(_):
        vh_flat = vh_out_ref[...]                    # (B*V, D)
        ch_flat = ch_s[...]                          # (B*C, D)

        # vertex message: MLP of vh[-1] (last batch element — torch semantics),
        # shared by every batch element.
        vlast = vh_flat[(B - 1) * V:B * V, :]
        hvm = jnp.maximum(f32dot(vlast, vm_w1) + vm_b1, 0.0)
        vmsg = jnp.maximum(f32dot(hvm, vm_w2) + vm_b2, 0.0)        # (V, D)

        # color message MLP, batched over all B*C rows.
        hcm = jnp.maximum(f32dot(ch_flat, cm_w1) + cm_b1, 0.0)
        cmsg = jnp.maximum(f32dot(hcm, cm_w2) + cm_b2, 0.0)        # (B*C, D)

        # adjacency message passing — only these stay per-batch (no shared RHS).
        mv_parts, mc_parts = [], []
        for b in range(B):
            vh_b = vh_flat[b * V:(b + 1) * V, :]
            cmsg_b = cmsg[b * C:(b + 1) * C, :]
            mv_parts.append(f32dot(mvv[b * V:(b + 1) * V, :], vh_b))   # (V, D)
            mc_parts.append(f32dot(mvc[b * V:(b + 1) * V, :], cmsg_b))  # (V, D)
        mv_all = jnp.concatenate(mv_parts, axis=0) if B > 1 else mv_parts[0]
        mc_all = jnp.concatenate(mc_parts, axis=0) if B > 1 else mc_parts[0]

        # rnn_c input: Mvc^T @ vmsg for every batch in ONE matmul (vmsg shared).
        rc_all = f32dot(mvct, vmsg)                                # (B*C, D)

        # fused single-matmul LSTM gates: [mc|mv|vh] @ [wih_mc;wih_mv;whh], etc.
        gv = f32dot(jnp.concatenate([mc_all, mv_all, vh_flat], axis=-1), wv) + bv
        gc = f32dot(jnp.concatenate([rc_all, ch_flat], axis=-1), wc) + bc

        hv, cv = lstm_update(gv, vmem_s[...], scale_v)
        hc, cc = lstm_update(gc, cmem_s[...], scale_c)

        # batched writeback (every read of the old state happened above).
        vh_out_ref[...] = hv
        vmem_s[...] = cv
        ch_s[...] = hc
        cmem_s[...] = cc

    if timesteps <= 8:
        for t in range(timesteps):        # fully unrolled for tiny static T
            timestep(t)
    else:
        pl.loop(0, timesteps)(timestep)


# ---------------------------- wrapper / params -------------------------------

def _prep_kernel_params(params):
    """Zero-pad MLP hidden 100->128 (exact math) and fuse the per-LSTM weight
    stacks so each gate block is a single matmul."""
    def pad_mlp(p):
        H = p["w1"].shape[1]
        Hp = ((H + 127) // 128) * 128
        return dict(
            w1=jnp.pad(p["w1"], ((0, 0), (0, Hp - H))),
            b1=jnp.pad(p["b1"], ((0, 0), (0, Hp - H))),
            w2=jnp.pad(p["w2"], ((0, Hp - H), (0, 0))),
            b2=p["b2"],
        )

    return dict(
        wv=jnp.concatenate([params["rnn_v"]["wih_t"], params["rnn_v"]["whh_t"]], axis=0),
        bv=params["rnn_v"]["bias"],
        wc=jnp.concatenate([params["rnn_c"]["wih_t"], params["rnn_c"]["whh_t"]], axis=0),
        bc=params["rnn_c"]["bias"],
        cm=pad_mlp(params["c_msg"]),
        vm=pad_mlp(params["v_msg"]),
    )


@functools.partial(jax.jit, static_argnames=("timesteps",))
def rec_gnn_forward(params, Mvv, Mvc, vh, ch, timesteps):
    B, V, _ = Mvv.shape
    C = Mvc.shape[2]
    D = vh.shape[2]
    kp = _prep_kernel_params(params)

    mvv_f = Mvv.reshape(B * V, V)
    mvc_f = Mvc.reshape(B * V, C)
    mvct_f = jnp.swapaxes(Mvc, 1, 2).reshape(B * C, V)   # enables one batched rc matmul
    vh_f = vh.reshape(B * V, D)
    ch_f = ch.reshape(B * C, D)

    kernel = functools.partial(_rec_gnn_fused_kernel,
                               timesteps=timesteps, B=B, V=V, C=C, D=D)
    out = pl.pallas_call(
        kernel,
        out_shape=jax.ShapeDtypeStruct((B * V, D), jnp.float32),
        scratch_shapes=[
            pltpu.VMEM((B * C, D), jnp.float32),   # ch state
            pltpu.VMEM((B * V, D), jnp.float32),   # v_memory
            pltpu.VMEM((B * C, D), jnp.float32),   # c_memory
        ],
        input_output_aliases={3: 0},               # vh buffer reused for the output
    )(
        mvv_f, mvc_f, mvct_f, vh_f, ch_f,
        kp["wv"], kp["bv"], kp["wc"], kp["bc"],
        kp["cm"]["w1"], kp["cm"]["b1"], kp["cm"]["w2"], kp["cm"]["b2"],
        kp["vm"]["w1"], kp["vm"]["b1"], kp["vm"]["w2"], kp["vm"]["b2"],
    )
    return out.reshape(B, V, D)


def init_params(key, inner_dim):
    D = inner_dim
    ks = jax.random.split(key, 16)

    def uni(k, shape, bound):
        return jax.random.uniform(k, shape, jnp.float32, -bound, bound)

    b = 1.0 / np.sqrt(D)
    return {
        # nn.LSTMCell(input=2D, hidden=D): weights stored transposed (in, 4H)
        "rnn_v": dict(
            wih_t=uni(ks[0], (2 * D, 4 * D), b),
            whh_t=uni(ks[1], (D, 4 * D), b),
            bias=uni(ks[2], (1, 4 * D), b) + uni(ks[3], (1, 4 * D), b),  # b_ih + b_hh
        ),
        # nn.LSTMCell(input=D, hidden=D)
        "rnn_c": dict(
            wih_t=uni(ks[4], (D, 4 * D), b),
            whh_t=uni(ks[5], (D, 4 * D), b),
            bias=uni(ks[6], (1, 4 * D), b) + uni(ks[7], (1, 4 * D), b),
        ),
        # c_msg_mlp / v_msg_mlp: Linear(D,100)->ReLU->Linear(100,D)->ReLU
        "c_msg": dict(
            w1=uni(ks[8], (D, 100), 1.0 / np.sqrt(D)),
            b1=uni(ks[9], (1, 100), 1.0 / np.sqrt(D)),
            w2=uni(ks[10], (100, D), 1.0 / np.sqrt(100)),
            b2=uni(ks[11], (1, D), 1.0 / np.sqrt(100)),
        ),
        "v_msg": dict(
            w1=uni(ks[12], (D, 100), 1.0 / np.sqrt(D)),
            b1=uni(ks[13], (1, 100), 1.0 / np.sqrt(D)),
            w2=uni(ks[14], (100, D), 1.0 / np.sqrt(100)),
            b2=uni(ks[15], (1, D), 1.0 / np.sqrt(100)),
        ),
    }


# ---------------------------- pure-JAX reference -----------------------------

_HI = jax.lax.Precision.HIGHEST


def _mlp2_ref(x, w1, b1, w2, b2):
    h = jnp.maximum(jnp.dot(x, w1, precision=_HI) + b1, 0.0)
    return jnp.maximum(jnp.dot(h, w2, precision=_HI) + b2, 0.0)


def _lstm_ref(x, h, c, wih_t, whh_t, bias):
    H = h.shape[-1]
    g_ = jnp.dot(x, wih_t, precision=_HI) + jnp.dot(h, whh_t, precision=_HI) + bias
    i = jax.nn.sigmoid(g_[:, :H])
    f = jax.nn.sigmoid(g_[:, H:2 * H])
    g = jnp.tanh(g_[:, 2 * H:3 * H])
    o = jax.nn.sigmoid(g_[:, 3 * H:])
    c_new = f * c + i * g
    return o * jnp.tanh(c_new), c_new


@functools.partial(jax.jit, static_argnames=("timesteps",))
def rec_gnn_reference(params, Mvv, Mvc, vh, ch, timesteps):
    B, V, _ = Mvv.shape
    C = Mvc.shape[2]
    D = vh.shape[2]
    v_memory = jnp.zeros((B, V, D), jnp.float32)
    c_memory = jnp.zeros((B, C, D), jnp.float32)
    MvcT = jnp.swapaxes(Mvc, 1, 2)
    for _ in range(timesteps):
        mv = jnp.matmul(Mvv, vh, precision=_HI)
        cmsg = _mlp2_ref(ch.reshape(B * C, D), **params["c_msg"]).reshape(B, C, D)
        vmsg = _mlp2_ref(vh[-1], **params["v_msg"])
        mc = jnp.matmul(Mvc, cmsg, precision=_HI)
        rnn_v_in = jnp.concatenate([mc, mv], axis=2)
        rnn_c_in = jnp.matmul(MvcT, jnp.broadcast_to(vmsg, (B, V, D)), precision=_HI)
        vh_new, v_mem = _lstm_ref(rnn_v_in.reshape(B * V, 2 * D),
                                  vh.reshape(B * V, D), v_memory.reshape(B * V, D),
                                  params["rnn_v"]["wih_t"], params["rnn_v"]["whh_t"],
                                  params["rnn_v"]["bias"])
        ch_new, c_mem = _lstm_ref(rnn_c_in.reshape(B * C, D),
                                  ch.reshape(B * C, D), c_memory.reshape(B * C, D),
                                  params["rnn_c"]["wih_t"], params["rnn_c"]["whh_t"],
                                  params["rnn_c"]["bias"])
        vh, v_memory = vh_new.reshape(B, V, D), v_mem.reshape(B, V, D)
        ch, c_memory = ch_new.reshape(B, C, D), c_mem.reshape(B, C, D)
    return vh


# ------------------------------------ main ------------------------------------

if __name__ == "__main__":
    INNER_DIM = 32
    TIMESTEPS = 8          # small for the demo (module default is 32)
    B, V, C = 2, 8, 4

    key = jax.random.PRNGKey(0)
    kp, k1, k2, k3, k4 = jax.random.split(key, 5)
    params = init_params(kp, INNER_DIM)

    Mvv = (jax.random.uniform(k1, (B, V, V)) > 0.5).astype(jnp.float32)
    Mvv = jnp.maximum(Mvv, jnp.swapaxes(Mvv, 1, 2))           # symmetric adjacency
    Mvc = (jax.random.uniform(k2, (B, V, C)) > 0.5).astype(jnp.float32)
    vh = jax.random.normal(k3, (B, V, INNER_DIM), jnp.float32)
    ch = jax.random.normal(k4, (B, C, INNER_DIM), jnp.float32)

    out = rec_gnn_forward(params, Mvv, Mvc, vh, ch, timesteps=TIMESTEPS)
    out = jax.block_until_ready(out)
    assert out.shape == (B, V, INNER_DIM)

    ref = jax.block_until_ready(
        rec_gnn_reference(params, Mvv, Mvc, vh, ch, timesteps=TIMESTEPS))
    np.testing.assert_allclose(np.asarray(out), np.asarray(ref), rtol=2e-3, atol=2e-3)

    print("KERNEL_OK")
</pallas_src>

<mosaic_0001>
module attributes {stable_mosaic.version = 11 : i64} {
  func.func @_rec_gnn_fused_kernel(%arg0: memref<16x8xf32, #tpu.memory_space<vmem>>, %arg1: memref<16x4xf32, #tpu.memory_space<vmem>>, %arg2: memref<8x8xf32, #tpu.memory_space<vmem>>, %arg3: memref<16x32xf32, #tpu.memory_space<vmem>>, %arg4: memref<8x32xf32, #tpu.memory_space<vmem>>, %arg5: memref<96x128xf32, #tpu.memory_space<vmem>>, %arg6: memref<1x128xf32, #tpu.memory_space<vmem>>, %arg7: memref<64x128xf32, #tpu.memory_space<vmem>>, %arg8: memref<1x128xf32, #tpu.memory_space<vmem>>, %arg9: memref<32x128xf32, #tpu.memory_space<vmem>>, %arg10: memref<1x128xf32, #tpu.memory_space<vmem>>, %arg11: memref<128x32xf32, #tpu.memory_space<vmem>>, %arg12: memref<1x32xf32, #tpu.memory_space<vmem>>, %arg13: memref<32x128xf32, #tpu.memory_space<vmem>>, %arg14: memref<1x128xf32, #tpu.memory_space<vmem>>, %arg15: memref<128x32xf32, #tpu.memory_space<vmem>>, %arg16: memref<1x32xf32, #tpu.memory_space<vmem>>, %arg17: memref<16x32xf32, #tpu.memory_space<vmem>>, %arg18: memref<8x32xf32, #tpu.memory_space<vmem>>, %arg19: memref<16x32xf32, #tpu.memory_space<vmem>>, %arg20: memref<8x32xf32, #tpu.memory_space<vmem>>) attributes {dimension_semantics = [], scalar_prefetch = 0 : i64, scratch_operands = 3 : i64, tpu.core_type = #tpu.core_type<tc>} {
    %c0 = arith.constant 0 : index
    %c0_0 = arith.constant 0 : index
    %0 = vector.load %arg3[%c0, %c0_0] : memref<16x32xf32, #tpu.memory_space<vmem>>, vector<16x32xf32>
    %c0_1 = arith.constant 0 : index
    %c0_2 = arith.constant 0 : index
    %1 = vector.load %arg17[%c0_1, %c0_2] : memref<16x32xf32, #tpu.memory_space<vmem>>, vector<16x32xf32>
    tpu.vector_store %arg17[%c0_1, %c0_2], %0 {strides = array<i32>} : memref<16x32xf32, #tpu.memory_space<vmem>>, vector<16x32xf32>,
    %c0_3 = arith.constant 0 : index
    %c0_4 = arith.constant 0 : index
    %2 = vector.load %arg4[%c0_3, %c0_4] : memref<8x32xf32, #tpu.memory_space<vmem>>, vector<8x32xf32>
    %c0_5 = arith.constant 0 : index
    %c0_6 = arith.constant 0 : index
    %3 = vector.load %arg18[%c0_5, %c0_6] : memref<8x32xf32, #tpu.memory_space<vmem>>, vector<8x32xf32>
    tpu.vector_store %arg18[%c0_5, %c0_6], %2 {strides = array<i32>} : memref<8x32xf32, #tpu.memory_space<vmem>>, vector<8x32xf32>,
    %cst = arith.constant 0.000000e+00 : f32
    %4 = vector.broadcast %cst : f32 to vector<16x32xf32>
    %c0_7 = arith.constant 0 : index
    %c0_8 = arith.constant 0 : index
    %5 = vector.load %arg19[%c0_7, %c0_8] : memref<16x32xf32, #tpu.memory_space<vmem>>, vector<16x32xf32>
    tpu.vector_store %arg19[%c0_7, %c0_8], %4 {strides = array<i32>} : memref<16x32xf32, #tpu.memory_space<vmem>>, vector<16x32xf32>,
    %cst_9 = arith.constant 0.000000e+00 : f32
    %6 = vector.broadcast %cst_9 : f32 to vector<8x32xf32>
    %c0_10 = arith.constant 0 : index
    %c0_11 = arith.constant 0 : index
    %7 = vector.load %arg20[%c0_10, %c0_11] : memref<8x32xf32, #tpu.memory_space<vmem>>, vector<8x32xf32>
    tpu.vector_store %arg20[%c0_10, %c0_11], %6 {strides = array<i32>} : memref<8x32xf32, #tpu.memory_space<vmem>>, vector<8x32xf32>,
    %c0_12 = arith.constant 0 : index
    %c0_13 = arith.constant 0 : index
    %8 = vector.load %arg0[%c0_12, %c0_13] : memref<16x8xf32, #tpu.memory_space<vmem>>, vector<16x8xf32>
    %c0_14 = arith.constant 0 : index
    %c0_15 = arith.constant 0 : index
    %9 = vector.load %arg1[%c0_14, %c0_15] : memref<16x4xf32, #tpu.memory_space<vmem>>, vector<16x4xf32>
    %c0_16 = arith.constant 0 : index
    %c0_17 = arith.constant 0 : index
    %10 = vector.load %arg2[%c0_16, %c0_17] : memref<8x8xf32, #tpu.memory_space<vmem>>, vector<8x8xf32>
    %c0_18 = arith.constant 0 : index
    %c0_19 = arith.constant 0 : index
    %11 = vector.load %arg5[%c0_18, %c0_19] : memref<96x128xf32, #tpu.memory_space<vmem>>, vector<96x128xf32>
    %c0_20 = arith.constant 0 : index
    %c0_21 = arith.constant 0 : index
    %12 = vector.load %arg7[%c0_20, %c0_21] : memref<64x128xf32, #tpu.memory_space<vmem>>, vector<64x128xf32>
    %c0_22 = arith.constant 0 : index
    %c0_23 = arith.constant 0 : index
    %13 = vector.load %arg6[%c0_22, %c0_23] : memref<1x128xf32, #tpu.memory_space<vmem>>, vector<1x128xf32>
    %14 = vector.shape_cast %13 : vector<1x128xf32> to vector<1x128xf32>
    %15 = vector.broadcast %14 : vector<1x128xf32> to vector<16x128xf32>
    %c0_24 = arith.constant 0 : index
    %c0_25 = arith.constant 0 : index
    %16 = vector.load %arg8[%c0_24, %c0_25] : memref<1x128xf32, #tpu.memory_space<vmem>>, vector<1x128xf32>
    %17 = vector.shape_cast %16 : vector<1x128xf32> to vector<1x128xf32>
    %18 = vector.broadcast %17 : vector<1x128xf32> to vector<8x128xf32>
    %c0_26 = arith.constant 0 : index
    %c0_27 = arith.constant 0 : index
    %19 = vector.load %arg9[%c0_26, %c0_27] : memref<32x128xf32, #tpu.memory_space<vmem>>, vector<32x128xf32>
    %c0_28 = arith.constant 0 : index
    %c0_29 = arith.constant 0 : index
    %20 = vector.load %arg11[%c0_28, %c0_29] : memref<128x32xf32, #tpu.memory_space<vmem>>, vector<128x32xf32>
    %c0_30 = arith.constant 0 : index
    %c0_31 = arith.constant 0 : index
    %21 = vector.load %arg13[%c0_30, %c0_31] : memref<32x128xf32, #tpu.memory_space<vmem>>, vector<32x128xf32>
    %c0_32 = arith.constant 0 : index
    %c0_33 = arith.constant 0 : index
    %22 = vector.load %arg15[%c0_32, %c0_33] : memref<128x32xf32, #tpu.memory_space<vmem>>, vector<128x32xf32>
    %c0_34 = arith.constant 0 : index
    %c0_35 = arith.constant 0 : index
    %23 = vector.load %arg10[%c0_34, %c0_35] : memref<1x128xf32, #tpu.memory_space<vmem>>, vector<1x128xf32>
    %24 = vector.shape_cast %23 : vector<1x128xf32> to vector<1x128xf32>
    %25 = vector.broadcast %24 : vector<1x128xf32> to vector<8x128xf32>
    %c0_36 = arith.constant 0 : index
    %c0_37 = arith.constant 0 : index
    %26 = vector.load %arg12[%c0_36, %c0_37] : memref<1x32xf32, #tpu.memory_space<vmem>>, vector<1x32xf32>
    %27 = vector.shape_cast %26 : vector<1x32xf32> to vector<1x32xf32>
    %28 = vector.broadcast %27 : vector<1x32xf32> to vector<8x32xf32>
    %c0_38 = arith.constant 0 : index
    %c0_39 = arith.constant 0 : index
    %29 = vector.load %arg14[%c0_38, %c0_39] : memref<1x128xf32, #tpu.memory_space<vmem>>, vector<1x128xf32>
    %30 = vector.shape_cast %29 : vector<1x128xf32> to vector<1x128xf32>
    %31 = vector.broadcast %30 : vector<1x128xf32> to vector<8x128xf32>
    %c0_40 = arith.constant 0 : index
    %c0_41 = arith.constant 0 : index
    %32 = vector.load %arg16[%c0_40, %c0_41] : memref<1x32xf32, #tpu.memory_space<vmem>>, vector<1x32xf32>
    %33 = vector.shape_cast %32 : vector<1x32xf32> to vector<1x32xf32>
    %34 = vector.broadcast %33 : vector<1x32xf32> to vector<8x32xf32>
    %35 = tpu.iota {dimensions = array<i32: 1>} : vector<1x128xi32>
    %c64_i32 = arith.constant 64 : i32
    %36 = vector.broadcast %c64_i32 : i32 to vector<1x128xi32>
    %37 = arith.cmpi sge, %35, %36 : vector<1x128xi32>
    %c96_i32 = arith.constant 96 : i32
    %38 = vector.broadcast %c96_i32 : i32 to vector<1x128xi32>
    %39 = arith.cmpi slt, %35, %38 : vector<1x128xi32>
    %40 = arith.andi %37, %39 : vector<1x128xi1>
    %cst_42 = arith.constant 2.000000e+00 : f32
    %cst_43 = arith.constant 1.000000e+00 : f32
    %41 = vector.broadcast %cst_42 : f32 to vector<1x128xf32>
    %42 = vector.broadcast %cst_43 : f32 to vector<1x128xf32>
    %43 = arith.select %40, %41, %42 : vector<1x128xi1>, vector<1x128xf32>
    %44 = vector.shape_cast %43 : vector<1x128xf32> to vector<1x128xf32>
    %45 = vector.broadcast %44 : vector<1x128xf32> to vector<16x128xf32>
    %46 = vector.shape_cast %43 : vector<1x128xf32> to vector<1x128xf32>
    %47 = vector.broadcast %46 : vector<1x128xf32> to vector<8x128xf32>
    %c0_44 = arith.constant 0 : index
    %c0_45 = arith.constant 0 : index
    %48 = vector.load %arg17[%c0_44, %c0_45] : memref<16x32xf32, #tpu.memory_space<vmem>>, vector<16x32xf32>
    %c0_46 = arith.constant 0 : index
    %c0_47 = arith.constant 0 : index
    %49 = vector.load %arg18[%c0_46, %c0_47] : memref<8x32xf32, #tpu.memory_space<vmem>>, vector<8x32xf32>
    %50 = vector.extract_strided_slice %48 {offsets = [8, 0], sizes = [8, 32], strides = [1, 1]} : vector<16x32xf32> to vector<8x32xf32>
    %cst_48 = arith.constant dense<0.000000e+00> : vector<8x128xf32>
    %51 = tpu.matmul %50, %21, %cst_48 {dimension_numbers = #tpu.dot_dimension_numbers<[1], [0], [0], [1], [0, 0, 1, 1], [], []>} : vector<8x32xf32>, vector<32x128xf32>, vector<8x128xf32> -> vector<8x128xf32>
    %52 = arith.addf %51, %31 : vector<8x128xf32>
    %cst_49 = arith.constant 0.000000e+00 : f32
    %53 = vector.broadcast %cst_49 : f32 to vector<8x128xf32>
    %54 = arith.maximumf %52, %53 : vector<8x128xf32>
    %cst_50 = arith.constant dense<0.000000e+00> : vector<8x32xf32>
    %55 = tpu.matmul %54, %22, %cst_50 {dimension_numbers = #tpu.dot_dimension_numbers<[1], [0], [0], [1], [0, 0, 1, 1], [], []>} : vector<8x128xf32>, vector<128x32xf32>, vector<8x32xf32> -> vector<8x32xf32>
    %56 = arith.addf %55, %34 : vector<8x32xf32>
    %cst_51 = arith.constant 0.000000e+00 : f32
    %57 = vector.broadcast %cst_51 : f32 to vector<8x32xf32>
    %58 = arith.maximumf %56, %57 : vector<8x32xf32>
    %cst_52 = arith.constant dense<0.000000e+00> : vector<8x128xf32>
    %59 = tpu.matmul %49, %19, %cst_52 {dimension_numbers = #tpu.dot_dimension_numbers<[1], [0], [0], [1], [0, 0, 1, 1], [], []>} : vector<8x32xf32>, vector<32x128xf32>, vector<8x128xf32> -> vector<8x128xf32>
    %60 = arith.addf %59, %25 : vector<8x128xf32>
    %cst_53 = arith.constant 0.000000e+00 : f32
    %61 = vector.broadcast %cst_53 : f32 to vector<8x128xf32>
    %62 = arith.maximumf %60, %61 : vector<8x128xf32>
    %cst_54 = arith.constant dense<0.000000e+00> : vector<8x32xf32>
    %63 = tpu.matmul %62, %20, %cst_54 {dimension_numbers = #tpu.dot_dimension_numbers<[1], [0], [0], [1], [0, 0, 1, 1], [], []>} : vector<8x128xf32>, vector<128x32xf32>, vector<8x32xf32> -> vector<8x32xf32>
    %64 = arith.addf %63, %28 : vector<8x32xf32>
    %cst_55 = arith.constant 0.000000e+00 : f32
    %65 = vector.broadcast %cst_55 : f32 to vector<8x32xf32>
    %66 = arith.maximumf %64, %65 : vector<8x32xf32>
    %67 = vector.extract_strided_slice %48 {offsets = [0, 0], sizes = [8, 32], strides = [1, 1]} : vector<16x32xf32> to vector<8x32xf32>
    %68 = vector.extract_strided_slice %66 {offsets = [0, 0], sizes = [4, 32], strides = [1, 1]} : vector<8x32xf32> to vector<4x32xf32>
    %69 = vector.extract_strided_slice %8 {offsets = [0, 0], sizes = [8, 8], strides = [1, 1]} : vector<16x8xf32> to vector<8x8xf32>
    %cst_56 = arith.constant dense<0.000000e+00> : vector<8x32xf32>
    %70 = tpu.matmul %69, %67, %cst_56 {dimension_numbers = #tpu.dot_dimension_numbers<[1], [0], [0], [1], [0, 0, 1, 1], [], []>} : vector<8x8xf32>, vector<8x32xf32>, vector<8x32xf32> -> vector<8x32xf32>
    %71 = vector.extract_strided_slice %9 {offsets = [0, 0], sizes = [8, 4], strides = [1, 1]} : vector<16x4xf32> to vector<8x4xf32>
    %cst_57 = arith.constant dense<0.000000e+00> : vector<8x32xf32>
    %72 = tpu.matmul %71, %68, %cst_57 {dimension_numbers = #tpu.dot_dimension_numbers<[1], [0], [0], [1], [0, 0, 1, 1], [], []>} : vector<8x4xf32>, vector<4x32xf32>, vector<8x32xf32> -> vector<8x32xf32>
    %73 = vector.extract_strided_slice %48 {offsets = [8, 0], sizes = [8, 32], strides = [1, 1]} : vector<16x32xf32> to vector<8x32xf32>
    %74 = vector.extract_strided_slice %66 {offsets = [4, 0], sizes = [4, 32], strides = [1, 1]} : vector<8x32xf32> to vector<4x32xf32>
    %75 = vector.extract_strided_slice %8 {offsets = [8, 0], sizes = [8, 8], strides = [1, 1]} : vector<16x8xf32> to vector<8x8xf32>
    %cst_58 = arith.constant dense<0.000000e+00> : vector<8x32xf32>
    %76 = tpu.matmul %75, %73, %cst_58 {dimension_numbers = #tpu.dot_dimension_numbers<[1], [0], [0], [1], [0, 0, 1, 1], [], []>} : vector<8x8xf32>, vector<8x32xf32>, vector<8x32xf32> -> vector<8x32xf32>
    %77 = vector.extract_strided_slice %9 {offsets = [8, 0], sizes = [8, 4], strides = [1, 1]} : vector<16x4xf32> to vector<8x4xf32>
    %cst_59 = arith.constant dense<0.000000e+00> : vector<8x32xf32>
    %78 = tpu.matmul %77, %74, %cst_59 {dimension_numbers = #tpu.dot_dimension_numbers<[1], [0], [0], [1], [0, 0, 1, 1], [], []>} : vector<8x4xf32>, vector<4x32xf32>, vector<8x32xf32> -> vector<8x32xf32>
    %79 = tpu.concatenate %70, %76 in 0 : vector<8x32xf32>, vector<8x32xf32> -> vector<16x32xf32>
    %80 = tpu.concatenate %72, %78 in 0 : vector<8x32xf32>, vector<8x32xf32> -> vector<16x32xf32>
    %cst_60 = arith.constant dense<0.000000e+00> : vector<8x32xf32>
    %81 = tpu.matmul %10, %58, %cst_60 {dimension_numbers = #tpu.dot_dimension_numbers<[1], [0], [0], [1], [0, 0, 1, 1], [], []>} : vector<8x8xf32>, vector<8x32xf32>, vector<8x32xf32> -> vector<8x32xf32>
    %82 = tpu.concatenate %80, %79, %48 in 1 : vector<16x32xf32>, vector<16x32xf32>, vector<16x32xf32> -> vector<16x96xf32>
    %cst_61 = arith.constant dense<0.000000e+00> : vector<16x128xf32>
    %83 = tpu.matmul %82, %11, %cst_61 {dimension_numbers = #tpu.dot_dimension_numbers<[1], [0], [0], [1], [0, 0, 1, 1], [], []>} : vector<16x96xf32>, vector<96x128xf32>, vector<16x128xf32> -> vector<16x128xf32>
    %84 = arith.addf %83, %15 : vector<16x128xf32>
    %85 = tpu.concatenate %81, %49 in 1 : vector<8x32xf32>, vector<8x32xf32> -> vector<8x64xf32>
    %cst_62 = arith.constant dense<0.000000e+00> : vector<8x128xf32>
    %86 = tpu.matmul %85, %12, %cst_62 {dimension_numbers = #tpu.dot_dimension_numbers<[1], [0], [0], [1], [0, 0, 1, 1], [], []>} : vector<8x64xf32>, vector<64x128xf32>, vector<8x128xf32> -> vector<8x128xf32>
    %87 = arith.addf %86, %18 : vector<8x128xf32>
    %c0_63 = arith.constant 0 : index
    %c0_64 = arith.constant 0 : index
    %88 = vector.load %arg19[%c0_63, %c0_64] : memref<16x32xf32, #tpu.memory_space<vmem>>, vector<16x32xf32>
    %89 = arith.mulf %84, %45 : vector<16x128xf32>
    %90 = arith.negf %89 : vector<16x128xf32>
    %91 = math.exp %90 : vector<16x128xf32>
    %cst_65 = arith.constant 1.000000e+00 : f32
    %92 = vector.broadcast %cst_65 : f32 to vector<16x128xf32>
    %93 = arith.addf %92, %91 : vector<16x128xf32>
    %94 = arith.divf %92, %93 : vector<16x128xf32>
    %95 = vector.extract_strided_slice %94 {offsets = [0, 0], sizes = [16, 32], strides = [1, 1]} : vector<16x128xf32> to vector<16x32xf32>
    %96 = vector.extract_strided_slice %94 {offsets = [0, 32], sizes = [16, 32], strides = [1, 1]} : vector<16x128xf32> to vector<16x32xf32>
    %97 = vector.extract_strided_slice %94 {offsets = [0, 64], sizes = [16, 32], strides = [1, 1]} : vector<16x128xf32> to vector<16x32xf32>
    %cst_66 = arith.constant 2.000000e+00 : f32
    %98 = vector.broadcast %cst_66 : f32 to vector<16x32xf32>
    %99 = arith.mulf %98, %97 : vector<16x32xf32>
    %cst_67 = arith.constant 1.000000e+00 : f32
    %100 = vector.broadcast %cst_67 : f32 to vector<16x32xf32>
    %101 = arith.subf %99, %100 : vector<16x32xf32>
    %102 = vector.extract_strided_slice %94 {offsets = [0, 96], sizes = [16, 32], strides = [1, 1]} : vector<16x128xf32> to vector<16x32xf32>
    %103 = arith.mulf %96, %88 : vector<16x32xf32>
    %104 = arith.mulf %95, %101 : vector<16x32xf32>
    %105 = arith.addf %103, %104 : vector<16x32xf32>
    %106 = math.tanh %105 : vector<16x32xf32>
    %107 = arith.mulf %102, %106 : vector<16x32xf32>
    %c0_68 = arith.constant 0 : index
    %c0_69 = arith.constant 0 : index
    %108 = vector.load %arg20[%c0_68, %c0_69] : memref<8x32xf32, #tpu.memory_space<vmem>>, vector<8x32xf32>
    %109 = arith.mulf %87, %47 : vector<8x128xf32>
    %110 = arith.negf %109 : vector<8x128xf32>
    %111 = math.exp %110 : vector<8x128xf32>
    %cst_70 = arith.constant 1.000000e+00 : f32
    %112 = vector.broadcast %cst_70 : f32 to vector<8x128xf32>
    %113 = arith.addf %112, %111 : vector<8x128xf32>
    %114 = arith.divf %112, %113 : vector<8x128xf32>
    %115 = vector.extract_strided_slice %114 {offsets = [0, 0], sizes = [8, 32], strides = [1, 1]} : vector<8x128xf32> to vector<8x32xf32>
    %116 = vector.extract_strided_slice %114 {offsets = [0, 32], sizes = [8, 32], strides = [1, 1]} : vector<8x128xf32> to vector<8x32xf32>
    %117 = vector.extract_strided_slice %114 {offsets = [0, 64], sizes = [8, 32], strides = [1, 1]} : vector<8x128xf32> to vector<8x32xf32>
    %cst_71 = arith.constant 2.000000e+00 : f32
    %118 = vector.broadcast %cst_71 : f32 to vector<8x32xf32>
    %119 = arith.mulf %118, %117 : vector<8x32xf32>
    %cst_72 = arith.constant 1.000000e+00 : f32
    %120 = vector.broadcast %cst_72 : f32 to vector<8x32xf32>
    %121 = arith.subf %119, %120 : vector<8x32xf32>
    %122 = vector.extract_strided_slice %114 {offsets = [0, 96], sizes = [8, 32], strides = [1, 1]} : vector<8x128xf32> to vector<8x32xf32>
    %123 = arith.mulf %116, %108 : vector<8x32xf32>
    %124 = arith.mulf %115, %121 : vector<8x32xf32>
    %125 = arith.addf %123, %124 : vector<8x32xf32>
    %126 = math.tanh %125 : vector<8x32xf32>
    %127 = arith.mulf %122, %126 : vector<8x32xf32>
    %c0_73 = arith.constant 0 : index
    %c0_74 = arith.constant 0 : index
    %128 = vector.load %arg17[%c0_73, %c0_74] : memref<16x32xf32, #tpu.memory_space<vmem>>, vector<16x32xf32>
    tpu.vector_store %arg17[%c0_73, %c0_74], %107 {strides = array<i32>} : memref<16x32xf32, #tpu.memory_space<vmem>>, vector<16x32xf32>,
    %c0_75 = arith.constant 0 : index
    %c0_76 = arith.constant 0 : index
    %129 = vector.load %arg19[%c0_75, %c0_76] : memref<16x32xf32, #tpu.memory_space<vmem>>, vector<16x32xf32>
    tpu.vector_store %arg19[%c0_75, %c0_76], %105 {strides = array<i32>} : memref<16x32xf32, #tpu.memory_space<vmem>>, vector<16x32xf32>,
    %c0_77 = arith.constant 0 : index
    %c0_78 = arith.constant 0 : index
    %130 = vector.load %arg18[%c0_77, %c0_78] : memref<8x32xf32, #tpu.memory_space<vmem>>, vector<8x32xf32>
    tpu.vector_store %arg18[%c0_77, %c0_78], %127 {strides = array<i32>} : memref<8x32xf32, #tpu.memory_space<vmem>>, vector<8x32xf32>,
    %c0_79 = arith.constant 0 : index
    %c0_80 = arith.constant 0 : index
    %131 = vector.load %arg20[%c0_79, %c0_80] : memref<8x32xf32, #tpu.memory_space<vmem>>, vector<8x32xf32>
    tpu.vector_store %arg20[%c0_79, %c0_80], %125 {strides = array<i32>} : memref<8x32xf32, #tpu.memory_space<vmem>>, vector<8x32xf32>,
    %c0_81 = arith.constant 0 : index
    %c0_82 = arith.constant 0 : index
    %132 = vector.load %arg17[%c0_81, %c0_82] : memref<16x32xf32, #tpu.memory_space<vmem>>, vector<16x32xf32>
    %c0_83 = arith.constant 0 : index
    %c0_84 = arith.constant 0 : index
    %133 = vector.load %arg18[%c0_83, %c0_84] : memref<8x32xf32, #tpu.memory_space<vmem>>, vector<8x32xf32>
    %134 = vector.extract_strided_slice %132 {offsets = [8, 0], sizes = [8, 32], strides = [1, 1]} : vector<16x32xf32> to vector<8x32xf32>
    %cst_85 = arith.constant dense<0.000000e+00> : vector<8x128xf32>
    %135 = tpu.matmul %134, %21, %cst_85 {dimension_numbers = #tpu.dot_dimension_numbers<[1], [0], [0], [1], [0, 0, 1, 1], [], []>} : vector<8x32xf32>, vector<32x128xf32>, vector<8x128xf32> -> vector<8x128xf32>
    %136 = arith.addf %135, %31 : vector<8x128xf32>
    %cst_86 = arith.constant 0.000000e+00 : f32
    %137 = vector.broadcast %cst_86 : f32 to vector<8x128xf32>
    %138 = arith.maximumf %136, %137 : vector<8x128xf32>
    %cst_87 = arith.constant dense<0.000000e+00> : vector<8x32xf32>
    %139 = tpu.matmul %138, %22, %cst_87 {dimension_numbers = #tpu.dot_dimension_numbers<[1], [0], [0], [1], [0, 0, 1, 1], [], []>} : vector<8x128xf32>, vector<128x32xf32>, vector<8x32xf32> -> vector<8x32xf32>
    %140 = arith.addf %139, %34 : vector<8x32xf32>
    %cst_88 = arith.constant 0.000000e+00 : f32
    %141 = vector.broadcast %cst_88 : f32 to vector<8x32xf32>
    %142 = arith.maximumf %140, %141 : vector<8x32xf32>
    %cst_89 = arith.constant dense<0.000000e+00> : vector<8x128xf32>
    %143 = tpu.matmul %133, %19, %cst_89 {dimension_numbers = #tpu.dot_dimension_numbers<[1], [0], [0], [1], [0, 0, 1, 1], [], []>} : vector<8x32xf32>, vector<32x128xf32>, vector<8x128xf32> -> vector<8x128xf32>
    %144 = arith.addf %143, %25 : vector<8x128xf32>
    %cst_90 = arith.constant 0.000000e+00 : f32
    %145 = vector.broadcast %cst_90 : f32 to vector<8x128xf32>
    %146 = arith.maximumf %144, %145 : vector<8x128xf32>
    %cst_91 = arith.constant dense<0.000000e+00> : vector<8x32xf32>
    %147 = tpu.matmul %146, %20, %cst_91 {dimension_numbers = #tpu.dot_dimension_numbers<[1], [0], [0], [1], [0, 0, 1, 1], [], []>} : vector<8x128xf32>, vector<128x32xf32>, vector<8x32xf32> -> vector<8x32xf32>
    %148 = arith.addf %147, %28 : vector<8x32xf32>
    %cst_92 = arith.constant 0.000000e+00 : f32
    %149 = vector.broadcast %cst_92 : f32 to vector<8x32xf32>
    %150 = arith.maximumf %148, %149 : vector<8x32xf32>
    %151 = vector.extract_strided_slice %132 {offsets = [0, 0], sizes = [8, 32], strides = [1, 1]} : vector<16x32xf32> to vector<8x32xf32>
    %152 = vector.extract_strided_slice %150 {offsets = [0, 0], sizes = [4, 32], strides = [1, 1]} : vector<8x32xf32> to vector<4x32xf32>
    %153 = vector.extract_strided_slice %8 {offsets = [0, 0], sizes = [8, 8], strides = [1, 1]} : vector<16x8xf32> to vector<8x8xf32>
    %cst_93 = arith.constant dense<0.000000e+00> : vector<8x32xf32>
    %154 = tpu.matmul %153, %151, %cst_93 {dimension_numbers = #tpu.dot_dimension_numbers<[1], [0], [0], [1], [0, 0, 1, 1], [], []>} : vector<8x8xf32>, vector<8x32xf32>, vector<8x32xf32> -> vector<8x32xf32>
    %155 = vector.extract_strided_slice %9 {offsets = [0, 0], sizes = [8, 4], strides = [1, 1]} : vector<16x4xf32> to vector<8x4xf32>
    %cst_94 = arith.constant dense<0.000000e+00> : vector<8x32xf32>
    %156 = tpu.matmul %155, %152, %cst_94 {dimension_numbers = #tpu.dot_dimension_numbers<[1], [0], [0], [1], [0, 0, 1, 1], [], []>} : vector<8x4xf32>, vector<4x32xf32>, vector<8x32xf32> -> vector<8x32xf32>
    %157 = vector.extract_strided_slice %132 {offsets = [8, 0], sizes = [8, 32], strides = [1, 1]} : vector<16x32xf32> to vector<8x32xf32>
    %158 = vector.extract_strided_slice %150 {offsets = [4, 0], sizes = [4, 32], strides = [1, 1]} : vector<8x32xf32> to vector<4x32xf32>
    %159 = vector.extract_strided_slice %8 {offsets = [8, 0], sizes = [8, 8], strides = [1, 1]} : vector<16x8xf32> to vector<8x8xf32>
    %cst_95 = arith.constant dense<0.000000e+00> : vector<8x32xf32>
    %160 = tpu.matmul %159, %157, %cst_95 {dimension_numbers = #tpu.dot_dimension_numbers<[1], [0], [0], [1], [0, 0, 1, 1], [], []>} : vector<8x8xf32>, vector<8x32xf32>, vector<8x32xf32> -> vector<8x32xf32>
    %161 = vector.extract_strided_slice %9 {offsets = [8, 0], sizes = [8, 4], strides = [1, 1]} : vector<16x4xf32> to vector<8x4xf32>
    %cst_96 = arith.constant dense<0.000000e+00> : vector<8x32xf32>
    %162 = tpu.matmul %161, %158, %cst_96 {dimension_numbers = #tpu.dot_dimension_numbers<[1], [0], [0], [1], [0, 0, 1, 1], [], []>} : vector<8x4xf32>, vector<4x32xf32>, vector<8x32xf32> -> vector<8x32xf32>
    %163 = tpu.concatenate %154, %160 in 0 : vector<8x32xf32>, vector<8x32xf32> -> vector<16x32xf32>
    %164 = tpu.concatenate %156, %162 in 0 : vector<8x32xf32>, vector<8x32xf32> -> vector<16x32xf32>
    %cst_97 = arith.constant dense<0.000000e+00> : vector<8x32xf32>
    %165 = tpu.matmul %10, %142, %cst_97 {dimension_numbers = #tpu.dot_dimension_numbers<[1], [0], [0], [1], [0, 0, 1, 1], [], []>} : vector<8x8xf32>, vector<8x32xf32>, vector<8x32xf32> -> vector<8x32xf32>
    %166 = tpu.concatenate %164, %163, %132 in 1 : vector<16x32xf32>, vector<16x32xf32>, vector<16x32xf32> -> vector<16x96xf32>
    %cst_98 = arith.constant dense<0.000000e+00> : vector<16x128xf32>
    %167 = tpu.matmul %166, %11, %cst_98 {dimension_numbers = #tpu.dot_dimension_numbers<[1], [0], [0], [1], [0, 0, 1, 1], [], []>} : vector<16x96xf32>, vector<96x128xf32>, vector<16x128xf32> -> vector<16x128xf32>
    %168 = arith.addf %167, %15 : vector<16x128xf32>
    %169 = tpu.concatenate %165, %133 in 1 : vector<8x32xf32>, vector<8x32xf32> -> vector<8x64xf32>
    %cst_99 = arith.constant dense<0.000000e+00> : vector<8x128xf32>
    %170 = tpu.matmul %169, %12, %cst_99 {dimension_numbers = #tpu.dot_dimension_numbers<[1], [0], [0], [1], [0, 0, 1, 1], [], []>} : vector<8x64xf32>, vector<64x128xf32>, vector<8x128xf32> -> vector<8x128xf32>
    %171 = arith.addf %170, %18 : vector<8x128xf32>
    %c0_100 = arith.constant 0 : index
    %c0_101 = arith.constant 0 : index
    %172 = vector.load %arg19[%c0_100, %c0_101] : memref<16x32xf32, #tpu.memory_space<vmem>>, vector<16x32xf32>
    %173 = arith.mulf %168, %45 : vector<16x128xf32>
    %174 = arith.negf %173 : vector<16x128xf32>
    %175 = math.exp %174 : vector<16x128xf32>
    %cst_102 = arith.constant 1.000000e+00 : f32
    %176 = vector.broadcast %cst_102 : f32 to vector<16x128xf32>
    %177 = arith.addf %176, %175 : vector<16x128xf32>
    %178 = arith.divf %176, %177 : vector<16x128xf32>
    %179 = vector.extract_strided_slice %178 {offsets = [0, 0], sizes = [16, 32], strides = [1, 1]} : vector<16x128xf32> to vector<16x32xf32>
    %180 = vector.extract_strided_slice %178 {offsets = [0, 32], sizes = [16, 32], strides = [1, 1]} : vector<16x128xf32> to vector<16x32xf32>
    %181 = vector.extract_strided_slice %178 {offsets = [0, 64], sizes = [16, 32], strides = [1, 1]} : vector<16x128xf32> to vector<16x32xf32>
    %cst_103 = arith.constant 2.000000e+00 : f32
    %182 = vector.broadcast %cst_103 : f32 to vector<16x32xf32>
    %183 = arith.mulf %182, %181 : vector<16x32xf32>
    %cst_104 = arith.constant 1.000000e+00 : f32
    %184 = vector.broadcast %cst_104 : f32 to vector<16x32xf32>
    %185 = arith.subf %183, %184 : vector<16x32xf32>
    %186 = vector.extract_strided_slice %178 {offsets = [0, 96], sizes = [16, 32], strides = [1, 1]} : vector<16x128xf32> to vector<16x32xf32>
    %187 = arith.mulf %180, %172 : vector<16x32xf32>
    %188 = arith.mulf %179, %185 : vector<16x32xf32>
    %189 = arith.addf %187, %188 : vector<16x32xf32>
    %190 = math.tanh %189 : vector<16x32xf32>
    %191 = arith.mulf %186, %190 : vector<16x32xf32>
    %c0_105 = arith.constant 0 : index
    %c0_106 = arith.constant 0 : index
    %192 = vector.load %arg20[%c0_105, %c0_106] : memref<8x32xf32, #tpu.memory_space<vmem>>, vector<8x32xf32>
    %193 = arith.mulf %171, %47 : vector<8x128xf32>
    %194 = arith.negf %193 : vector<8x128xf32>
    %195 = math.exp %194 : vector<8x128xf32>
    %cst_107 = arith.constant 1.000000e+00 : f32
    %196 = vector.broadcast %cst_107 : f32 to vector<8x128xf32>
    %197 = arith.addf %196, %195 : vector<8x128xf32>
    %198 = arith.divf %196, %197 : vector<8x128xf32>
    %199 = vector.extract_strided_slice %198 {offsets = [0, 0], sizes = [8, 32], strides = [1, 1]} : vector<8x128xf32> to vector<8x32xf32>
    %200 = vector.extract_strided_slice %198 {offsets = [0, 32], sizes = [8, 32], strides = [1, 1]} : vector<8x128xf32> to vector<8x32xf32>
    %201 = vector.extract_strided_slice %198 {offsets = [0, 64], sizes = [8, 32], strides = [1, 1]} : vector<8x128xf32> to vector<8x32xf32>
    %cst_108 = arith.constant 2.000000e+00 : f32
    %202 = vector.broadcast %cst_108 : f32 to vector<8x32xf32>
    %203 = arith.mulf %202, %201 : vector<8x32xf32>
    %cst_109 = arith.constant 1.000000e+00 : f32
    %204 = vector.broadcast %cst_109 : f32 to vector<8x32xf32>
    %205 = arith.subf %203, %204 : vector<8x32xf32>
    %206 = vector.extract_strided_slice %198 {offsets = [0, 96], sizes = [8, 32], strides = [1, 1]} : vector<8x128xf32> to vector<8x32xf32>
    %207 = arith.mulf %200, %192 : vector<8x32xf32>
    %208 = arith.mulf %199, %205 : vector<8x32xf32>
    %209 = arith.addf %207, %208 : vector<8x32xf32>
    %210 = math.tanh %209 : vector<8x32xf32>
    %211 = arith.mulf %206, %210 : vector<8x32xf32>
    %c0_110 = arith.constant 0 : index
    %c0_111 = arith.constant 0 : index
    %212 = vector.load %arg17[%c0_110, %c0_111] : memref<16x32xf32, #tpu.memory_space<vmem>>, vector<16x32xf32>
    tpu.vector_store %arg17[%c0_110, %c0_111], %191 {strides = array<i32>} : memref<16x32xf32, #tpu.memory_space<vmem>>, vector<16x32xf32>,
    %c0_112 = arith.constant 0 : index
    %c0_113 = arith.constant 0 : index
    %213 = vector.load %arg19[%c0_112, %c0_113] : memref<16x32xf32, #tpu.memory_space<vmem>>, vector<16x32xf32>
    tpu.vector_store %arg19[%c0_112, %c0_113], %189 {strides = array<i32>} : memref<16x32xf32, #tpu.memory_space<vmem>>, vector<16x32xf32>,
    %c0_114 = arith.constant 0 : index
    %c0_115 = arith.constant 0 : index
    %214 = vector.load %arg18[%c0_114, %c0_115] : memref<8x32xf32, #tpu.memory_space<vmem>>, vector<8x32xf32>
    tpu.vector_store %arg18[%c0_114, %c0_115], %211 {strides = array<i32>} : memref<8x32xf32, #tpu.memory_space<vmem>>, vector<8x32xf32>,
    %c0_116 = arith.constant 0 : index
    %c0_117 = arith.constant 0 : index
    %215 = vector.load %arg20[%c0_116, %c0_117] : memref<8x32xf32, #tpu.memory_space<vmem>>, vector<8x32xf32>
    tpu.vector_store %arg20[%c0_116, %c0_117], %209 {strides = array<i32>} : memref<8x32xf32, #tpu.memory_space<vmem>>, vector<8x32xf32>,
    %c0_118 = arith.constant 0 : index
    %c0_119 = arith.constant 0 : index
    %216 = vector.load %arg17[%c0_118, %c0_119] : memref<16x32xf32, #tpu.memory_space<vmem>>, vector<16x32xf32>
    %c0_120 = arith.constant 0 : index
    %c0_121 = arith.constant 0 : index
    %217 = vector.load %arg18[%c0_120, %c0_121] : memref<8x32xf32, #tpu.memory_space<vmem>>, vector<8x32xf32>
    %218 = vector.extract_strided_slice %216 {offsets = [8, 0], sizes = [8, 32], strides = [1, 1]} : vector<16x32xf32> to vector<8x32xf32>
    %cst_122 = arith.constant dense<0.000000e+00> : vector<8x128xf32>
    %219 = tpu.matmul %218, %21, %cst_122 {dimension_numbers = #tpu.dot_dimension_numbers<[1], [0], [0], [1], [0, 0, 1, 1], [], []>} : vector<8x32xf32>, vector<32x128xf32>, vector<8x128xf32> -> vector<8x128xf32>
    %220 = arith.addf %219, %31 : vector<8x128xf32>
    %cst_123 = arith.constant 0.000000e+00 : f32
    %221 = vector.broadcast %cst_123 : f32 to vector<8x128xf32>
    %222 = arith.maximumf %220, %221 : vector<8x128xf32>
    %cst_124 = arith.constant dense<0.000000e+00> : vector<8x32xf32>
    %223 = tpu.matmul %222, %22, %cst_124 {dimension_numbers = #tpu.dot_dimension_numbers<[1], [0], [0], [1], [0, 0, 1, 1], [], []>} : vector<8x128xf32>, vector<128x32xf32>, vector<8x32xf32> -> vector<8x32xf32>
    %224 = arith.addf %223, %34 : vector<8x32xf32>
    %cst_125 = arith.constant 0.000000e+00 : f32
    %225 = vector.broadcast %cst_125 : f32 to vector<8x32xf32>
    %226 = arith.maximumf %224, %225 : vector<8x32xf32>
    %cst_126 = arith.constant dense<0.000000e+00> : vector<8x128xf32>
    %227 = tpu.matmul %217, %19, %cst_126 {dimension_numbers = #tpu.dot_dimension_numbers<[1], [0], [0], [1], [0, 0, 1, 1], [], []>} : vector<8x32xf32>, vector<32x128xf32>, vector<8x128xf32> -> vector<8x128xf32>
    %228 = arith.addf %227, %25 : vector<8x128xf32>
    %cst_127 = arith.constant 0.000000e+00 : f32
    %229 = vector.broadcast %cst_127 : f32 to vector<8x128xf32>
    %230 = arith.maximumf %228, %229 : vector<8x128xf32>
    %cst_128 = arith.constant dense<0.000000e+00> : vector<8x32xf32>
    %231 = tpu.matmul %230, %20, %cst_128 {dimension_numbers = #tpu.dot_dimension_numbers<[1], [0], [0], [1], [0, 0, 1, 1], [], []>} : vector<8x128xf32>, vector<128x32xf32>, vector<8x32xf32> -> vector<8x32xf32>
    %232 = arith.addf %231, %28 : vector<8x32xf32>
    %cst_129 = arith.constant 0.000000e+00 : f32
    %233 = vector.broadcast %cst_129 : f32 to vector<8x32xf32>
    %234 = arith.maximumf %232, %233 : vector<8x32xf32>
    %235 = vector.extract_strided_slice %216 {offsets = [0, 0], sizes = [8, 32], strides = [1, 1]} : vector<16x32xf32> to vector<8x32xf32>
    %236 = vector.extract_strided_slice %234 {offsets = [0, 0], sizes = [4, 32], strides = [1, 1]} : vector<8x32xf32> to vector<4x32xf32>
    %237 = vector.extract_strided_slice %8 {offsets = [0, 0], sizes = [8, 8], strides = [1, 1]} : vector<16x8xf32> to vector<8x8xf32>
    %cst_130 = arith.constant dense<0.000000e+00> : vector<8x32xf32>
    %238 = tpu.matmul %237, %235, %cst_130 {dimension_numbers = #tpu.dot_dimension_numbers<[1], [0], [0], [1], [0, 0, 1, 1], [], []>} : vector<8x8xf32>, vector<8x32xf32>, vector<8x32xf32> -> vector<8x32xf32>
    %239 = vector.extract_strided_slice %9 {offsets = [0, 0], sizes = [8, 4], strides = [1, 1]} : vector<16x4xf32> to vector<8x4xf32>
    %cst_131 = arith.constant dense<0.000000e+00> : vector<8x32xf32>
    %240 = tpu.matmul %239, %236, %cst_131 {dimension_numbers = #tpu.dot_dimension_numbers<[1], [0], [0], [1], [0, 0, 1, 1], [], []>} : vector<8x4xf32>, vector<4x32xf32>, vector<8x32xf32> -> vector<8x32xf32>
    %241 = vector.extract_strided_slice %216 {offsets = [8, 0], sizes = [8, 32], strides = [1, 1]} : vector<16x32xf32> to vector<8x32xf32>
    %242 = vector.extract_strided_slice %234 {offsets = [4, 0], sizes = [4, 32], strides = [1, 1]} : vector<8x32xf32> to vector<4x32xf32>
    %243 = vector.extract_strided_slice %8 {offsets = [8, 0], sizes = [8, 8], strides = [1, 1]} : vector<16x8xf32> to vector<8x8xf32>
    %cst_132 = arith.constant dense<0.000000e+00> : vector<8x32xf32>
    %244 = tpu.matmul %243, %241, %cst_132 {dimension_numbers = #tpu.dot_dimension_numbers<[1], [0], [0], [1], [0, 0, 1, 1], [], []>} : vector<8x8xf32>, vector<8x32xf32>, vector<8x32xf32> -> vector<8x32xf32>
    %245 = vector.extract_strided_slice %9 {offsets = [8, 0], sizes = [8, 4], strides = [1, 1]} : vector<16x4xf32> to vector<8x4xf32>
    %cst_133 = arith.constant dense<0.000000e+00> : vector<8x32xf32>
    %246 = tpu.matmul %245, %242, %cst_133 {dimension_numbers = #tpu.dot_dimension_numbers<[1], [0], [0], [1], [0, 0, 1, 1], [], []>} : vector<8x4xf32>, vector<4x32xf32>, vector<8x32xf32> -> vector<8x32xf32>
    %247 = tpu.concatenate %238, %244 in 0 : vector<8x32xf32>, vector<8x32xf32> -> vector<16x32xf32>
    %248 = tpu.concatenate %240, %246 in 0 : vector<8x32xf32>, vector<8x32xf32> -> vector<16x32xf32>
    %cst_134 = arith.constant dense<0.000000e+00> : vector<8x32xf32>
    %249 = tpu.matmul %10, %226, %cst_134 {dimension_numbers = #tpu.dot_dimension_numbers<[1], [0], [0], [1], [0, 0, 1, 1], [], []>} : vector<8x8xf32>, vector<8x32xf32>, vector<8x32xf32> -> vector<8x32xf32>
    %250 = tpu.concatenate %248, %247, %216 in 1 : vector<16x32xf32>, vector<16x32xf32>, vector<16x32xf32> -> vector<16x96xf32>
    %cst_135 = arith.constant dense<0.000000e+00> : vector<16x128xf32>
    %251 = tpu.matmul %250, %11, %cst_135 {dimension_numbers = #tpu.dot_dimension_numbers<[1], [0], [0], [1], [0, 0, 1, 1], [], []>} : vector<16x96xf32>, vector<96x128xf32>, vector<16x128xf32> -> vector<16x128xf32>
    %252 = arith.addf %251, %15 : vector<16x128xf32>
    %253 = tpu.concatenate %249, %217 in 1 : vector<8x32xf32>, vector<8x32xf32> -> vector<8x64xf32>
    %cst_136 = arith.constant dense<0.000000e+00> : vector<8x128xf32>
    %254 = tpu.matmul %253, %12, %cst_136 {dimension_numbers = #tpu.dot_dimension_numbers<[1], [0], [0], [1], [0, 0, 1, 1], [], []>} : vector<8x64xf32>, vector<64x128xf32>, vector<8x128xf32> -> vector<8x128xf32>
    %255 = arith.addf %254, %18 : vector<8x128xf32>
    %c0_137 = arith.constant 0 : index
    %c0_138 = arith.constant 0 : index
    %256 = vector.load %arg19[%c0_137, %c0_138] : memref<16x32xf32, #tpu.memory_space<vmem>>, vector<16x32xf32>
    %257 = arith.mulf %252, %45 : vector<16x128xf32>
    %258 = arith.negf %257 : vector<16x128xf32>
    %259 = math.exp %258 : vector<16x128xf32>
    %cst_139 = arith.constant 1.000000e+00 : f32
    %260 = vector.broadcast %cst_139 : f32 to vector<16x128xf32>
    %261 = arith.addf %260, %259 : vector<16x128xf32>
    %262 = arith.divf %260, %261 : vector<16x128xf32>
    %263 = vector.extract_strided_slice %262 {offsets = [0, 0], sizes = [16, 32], strides = [1, 1]} : vector<16x128xf32> to vector<16x32xf32>
    %264 = vector.extract_strided_slice %262 {offsets = [0, 32], sizes = [16, 32], strides = [1, 1]} : vector<16x128xf32> to vector<16x32xf32>
    %265 = vector.extract_strided_slice %262 {offsets = [0, 64], sizes = [16, 32], strides = [1, 1]} : vector<16x128xf32> to vector<16x32xf32>
    %cst_140 = arith.constant 2.000000e+00 : f32
    %266 = vector.broadcast %cst_140 : f32 to vector<16x32xf32>
    %267 = arith.mulf %266, %265 : vector<16x32xf32>
    %cst_141 = arith.constant 1.000000e+00 : f32
    %268 = vector.broadcast %cst_141 : f32 to vector<16x32xf32>
    %269 = arith.subf %267, %268 : vector<16x32xf32>
    %270 = vector.extract_strided_slice %262 {offsets = [0, 96], sizes = [16, 32], strides = [1, 1]} : vector<16x128xf32> to vector<16x32xf32>
    %271 = arith.mulf %264, %256 : vector<16x32xf32>
    %272 = arith.mulf %263, %269 : vector<16x32xf32>
    %273 = arith.addf %271, %272 : vector<16x32xf32>
    %274 = math.tanh %273 : vector<16x32xf32>
    %275 = arith.mulf %270, %274 : vector<16x32xf32>
    %c0_142 = arith.constant 0 : index
    %c0_143 = arith.constant 0 : index
    %276 = vector.load %arg20[%c0_142, %c0_143] : memref<8x32xf32, #tpu.memory_space<vmem>>, vector<8x32xf32>
    %277 = arith.mulf %255, %47 : vector<8x128xf32>
    %278 = arith.negf %277 : vector<8x128xf32>
    %279 = math.exp %278 : vector<8x128xf32>
    %cst_144 = arith.constant 1.000000e+00 : f32
    %280 = vector.broadcast %cst_144 : f32 to vector<8x128xf32>
    %281 = arith.addf %280, %279 : vector<8x128xf32>
    %282 = arith.divf %280, %281 : vector<8x128xf32>
    %283 = vector.extract_strided_slice %282 {offsets = [0, 0], sizes = [8, 32], strides = [1, 1]} : vector<8x128xf32> to vector<8x32xf32>
    %284 = vector.extract_strided_slice %282 {offsets = [0, 32], sizes = [8, 32], strides = [1, 1]} : vector<8x128xf32> to vector<8x32xf32>
    %285 = vector.extract_strided_slice %282 {offsets = [0, 64], sizes = [8, 32], strides = [1, 1]} : vector<8x128xf32> to vector<8x32xf32>
    %cst_145 = arith.constant 2.000000e+00 : f32
    %286 = vector.broadcast %cst_145 : f32 to vector<8x32xf32>
    %287 = arith.mulf %286, %285 : vector<8x32xf32>
    %cst_146 = arith.constant 1.000000e+00 : f32
    %288 = vector.broadcast %cst_146 : f32 to vector<8x32xf32>
    %289 = arith.subf %287, %288 : vector<8x32xf32>
    %290 = vector.extract_strided_slice %282 {offsets = [0, 96], sizes = [8, 32], strides = [1, 1]} : vector<8x128xf32> to vector<8x32xf32>
    %291 = arith.mulf %284, %276 : vector<8x32xf32>
    %292 = arith.mulf %283, %289 : vector<8x32xf32>
    %293 = arith.addf %291, %292 : vector<8x32xf32>
    %294 = math.tanh %293 : vector<8x32xf32>
    %295 = arith.mulf %290, %294 : vector<8x32xf32>
    %c0_147 = arith.constant 0 : index
    %c0_148 = arith.constant 0 : index
    %296 = vector.load %arg17[%c0_147, %c0_148] : memref<16x32xf32, #tpu.memory_space<vmem>>, vector<16x32xf32>
    tpu.vector_store %arg17[%c0_147, %c0_148], %275 {strides = array<i32>} : memref<16x32xf32, #tpu.memory_space<vmem>>, vector<16x32xf32>,
    %c0_149 = arith.constant 0 : index
    %c0_150 = arith.constant 0 : index
    %297 = vector.load %arg19[%c0_149, %c0_150] : memref<16x32xf32, #tpu.memory_space<vmem>>, vector<16x32xf32>
    tpu.vector_store %arg19[%c0_149, %c0_150], %273 {strides = array<i32>} : memref<16x32xf32, #tpu.memory_space<vmem>>, vector<16x32xf32>,
    %c0_151 = arith.constant 0 : index
    %c0_152 = arith.constant 0 : index
    %298 = vector.load %arg18[%c0_151, %c0_152] : memref<8x32xf32, #tpu.memory_space<vmem>>, vector<8x32xf32>
    tpu.vector_store %arg18[%c0_151, %c0_152], %295 {strides = array<i32>} : memref<8x32xf32, #tpu.memory_space<vmem>>, vector<8x32xf32>,
    %c0_153 = arith.constant 0 : index
    %c0_154 = arith.constant 0 : index
    %299 = vector.load %arg20[%c0_153, %c0_154] : memref<8x32xf32, #tpu.memory_space<vmem>>, vector<8x32xf32>
    tpu.vector_store %arg20[%c0_153, %c0_154], %293 {strides = array<i32>} : memref<8x32xf32, #tpu.memory_space<vmem>>, vector<8x32xf32>,
    %c0_155 = arith.constant 0 : index
    %c0_156 = arith.constant 0 : index
    %300 = vector.load %arg17[%c0_155, %c0_156] : memref<16x32xf32, #tpu.memory_space<vmem>>, vector<16x32xf32>
    %c0_157 = arith.constant 0 : index
    %c0_158 = arith.constant 0 : index
    %301 = vector.load %arg18[%c0_157, %c0_158] : memref<8x32xf32, #tpu.memory_space<vmem>>, vector<8x32xf32>
    %302 = vector.extract_strided_slice %300 {offsets = [8, 0], sizes = [8, 32], strides = [1, 1]} : vector<16x32xf32> to vector<8x32xf32>
    %cst_159 = arith.constant dense<0.000000e+00> : vector<8x128xf32>
    %303 = tpu.matmul %302, %21, %cst_159 {dimension_numbers = #tpu.dot_dimension_numbers<[1], [0], [0], [1], [0, 0, 1, 1], [], []>} : vector<8x32xf32>, vector<32x128xf32>, vector<8x128xf32> -> vector<8x128xf32>
    %304 = arith.addf %303, %31 : vector<8x128xf32>
    %cst_160 = arith.constant 0.000000e+00 : f32
    %305 = vector.broadcast %cst_160 : f32 to vector<8x128xf32>
    %306 = arith.maximumf %304, %305 : vector<8x128xf32>
    %cst_161 = arith.constant dense<0.000000e+00> : vector<8x32xf32>
    %307 = tpu.matmul %306, %22, %cst_161 {dimension_numbers = #tpu.dot_dimension_numbers<[1], [0], [0], [1], [0, 0, 1, 1], [], []>} : vector<8x128xf32>, vector<128x32xf32>, vector<8x32xf32> -> vector<8x32xf32>
    %308 = arith.addf %307, %34 : vector<8x32xf32>
    %cst_162 = arith.constant 0.000000e+00 : f32
    %309 = vector.broadcast %cst_162 : f32 to vector<8x32xf32>
    %310 = arith.maximumf %308, %309 : vector<8x32xf32>
    %cst_163 = arith.constant dense<0.000000e+00> : vector<8x128xf32>
    %311 = tpu.matmul %301, %19, %cst_163 {dimension_numbers = #tpu.dot_dimension_numbers<[1], [0], [0], [1], [0, 0, 1, 1], [], []>} : vector<8x32xf32>, vector<32x128xf32>, vector<8x128xf32> -> vector<8x128xf32>
    %312 = arith.addf %311, %25 : vector<8x128xf32>
    %cst_164 = arith.constant 0.000000e+00 : f32
    %313 = vector.broadcast %cst_164 : f32 to vector<8x128xf32>
    %314 = arith.maximumf %312, %313 : vector<8x128xf32>
    %cst_165 = arith.constant dense<0.000000e+00> : vector<8x32xf32>
    %315 = tpu.matmul %314, %20, %cst_165 {dimension_numbers = #tpu.dot_dimension_numbers<[1], [0], [0], [1], [0, 0, 1, 1], [], []>} : vector<8x128xf32>, vector<128x32xf32>, vector<8x32xf32> -> vector<8x32xf32>
    %316 = arith.addf %315, %28 : vector<8x32xf32>
    %cst_166 = arith.constant 0.000000e+00 : f32
    %317 = vector.broadcast %cst_166 : f32 to vector<8x32xf32>
    %318 = arith.maximumf %316, %317 : vector<8x32xf32>
    %319 = vector.extract_strided_slice %300 {offsets = [0, 0], sizes = [8, 32], strides = [1, 1]} : vector<16x32xf32> to vector<8x32xf32>
    %320 = vector.extract_strided_slice %318 {offsets = [0, 0], sizes = [4, 32], strides = [1, 1]} : vector<8x32xf32> to vector<4x32xf32>
    %321 = vector.extract_strided_slice %8 {offsets = [0, 0], sizes = [8, 8], strides = [1, 1]} : vector<16x8xf32> to vector<8x8xf32>
    %cst_167 = arith.constant dense<0.000000e+00> : vector<8x32xf32>
    %322 = tpu.matmul %321, %319, %cst_167 {dimension_numbers = #tpu.dot_dimension_numbers<[1], [0], [0], [1], [0, 0, 1, 1], [], []>} : vector<8x8xf32>, vector<8x32xf32>, vector<8x32xf32> -> vector<8x32xf32>
    %323 = vector.extract_strided_slice %9 {offsets = [0, 0], sizes = [8, 4], strides = [1, 1]} : vector<16x4xf32> to vector<8x4xf32>
    %cst_168 = arith.constant dense<0.000000e+00> : vector<8x32xf32>
    %324 = tpu.matmul %323, %320, %cst_168 {dimension_numbers = #tpu.dot_dimension_numbers<[1], [0], [0], [1], [0, 0, 1, 1], [], []>} : vector<8x4xf32>, vector<4x32xf32>, vector<8x32xf32> -> vector<8x32xf32>
    %325 = vector.extract_strided_slice %300 {offsets = [8, 0], sizes = [8, 32], strides = [1, 1]} : vector<16x32xf32> to vector<8x32xf32>
    %326 = vector.extract_strided_slice %318 {offsets = [4, 0], sizes = [4, 32], strides = [1, 1]} : vector<8x32xf32> to vector<4x32xf32>
    %327 = vector.extract_strided_slice %8 {offsets = [8, 0], sizes = [8, 8], strides = [1, 1]} : vector<16x8xf32> to vector<8x8xf32>
    %cst_169 = arith.constant dense<0.000000e+00> : vector<8x32xf32>
    %328 = tpu.matmul %327, %325, %cst_169 {dimension_numbers = #tpu.dot_dimension_numbers<[1], [0], [0], [1], [0, 0, 1, 1], [], []>} : vector<8x8xf32>, vector<8x32xf32>, vector<8x32xf32> -> vector<8x32xf32>
    %329 = vector.extract_strided_slice %9 {offsets = [8, 0], sizes = [8, 4], strides = [1, 1]} : vector<16x4xf32> to vector<8x4xf32>
    %cst_170 = arith.constant dense<0.000000e+00> : vector<8x32xf32>
    %330 = tpu.matmul %329, %326, %cst_170 {dimension_numbers = #tpu.dot_dimension_numbers<[1], [0], [0], [1], [0, 0, 1, 1], [], []>} : vector<8x4xf32>, vector<4x32xf32>, vector<8x32xf32> -> vector<8x32xf32>
    %331 = tpu.concatenate %322, %328 in 0 : vector<8x32xf32>, vector<8x32xf32> -> vector<16x32xf32>
    %332 = tpu.concatenate %324, %330 in 0 : vector<8x32xf32>, vector<8x32xf32> -> vector<16x32xf32>
    %cst_171 = arith.constant dense<0.000000e+00> : vector<8x32xf32>
    %333 = tpu.matmul %10, %310, %cst_171 {dimension_numbers = #tpu.dot_dimension_numbers<[1], [0], [0], [1], [0, 0, 1, 1], [], []>} : vector<8x8xf32>, vector<8x32xf32>, vector<8x32xf32> -> vector<8x32xf32>
    %334 = tpu.concatenate %332, %331, %300 in 1 : vector<16x32xf32>, vector<16x32xf32>, vector<16x32xf32> -> vector<16x96xf32>
    %cst_172 = arith.constant dense<0.000000e+00> : vector<16x128xf32>
    %335 = tpu.matmul %334, %11, %cst_172 {dimension_numbers = #tpu.dot_dimension_numbers<[1], [0], [0], [1], [0, 0, 1, 1], [], []>} : vector<16x96xf32>, vector<96x128xf32>, vector<16x128xf32> -> vector<16x128xf32>
    %336 = arith.addf %335, %15 : vector<16x128xf32>
    %337 = tpu.concatenate %333, %301 in 1 : vector<8x32xf32>, vector<8x32xf32> -> vector<8x64xf32>
    %cst_173 = arith.constant dense<0.000000e+00> : vector<8x128xf32>
    %338 = tpu.matmul %337, %12, %cst_173 {dimension_numbers = #tpu.dot_dimension_numbers<[1], [0], [0], [1], [0, 0, 1, 1], [], []>} : vector<8x64xf32>, vector<64x128xf32>, vector<8x128xf32> -> vector<8x128xf32>
    %339 = arith.addf %338, %18 : vector<8x128xf32>
    %c0_174 = arith.constant 0 : index
    %c0_175 = arith.constant 0 : index
    %340 = vector.load %arg19[%c0_174, %c0_175] : memref<16x32xf32, #tpu.memory_space<vmem>>, vector<16x32xf32>
    %341 = arith.mulf %336, %45 : vector<16x128xf32>
    %342 = arith.negf %341 : vector<16x128xf32>
    %343 = math.exp %342 : vector<16x128xf32>
    %cst_176 = arith.constant 1.000000e+00 : f32
    %344 = vector.broadcast %cst_176 : f32 to vector<16x128xf32>
    %345 = arith.addf %344, %343 : vector<16x128xf32>
    %346 = arith.divf %344, %345 : vector<16x128xf32>
    %347 = vector.extract_strided_slice %346 {offsets = [0, 0], sizes = [16, 32], strides = [1, 1]} : vector<16x128xf32> to vector<16x32xf32>
    %348 = vector.extract_strided_slice %346 {offsets = [0, 32], sizes = [16, 32], strides = [1, 1]} : vector<16x128xf32> to vector<16x32xf32>
    %349 = vector.extract_strided_slice %346 {offsets = [0, 64], sizes = [16, 32], strides = [1, 1]} : vector<16x128xf32> to vector<16x32xf32>
    %cst_177 = arith.constant 2.000000e+00 : f32
    %350 = vector.broadcast %cst_177 : f32 to vector<16x32xf32>
    %351 = arith.mulf %350, %349 : vector<16x32xf32>
    %cst_178 = arith.constant 1.000000e+00 : f32
    %352 = vector.broadcast %cst_178 : f32 to vector<16x32xf32>
    %353 = arith.subf %351, %352 : vector<16x32xf32>
    %354 = vector.extract_strided_slice %346 {offsets = [0, 96], sizes = [16, 32], strides = [1, 1]} : vector<16x128xf32> to vector<16x32xf32>
    %355 = arith.mulf %348, %340 : vector<16x32xf32>
    %356 = arith.mulf %347, %353 : vector<16x32xf32>
    %357 = arith.addf %355, %356 : vector<16x32xf32>
    %358 = math.tanh %357 : vector<16x32xf32>
    %359 = arith.mulf %354, %358 : vector<16x32xf32>
    %c0_179 = arith.constant 0 : index
    %c0_180 = arith.constant 0 : index
    %360 = vector.load %arg20[%c0_179, %c0_180] : memref<8x32xf32, #tpu.memory_space<vmem>>, vector<8x32xf32>
    %361 = arith.mulf %339, %47 : vector<8x128xf32>
    %362 = arith.negf %361 : vector<8x128xf32>
    %363 = math.exp %362 : vector<8x128xf32>
    %cst_181 = arith.constant 1.000000e+00 : f32
    %364 = vector.broadcast %cst_181 : f32 to vector<8x128xf32>
    %365 = arith.addf %364, %363 : vector<8x128xf32>
    %366 = arith.divf %364, %365 : vector<8x128xf32>
    %367 = vector.extract_strided_slice %366 {offsets = [0, 0], sizes = [8, 32], strides = [1, 1]} : vector<8x128xf32> to vector<8x32xf32>
    %368 = vector.extract_strided_slice %366 {offsets = [0, 32], sizes = [8, 32], strides = [1, 1]} : vector<8x128xf32> to vector<8x32xf32>
    %369 = vector.extract_strided_slice %366 {offsets = [0, 64], sizes = [8, 32], strides = [1, 1]} : vector<8x128xf32> to vector<8x32xf32>
    %cst_182 = arith.constant 2.000000e+00 : f32
    %370 = vector.broadcast %cst_182 : f32 to vector<8x32xf32>
    %371 = arith.mulf %370, %369 : vector<8x32xf32>
    %cst_183 = arith.constant 1.000000e+00 : f32
    %372 = vector.broadcast %cst_183 : f32 to vector<8x32xf32>
    %373 = arith.subf %371, %372 : vector<8x32xf32>
    %374 = vector.extract_strided_slice %366 {offsets = [0, 96], sizes = [8, 32], strides = [1, 1]} : vector<8x128xf32> to vector<8x32xf32>
    %375 = arith.mulf %368, %360 : vector<8x32xf32>
    %376 = arith.mulf %367, %373 : vector<8x32xf32>
    %377 = arith.addf %375, %376 : vector<8x32xf32>
    %378 = math.tanh %377 : vector<8x32xf32>
    %379 = arith.mulf %374, %378 : vector<8x32xf32>
    %c0_184 = arith.constant 0 : index
    %c0_185 = arith.constant 0 : index
    %380 = vector.load %arg17[%c0_184, %c0_185] : memref<16x32xf32, #tpu.memory_space<vmem>>, vector<16x32xf32>
    tpu.vector_store %arg17[%c0_184, %c0_185], %359 {strides = array<i32>} : memref<16x32xf32, #tpu.memory_space<vmem>>, vector<16x32xf32>,
    %c0_186 = arith.constant 0 : index
    %c0_187 = arith.constant 0 : index
    %381 = vector.load %arg19[%c0_186, %c0_187] : memref<16x32xf32, #tpu.memory_space<vmem>>, vector<16x32xf32>
    tpu.vector_store %arg19[%c0_186, %c0_187], %357 {strides = array<i32>} : memref<16x32xf32, #tpu.memory_space<vmem>>, vector<16x32xf32>,
    %c0_188 = arith.constant 0 : index
    %c0_189 = arith.constant 0 : index
    %382 = vector.load %arg18[%c0_188, %c0_189] : memref<8x32xf32, #tpu.memory_space<vmem>>, vector<8x32xf32>
    tpu.vector_store %arg18[%c0_188, %c0_189], %379 {strides = array<i32>} : memref<8x32xf32, #tpu.memory_space<vmem>>, vector<8x32xf32>,
    %c0_190 = arith.constant 0 : index
    %c0_191 = arith.constant 0 : index
    %383 = vector.load %arg20[%c0_190, %c0_191] : memref<8x32xf32, #tpu.memory_space<vmem>>, vector<8x32xf32>
    tpu.vector_store %arg20[%c0_190, %c0_191], %377 {strides = array<i32>} : memref<8x32xf32, #tpu.memory_space<vmem>>, vector<8x32xf32>,
    %c0_192 = arith.constant 0 : index
    %c0_193 = arith.constant 0 : index
    %384 = vector.load %arg17[%c0_192, %c0_193] : memref<16x32xf32, #tpu.memory_space<vmem>>, vector<16x32xf32>
    %c0_194 = arith.constant 0 : index
    %c0_195 = arith.constant 0 : index
    %385 = vector.load %arg18[%c0_194, %c0_195] : memref<8x32xf32, #tpu.memory_space<vmem>>, vector<8x32xf32>
    %386 = vector.extract_strided_slice %384 {offsets = [8, 0], sizes = [8, 32], strides = [1, 1]} : vector<16x32xf32> to vector<8x32xf32>
    %cst_196 = arith.constant dense<0.000000e+00> : vector<8x128xf32>
    %387 = tpu.matmul %386, %21, %cst_196 {dimension_numbers = #tpu.dot_dimension_numbers<[1], [0], [0], [1], [0, 0, 1, 1], [], []>} : vector<8x32xf32>, vector<32x128xf32>, vector<8x128xf32> -> vector<8x128xf32>
    %388 = arith.addf %387, %31 : vector<8x128xf32>
    %cst_197 = arith.constant 0.000000e+00 : f32
    %389 = vector.broadcast %cst_197 : f32 to vector<8x128xf32>
    %390 = arith.maximumf %388, %389 : vector<8x128xf32>
    %cst_198 = arith.constant dense<0.000000e+00> : vector<8x32xf32>
    %391 = tpu.matmul %390, %22, %cst_198 {dimension_numbers = #tpu.dot_dimension_numbers<[1], [0], [0], [1], [0, 0, 1, 1], [], []>} : vector<8x128xf32>, vector<128x32xf32>, vector<8x32xf32> -> vector<8x32xf32>
    %392 = arith.addf %391, %34 : vector<8x32xf32>
    %cst_199 = arith.constant 0.000000e+00 : f32
    %393 = vector.broadcast %cst_199 : f32 to vector<8x32xf32>
    %394 = arith.maximumf %392, %393 : vector<8x32xf32>
    %cst_200 = arith.constant dense<0.000000e+00> : vector<8x128xf32>
    %395 = tpu.matmul %385, %19, %cst_200 {dimension_numbers = #tpu.dot_dimension_numbers<[1], [0], [0], [1], [0, 0, 1, 1], [], []>} : vector<8x32xf32>, vector<32x128xf32>, vector<8x128xf32> -> vector<8x128xf32>
    %396 = arith.addf %395, %25 : vector<8x128xf32>
    %cst_201 = arith.constant 0.000000e+00 : f32
    %397 = vector.broadcast %cst_201 : f32 to vector<8x128xf32>
    %398 = arith.maximumf %396, %397 : vector<8x128xf32>
    %cst_202 = arith.constant dense<0.000000e+00> : vector<8x32xf32>
    %399 = tpu.matmul %398, %20, %cst_202 {dimension_numbers = #tpu.dot_dimension_numbers<[1], [0], [0], [1], [0, 0, 1, 1], [], []>} : vector<8x128xf32>, vector<128x32xf32>, vector<8x32xf32> -> vector<8x32xf32>
    %400 = arith.addf %399, %28 : vector<8x32xf32>
    %cst_203 = arith.constant 0.000000e+00 : f32
    %401 = vector.broadcast %cst_203 : f32 to vector<8x32xf32>
    %402 = arith.maximumf %400, %401 : vector<8x32xf32>
    %403 = vector.extract_strided_slice %384 {offsets = [0, 0], sizes = [8, 32], strides = [1, 1]} : vector<16x32xf32> to vector<8x32xf32>
    %404 = vector.extract_strided_slice %402 {offsets = [0, 0], sizes = [4, 32], strides = [1, 1]} : vector<8x32xf32> to vector<4x32xf32>
    %405 = vector.extract_strided_slice %8 {offsets = [0, 0], sizes = [8, 8], strides = [1, 1]} : vector<16x8xf32> to vector<8x8xf32>
    %cst_204 = arith.constant dense<0.000000e+00> : vector<8x32xf32>
    %406 = tpu.matmul %405, %403, %cst_204 {dimension_numbers = #tpu.dot_dimension_numbers<[1], [0], [0], [1], [0, 0, 1, 1], [], []>} : vector<8x8xf32>, vector<8x32xf32>, vector<8x32xf32> -> vector<8x32xf32>
    %407 = vector.extract_strided_slice %9 {offsets = [0, 0], sizes = [8, 4], strides = [1, 1]} : vector<16x4xf32> to vector<8x4xf32>
    %cst_205 = arith.constant dense<0.000000e+00> : vector<8x32xf32>
    %408 = tpu.matmul %407, %404, %cst_205 {dimension_numbers = #tpu.dot_dimension_numbers<[1], [0], [0], [1], [0, 0, 1, 1], [], []>} : vector<8x4xf32>, vector<4x32xf32>, vector<8x32xf32> -> vector<8x32xf32>
    %409 = vector.extract_strided_slice %384 {offsets = [8, 0], sizes = [8, 32], strides = [1, 1]} : vector<16x32xf32> to vector<8x32xf32>
    %410 = vector.extract_strided_slice %402 {offsets = [4, 0], sizes = [4, 32], strides = [1, 1]} : vector<8x32xf32> to vector<4x32xf32>
    %411 = vector.extract_strided_slice %8 {offsets = [8, 0], sizes = [8, 8], strides = [1, 1]} : vector<16x8xf32> to vector<8x8xf32>
    %cst_206 = arith.constant dense<0.000000e+00> : vector<8x32xf32>
    %412 = tpu.matmul %411, %409, %cst_206 {dimension_numbers = #tpu.dot_dimension_numbers<[1], [0], [0], [1], [0, 0, 1, 1], [], []>} : vector<8x8xf32>, vector<8x32xf32>, vector<8x32xf32> -> vector<8x32xf32>
    %413 = vector.extract_strided_slice %9 {offsets = [8, 0], sizes = [8, 4], strides = [1, 1]} : vector<16x4xf32> to vector<8x4xf32>
    %cst_207 = arith.constant dense<0.000000e+00> : vector<8x32xf32>
    %414 = tpu.matmul %413, %410, %cst_207 {dimension_numbers = #tpu.dot_dimension_numbers<[1], [0], [0], [1], [0, 0, 1, 1], [], []>} : vector<8x4xf32>, vector<4x32xf32>, vector<8x32xf32> -> vector<8x32xf32>
    %415 = tpu.concatenate %406, %412 in 0 : vector<8x32xf32>, vector<8x32xf32> -> vector<16x32xf32>
    %416 = tpu.concatenate %408, %414 in 0 : vector<8x32xf32>, vector<8x32xf32> -> vector<16x32xf32>
    %cst_208 = arith.constant dense<0.000000e+00> : vector<8x32xf32>
    %417 = tpu.matmul %10, %394, %cst_208 {dimension_numbers = #tpu.dot_dimension_numbers<[1], [0], [0], [1], [0, 0, 1, 1], [], []>} : vector<8x8xf32>, vector<8x32xf32>, vector<8x32xf32> -> vector<8x32xf32>
    %418 = tpu.concatenate %416, %415, %384 in 1 : vector<16x32xf32>, vector<16x32xf32>, vector<16x32xf32> -> vector<16x96xf32>
    %cst_209 = arith.constant dense<0.000000e+00> : vector<16x128xf32>
    %419 = tpu.matmul %418, %11, %cst_209 {dimension_numbers = #tpu.dot_dimension_numbers<[1], [0], [0], [1], [0, 0, 1, 1], [], []>} : vector<16x96xf32>, vector<96x128xf32>, vector<16x128xf32> -> vector<16x128xf32>
    %420 = arith.addf %419, %15 : vector<16x128xf32>
    %421 = tpu.concatenate %417, %385 in 1 : vector<8x32xf32>, vector<8x32xf32> -> vector<8x64xf32>
    %cst_210 = arith.constant dense<0.000000e+00> : vector<8x128xf32>
    %422 = tpu.matmul %421, %12, %cst_210 {dimension_numbers = #tpu.dot_dimension_numbers<[1], [0], [0], [1], [0, 0, 1, 1], [], []>} : vector<8x64xf32>, vector<64x128xf32>, vector<8x128xf32> -> vector<8x128xf32>
    %423 = arith.addf %422, %18 : vector<8x128xf32>
    %c0_211 = arith.constant 0 : index
    %c0_212 = arith.constant 0 : index
    %424 = vector.load %arg19[%c0_211, %c0_212] : memref<16x32xf32, #tpu.memory_space<vmem>>, vector<16x32xf32>
    %425 = arith.mulf %420, %45 : vector<16x128xf32>
    %426 = arith.negf %425 : vector<16x128xf32>
    %427 = math.exp %426 : vector<16x128xf32>
    %cst_213 = arith.constant 1.000000e+00 : f32
    %428 = vector.broadcast %cst_213 : f32 to vector<16x128xf32>
    %429 = arith.addf %428, %427 : vector<16x128xf32>
    %430 = arith.divf %428, %429 : vector<16x128xf32>
    %431 = vector.extract_strided_slice %430 {offsets = [0, 0], sizes = [16, 32], strides = [1, 1]} : vector<16x128xf32> to vector<16x32xf32>
    %432 = vector.extract_strided_slice %430 {offsets = [0, 32], sizes = [16, 32], strides = [1, 1]} : vector<16x128xf32> to vector<16x32xf32>
    %433 = vector.extract_strided_slice %430 {offsets = [0, 64], sizes = [16, 32], strides = [1, 1]} : vector<16x128xf32> to vector<16x32xf32>
    %cst_214 = arith.constant 2.000000e+00 : f32
    %434 = vector.broadcast %cst_214 : f32 to vector<16x32xf32>
    %435 = arith.mulf %434, %433 : vector<16x32xf32>
    %cst_215 = arith.constant 1.000000e+00 : f32
    %436 = vector.broadcast %cst_215 : f32 to vector<16x32xf32>
    %437 = arith.subf %435, %436 : vector<16x32xf32>
    %438 = vector.extract_strided_slice %430 {offsets = [0, 96], sizes = [16, 32], strides = [1, 1]} : vector<16x128xf32> to vector<16x32xf32>
    %439 = arith.mulf %432, %424 : vector<16x32xf32>
    %440 = arith.mulf %431, %437 : vector<16x32xf32>
    %441 = arith.addf %439, %440 : vector<16x32xf32>
    %442 = math.tanh %441 : vector<16x32xf32>
    %443 = arith.mulf %438, %442 : vector<16x32xf32>
    %c0_216 = arith.constant 0 : index
    %c0_217 = arith.constant 0 : index
    %444 = vector.load %arg20[%c0_216, %c0_217] : memref<8x32xf32, #tpu.memory_space<vmem>>, vector<8x32xf32>
    %445 = arith.mulf %423, %47 : vector<8x128xf32>
    %446 = arith.negf %445 : vector<8x128xf32>
    %447 = math.exp %446 : vector<8x128xf32>
    %cst_218 = arith.constant 1.000000e+00 : f32
    %448 = vector.broadcast %cst_218 : f32 to vector<8x128xf32>
    %449 = arith.addf %448, %447 : vector<8x128xf32>
    %450 = arith.divf %448, %449 : vector<8x128xf32>
    %451 = vector.extract_strided_slice %450 {offsets = [0, 0], sizes = [8, 32], strides = [1, 1]} : vector<8x128xf32> to vector<8x32xf32>
    %452 = vector.extract_strided_slice %450 {offsets = [0, 32], sizes = [8, 32], strides = [1, 1]} : vector<8x128xf32> to vector<8x32xf32>
    %453 = vector.extract_strided_slice %450 {offsets = [0, 64], sizes = [8, 32], strides = [1, 1]} : vector<8x128xf32> to vector<8x32xf32>
    %cst_219 = arith.constant 2.000000e+00 : f32
    %454 = vector.broadcast %cst_219 : f32 to vector<8x32xf32>
    %455 = arith.mulf %454, %453 : vector<8x32xf32>
    %cst_220 = arith.constant 1.000000e+00 : f32
    %456 = vector.broadcast %cst_220 : f32 to vector<8x32xf32>
    %457 = arith.subf %455, %456 : vector<8x32xf32>
    %458 = vector.extract_strided_slice %450 {offsets = [0, 96], sizes = [8, 32], strides = [1, 1]} : vector<8x128xf32> to vector<8x32xf32>
    %459 = arith.mulf %452, %444 : vector<8x32xf32>
    %460 = arith.mulf %451, %457 : vector<8x32xf32>
    %461 = arith.addf %459, %460 : vector<8x32xf32>
    %462 = math.tanh %461 : vector<8x32xf32>
    %463 = arith.mulf %458, %462 : vector<8x32xf32>
    %c0_221 = arith.constant 0 : index
    %c0_222 = arith.constant 0 : index
    %464 = vector.load %arg17[%c0_221, %c0_222] : memref<16x32xf32, #tpu.memory_space<vmem>>, vector<16x32xf32>
    tpu.vector_store %arg17[%c0_221, %c0_222], %443 {strides = array<i32>} : memref<16x32xf32, #tpu.memory_space<vmem>>, vector<16x32xf32>,
    %c0_223 = arith.constant 0 : index
    %c0_224 = arith.constant 0 : index
    %465 = vector.load %arg19[%c0_223, %c0_224] : memref<16x32xf32, #tpu.memory_space<vmem>>, vector<16x32xf32>
    tpu.vector_store %arg19[%c0_223, %c0_224], %441 {strides = array<i32>} : memref<16x32xf32, #tpu.memory_space<vmem>>, vector<16x32xf32>,
    %c0_225 = arith.constant 0 : index
    %c0_226 = arith.constant 0 : index
    %466 = vector.load %arg18[%c0_225, %c0_226] : memref<8x32xf32, #tpu.memory_space<vmem>>, vector<8x32xf32>
    tpu.vector_store %arg18[%c0_225, %c0_226], %463 {strides = array<i32>} : memref<8x32xf32, #tpu.memory_space<vmem>>, vector<8x32xf32>,
    %c0_227 = arith.constant 0 : index
    %c0_228 = arith.constant 0 : index
    %467 = vector.load %arg20[%c0_227, %c0_228] : memref<8x32xf32, #tpu.memory_space<vmem>>, vector<8x32xf32>
    tpu.vector_store %arg20[%c0_227, %c0_228], %461 {strides = array<i32>} : memref<8x32xf32, #tpu.memory_space<vmem>>, vector<8x32xf32>,
    %c0_229 = arith.constant 0 : index
    %c0_230 = arith.constant 0 : index
    %468 = vector.load %arg17[%c0_229, %c0_230] : memref<16x32xf32, #tpu.memory_space<vmem>>, vector<16x32xf32>
    %c0_231 = arith.constant 0 : index
    %c0_232 = arith.constant 0 : index
    %469 = vector.load %arg18[%c0_231, %c0_232] : memref<8x32xf32, #tpu.memory_space<vmem>>, vector<8x32xf32>
    %470 = vector.extract_strided_slice %468 {offsets = [8, 0], sizes = [8, 32], strides = [1, 1]} : vector<16x32xf32> to vector<8x32xf32>
    %cst_233 = arith.constant dense<0.000000e+00> : vector<8x128xf32>
    %471 = tpu.matmul %470, %21, %cst_233 {dimension_numbers = #tpu.dot_dimension_numbers<[1], [0], [0], [1], [0, 0, 1, 1], [], []>} : vector<8x32xf32>, vector<32x128xf32>, vector<8x128xf32> -> vector<8x128xf32>
    %472 = arith.addf %471, %31 : vector<8x128xf32>
    %cst_234 = arith.constant 0.000000e+00 : f32
    %473 = vector.broadcast %cst_234 : f32 to vector<8x128xf32>
    %474 = arith.maximumf %472, %473 : vector<8x128xf32>
    %cst_235 = arith.constant dense<0.000000e+00> : vector<8x32xf32>
    %475 = tpu.matmul %474, %22, %cst_235 {dimension_numbers = #tpu.dot_dimension_numbers<[1], [0], [0], [1], [0, 0, 1, 1], [], []>} : vector<8x128xf32>, vector<128x32xf32>, vector<8x32xf32> -> vector<8x32xf32>
    %476 = arith.addf %475, %34 : vector<8x32xf32>
    %cst_236 = arith.constant 0.000000e+00 : f32
    %477 = vector.broadcast %cst_236 : f32 to vector<8x32xf32>
    %478 = arith.maximumf %476, %477 : vector<8x32xf32>
    %cst_237 = arith.constant dense<0.000000e+00> : vector<8x128xf32>
    %479 = tpu.matmul %469, %19, %cst_237 {dimension_numbers = #tpu.dot_dimension_numbers<[1], [0], [0], [1], [0, 0, 1, 1], [], []>} : vector<8x32xf32>, vector<32x128xf32>, vector<8x128xf32> -> vector<8x128xf32>
    %480 = arith.addf %479, %25 : vector<8x128xf32>
    %cst_238 = arith.constant 0.000000e+00 : f32
    %481 = vector.broadcast %cst_238 : f32 to vector<8x128xf32>
    %482 = arith.maximumf %480, %481 : vector<8x128xf32>
    %cst_239 = arith.constant dense<0.000000e+00> : vector<8x32xf32>
    %483 = tpu.matmul %482, %20, %cst_239 {dimension_numbers = #tpu.dot_dimension_numbers<[1], [0], [0], [1], [0, 0, 1, 1], [], []>} : vector<8x128xf32>, vector<128x32xf32>, vector<8x32xf32> -> vector<8x32xf32>
    %484 = arith.addf %483, %28 : vector<8x32xf32>
    %cst_240 = arith.constant 0.000000e+00 : f32
    %485 = vector.broadcast %cst_240 : f32 to vector<8x32xf32>
    %486 = arith.maximumf %484, %485 : vector<8x32xf32>
    %487 = vector.extract_strided_slice %468 {offsets = [0, 0], sizes = [8, 32], strides = [1, 1]} : vector<16x32xf32> to vector<8x32xf32>
    %488 = vector.extract_strided_slice %486 {offsets = [0, 0], sizes = [4, 32], strides = [1, 1]} : vector<8x32xf32> to vector<4x32xf32>
    %489 = vector.extract_strided_slice %8 {offsets = [0, 0], sizes = [8, 8], strides = [1, 1]} : vector<16x8xf32> to vector<8x8xf32>
    %cst_241 = arith.constant dense<0.000000e+00> : vector<8x32xf32>
    %490 = tpu.matmul %489, %487, %cst_241 {dimension_numbers = #tpu.dot_dimension_numbers<[1], [0], [0], [1], [0, 0, 1, 1], [], []>} : vector<8x8xf32>, vector<8x32xf32>, vector<8x32xf32> -> vector<8x32xf32>
    %491 = vector.extract_strided_slice %9 {offsets = [0, 0], sizes = [8, 4], strides = [1, 1]} : vector<16x4xf32> to vector<8x4xf32>
    %cst_242 = arith.constant dense<0.000000e+00> : vector<8x32xf32>
    %492 = tpu.matmul %491, %488, %cst_242 {dimension_numbers = #tpu.dot_dimension_numbers<[1], [0], [0], [1], [0, 0, 1, 1], [], []>} : vector<8x4xf32>, vector<4x32xf32>, vector<8x32xf32> -> vector<8x32xf32>
    %493 = vector.extract_strided_slice %468 {offsets = [8, 0], sizes = [8, 32], strides = [1, 1]} : vector<16x32xf32> to vector<8x32xf32>
    %494 = vector.extract_strided_slice %486 {offsets = [4, 0], sizes = [4, 32], strides = [1, 1]} : vector<8x32xf32> to vector<4x32xf32>
    %495 = vector.extract_strided_slice %8 {offsets = [8, 0], sizes = [8, 8], strides = [1, 1]} : vector<16x8xf32> to vector<8x8xf32>
    %cst_243 = arith.constant dense<0.000000e+00> : vector<8x32xf32>
    %496 = tpu.matmul %495, %493, %cst_243 {dimension_numbers = #tpu.dot_dimension_numbers<[1], [0], [0], [1], [0, 0, 1, 1], [], []>} : vector<8x8xf32>, vector<8x32xf32>, vector<8x32xf32> -> vector<8x32xf32>
    %497 = vector.extract_strided_slice %9 {offsets = [8, 0], sizes = [8, 4], strides = [1, 1]} : vector<16x4xf32> to vector<8x4xf32>
    %cst_244 = arith.constant dense<0.000000e+00> : vector<8x32xf32>
    %498 = tpu.matmul %497, %494, %cst_244 {dimension_numbers = #tpu.dot_dimension_numbers<[1], [0], [0], [1], [0, 0, 1, 1], [], []>} : vector<8x4xf32>, vector<4x32xf32>, vector<8x32xf32> -> vector<8x32xf32>
    %499 = tpu.concatenate %490, %496 in 0 : vector<8x32xf32>, vector<8x32xf32> -> vector<16x32xf32>
    %500 = tpu.concatenate %492, %498 in 0 : vector<8x32xf32>, vector<8x32xf32> -> vector<16x32xf32>
    %cst_245 = arith.constant dense<0.000000e+00> : vector<8x32xf32>
    %501 = tpu.matmul %10, %478, %cst_245 {dimension_numbers = #tpu.dot_dimension_numbers<[1], [0], [0], [1], [0, 0, 1, 1], [], []>} : vector<8x8xf32>, vector<8x32xf32>, vector<8x32xf32> -> vector<8x32xf32>
    %502 = tpu.concatenate %500, %499, %468 in 1 : vector<16x32xf32>, vector<16x32xf32>, vector<16x32xf32> -> vector<16x96xf32>
    %cst_246 = arith.constant dense<0.000000e+00> : vector<16x128xf32>
    %503 = tpu.matmul %502, %11, %cst_246 {dimension_numbers = #tpu.dot_dimension_numbers<[1], [0], [0], [1], [0, 0, 1, 1], [], []>} : vector<16x96xf32>, vector<96x128xf32>, vector<16x128xf32> -> vector<16x128xf32>
    %504 = arith.addf %503, %15 : vector<16x128xf32>
    %505 = tpu.concatenate %501, %469 in 1 : vector<8x32xf32>, vector<8x32xf32> -> vector<8x64xf32>
    %cst_247 = arith.constant dense<0.000000e+00> : vector<8x128xf32>
    %506 = tpu.matmul %505, %12, %cst_247 {dimension_numbers = #tpu.dot_dimension_numbers<[1], [0], [0], [1], [0, 0, 1, 1], [], []>} : vector<8x64xf32>, vector<64x128xf32>, vector<8x128xf32> -> vector<8x128xf32>
    %507 = arith.addf %506, %18 : vector<8x128xf32>
    %c0_248 = arith.constant 0 : index
    %c0_249 = arith.constant 0 : index
    %508 = vector.load %arg19[%c0_248, %c0_249] : memref<16x32xf32, #tpu.memory_space<vmem>>, vector<16x32xf32>
    %509 = arith.mulf %504, %45 : vector<16x128xf32>
    %510 = arith.negf %509 : vector<16x128xf32>
    %511 = math.exp %510 : vector<16x128xf32>
    %cst_250 = arith.constant 1.000000e+00 : f32
    %512 = vector.broadcast %cst_250 : f32 to vector<16x128xf32>
    %513 = arith.addf %512, %511 : vector<16x128xf32>
    %514 = arith.divf %512, %513 : vector<16x128xf32>
    %515 = vector.extract_strided_slice %514 {offsets = [0, 0], sizes = [16, 32], strides = [1, 1]} : vector<16x128xf32> to vector<16x32xf32>
    %516 = vector.extract_strided_slice %514 {offsets = [0, 32], sizes = [16, 32], strides = [1, 1]} : vector<16x128xf32> to vector<16x32xf32>
    %517 = vector.extract_strided_slice %514 {offsets = [0, 64], sizes = [16, 32], strides = [1, 1]} : vector<16x128xf32> to vector<16x32xf32>
    %cst_251 = arith.constant 2.000000e+00 : f32
    %518 = vector.broadcast %cst_251 : f32 to vector<16x32xf32>
    %519 = arith.mulf %518, %517 : vector<16x32xf32>
    %cst_252 = arith.constant 1.000000e+00 : f32
    %520 = vector.broadcast %cst_252 : f32 to vector<16x32xf32>
    %521 = arith.subf %519, %520 : vector<16x32xf32>
    %522 = vector.extract_strided_slice %514 {offsets = [0, 96], sizes = [16, 32], strides = [1, 1]} : vector<16x128xf32> to vector<16x32xf32>
    %523 = arith.mulf %516, %508 : vector<16x32xf32>
    %524 = arith.mulf %515, %521 : vector<16x32xf32>
    %525 = arith.addf %523, %524 : vector<16x32xf32>
    %526 = math.tanh %525 : vector<16x32xf32>
    %527 = arith.mulf %522, %526 : vector<16x32xf32>
    %c0_253 = arith.constant 0 : index
    %c0_254 = arith.constant 0 : index
    %528 = vector.load %arg20[%c0_253, %c0_254] : memref<8x32xf32, #tpu.memory_space<vmem>>, vector<8x32xf32>
    %529 = arith.mulf %507, %47 : vector<8x128xf32>
    %530 = arith.negf %529 : vector<8x128xf32>
    %531 = math.exp %530 : vector<8x128xf32>
    %cst_255 = arith.constant 1.000000e+00 : f32
    %532 = vector.broadcast %cst_255 : f32 to vector<8x128xf32>
    %533 = arith.addf %532, %531 : vector<8x128xf32>
    %534 = arith.divf %532, %533 : vector<8x128xf32>
    %535 = vector.extract_strided_slice %534 {offsets = [0, 0], sizes = [8, 32], strides = [1, 1]} : vector<8x128xf32> to vector<8x32xf32>
    %536 = vector.extract_strided_slice %534 {offsets = [0, 32], sizes = [8, 32], strides = [1, 1]} : vector<8x128xf32> to vector<8x32xf32>
    %537 = vector.extract_strided_slice %534 {offsets = [0, 64], sizes = [8, 32], strides = [1, 1]} : vector<8x128xf32> to vector<8x32xf32>
    %cst_256 = arith.constant 2.000000e+00 : f32
    %538 = vector.broadcast %cst_256 : f32 to vector<8x32xf32>
    %539 = arith.mulf %538, %537 : vector<8x32xf32>
    %cst_257 = arith.constant 1.000000e+00 : f32
    %540 = vector.broadcast %cst_257 : f32 to vector<8x32xf32>
    %541 = arith.subf %539, %540 : vector<8x32xf32>
    %542 = vector.extract_strided_slice %534 {offsets = [0, 96], sizes = [8, 32], strides = [1, 1]} : vector<8x128xf32> to vector<8x32xf32>
    %543 = arith.mulf %536, %528 : vector<8x32xf32>
    %544 = arith.mulf %535, %541 : vector<8x32xf32>
    %545 = arith.addf %543, %544 : vector<8x32xf32>
    %546 = math.tanh %545 : vector<8x32xf32>
    %547 = arith.mulf %542, %546 : vector<8x32xf32>
    %c0_258 = arith.constant 0 : index
    %c0_259 = arith.constant 0 : index
    %548 = vector.load %arg17[%c0_258, %c0_259] : memref<16x32xf32, #tpu.memory_space<vmem>>, vector<16x32xf32>
    tpu.vector_store %arg17[%c0_258, %c0_259], %527 {strides = array<i32>} : memref<16x32xf32, #tpu.memory_space<vmem>>, vector<16x32xf32>,
    %c0_260 = arith.constant 0 : index
    %c0_261 = arith.constant 0 : index
    %549 = vector.load %arg19[%c0_260, %c0_261] : memref<16x32xf32, #tpu.memory_space<vmem>>, vector<16x32xf32>
    tpu.vector_store %arg19[%c0_260, %c0_261], %525 {strides = array<i32>} : memref<16x32xf32, #tpu.memory_space<vmem>>, vector<16x32xf32>,
    %c0_262 = arith.constant 0 : index
    %c0_263 = arith.constant 0 : index
    %550 = vector.load %arg18[%c0_262, %c0_263] : memref<8x32xf32, #tpu.memory_space<vmem>>, vector<8x32xf32>
    tpu.vector_store %arg18[%c0_262, %c0_263], %547 {strides = array<i32>} : memref<8x32xf32, #tpu.memory_space<vmem>>, vector<8x32xf32>,
    %c0_264 = arith.constant 0 : index
    %c0_265 = arith.constant 0 : index
    %551 = vector.load %arg20[%c0_264, %c0_265] : memref<8x32xf32, #tpu.memory_space<vmem>>, vector<8x32xf32>
    tpu.vector_store %arg20[%c0_264, %c0_265], %545 {strides = array<i32>} : memref<8x32xf32, #tpu.memory_space<vmem>>, vector<8x32xf32>,
    %c0_266 = arith.constant 0 : index
    %c0_267 = arith.constant 0 : index
    %552 = vector.load %arg17[%c0_266, %c0_267] : memref<16x32xf32, #tpu.memory_space<vmem>>, vector<16x32xf32>
    %c0_268 = arith.constant 0 : index
    %c0_269 = arith.constant 0 : index
    %553 = vector.load %arg18[%c0_268, %c0_269] : memref<8x32xf32, #tpu.memory_space<vmem>>, vector<8x32xf32>
    %554 = vector.extract_strided_slice %552 {offsets = [8, 0], sizes = [8, 32], strides = [1, 1]} : vector<16x32xf32> to vector<8x32xf32>
    %cst_270 = arith.constant dense<0.000000e+00> : vector<8x128xf32>
    %555 = tpu.matmul %554, %21, %cst_270 {dimension_numbers = #tpu.dot_dimension_numbers<[1], [0], [0], [1], [0, 0, 1, 1], [], []>} : vector<8x32xf32>, vector<32x128xf32>, vector<8x128xf32> -> vector<8x128xf32>
    %556 = arith.addf %555, %31 : vector<8x128xf32>
    %cst_271 = arith.constant 0.000000e+00 : f32
    %557 = vector.broadcast %cst_271 : f32 to vector<8x128xf32>
    %558 = arith.maximumf %556, %557 : vector<8x128xf32>
    %cst_272 = arith.constant dense<0.000000e+00> : vector<8x32xf32>
    %559 = tpu.matmul %558, %22, %cst_272 {dimension_numbers = #tpu.dot_dimension_numbers<[1], [0], [0], [1], [0, 0, 1, 1], [], []>} : vector<8x128xf32>, vector<128x32xf32>, vector<8x32xf32> -> vector<8x32xf32>
    %560 = arith.addf %559, %34 : vector<8x32xf32>
    %cst_273 = arith.constant 0.000000e+00 : f32
    %561 = vector.broadcast %cst_273 : f32 to vector<8x32xf32>
    %562 = arith.maximumf %560, %561 : vector<8x32xf32>
    %cst_274 = arith.constant dense<0.000000e+00> : vector<8x128xf32>
    %563 = tpu.matmul %553, %19, %cst_274 {dimension_numbers = #tpu.dot_dimension_numbers<[1], [0], [0], [1], [0, 0, 1, 1], [], []>} : vector<8x32xf32>, vector<32x128xf32>, vector<8x128xf32> -> vector<8x128xf32>
    %564 = arith.addf %563, %25 : vector<8x128xf32>
    %cst_275 = arith.constant 0.000000e+00 : f32
    %565 = vector.broadcast %cst_275 : f32 to vector<8x128xf32>
    %566 = arith.maximumf %564, %565 : vector<8x128xf32>
    %cst_276 = arith.constant dense<0.000000e+00> : vector<8x32xf32>
    %567 = tpu.matmul %566, %20, %cst_276 {dimension_numbers = #tpu.dot_dimension_numbers<[1], [0], [0], [1], [0, 0, 1, 1], [], []>} : vector<8x128xf32>, vector<128x32xf32>, vector<8x32xf32> -> vector<8x32xf32>
    %568 = arith.addf %567, %28 : vector<8x32xf32>
    %cst_277 = arith.constant 0.000000e+00 : f32
    %569 = vector.broadcast %cst_277 : f32 to vector<8x32xf32>
    %570 = arith.maximumf %568, %569 : vector<8x32xf32>
    %571 = vector.extract_strided_slice %552 {offsets = [0, 0], sizes = [8, 32], strides = [1, 1]} : vector<16x32xf32> to vector<8x32xf32>
    %572 = vector.extract_strided_slice %570 {offsets = [0, 0], sizes = [4, 32], strides = [1, 1]} : vector<8x32xf32> to vector<4x32xf32>
    %573 = vector.extract_strided_slice %8 {offsets = [0, 0], sizes = [8, 8], strides = [1, 1]} : vector<16x8xf32> to vector<8x8xf32>
    %cst_278 = arith.constant dense<0.000000e+00> : vector<8x32xf32>
    %574 = tpu.matmul %573, %571, %cst_278 {dimension_numbers = #tpu.dot_dimension_numbers<[1], [0], [0], [1], [0, 0, 1, 1], [], []>} : vector<8x8xf32>, vector<8x32xf32>, vector<8x32xf32> -> vector<8x32xf32>
    %575 = vector.extract_strided_slice %9 {offsets = [0, 0], sizes = [8, 4], strides = [1, 1]} : vector<16x4xf32> to vector<8x4xf32>
    %cst_279 = arith.constant dense<0.000000e+00> : vector<8x32xf32>
    %576 = tpu.matmul %575, %572, %cst_279 {dimension_numbers = #tpu.dot_dimension_numbers<[1], [0], [0], [1], [0, 0, 1, 1], [], []>} : vector<8x4xf32>, vector<4x32xf32>, vector<8x32xf32> -> vector<8x32xf32>
    %577 = vector.extract_strided_slice %552 {offsets = [8, 0], sizes = [8, 32], strides = [1, 1]} : vector<16x32xf32> to vector<8x32xf32>
    %578 = vector.extract_strided_slice %570 {offsets = [4, 0], sizes = [4, 32], strides = [1, 1]} : vector<8x32xf32> to vector<4x32xf32>
    %579 = vector.extract_strided_slice %8 {offsets = [8, 0], sizes = [8, 8], strides = [1, 1]} : vector<16x8xf32> to vector<8x8xf32>
    %cst_280 = arith.constant dense<0.000000e+00> : vector<8x32xf32>
    %580 = tpu.matmul %579, %577, %cst_280 {dimension_numbers = #tpu.dot_dimension_numbers<[1], [0], [0], [1], [0, 0, 1, 1], [], []>} : vector<8x8xf32>, vector<8x32xf32>, vector<8x32xf32> -> vector<8x32xf32>
    %581 = vector.extract_strided_slice %9 {offsets = [8, 0], sizes = [8, 4], strides = [1, 1]} : vector<16x4xf32> to vector<8x4xf32>
    %cst_281 = arith.constant dense<0.000000e+00> : vector<8x32xf32>
    %582 = tpu.matmul %581, %578, %cst_281 {dimension_numbers = #tpu.dot_dimension_numbers<[1], [0], [0], [1], [0, 0, 1, 1], [], []>} : vector<8x4xf32>, vector<4x32xf32>, vector<8x32xf32> -> vector<8x32xf32>
    %583 = tpu.concatenate %574, %580 in 0 : vector<8x32xf32>, vector<8x32xf32> -> vector<16x32xf32>
    %584 = tpu.concatenate %576, %582 in 0 : vector<8x32xf32>, vector<8x32xf32> -> vector<16x32xf32>
    %cst_282 = arith.constant dense<0.000000e+00> : vector<8x32xf32>
    %585 = tpu.matmul %10, %562, %cst_282 {dimension_numbers = #tpu.dot_dimension_numbers<[1], [0], [0], [1], [0, 0, 1, 1], [], []>} : vector<8x8xf32>, vector<8x32xf32>, vector<8x32xf32> -> vector<8x32xf32>
    %586 = tpu.concatenate %584, %583, %552 in 1 : vector<16x32xf32>, vector<16x32xf32>, vector<16x32xf32> -> vector<16x96xf32>
    %cst_283 = arith.constant dense<0.000000e+00> : vector<16x128xf32>
    %587 = tpu.matmul %586, %11, %cst_283 {dimension_numbers = #tpu.dot_dimension_numbers<[1], [0], [0], [1], [0, 0, 1, 1], [], []>} : vector<16x96xf32>, vector<96x128xf32>, vector<16x128xf32> -> vector<16x128xf32>
    %588 = arith.addf %587, %15 : vector<16x128xf32>
    %589 = tpu.concatenate %585, %553 in 1 : vector<8x32xf32>, vector<8x32xf32> -> vector<8x64xf32>
    %cst_284 = arith.constant dense<0.000000e+00> : vector<8x128xf32>
    %590 = tpu.matmul %589, %12, %cst_284 {dimension_numbers = #tpu.dot_dimension_numbers<[1], [0], [0], [1], [0, 0, 1, 1], [], []>} : vector<8x64xf32>, vector<64x128xf32>, vector<8x128xf32> -> vector<8x128xf32>
    %591 = arith.addf %590, %18 : vector<8x128xf32>
    %c0_285 = arith.constant 0 : index
    %c0_286 = arith.constant 0 : index
    %592 = vector.load %arg19[%c0_285, %c0_286] : memref<16x32xf32, #tpu.memory_space<vmem>>, vector<16x32xf32>
    %593 = arith.mulf %588, %45 : vector<16x128xf32>
    %594 = arith.negf %593 : vector<16x128xf32>
    %595 = math.exp %594 : vector<16x128xf32>
    %cst_287 = arith.constant 1.000000e+00 : f32
    %596 = vector.broadcast %cst_287 : f32 to vector<16x128xf32>
    %597 = arith.addf %596, %595 : vector<16x128xf32>
    %598 = arith.divf %596, %597 : vector<16x128xf32>
    %599 = vector.extract_strided_slice %598 {offsets = [0, 0], sizes = [16, 32], strides = [1, 1]} : vector<16x128xf32> to vector<16x32xf32>
    %600 = vector.extract_strided_slice %598 {offsets = [0, 32], sizes = [16, 32], strides = [1, 1]} : vector<16x128xf32> to vector<16x32xf32>
    %601 = vector.extract_strided_slice %598 {offsets = [0, 64], sizes = [16, 32], strides = [1, 1]} : vector<16x128xf32> to vector<16x32xf32>
    %cst_288 = arith.constant 2.000000e+00 : f32
    %602 = vector.broadcast %cst_288 : f32 to vector<16x32xf32>
    %603 = arith.mulf %602, %601 : vector<16x32xf32>
    %cst_289 = arith.constant 1.000000e+00 : f32
    %604 = vector.broadcast %cst_289 : f32 to vector<16x32xf32>
    %605 = arith.subf %603, %604 : vector<16x32xf32>
    %606 = vector.extract_strided_slice %598 {offsets = [0, 96], sizes = [16, 32], strides = [1, 1]} : vector<16x128xf32> to vector<16x32xf32>
    %607 = arith.mulf %600, %592 : vector<16x32xf32>
    %608 = arith.mulf %599, %605 : vector<16x32xf32>
    %609 = arith.addf %607, %608 : vector<16x32xf32>
    %610 = math.tanh %609 : vector<16x32xf32>
    %611 = arith.mulf %606, %610 : vector<16x32xf32>
    %c0_290 = arith.constant 0 : index
    %c0_291 = arith.constant 0 : index
    %612 = vector.load %arg20[%c0_290, %c0_291] : memref<8x32xf32, #tpu.memory_space<vmem>>, vector<8x32xf32>
    %613 = arith.mulf %591, %47 : vector<8x128xf32>
    %614 = arith.negf %613 : vector<8x128xf32>
    %615 = math.exp %614 : vector<8x128xf32>
    %cst_292 = arith.constant 1.000000e+00 : f32
    %616 = vector.broadcast %cst_292 : f32 to vector<8x128xf32>
    %617 = arith.addf %616, %615 : vector<8x128xf32>
    %618 = arith.divf %616, %617 : vector<8x128xf32>
    %619 = vector.extract_strided_slice %618 {offsets = [0, 0], sizes = [8, 32], strides = [1, 1]} : vector<8x128xf32> to vector<8x32xf32>
    %620 = vector.extract_strided_slice %618 {offsets = [0, 32], sizes = [8, 32], strides = [1, 1]} : vector<8x128xf32> to vector<8x32xf32>
    %621 = vector.extract_strided_slice %618 {offsets = [0, 64], sizes = [8, 32], strides = [1, 1]} : vector<8x128xf32> to vector<8x32xf32>
    %cst_293 = arith.constant 2.000000e+00 : f32
    %622 = vector.broadcast %cst_293 : f32 to vector<8x32xf32>
    %623 = arith.mulf %622, %621 : vector<8x32xf32>
    %cst_294 = arith.constant 1.000000e+00 : f32
    %624 = vector.broadcast %cst_294 : f32 to vector<8x32xf32>
    %625 = arith.subf %623, %624 : vector<8x32xf32>
    %626 = vector.extract_strided_slice %618 {offsets = [0, 96], sizes = [8, 32], strides = [1, 1]} : vector<8x128xf32> to vector<8x32xf32>
    %627 = arith.mulf %620, %612 : vector<8x32xf32>
    %628 = arith.mulf %619, %625 : vector<8x32xf32>
    %629 = arith.addf %627, %628 : vector<8x32xf32>
    %630 = math.tanh %629 : vector<8x32xf32>
    %631 = arith.mulf %626, %630 : vector<8x32xf32>
    %c0_295 = arith.constant 0 : index
    %c0_296 = arith.constant 0 : index
    %632 = vector.load %arg17[%c0_295, %c0_296] : memref<16x32xf32, #tpu.memory_space<vmem>>, vector<16x32xf32>
    tpu.vector_store %arg17[%c0_295, %c0_296], %611 {strides = array<i32>} : memref<16x32xf32, #tpu.memory_space<vmem>>, vector<16x32xf32>,
    %c0_297 = arith.constant 0 : index
    %c0_298 = arith.constant 0 : index
    %633 = vector.load %arg19[%c0_297, %c0_298] : memref<16x32xf32, #tpu.memory_space<vmem>>, vector<16x32xf32>
    tpu.vector_store %arg19[%c0_297, %c0_298], %609 {strides = array<i32>} : memref<16x32xf32, #tpu.memory_space<vmem>>, vector<16x32xf32>,
    %c0_299 = arith.constant 0 : index
    %c0_300 = arith.constant 0 : index
    %634 = vector.load %arg18[%c0_299, %c0_300] : memref<8x32xf32, #tpu.memory_space<vmem>>, vector<8x32xf32>
    tpu.vector_store %arg18[%c0_299, %c0_300], %631 {strides = array<i32>} : memref<8x32xf32, #tpu.memory_space<vmem>>, vector<8x32xf32>,
    %c0_301 = arith.constant 0 : index
    %c0_302 = arith.constant 0 : index
    %635 = vector.load %arg20[%c0_301, %c0_302] : memref<8x32xf32, #tpu.memory_space<vmem>>, vector<8x32xf32>
    tpu.vector_store %arg20[%c0_301, %c0_302], %629 {strides = array<i32>} : memref<8x32xf32, #tpu.memory_space<vmem>>, vector<8x32xf32>,
    %c0_303 = arith.constant 0 : index
    %c0_304 = arith.constant 0 : index
    %636 = vector.load %arg17[%c0_303, %c0_304] : memref<16x32xf32, #tpu.memory_space<vmem>>, vector<16x32xf32>
    %c0_305 = arith.constant 0 : index
    %c0_306 = arith.constant 0 : index
    %637 = vector.load %arg18[%c0_305, %c0_306] : memref<8x32xf32, #tpu.memory_space<vmem>>, vector<8x32xf32>
    %638 = vector.extract_strided_slice %636 {offsets = [8, 0], sizes = [8, 32], strides = [1, 1]} : vector<16x32xf32> to vector<8x32xf32>
    %cst_307 = arith.constant dense<0.000000e+00> : vector<8x128xf32>
    %639 = tpu.matmul %638, %21, %cst_307 {dimension_numbers = #tpu.dot_dimension_numbers<[1], [0], [0], [1], [0, 0, 1, 1], [], []>} : vector<8x32xf32>, vector<32x128xf32>, vector<8x128xf32> -> vector<8x128xf32>
    %640 = arith.addf %639, %31 : vector<8x128xf32>
    %cst_308 = arith.constant 0.000000e+00 : f32
    %641 = vector.broadcast %cst_308 : f32 to vector<8x128xf32>
    %642 = arith.maximumf %640, %641 : vector<8x128xf32>
    %cst_309 = arith.constant dense<0.000000e+00> : vector<8x32xf32>
    %643 = tpu.matmul %642, %22, %cst_309 {dimension_numbers = #tpu.dot_dimension_numbers<[1], [0], [0], [1], [0, 0, 1, 1], [], []>} : vector<8x128xf32>, vector<128x32xf32>, vector<8x32xf32> -> vector<8x32xf32>
    %644 = arith.addf %643, %34 : vector<8x32xf32>
    %cst_310 = arith.constant 0.000000e+00 : f32
    %645 = vector.broadcast %cst_310 : f32 to vector<8x32xf32>
    %646 = arith.maximumf %644, %645 : vector<8x32xf32>
    %cst_311 = arith.constant dense<0.000000e+00> : vector<8x128xf32>
    %647 = tpu.matmul %637, %19, %cst_311 {dimension_numbers = #tpu.dot_dimension_numbers<[1], [0], [0], [1], [0, 0, 1, 1], [], []>} : vector<8x32xf32>, vector<32x128xf32>, vector<8x128xf32> -> vector<8x128xf32>
    %648 = arith.addf %647, %25 : vector<8x128xf32>
    %cst_312 = arith.constant 0.000000e+00 : f32
    %649 = vector.broadcast %cst_312 : f32 to vector<8x128xf32>
    %650 = arith.maximumf %648, %649 : vector<8x128xf32>
    %cst_313 = arith.constant dense<0.000000e+00> : vector<8x32xf32>
    %651 = tpu.matmul %650, %20, %cst_313 {dimension_numbers = #tpu.dot_dimension_numbers<[1], [0], [0], [1], [0, 0, 1, 1], [], []>} : vector<8x128xf32>, vector<128x32xf32>, vector<8x32xf32> -> vector<8x32xf32>
    %652 = arith.addf %651, %28 : vector<8x32xf32>
    %cst_314 = arith.constant 0.000000e+00 : f32
    %653 = vector.broadcast %cst_314 : f32 to vector<8x32xf32>
    %654 = arith.maximumf %652, %653 : vector<8x32xf32>
    %655 = vector.extract_strided_slice %636 {offsets = [0, 0], sizes = [8, 32], strides = [1, 1]} : vector<16x32xf32> to vector<8x32xf32>
    %656 = vector.extract_strided_slice %654 {offsets = [0, 0], sizes = [4, 32], strides = [1, 1]} : vector<8x32xf32> to vector<4x32xf32>
    %657 = vector.extract_strided_slice %8 {offsets = [0, 0], sizes = [8, 8], strides = [1, 1]} : vector<16x8xf32> to vector<8x8xf32>
    %cst_315 = arith.constant dense<0.000000e+00> : vector<8x32xf32>
    %658 = tpu.matmul %657, %655, %cst_315 {dimension_numbers = #tpu.dot_dimension_numbers<[1], [0], [0], [1], [0, 0, 1, 1], [], []>} : vector<8x8xf32>, vector<8x32xf32>, vector<8x32xf32> -> vector<8x32xf32>
    %659 = vector.extract_strided_slice %9 {offsets = [0, 0], sizes = [8, 4], strides = [1, 1]} : vector<16x4xf32> to vector<8x4xf32>
    %cst_316 = arith.constant dense<0.000000e+00> : vector<8x32xf32>
    %660 = tpu.matmul %659, %656, %cst_316 {dimension_numbers = #tpu.dot_dimension_numbers<[1], [0], [0], [1], [0, 0, 1, 1], [], []>} : vector<8x4xf32>, vector<4x32xf32>, vector<8x32xf32> -> vector<8x32xf32>
    %661 = vector.extract_strided_slice %636 {offsets = [8, 0], sizes = [8, 32], strides = [1, 1]} : vector<16x32xf32> to vector<8x32xf32>
    %662 = vector.extract_strided_slice %654 {offsets = [4, 0], sizes = [4, 32], strides = [1, 1]} : vector<8x32xf32> to vector<4x32xf32>
    %663 = vector.extract_strided_slice %8 {offsets = [8, 0], sizes = [8, 8], strides = [1, 1]} : vector<16x8xf32> to vector<8x8xf32>
    %cst_317 = arith.constant dense<0.000000e+00> : vector<8x32xf32>
    %664 = tpu.matmul %663, %661, %cst_317 {dimension_numbers = #tpu.dot_dimension_numbers<[1], [0], [0], [1], [0, 0, 1, 1], [], []>} : vector<8x8xf32>, vector<8x32xf32>, vector<8x32xf32> -> vector<8x32xf32>
    %665 = vector.extract_strided_slice %9 {offsets = [8, 0], sizes = [8, 4], strides = [1, 1]} : vector<16x4xf32> to vector<8x4xf32>
    %cst_318 = arith.constant dense<0.000000e+00> : vector<8x32xf32>
    %666 = tpu.matmul %665, %662, %cst_318 {dimension_numbers = #tpu.dot_dimension_numbers<[1], [0], [0], [1], [0, 0, 1, 1], [], []>} : vector<8x4xf32>, vector<4x32xf32>, vector<8x32xf32> -> vector<8x32xf32>
    %667 = tpu.concatenate %658, %664 in 0 : vector<8x32xf32>, vector<8x32xf32> -> vector<16x32xf32>
    %668 = tpu.concatenate %660, %666 in 0 : vector<8x32xf32>, vector<8x32xf32> -> vector<16x32xf32>
    %cst_319 = arith.constant dense<0.000000e+00> : vector<8x32xf32>
    %669 = tpu.matmul %10, %646, %cst_319 {dimension_numbers = #tpu.dot_dimension_numbers<[1], [0], [0], [1], [0, 0, 1, 1], [], []>} : vector<8x8xf32>, vector<8x32xf32>, vector<8x32xf32> -> vector<8x32xf32>
    %670 = tpu.concatenate %668, %667, %636 in 1 : vector<16x32xf32>, vector<16x32xf32>, vector<16x32xf32> -> vector<16x96xf32>
    %cst_320 = arith.constant dense<0.000000e+00> : vector<16x128xf32>
    %671 = tpu.matmul %670, %11, %cst_320 {dimension_numbers = #tpu.dot_dimension_numbers<[1], [0], [0], [1], [0, 0, 1, 1], [], []>} : vector<16x96xf32>, vector<96x128xf32>, vector<16x128xf32> -> vector<16x128xf32>
    %672 = arith.addf %671, %15 : vector<16x128xf32>
    %673 = tpu.concatenate %669, %637 in 1 : vector<8x32xf32>, vector<8x32xf32> -> vector<8x64xf32>
    %cst_321 = arith.constant dense<0.000000e+00> : vector<8x128xf32>
    %674 = tpu.matmul %673, %12, %cst_321 {dimension_numbers = #tpu.dot_dimension_numbers<[1], [0], [0], [1], [0, 0, 1, 1], [], []>} : vector<8x64xf32>, vector<64x128xf32>, vector<8x128xf32> -> vector<8x128xf32>
    %675 = arith.addf %674, %18 : vector<8x128xf32>
    %c0_322 = arith.constant 0 : index
    %c0_323 = arith.constant 0 : index
    %676 = vector.load %arg19[%c0_322, %c0_323] : memref<16x32xf32, #tpu.memory_space<vmem>>, vector<16x32xf32>
    %677 = arith.mulf %672, %45 : vector<16x128xf32>
    %678 = arith.negf %677 : vector<16x128xf32>
    %679 = math.exp %678 : vector<16x128xf32>
    %cst_324 = arith.constant 1.000000e+00 : f32
    %680 = vector.broadcast %cst_324 : f32 to vector<16x128xf32>
    %681 = arith.addf %680, %679 : vector<16x128xf32>
    %682 = arith.divf %680, %681 : vector<16x128xf32>
    %683 = vector.extract_strided_slice %682 {offsets = [0, 0], sizes = [16, 32], strides = [1, 1]} : vector<16x128xf32> to vector<16x32xf32>
    %684 = vector.extract_strided_slice %682 {offsets = [0, 32], sizes = [16, 32], strides = [1, 1]} : vector<16x128xf32> to vector<16x32xf32>
    %685 = vector.extract_strided_slice %682 {offsets = [0, 64], sizes = [16, 32], strides = [1, 1]} : vector<16x128xf32> to vector<16x32xf32>
    %cst_325 = arith.constant 2.000000e+00 : f32
    %686 = vector.broadcast %cst_325 : f32 to vector<16x32xf32>
    %687 = arith.mulf %686, %685 : vector<16x32xf32>
    %cst_326 = arith.constant 1.000000e+00 : f32
    %688 = vector.broadcast %cst_326 : f32 to vector<16x32xf32>
    %689 = arith.subf %687, %688 : vector<16x32xf32>
    %690 = vector.extract_strided_slice %682 {offsets = [0, 96], sizes = [16, 32], strides = [1, 1]} : vector<16x128xf32> to vector<16x32xf32>
    %691 = arith.mulf %684, %676 : vector<16x32xf32>
    %692 = arith.mulf %683, %689 : vector<16x32xf32>
    %693 = arith.addf %691, %692 : vector<16x32xf32>
    %694 = math.tanh %693 : vector<16x32xf32>
    %695 = arith.mulf %690, %694 : vector<16x32xf32>
    %c0_327 = arith.constant 0 : index
    %c0_328 = arith.constant 0 : index
    %696 = vector.load %arg20[%c0_327, %c0_328] : memref<8x32xf32, #tpu.memory_space<vmem>>, vector<8x32xf32>
    %697 = arith.mulf %675, %47 : vector<8x128xf32>
    %698 = arith.negf %697 : vector<8x128xf32>
    %699 = math.exp %698 : vector<8x128xf32>
    %cst_329 = arith.constant 1.000000e+00 : f32
    %700 = vector.broadcast %cst_329 : f32 to vector<8x128xf32>
    %701 = arith.addf %700, %699 : vector<8x128xf32>
    %702 = arith.divf %700, %701 : vector<8x128xf32>
    %703 = vector.extract_strided_slice %702 {offsets = [0, 0], sizes = [8, 32], strides = [1, 1]} : vector<8x128xf32> to vector<8x32xf32>
    %704 = vector.extract_strided_slice %702 {offsets = [0, 32], sizes = [8, 32], strides = [1, 1]} : vector<8x128xf32> to vector<8x32xf32>
    %705 = vector.extract_strided_slice %702 {offsets = [0, 64], sizes = [8, 32], strides = [1, 1]} : vector<8x128xf32> to vector<8x32xf32>
    %cst_330 = arith.constant 2.000000e+00 : f32
    %706 = vector.broadcast %cst_330 : f32 to vector<8x32xf32>
    %707 = arith.mulf %706, %705 : vector<8x32xf32>
    %cst_331 = arith.constant 1.000000e+00 : f32
    %708 = vector.broadcast %cst_331 : f32 to vector<8x32xf32>
    %709 = arith.subf %707, %708 : vector<8x32xf32>
    %710 = vector.extract_strided_slice %702 {offsets = [0, 96], sizes = [8, 32], strides = [1, 1]} : vector<8x128xf32> to vector<8x32xf32>
    %711 = arith.mulf %704, %696 : vector<8x32xf32>
    %712 = arith.mulf %703, %709 : vector<8x32xf32>
    %713 = arith.addf %711, %712 : vector<8x32xf32>
    %714 = math.tanh %713 : vector<8x32xf32>
    %715 = arith.mulf %710, %714 : vector<8x32xf32>
    %c0_332 = arith.constant 0 : index
    %c0_333 = arith.constant 0 : index
    %716 = vector.load %arg17[%c0_332, %c0_333] : memref<16x32xf32, #tpu.memory_space<vmem>>, vector<16x32xf32>
    tpu.vector_store %arg17[%c0_332, %c0_333], %695 {strides = array<i32>} : memref<16x32xf32, #tpu.memory_space<vmem>>, vector<16x32xf32>,
    %c0_334 = arith.constant 0 : index
    %c0_335 = arith.constant 0 : index
    %717 = vector.load %arg19[%c0_334, %c0_335] : memref<16x32xf32, #tpu.memory_space<vmem>>, vector<16x32xf32>
    tpu.vector_store %arg19[%c0_334, %c0_335], %693 {strides = array<i32>} : memref<16x32xf32, #tpu.memory_space<vmem>>, vector<16x32xf32>,
    %c0_336 = arith.constant 0 : index
    %c0_337 = arith.constant 0 : index
    %718 = vector.load %arg18[%c0_336, %c0_337] : memref<8x32xf32, #tpu.memory_space<vmem>>, vector<8x32xf32>
    tpu.vector_store %arg18[%c0_336, %c0_337], %715 {strides = array<i32>} : memref<8x32xf32, #tpu.memory_space<vmem>>, vector<8x32xf32>,
    %c0_338 = arith.constant 0 : index
    %c0_339 = arith.constant 0 : index
    %719 = vector.load %arg20[%c0_338, %c0_339] : memref<8x32xf32, #tpu.memory_space<vmem>>, vector<8x32xf32>
    tpu.vector_store %arg20[%c0_338, %c0_339], %713 {strides = array<i32>} : memref<8x32xf32, #tpu.memory_space<vmem>>, vector<8x32xf32>,
    return
  }
}

</mosaic_0001>

<llo_original>
// kernel: rec_gnn_forward.1
$region0: #{rec_gnn_forward.1}
  #allocation0 [shape = 'u32[]', space=smem, size = 0x4, offset = 0x4, fixed_abs, tag = 'smem constant byte address 0x4 - core index']
  #allocation1 [shape = 'u32[144,128]{1,0:T(1,128)}', space=vmem, size = 0x12000, scoped, tag = 'internal scratch']
  #allocation2 [shape = 'f32[8,32]{1,0:T(8,128)}', space=vmem, size = 0x1000, scoped, tag = 'scratch operand']
  #allocation3 [shape = 'f32[16,32]{1,0:T(8,128)}', space=vmem, size = 0x2000, scoped, tag = 'scratch operand']
  #allocation4 [shape = 'f32[8,32]{1,0:T(8,128)}', space=vmem, size = 0x1000, scoped, tag = 'scratch operand']
  %s0 = inlined_call_operand.vmem [shape: f32[16,8], index: 0, kind: input, shape index: {}]
  %s1 = inlined_call_operand.vmem [shape: f32[16,4], index: 1, kind: input, shape index: {}]
  %s2 = inlined_call_operand.vmem [shape: f32[8,8], index: 2, kind: input, shape index: {}]
  %s3 = inlined_call_operand.vmem [shape: f32[16,32], index: 3, kind: input, shape index: {}, may-alias: {3,17}]
  %s4 = inlined_call_operand.vmem [shape: f32[8,32], index: 4, kind: input, shape index: {}]
  %s5 = inlined_call_operand.vmem [shape: f32[96,128], index: 5, kind: input, shape index: {}]
  %s6 = inlined_call_operand.vmem [shape: f32[1,128], index: 6, kind: input, shape index: {}]
  %s7 = inlined_call_operand.vmem [shape: f32[64,128], index: 7, kind: input, shape index: {}]
  %s8 = inlined_call_operand.vmem [shape: f32[1,128], index: 8, kind: input, shape index: {}]
  %s9 = inlined_call_operand.vmem [shape: f32[32,128], index: 9, kind: input, shape index: {}]
  %s10 = inlined_call_operand.vmem [shape: f32[1,128], index: 10, kind: input, shape index: {}]
  %s11 = inlined_call_operand.vmem [shape: f32[128,32], index: 11, kind: input, shape index: {}]
  %s12 = inlined_call_operand.vmem [shape: f32[1,32], index: 12, kind: input, shape index: {}]
  %s13 = inlined_call_operand.vmem [shape: f32[32,128], index: 13, kind: input, shape index: {}]
  %s14 = inlined_call_operand.vmem [shape: f32[1,128], index: 14, kind: input, shape index: {}]
  %s15 = inlined_call_operand.vmem [shape: f32[128,32], index: 15, kind: input, shape index: {}]
  %s16 = inlined_call_operand.vmem [shape: f32[1,32], index: 16, kind: input, shape index: {}]
  %s17 = inlined_call_operand.vmem [shape: f32[16,32], index: 17, kind: output, shape index: {}, may-alias: {3,17}]
  %s18 = sld [smem:[#allocation0]]
  $region78: #{rec_gnn_forward.1} parent=0
    _
  %s20 = ssub.s32 1, %s18
  %s21 = scalar_select 0, %s20, %s18
  // Predicated region
  $region2: #{rec_gnn_forward.1} parent=0 // pred_check
    _
  $region3: #{rec_gnn_forward.1} parent=0 // pred_check_branch
    %23 = sbr.rel (0) target = $region5
  $region4: #{rec_gnn_forward.1} parent=0 // pred_region
    _
  $region5: #{rec_gnn_forward.1} parent=0 // pred_fallthru
    _
  // Predicated region
  $region6: #{rec_gnn_forward.1} parent=0 // pred_check
    _
  $region7: #{rec_gnn_forward.1} parent=0 // pred_check_branch
    %25 = sbr.rel (0) target = $region9
  $region8: #{rec_gnn_forward.1} parent=0 // pred_region
    _
  $region9: #{rec_gnn_forward.1} parent=0 // pred_fallthru
    _
  // Predicated region
  $region10: #{rec_gnn_forward.1} parent=0 // pred_check
    _
  $region11: #{rec_gnn_forward.1} parent=0 // pred_check_branch
    %27 = sbr.rel (0) target = $region13
  $region12: #{rec_gnn_forward.1} parent=0 // pred_region
    _
  $region13: #{rec_gnn_forward.1} parent=0 // pred_fallthru
    _
  // Predicated region
  $region14: #{rec_gnn_forward.1} parent=0 // pred_check
    _
  $region15: #{rec_gnn_forward.1} parent=0 // pred_check_branch
    %29 = sbr.rel (0) target = $region17
  $region16: #{rec_gnn_forward.1} parent=0 // pred_region
    _
  $region17: #{rec_gnn_forward.1} parent=0 // pred_fallthru
    _
  // Predicated region
  $region18: #{rec_gnn_forward.1} parent=0 // pred_check
    _
  $region19: #{rec_gnn_forward.1} parent=0 // pred_check_branch
    %31 = sbr.rel (0) target = $region21
  $region20: #{rec_gnn_forward.1} parent=0 // pred_region
    _
  $region21: #{rec_gnn_forward.1} parent=0 // pred_fallthru
    _
  // Predicated region
  $region22: #{rec_gnn_forward.1} parent=0 // pred_check
    _
  $region23: #{rec_gnn_forward.1} parent=0 // pred_check_branch
    %33 = sbr.rel (0) target = $region25
  $region24: #{rec_gnn_forward.1} parent=0 // pred_region
    _
  $region25: #{rec_gnn_forward.1} parent=0 // pred_fallthru
    _
  // Predicated region
  $region26: #{rec_gnn_forward.1} parent=0 // pred_check
    _
  $region27: #{rec_gnn_forward.1} parent=0 // pred_check_branch
    %35 = sbr.rel (0) target = $region29
  $region28: #{rec_gnn_forward.1} parent=0 // pred_region
    _
  $region29: #{rec_gnn_forward.1} parent=0 // pred_fallthru
    _
  // Predicated region
  $region30: #{rec_gnn_forward.1} parent=0 // pred_check
    _
  $region31: #{rec_gnn_forward.1} parent=0 // pred_check_branch
    %37 = sbr.rel (0) target = $region33
  $region32: #{rec_gnn_forward.1} parent=0 // pred_region
    _
  $region33: #{rec_gnn_forward.1} parent=0 // pred_fallthru
    _
  // Predicated region
  $region34: #{rec_gnn_forward.1} parent=0 // pred_check
    _
  $region35: #{rec_gnn_forward.1} parent=0 // pred_check_branch
    %39 = sbr.rel (0) target = $region37
  $region36: #{rec_gnn_forward.1} parent=0 // pred_region
    _
  $region37: #{rec_gnn_forward.1} parent=0 // pred_fallthru
    _
  // Predicated region
  $region38: #{rec_gnn_forward.1} parent=0 // pred_check
    _
  $region39: #{rec_gnn_forward.1} parent=0 // pred_check_branch
    %41 = sbr.rel (0) target = $region41
  $region40: #{rec_gnn_forward.1} parent=0 // pred_region
    _
  $region41: #{rec_gnn_forward.1} parent=0 // pred_fallthru
    _
  // Predicated region
  $region42: #{rec_gnn_forward.1} parent=0 // pred_check
    _
  $region43: #{rec_gnn_forward.1} parent=0 // pred_check_branch
    %43 = sbr.rel (0) target = $region45
  $region44: #{rec_gnn_forward.1} parent=0 // pred_region
    _
  $region45: #{rec_gnn_forward.1} parent=0 // pred_fallthru
    _
  // Predicated region
  $region46: #{rec_gnn_forward.1} parent=0 // pred_check
    _
  $region47: #{rec_gnn_forward.1} parent=0 // pred_check_branch
    %45 = sbr.rel (0) target = $region49
  $region48: #{rec_gnn_forward.1} parent=0 // pred_region
    _
  $region49: #{rec_gnn_forward.1} parent=0 // pred_fallthru
    _
  // Predicated region
  $region50: #{rec_gnn_forward.1} parent=0 // pred_check
    _
  $region51: #{rec_gnn_forward.1} parent=0 // pred_check_branch
    %47 = sbr.rel (0) target = $region53
  $region52: #{rec_gnn_forward.1} parent=0 // pred_region
    _
  $region53: #{rec_gnn_forward.1} parent=0 // pred_fallthru
    _
  // Predicated region
  $region54: #{rec_gnn_forward.1} parent=0 // pred_check
    _
  $region55: #{rec_gnn_forward.1} parent=0 // pred_check_branch
    %49 = sbr.rel (0) target = $region57
  $region56: #{rec_gnn_forward.1} parent=0 // pred_region
    _
  $region57: #{rec_gnn_forward.1} parent=0 // pred_fallthru
    _
  // Predicated region
  $region58: #{rec_gnn_forward.1} parent=0 // pred_check
    _
  $region59: #{rec_gnn_forward.1} parent=0 // pred_check_branch
    %51 = sbr.rel (0) target = $region61
  $region60: #{rec_gnn_forward.1} parent=0 // pred_region
    _
  $region61: #{rec_gnn_forward.1} parent=0 // pred_fallthru
    _
  // Predicated region
  $region62: #{rec_gnn_forward.1} parent=0 // pred_check
    _
  $region63: #{rec_gnn_forward.1} parent=0 // pred_check_branch
    %53 = sbr.rel (0) target = $region65
  $region64: #{rec_gnn_forward.1} parent=0 // pred_region
    _
  $region65: #{rec_gnn_forward.1} parent=0 // pred_fallthru
    _
  // Predicated region
  $region66: #{rec_gnn_forward.1} parent=0 // pred_check
    _
  $region67: #{rec_gnn_forward.1} parent=0 // pred_check_branch
    %55 = sbr.rel (0) target = $region69
  $region68: #{rec_gnn_forward.1} parent=0 // pred_region
    _
  $region69: #{rec_gnn_forward.1} parent=0 // pred_fallthru
    _
  %v56 = vld [vmem:[%s3] sm:$0xff]
  %v57 = vld [vmem:[%s3 + $0x8] sm:$0xff]
  %vm58 = vcmask 261120
  %59 = vst.msk [vmem:[%s17] sm:$0xff] %vm58, %v56
  %60 = vst.msk [vmem:[%s17 + $0x8] sm:$0xff] %vm58, %v57
  %v61 = vld [vmem:[%s4] sm:$0xff]
  %62 = vst.msk [vmem:[#allocation2] sm:$0xff] %vm58, %v61
  %63 = vst.msk [vmem:[#allocation3] sm:$0xff] %vm58, 0.0
  %64 = vst.msk [vmem:[#allocation3 + $0x8] sm:$0xff] %vm58, 0.0
  %65 = vst.msk [vmem:[#allocation4] sm:$0xff] %vm58, 0.0
  %v66 = vld [vmem:[%s0] sm:$0xff]
  %v67 = vld [vmem:[%s0 + $0x8] sm:$0xff]
  %v68 = vld [vmem:[%s1] sm:$0xff]
  %v69 = vld [vmem:[%s1 + $0x8] sm:$0xff]
  %v70 = vld [vmem:[%s2] sm:$0xff]
  %v71 = vld [vmem:[%s5] sm:$0xff]
  %v72 = vld [vmem:[%s5 + $0x8] sm:$0xff]
  %v73 = vld [vmem:[%s5 + $0x10] sm:$0xff]
  %v74 = vld [vmem:[%s5 + $0x18] sm:$0xff]
  %v75 = vld [vmem:[%s5 + $0x20] sm:$0xff]
  %v76 = vld [vmem:[%s5 + $0x28] sm:$0xff]
  %v77 = vld [vmem:[%s5 + $0x30] sm:$0xff]
  %v78 = vld [vmem:[%s5 + $0x38] sm:$0xff]
  %v79 = vld [vmem:[%s5 + $0x40] sm:$0xff]
  %v80 = vld [vmem:[%s5 + $0x48] sm:$0xff]
  %v81 = vld [vmem:[%s5 + $0x50] sm:$0xff]
  %v82 = vld [vmem:[%s5 + $0x58] sm:$0xff]
  %v83 = vld [vmem:[%s7] sm:$0xff]
  %v84 = vld [vmem:[%s7 + $0x8] sm:$0xff]
  %v85 = vld [vmem:[%s7 + $0x10] sm:$0xff]
  %v86 = vld [vmem:[%s7 + $0x18] sm:$0xff]
  %v87 = vld [vmem:[%s7 + $0x20] sm:$0xff]
  %v88 = vld [vmem:[%s7 + $0x28] sm:$0xff]
  %v89 = vld [vmem:[%s7 + $0x30] sm:$0xff]
  %v90 = vld [vmem:[%s7 + $0x38] sm:$0xff]
  %v91 = vld [vmem:[%s6] sm:$0x1]
  %v93 = vlaneseq
  %v94 = vshrl.u32 %v93, 7
  %v95 = vsub.s32 0, %v94
  %v96 = vrot.slane %v91, %v95
  %v98 = vld [vmem:[%s8] sm:$0x1]
  %v100 = vlaneseq
  %v101 = vshrl.u32 %v100, 7
  %v102 = vsub.s32 0, %v101
  %v103 = vrot.slane %v98, %v102
  %v105 = vld [vmem:[%s9] sm:$0xff]
  %v106 = vld [vmem:[%s9 + $0x8] sm:$0xff]
  %v107 = vld [vmem:[%s9 + $0x10] sm:$0xff]
  %v108 = vld [vmem:[%s9 + $0x18] sm:$0xff]
  %v109 = vld [vmem:[%s11] sm:$0xff]
  %v110 = vld [vmem:[%s11 + $0x8] sm:$0xff]
  %v111 = vld [vmem:[%s11 + $0x10] sm:$0xff]
  %v112 = vld [vmem:[%s11 + $0x18] sm:$0xff]
  %v113 = vld [vmem:[%s11 + $0x20] sm:$0xff]
  %v114 = vld [vmem:[%s11 + $0x28] sm:$0xff]
  %v115 = vld [vmem:[%s11 + $0x30] sm:$0xff]
  %v116 = vld [vmem:[%s11 + $0x38] sm:$0xff]
  %v117 = vld [vmem:[%s11 + $0x40] sm:$0xff]
  %v118 = vld [vmem:[%s11 + $0x48] sm:$0xff]
  %v119 = vld [vmem:[%s11 + $0x50] sm:$0xff]
  %v120 = vld [vmem:[%s11 + $0x58] sm:$0xff]
  %v121 = vld [vmem:[%s11 + $0x60] sm:$0xff]
  %v122 = vld [vmem:[%s11 + $0x68] sm:$0xff]
  %v123 = vld [vmem:[%s11 + $0x70] sm:$0xff]
  %v124 = vld [vmem:[%s11 + $0x78] sm:$0xff]
  %v125 = vld [vmem:[%s13] sm:$0xff]
  %v126 = vld [vmem:[%s13 + $0x8] sm:$0xff]
  %v127 = vld [vmem:[%s13 + $0x10] sm:$0xff]
  %v128 = vld [vmem:[%s13 + $0x18] sm:$0xff]
  %v129 = vld [vmem:[%s15] sm:$0xff]
  %v130 = vld [vmem:[%s15 + $0x8] sm:$0xff]
  %v131 = vld [vmem:[%s15 + $0x10] sm:$0xff]
  %v132 = vld [vmem:[%s15 + $0x18] sm:$0xff]
  %v133 = vld [vmem:[%s15 + $0x20] sm:$0xff]
  %v134 = vld [vmem:[%s15 + $0x28] sm:$0xff]
  %v135 = vld [vmem:[%s15 + $0x30] sm:$0xff]
  %v136 = vld [vmem:[%s15 + $0x38] sm:$0xff]
  %v137 = vld [vmem:[%s15 + $0x40] sm:$0xff]
  %v138 = vld [vmem:[%s15 + $0x48] sm:$0xff]
  %v139 = vld [vmem:[%s15 + $0x50] sm:$0xff]
  %v140 = vld [vmem:[%s15 + $0x58] sm:$0xff]
  %v141 = vld [vmem:[%s15 + $0x60] sm:$0xff]
  %v142 = vld [vmem:[%s15 + $0x68] sm:$0xff]
  %v143 = vld [vmem:[%s15 + $0x70] sm:$0xff]
  %v144 = vld [vmem:[%s15 + $0x78] sm:$0xff]
  %v145 = vld [vmem:[%s10] sm:$0x1]
  %v147 = vlaneseq
  %v148 = vshrl.u32 %v147, 7
  %v149 = vsub.s32 0, %v148
  %v150 = vrot.slane %v145, %v149
  %v152 = vld [vmem:[%s12] sm:$0x1]
  %v154 = vlaneseq
  %v155 = vshrl.u32 %v154, 7
  %v156 = vsub.s32 0, %v155
  %v157 = vrot.slane %v152, %v156
  %v159 = vld [vmem:[%s14] sm:$0x1]
  %v161 = vlaneseq
  %v162 = vshrl.u32 %v161, 7
  %v163 = vsub.s32 0, %v162
  %v164 = vrot.slane %v159, %v163
  %v166 = vld [vmem:[%s16] sm:$0x1]
  %v168 = vlaneseq
  %v169 = vshrl.u32 %v168, 7
  %v170 = vsub.s32 0, %v169
  %v171 = vrot.slane %v166, %v170
  %v173 = vlaneseq
  %v174 = vand.u32 %v173, 127
  %vm175 = vcmp.ge.s32.totalorder %v174, 64
  %vm176 = vcmp.lt.s32.totalorder %v174, 96
  %vm177 = vmand %vm175, %vm176
  %v178 = vsel %vm177, 2.0, 1.0
  %v179 = vld [vmem:[%s17] sm:$0xff]
  %v180 = vld [vmem:[%s17 + $0x8] sm:$0xff]
  %v181 = vld [vmem:[#allocation2] sm:$0xff]
  %v183 = vsel %vm58, %v180, 0
  %185 = vmatprep.subr.mxu0 0.0
  %186 = vmatpush1.msra.mxu0 0.0
  %187 = vmatprep.subr.mxu0 0.0
  %188 = vmatpush1.msra.mxu0 0.0
  %189 = vmatprep.subr.mxu0 0.0
  %190 = vmatpush1.msra.mxu0 0.0
  %191 = vmatprep.subr.mxu0 0.0
  %192 = vmatpush1.msra.mxu0 0.0
  %193 = vmatprep.subr.mxu0 0.0
  %194 = vmatpush1.msra.mxu0 0.0
  %195 = vmatprep.subr.mxu0 0.0
  %196 = vmatpush1.msra.mxu0 0.0
  %197 = vmatprep.subr.mxu0 0.0
  %198 = vmatpush1.msra.mxu0 0.0
  %199 = vmatprep.subr.mxu0 0.0
  %200 = vmatpush1.msra.mxu0 0.0
  %201 = vmatprep.subr.mxu0 0.0
  %202 = vmatpush1.msra.mxu0 0.0
  %203 = vmatprep.subr.mxu0 0.0
  %204 = vmatpush1.msra.mxu0 0.0
  %205 = vmatprep.subr.mxu0 0.0
  %206 = vmatpush1.msra.mxu0 0.0
  %207 = vmatprep.subr.mxu0 0.0
  %208 = vmatpush1.msra.mxu0 0.0
  %209 = vmatprep.subr.mxu0 0.0
  %210 = vmatpush1.msra.mxu0 %v128
  %211 = vmatprep.subr.mxu0 0.0
  %212 = vmatpush1.msra.mxu0 %v127
  %213 = vmatprep.subr.mxu0 0.0
  %214 = vmatpush1.msra.mxu0 %v126
  %215 = vmatprep.subr.mxu0 0.0
  %216 = vmatpush1.msra.mxu0 %v125
  %217 = vmatprep.subr.mxu0 0.0
  %218 = vmatpush2.msra.mxu0 0.0
  %219 = vmatprep.subr.mxu0 0.0
  %220 = vmatpush2.msra.mxu0 0.0
  %221 = vmatprep.subr.mxu0 0.0
  %222 = vmatpush2.msra.mxu0 0.0
  %223 = vmatprep.subr.mxu0 0.0
  %224 = vmatpush2.msra.mxu0 0.0
  %225 = vmatprep.subr.mxu0 0.0
  %226 = vmatpush2.msra.mxu0 0.0
  %227 = vmatprep.subr.mxu0 0.0
  %228 = vmatpush2.msra.mxu0 0.0
  %229 = vmatprep.subr.mxu0 0.0
  %230 = vmatpush2.msra.mxu0 0.0
  %231 = vmatprep.subr.mxu0 0.0
  %232 = vmatpush2.msra.mxu0 0.0
  %233 = vmatprep.subr.mxu0 0.0
  %234 = vmatpush2.msra.mxu0 0.0
  %235 = vmatprep.subr.mxu0 0.0
  %236 = vmatpush2.msra.mxu0 0.0
  %237 = vmatprep.subr.mxu0 0.0
  %238 = vmatpush2.msra.mxu0 0.0
  %239 = vmatprep.subr.mxu0 0.0
  %240 = vmatpush2.msra.mxu0 0.0
  %241 = vmatprep.subr.mxu0 0.0
  %242 = vmatpush2.msra.mxu0 0.0
  %243 = vmatprep.subr.mxu0 0.0
  %244 = vmatpush2.msra.mxu0 0.0
  %245 = vmatprep.subr.mxu0 0.0
  %246 = vmatpush2.msra.mxu0 0.0
  %247 = vmatprep.subr.mxu0 0.0
  %248 = vmatpush2.msra.mxu0 0.0
  %249 = vmatprep.mubr.f32.mxu0 0.0
  %250 = vmatmul.mubr.f32.gmra.mxu0 %v183
  %v251 = vpop.f32.mrf.mxu0
  %v252 = vadd.f32 %v164, %v251
  %v253 = vpop.f32.mrf.mxu0
  %254 = vdwg.mxu0
  %v255 = vmax.f32 %v252, 0.0
  %256 = vmatprep.subr.mxu0 0.0
  %257 = vmatpush1.msra.mxu0 %v144
  %258 = vmatprep.subr.mxu0 0.0
  %259 = vmatpush1.msra.mxu0 %v143
  %260 = vmatprep.subr.mxu0 0.0
  %261 = vmatpush1.msra.mxu0 %v142
  %262 = vmatprep.subr.mxu0 0.0
  %263 = vmatpush1.msra.mxu0 %v141
  %264 = vmatprep.subr.mxu0 0.0
  %265 = vmatpush1.msra.mxu0 %v140
  %266 = vmatprep.subr.mxu0 0.0
  %267 = vmatpush1.msra.mxu0 %v139
  %268 = vmatprep.subr.mxu0 0.0
  %269 = vmatpush1.msra.mxu0 %v138
  %270 = vmatprep.subr.mxu0 0.0
  %271 = vmatpush1.msra.mxu0 %v137
  %272 = vmatprep.subr.mxu0 0.0
  %273 = vmatpush1.msra.mxu0 %v136
  %274 = vmatprep.subr.mxu0 0.0
  %275 = vmatpush1.msra.mxu0 %v135
  %276 = vmatprep.subr.mxu0 0.0
  %277 = vmatpush1.msra.mxu0 %v134
  %278 = vmatprep.subr.mxu0 0.0
  %279 = vmatpush1.msra.mxu0 %v133
  %280 = vmatprep.subr.mxu0 0.0
  %281 = vmatpush1.msra.mxu0 %v132
  %282 = vmatprep.subr.mxu0 0.0
  %283 = vmatpush1.msra.mxu0 %v131
  %284 = vmatprep.subr.mxu0 0.0
  %285 = vmatpush1.msra.mxu0 %v130
  %286 = vmatprep.subr.mxu0 0.0
  %287 = vmatpush1.msra.mxu0 %v129
  %288 = vmatprep.subr.mxu0 0.0
  %289 = vmatpush2.msra.mxu0 0.0
  %290 = vmatprep.subr.mxu0 0.0
  %291 = vmatpush2.msra.mxu0 0.0
  %292 = vmatprep.subr.mxu0 0.0
  %293 = vmatpush2.msra.mxu0 0.0
  %294 = vmatprep.subr.mxu0 0.0
  %295 = vmatpush2.msra.mxu0 0.0
  %296 = vmatprep.subr.mxu0 0.0
  %297 = vmatpush2.msra.mxu0 0.0
  %298 = vmatprep.subr.mxu0 0.0
  %299 = vmatpush2.msra.mxu0 0.0
  %300 = vmatprep.subr.mxu0 0.0
  %301 = vmatpush2.msra.mxu0 0.0
  %302 = vmatprep.subr.mxu0 0.0
  %303 = vmatpush2.msra.mxu0 0.0
  %304 = vmatprep.subr.mxu0 0.0
  %305 = vmatpush2.msra.mxu0 0.0
  %306 = vmatprep.subr.mxu0 0.0
  %307 = vmatpush2.msra.mxu0 0.0
  %308 = vmatprep.subr.mxu0 0.0
  %309 = vmatpush2.msra.mxu0 0.0
  %310 = vmatprep.subr.mxu0 0.0
  %311 = vmatpush2.msra.mxu0 0.0
  %312 = vmatprep.subr.mxu0 0.0
  %313 = vmatpush2.msra.mxu0 0.0
  %314 = vmatprep.subr.mxu0 0.0
  %315 = vmatpush2.msra.mxu0 0.0
  %316 = vmatprep.subr.mxu0 0.0
  %317 = vmatpush2.msra.mxu0 0.0
  %318 = vmatprep.subr.mxu0 0.0
  %319 = vmatpush2.msra.mxu0 0.0
  %320 = vmatprep.mubr.f32.mxu0 0.0
  %321 = vmatmul.mubr.f32.gmra.mxu0 %v255
  %v322 = vpop.f32.mrf.mxu0
  %v323 = vadd.f32 %v171, %v322
  %v324 = vpop.f32.mrf.mxu0
  %325 = vdwg.mxu0
  %v326 = vmax.f32 %v323, 0.0
  %v328 = vsel %vm58, %v181, 0
  %330 = vmatprep.subr.mxu0 0.0
  %331 = vmatpush1.msra.mxu0 0.0
  %332 = vmatprep.subr.mxu0 0.0
  %333 = vmatpush1.msra.mxu0 0.0
  %334 = vmatprep.subr.mxu0 0.0
  %335 = vmatpush1.msra.mxu0 0.0
  %336 = vmatprep.subr.mxu0 0.0
  %337 = vmatpush1.msra.mxu0 0.0
  %338 = vmatprep.subr.mxu0 0.0
  %339 = vmatpush1.msra.mxu0 0.0
  %340 = vmatprep.subr.mxu0 0.0
  %341 = vmatpush1.msra.mxu0 0.0
  %342 = vmatprep.subr.mxu0 0.0
  %343 = vmatpush1.msra.mxu0 0.0
  %344 = vmatprep.subr.mxu0 0.0
  %345 = vmatpush1.msra.mxu0 0.0
  %346 = vmatprep.subr.mxu0 0.0
  %347 = vmatpush1.msra.mxu0 0.0
  %348 = vmatprep.subr.mxu0 0.0
  %349 = vmatpush1.msra.mxu0 0.0
  %350 = vmatprep.subr.mxu0 0.0
  %351 = vmatpush1.msra.mxu0 0.0
  %352 = vmatprep.subr.mxu0 0.0
  %353 = vmatpush1.msra.mxu0 0.0
  %354 = vmatprep.subr.mxu0 0.0
  %355 = vmatpush1.msra.mxu0 %v108
  %356 = vmatprep.subr.mxu0 0.0
  %357 = vmatpush1.msra.mxu0 %v107
  %358 = vmatprep.subr.mxu0 0.0
  %359 = vmatpush1.msra.mxu0 %v106
  %360 = vmatprep.subr.mxu0 0.0
  %361 = vmatpush1.msra.mxu0 %v105
  %362 = vmatprep.subr.mxu0 0.0
  %363 = vmatpush2.msra.mxu0 0.0
  %364 = vmatprep.subr.mxu0 0.0
  %365 = vmatpush2.msra.mxu0 0.0
  %366 = vmatprep.subr.mxu0 0.0
  %367 = vmatpush2.msra.mxu0 0.0
  %368 = vmatprep.subr.mxu0 0.0
  %369 = vmatpush2.msra.mxu0 0.0
  %370 = vmatprep.subr.mxu0 0.0
  %371 = vmatpush2.msra.mxu0 0.0
  %372 = vmatprep.subr.mxu0 0.0
  %373 = vmatpush2.msra.mxu0 0.0
  %374 = vmatprep.subr.mxu0 0.0
  %375 = vmatpush2.msra.mxu0 0.0
  %376 = vmatprep.subr.mxu0 0.0
  %377 = vmatpush2.msra.mxu0 0.0
  %378 = vmatprep.subr.mxu0 0.0
  %379 = vmatpush2.msra.mxu0 0.0
  %380 = vmatprep.subr.mxu0 0.0
  %381 = vmatpush2.msra.mxu0 0.0
  %382 = vmatprep.subr.mxu0 0.0
  %383 = vmatpush2.msra.mxu0 0.0
  %384 = vmatprep.subr.mxu0 0.0
  %385 = vmatpush2.msra.mxu0 0.0
  %386 = vmatprep.subr.mxu0 0.0
  %387 = vmatpush2.msra.mxu0 0.0
  %388 = vmatprep.subr.mxu0 0.0
  %389 = vmatpush2.msra.mxu0 0.0
  %390 = vmatprep.subr.mxu0 0.0
  %391 = vmatpush2.msra.mxu0 0.0
  %392 = vmatprep.subr.mxu0 0.0
  %393 = vmatpush2.msra.mxu0 0.0
  %394 = vmatprep.mubr.f32.mxu0 0.0
  %395 = vmatmul.mubr.f32.gmra.mxu0 %v328
  %v396 = vpop.f32.mrf.mxu0
  %v397 = vadd.f32 %v150, %v396
  %v398 = vpop.f32.mrf.mxu0
  %399 = vdwg.mxu0
  %v400 = vmax.f32 %v397, 0.0
  %401 = vmatprep.subr.mxu0 0.0
  %402 = vmatpush1.msra.mxu0 %v124
  %403 = vmatprep.subr.mxu0 0.0
  %404 = vmatpush1.msra.mxu0 %v123
  %405 = vmatprep.subr.mxu0 0.0
  %406 = vmatpush1.msra.mxu0 %v122
  %407 = vmatprep.subr.mxu0 0.0
  %408 = vmatpush1.msra.mxu0 %v121
  %409 = vmatprep.subr.mxu0 0.0
  %410 = vmatpush1.msra.mxu0 %v120
  %411 = vmatprep.subr.mxu0 0.0
  %412 = vmatpush1.msra.mxu0 %v119
  %413 = vmatprep.subr.mxu0 0.0
  %414 = vmatpush1.msra.mxu0 %v118
  %415 = vmatprep.subr.mxu0 0.0
  %416 = vmatpush1.msra.mxu0 %v117
  %417 = vmatprep.subr.mxu0 0.0
  %418 = vmatpush1.msra.mxu0 %v116
  %419 = vmatprep.subr.mxu0 0.0
  %420 = vmatpush1.msra.mxu0 %v115
  %421 = vmatprep.subr.mxu0 0.0
  %422 = vmatpush1.msra.mxu0 %v114
  %423 = vmatprep.subr.mxu0 0.0
  %424 = vmatpush1.msra.mxu0 %v113
  %425 = vmatprep.subr.mxu0 0.0
  %426 = vmatpush1.msra.mxu0 %v112
  %427 = vmatprep.subr.mxu0 0.0
  %428 = vmatpush1.msra.mxu0 %v111
  %429 = vmatprep.subr.mxu0 0.0
  %430 = vmatpush1.msra.mxu0 %v110
  %431 = vmatprep.subr.mxu0 0.0
  %432 = vmatpush1.msra.mxu0 %v109
  %433 = vmatprep.subr.mxu0 0.0
  %434 = vmatpush2.msra.mxu0 0.0
  %435 = vmatprep.subr.mxu0 0.0
  %436 = vmatpush2.msra.mxu0 0.0
  %437 = vmatprep.subr.mxu0 0.0
  %438 = vmatpush2.msra.mxu0 0.0
  %439 = vmatprep.subr.mxu0 0.0
  %440 = vmatpush2.msra.mxu0 0.0
  %441 = vmatprep.subr.mxu0 0.0
  %442 = vmatpush2.msra.mxu0 0.0
  %443 = vmatprep.subr.mxu0 0.0
  %444 = vmatpush2.msra.mxu0 0.0
  %445 = vmatprep.subr.mxu0 0.0
  %446 = vmatpush2.msra.mxu0 0.0
  %447 = vmatprep.subr.mxu0 0.0
  %448 = vmatpush2.msra.mxu0 0.0
  %449 = vmatprep.subr.mxu0 0.0
  %450 = vmatpush2.msra.mxu0 0.0
  %451 = vmatprep.subr.mxu0 0.0
  %452 = vmatpush2.msra.mxu0 0.0
  %453 = vmatprep.subr.mxu0 0.0
  %454 = vmatpush2.msra.mxu0 0.0
  %455 = vmatprep.subr.mxu0 0.0
  %456 = vmatpush2.msra.mxu0 0.0
  %457 = vmatprep.subr.mxu0 0.0
  %458 = vmatpush2.msra.mxu0 0.0
  %459 = vmatprep.subr.mxu0 0.0
  %460 = vmatpush2.msra.mxu0 0.0
  %461 = vmatprep.subr.mxu0 0.0
  %462 = vmatpush2.msra.mxu0 0.0
  %463 = vmatprep.subr.mxu0 0.0
  %464 = vmatpush2.msra.mxu0 0.0
  %465 = vmatprep.mubr.f32.mxu0 0.0
  %466 = vmatmul.mubr.f32.gmra.mxu0 %v400
  %v467 = vpop.f32.mrf.mxu0
  %v468 = vadd.f32 %v157, %v467
  %v469 = vpop.f32.mrf.mxu0
  %470 = vdwg.mxu0
  %v471 = vmax.f32 %v468, 0.0
  %vm472 = vcmask 64512
  %v474 = vsel %vm472, %v66, 0
  %476 = vmatprep.subr.mxu0 0.0
  %477 = vmatpush1.msra.mxu0 0.0
  %478 = vmatprep.subr.mxu0 0.0
  %479 = vmatpush1.msra.mxu0 0.0
  %480 = vmatprep.subr.mxu0 0.0
  %481 = vmatpush1.msra.mxu0 0.0
  %482 = vmatprep.subr.mxu0 0.0
  %483 = vmatpush1.msra.mxu0 0.0
  %484 = vmatprep.subr.mxu0 0.0
  %485 = vmatpush1.msra.mxu0 0.0
  %486 = vmatprep.subr.mxu0 0.0
  %487 = vmatpush1.msra.mxu0 0.0
  %488 = vmatprep.subr.mxu0 0.0
  %489 = vmatpush1.msra.mxu0 0.0
  %490 = vmatprep.subr.mxu0 0.0
  %491 = vmatpush1.msra.mxu0 0.0
  %492 = vmatprep.subr.mxu0 0.0
  %493 = vmatpush1.msra.mxu0 0.0
  %494 = vmatprep.subr.mxu0 0.0
  %495 = vmatpush1.msra.mxu0 0.0
  %496 = vmatprep.subr.mxu0 0.0
  %497 = vmatpush1.msra.mxu0 0.0
  %498 = vmatprep.subr.mxu0 0.0
  %499 = vmatpush1.msra.mxu0 0.0
  %500 = vmatprep.subr.mxu0 0.0
  %501 = vmatpush1.msra.mxu0 0.0
  %502 = vmatprep.subr.mxu0 0.0
  %503 = vmatpush1.msra.mxu0 0.0
  %504 = vmatprep.subr.mxu0 0.0
  %505 = vmatpush1.msra.mxu0 0.0
  %506 = vmatprep.subr.mxu0 0.0
  %507 = vmatpush1.msra.mxu0 %v179
  %508 = vmatprep.subr.mxu0 0.0
  %509 = vmatpush2.msra.mxu0 0.0
  %510 = vmatprep.subr.mxu0 0.0
  %511 = vmatpush2.msra.mxu0 0.0
  %512 = vmatprep.subr.mxu0 0.0
  %513 = vmatpush2.msra.mxu0 0.0
  %514 = vmatprep.subr.mxu0 0.0
  %515 = vmatpush2.msra.mxu0 0.0
  %516 = vmatprep.subr.mxu0 0.0
  %517 = vmatpush2.msra.mxu0 0.0
  %518 = vmatprep.subr.mxu0 0.0
  %519 = vmatpush2.msra.mxu0 0.0
  %520 = vmatprep.subr.mxu0 0.0
  %521 = vmatpush2.msra.mxu0 0.0
  %522 = vmatprep.subr.mxu0 0.0
  %523 = vmatpush2.msra.mxu0 0.0
  %524 = vmatprep.subr.mxu0 0.0
  %525 = vmatpush2.msra.mxu0 0.0
  %526 = vmatprep.subr.mxu0 0.0
  %527 = vmatpush2.msra.mxu0 0.0
  %528 = vmatprep.subr.mxu0 0.0
  %529 = vmatpush2.msra.mxu0 0.0
  %530 = vmatprep.subr.mxu0 0.0
  %531 = vmatpush2.msra.mxu0 0.0
  %532 = vmatprep.subr.mxu0 0.0
  %533 = vmatpush2.msra.mxu0 0.0
  %534 = vmatprep.subr.mxu0 0.0
  %535 = vmatpush2.msra.mxu0 0.0
  %536 = vmatprep.subr.mxu0 0.0
  %537 = vmatpush2.msra.mxu0 0.0
  %538 = vmatprep.subr.mxu0 0.0
  %539 = vmatpush2.msra.mxu0 0.0
  %540 = vmatprep.mubr.f32.mxu0 0.0
  %541 = vmatmul.mubr.f32.gmra.mxu0 %v474
  %v542 = vpop.f32.mrf.mxu0
  %v543 = vadd.f32 0.0, %v542
  %v544 = vpop.f32.mrf.mxu0
  %545 = vdwg.mxu0
  %vm546 = vcmask 31744
  %v548 = vsel %vm546, %v68, 0
  %vm550 = vcmask 1043456
  %v552 = vsel %vm550, %v471, 0
  %554 = vmatprep.subr.mxu0 0.0
  %555 = vmatpush1.msra.mxu0 0.0
  %556 = vmatprep.subr.mxu0 0.0
  %557 = vmatpush1.msra.mxu0 0.0
  %558 = vmatprep.subr.mxu0 0.0
  %559 = vmatpush1.msra.mxu0 0.0
  %560 = vmatprep.subr.mxu0 0.0
  %561 = vmatpush1.msra.mxu0 0.0
  %562 = vmatprep.subr.mxu0 0.0
  %563 = vmatpush1.msra.mxu0 0.0
  %564 = vmatprep.subr.mxu0 0.0
  %565 = vmatpush1.msra.mxu0 0.0
  %566 = vmatprep.subr.mxu0 0.0
  %567 = vmatpush1.msra.mxu0 0.0
  %568 = vmatprep.subr.mxu0 0.0
  %569 = vmatpush1.msra.mxu0 0.0
  %570 = vmatprep.subr.mxu0 0.0
  %571 = vmatpush1.msra.mxu0 0.0
  %572 = vmatprep.subr.mxu0 0.0
  %573 = vmatpush1.msra.mxu0 0.0
  %574 = vmatprep.subr.mxu0 0.0
  %575 = vmatpush1.msra.mxu0 0.0
  %576 = vmatprep.subr.mxu0 0.0
  %577 = vmatpush1.msra.mxu0 0.0
  %578 = vmatprep.subr.mxu0 0.0
  %579 = vmatpush1.msra.mxu0 0.0
  %580 = vmatprep.subr.mxu0 0.0
  %581 = vmatpush1.msra.mxu0 0.0
  %582 = vmatprep.subr.mxu0 0.0
  %583 = vmatpush1.msra.mxu0 0.0
  %584 = vmatprep.subr.mxu0 0.0
  %585 = vmatpush1.msra.mxu0 %v552
  %586 = vmatprep.subr.mxu0 0.0
  %587 = vmatpush2.msra.mxu0 0.0
  %588 = vmatprep.subr.mxu0 0.0
  %589 = vmatpush2.msra.mxu0 0.0
  %590 = vmatprep.subr.mxu0 0.0
  %591 = vmatpush2.msra.mxu0 0.0
  %592 = vmatprep.subr.mxu0 0.0
  %593 = vmatpush2.msra.mxu0 0.0
  %594 = vmatprep.subr.mxu0 0.0
  %595 = vmatpush2.msra.mxu0 0.0
  %596 = vmatprep.subr.mxu0 0.0
  %597 = vmatpush2.msra.mxu0 0.0
  %598 = vmatprep.subr.mxu0 0.0
  %599 = vmatpush2.msra.mxu0 0.0
  %600 = vmatprep.subr.mxu0 0.0
  %601 = vmatpush2.msra.mxu0 0.0
  %602 = vmatprep.subr.mxu0 0.0
  %603 = vmatpush2.msra.mxu0 0.0
  %604 = vmatprep.subr.mxu0 0.0
  %605 = vmatpush2.msra.mxu0 0.0
  %606 = vmatprep.subr.mxu0 0.0
  %607 = vmatpush2.msra.mxu0 0.0
  %608 = vmatprep.subr.mxu0 0.0
  %609 = vmatpush2.msra.mxu0 0.0
  %610 = vmatprep.subr.mxu0 0.0
  %611 = vmatpush2.msra.mxu0 0.0
  %612 = vmatprep.subr.mxu0 0.0
  %613 = vmatpush2.msra.mxu0 0.0
  %614 = vmatprep.subr.mxu0 0.0
  %615 = vmatpush2.msra.mxu0 0.0
  %616 = vmatprep.subr.mxu0 0.0
  %617 = vmatpush2.msra.mxu0 0.0
  %618 = vmatprep.mubr.f32.mxu0 0.0
  %619 = vmatmul.mubr.f32.gmra.mxu0 %v548
  %v620 = vpop.f32.mrf.mxu0
  %v621 = vadd.f32 0.0, %v620
  %v622 = vpop.f32.mrf.mxu0
  %623 = vdwg.mxu0
  %v625 = vsel %vm472, %v67, 0
  %627 = vmatprep.subr.mxu0 0.0
  %628 = vmatpush1.msra.mxu0 0.0
  %629 = vmatprep.subr.mxu0 0.0
  %630 = vmatpush1.msra.mxu0 0.0
  %631 = vmatprep.subr.mxu0 0.0
  %632 = vmatpush1.msra.mxu0 0.0
  %633 = vmatprep.subr.mxu0 0.0
  %634 = vmatpush1.msra.mxu0 0.0
  %635 = vmatprep.subr.mxu0 0.0
  %636 = vmatpush1.msra.mxu0 0.0
  %637 = vmatprep.subr.mxu0 0.0
  %638 = vmatpush1.msra.mxu0 0.0
  %639 = vmatprep.subr.mxu0 0.0
  %640 = vmatpush1.msra.mxu0 0.0
  %641 = vmatprep.subr.mxu0 0.0
  %642 = vmatpush1.msra.mxu0 0.0
  %643 = vmatprep.subr.mxu0 0.0
  %644 = vmatpush1.msra.mxu0 0.0
  %645 = vmatprep.subr.mxu0 0.0
  %646 = vmatpush1.msra.mxu0 0.0
  %647 = vmatprep.subr.mxu0 0.0
  %648 = vmatpush1.msra.mxu0 0.0
  %649 = vmatprep.subr.mxu0 0.0
  %650 = vmatpush1.msra.mxu0 0.0
  %651 = vmatprep.subr.mxu0 0.0
  %652 = vmatpush1.msra.mxu0 0.0
  %653 = vmatprep.subr.mxu0 0.0
  %654 = vmatpush1.msra.mxu0 0.0
  %655 = vmatprep.subr.mxu0 0.0
  %656 = vmatpush1.msra.mxu0 0.0
  %657 = vmatprep.subr.mxu0 0.0
  %658 = vmatpush1.msra.mxu0 %v180
  %659 = vmatprep.subr.mxu0 0.0
  %660 = vmatpush2.msra.mxu0 0.0
  %661 = vmatprep.subr.mxu0 0.0
  %662 = vmatpush2.msra.mxu0 0.0
  %663 = vmatprep.subr.mxu0 0.0
  %664 = vmatpush2.msra.mxu0 0.0
  %665 = vmatprep.subr.mxu0 0.0
  %666 = vmatpush2.msra.mxu0 0.0
  %667 = vmatprep.subr.mxu0 0.0
  %668 = vmatpush2.msra.mxu0 0.0
  %669 = vmatprep.subr.mxu0 0.0
  %670 = vmatpush2.msra.mxu0 0.0
  %671 = vmatprep.subr.mxu0 0.0
  %672 = vmatpush2.msra.mxu0 0.0
  %673 = vmatprep.subr.mxu0 0.0
  %674 = vmatpush2.msra.mxu0 0.0
  %675 = vmatprep.subr.mxu0 0.0
  %676 = vmatpush2.msra.mxu0 0.0
  %677 = vmatprep.subr.mxu0 0.0
  %678 = vmatpush2.msra.mxu0 0.0
  %679 = vmatprep.subr.mxu0 0.0
  %680 = vmatpush2.msra.mxu0 0.0
  %681 = vmatprep.subr.mxu0 0.0
  %682 = vmatpush2.msra.mxu0 0.0
  %683 = vmatprep.subr.mxu0 0.0
  %684 = vmatpush2.msra.mxu0 0.0
  %685 = vmatprep.subr.mxu0 0.0
  %686 = vmatpush2.msra.mxu0 0.0
  %687 = vmatprep.subr.mxu0 0.0
  %688 = vmatpush2.msra.mxu0 0.0
  %689 = vmatprep.subr.mxu0 0.0
  %690 = vmatpush2.msra.mxu0 0.0
  %691 = vmatprep.mubr.f32.mxu0 0.0
  %692 = vmatmul.mubr.f32.gmra.mxu0 %v625
  %v693 = vpop.f32.mrf.mxu0
  %v694 = vadd.f32 0.0, %v693
  %v695 = vpop.f32.mrf.mxu0
  %696 = vdwg.mxu0
  %v697 = vrot.slane %v471, 4
  %v699 = vsel %vm546, %v69, 0
  %v701 = vsel %vm550, %v697, 0
  %703 = vmatprep.subr.mxu0 0.0
  %704 = vmatpush1.msra.mxu0 0.0
  %705 = vmatprep.subr.mxu0 0.0
  %706 = vmatpush1.msra.mxu0 0.0
  %707 = vmatprep.subr.mxu0 0.0
  %708 = vmatpush1.msra.mxu0 0.0
  %709 = vmatprep.subr.mxu0 0.0
  %710 = vmatpush1.msra.mxu0 0.0
  %711 = vmatprep.subr.mxu0 0.0
  %712 = vmatpush1.msra.mxu0 0.0
  %713 = vmatprep.subr.mxu0 0.0
  %714 = vmatpush1.msra.mxu0 0.0
  %715 = vmatprep.subr.mxu0 0.0
  %716 = vmatpush1.msra.mxu0 0.0
  %717 = vmatprep.subr.mxu0 0.0
  %718 = vmatpush1.msra.mxu0 0.0
  %719 = vmatprep.subr.mxu0 0.0
  %720 = vmatpush1.msra.mxu0 0.0
  %721 = vmatprep.subr.mxu0 0.0
  %722 = vmatpush1.msra.mxu0 0.0
  %723 = vmatprep.subr.mxu0 0.0
  %724 = vmatpush1.msra.mxu0 0.0
  %725 = vmatprep.subr.mxu0 0.0
  %726 = vmatpush1.msra.mxu0 0.0
  %727 = vmatprep.subr.mxu0 0.0
  %728 = vmatpush1.msra.mxu0 0.0
  %729 = vmatprep.subr.mxu0 0.0
  %730 = vmatpush1.msra.mxu0 0.0
  %731 = vmatprep.subr.mxu0 0.0
  %732 = vmatpush1.msra.mxu0 0.0
  %733 = vmatprep.subr.mxu0 0.0
  %734 = vmatpush1.msra.mxu0 %v701
  %735 = vmatprep.subr.mxu0 0.0
  %736 = vmatpush2.msra.mxu0 0.0
  %737 = vmatprep.subr.mxu0 0.0
  %738 = vmatpush2.msra.mxu0 0.0
  %739 = vmatprep.subr.mxu0 0.0
  %740 = vmatpush2.msra.mxu0 0.0
  %741 = vmatprep.subr.mxu0 0.0
  %742 = vmatpush2.msra.mxu0 0.0
  %743 = vmatprep.subr.mxu0 0.0
  %744 = vmatpush2.msra.mxu0 0.0
  %745 = vmatprep.subr.mxu0 0.0
  %746 = vmatpush2.msra.mxu0 0.0
  %747 = vmatprep.subr.mxu0 0.0
  %748 = vmatpush2.msra.mxu0 0.0
  %749 = vmatprep.subr.mxu0 0.0
  %750 = vmatpush2.msra.mxu0 0.0
  %751 = vmatprep.subr.mxu0 0.0
  %752 = vmatpush2.msra.mxu0 0.0
  %753 = vmatprep.subr.mxu0 0.0
  %754 = vmatpush2.msra.mxu0 0.0
  %755 = vmatprep.subr.mxu0 0.0
  %756 = vmatpush2.msra.mxu0 0.0
  %757 = vmatprep.subr.mxu0 0.0
  %758 = vmatpush2.msra.mxu0 0.0
  %759 = vmatprep.subr.mxu0 0.0
  %760 = vmatpush2.msra.mxu0 0.0
  %761 = vmatprep.subr.mxu0 0.0
  %762 = vmatpush2.msra.mxu0 0.0
  %763 = vmatprep.subr.mxu0 0.0
  %764 = vmatpush2.msra.mxu0 0.0
  %765 = vmatprep.subr.mxu0 0.0
  %766 = vmatpush2.msra.mxu0 0.0
  %767 = vmatprep.mubr.f32.mxu0 0.0
  %768 = vmatmul.mubr.f32.gmra.mxu0 %v699
  %v769 = vpop.f32.mrf.mxu0
  %v770 = vadd.f32 0.0, %v769
  %v771 = vpop.f32.mrf.mxu0
  %772 = vdwg.mxu0
  %v774 = vsel %vm472, %v70, 0
  %776 = vmatprep.subr.mxu0 0.0
  %777 = vmatpush1.msra.mxu0 0.0
  %778 = vmatprep.subr.mxu0 0.0
  %779 = vmatpush1.msra.mxu0 0.0
  %780 = vmatprep.subr.mxu0 0.0
  %781 = vmatpush1.msra.mxu0 0.0
  %782 = vmatprep.subr.mxu0 0.0
  %783 = vmatpush1.msra.mxu0 0.0
  %784 = vmatprep.subr.mxu0 0.0
  %785 = vmatpush1.msra.mxu0 0.0
  %786 = vmatprep.subr.mxu0 0.0
  %787 = vmatpush1.msra.mxu0 0.0
  %788 = vmatprep.subr.mxu0 0.0
  %789 = vmatpush1.msra.mxu0 0.0
  %790 = vmatprep.subr.mxu0 0.0
  %791 = vmatpush1.msra.mxu0 0.0
  %792 = vmatprep.subr.mxu0 0.0
  %793 = vmatpush1.msra.mxu0 0.0
  %794 = vmatprep.subr.mxu0 0.0
  %795 = vmatpush1.msra.mxu0 0.0
  %796 = vmatprep.subr.mxu0 0.0
  %797 = vmatpush1.msra.mxu0 0.0
  %798 = vmatprep.subr.mxu0 0.0
  %799 = vmatpush1.msra.mxu0 0.0
  %800 = vmatprep.subr.mxu0 0.0
  %801 = vmatpush1.msra.mxu0 0.0
  %802 = vmatprep.subr.mxu0 0.0
  %803 = vmatpush1.msra.mxu0 0.0
  %804 = vmatprep.subr.mxu0 0.0
  %805 = vmatpush1.msra.mxu0 0.0
  %806 = vmatprep.subr.mxu0 0.0
  %807 = vmatpush1.msra.mxu0 %v326
  %808 = vmatprep.subr.mxu0 0.0
  %809 = vmatpush2.msra.mxu0 0.0
  %810 = vmatprep.subr.mxu0 0.0
  %811 = vmatpush2.msra.mxu0 0.0
  %812 = vmatprep.subr.mxu0 0.0
  %813 = vmatpush2.msra.mxu0 0.0
  %814 = vmatprep.subr.mxu0 0.0
  %815 = vmatpush2.msra.mxu0 0.0
  %816 = vmatprep.subr.mxu0 0.0
  %817 = vmatpush2.msra.mxu0 0.0
  %818 = vmatprep.subr.mxu0 0.0
  %819 = vmatpush2.msra.mxu0 0.0
  %820 = vmatprep.subr.mxu0 0.0
  %821 = vmatpush2.msra.mxu0 0.0
  %822 = vmatprep.subr.mxu0 0.0
  %823 = vmatpush2.msra.mxu0 0.0
  %824 = vmatprep.subr.mxu0 0.0
  %825 = vmatpush2.msra.mxu0 0.0
  %826 = vmatprep.subr.mxu0 0.0
  %827 = vmatpush2.msra.mxu0 0.0
  %828 = vmatprep.subr.mxu0 0.0
  %829 = vmatpush2.msra.mxu0 0.0
  %830 = vmatprep.subr.mxu0 0.0
  %831 = vmatpush2.msra.mxu0 0.0
  %832 = vmatprep.subr.mxu0 0.0
  %833 = vmatpush2.msra.mxu0 0.0
  %834 = vmatprep.subr.mxu0 0.0
  %835 = vmatpush2.msra.mxu0 0.0
  %836 = vmatprep.subr.mxu0 0.0
  %837 = vmatpush2.msra.mxu0 0.0
  %838 = vmatprep.subr.mxu0 0.0
  %839 = vmatpush2.msra.mxu0 0.0
  %840 = vmatprep.mubr.f32.mxu0 0.0
  %841 = vmatmul.mubr.f32.gmra.mxu0 %v774
  %v842 = vpop.f32.mrf.mxu0
  %v843 = vadd.f32 0.0, %v842
  %v844 = vpop.f32.mrf.mxu0
  %845 = vdwg.mxu0
  %848 = vrot.lane.b32.xlu0 %v543, 32
  %v849 = vpop.permute.xlu0 %848
  %850 = vrot.lane.b32.xlu0 %v694, 32
  %v851 = vpop.permute.xlu0 %850
  %855 = vrot.lane.b32.xlu0 %v179, 64
  %v856 = vpop.permute.xlu0 %855
  %857 = vrot.lane.b32.xlu0 %v180, 64
  %v858 = vpop.permute.xlu0 %857
  %v861 = vsel %vm58, %v621, %v849
  %v862 = vsel %vm58, %v770, %v851
  %vm863 = vcmask 523264
  %v864 = vsel %vm863, %v861, %v856
  %v865 = vsel %vm863, %v862, %v858
  %vm866 = vcmask 785408
  %v868 = vsel %vm866, %v864, 0
  %v871 = vsel %vm866, %v865, 0
  %873 = vmatprep.subr.mxu0 0.0
  %874 = vmatpush1.msra.mxu0 0.0
  %875 = vmatprep.subr.mxu0 0.0
  %876 = vmatpush1.msra.mxu0 0.0
  %877 = vmatprep.subr.mxu0 0.0
  %878 = vmatpush1.msra.mxu0 0.0
  %879 = vmatprep.subr.mxu0 0.0
  %880 = vmatpush1.msra.mxu0 0.0
  %881 = vmatprep.subr.mxu0 0.0
  %882 = vmatpush1.msra.mxu0 %v82
  %883 = vmatprep.subr.mxu0 0.0
  %884 = vmatpush1.msra.mxu0 %v81
  %885 = vmatprep.subr.mxu0 0.0
  %886 = vmatpush1.msra.mxu0 %v80
  %887 = vmatprep.subr.mxu0 0.0
  %888 = vmatpush1.msra.mxu0 %v79
  %889 = vmatprep.subr.mxu0 0.0
  %890 = vmatpush1.msra.mxu0 %v78
  %891 = vmatprep.subr.mxu0 0.0
  %892 = vmatpush1.msra.mxu0 %v77
  %893 = vmatprep.subr.mxu0 0.0
  %894 = vmatpush1.msra.mxu0 %v76
  %895 = vmatprep.subr.mxu0 0.0
  %896 = vmatpush1.msra.mxu0 %v75
  %897 = vmatprep.subr.mxu0 0.0
  %898 = vmatpush1.msra.mxu0 %v74
  %899 = vmatprep.subr.mxu0 0.0
  %900 = vmatpush1.msra.mxu0 %v73
  %901 = vmatprep.subr.mxu0 0.0
  %902 = vmatpush1.msra.mxu0 %v72
  %903 = vmatprep.subr.mxu0 0.0
  %904 = vmatpush1.msra.mxu0 %v71
  %905 = vmatprep.subr.mxu0 0.0
  %906 = vmatpush2.msra.mxu0 0.0
  %907 = vmatprep.subr.mxu0 0.0
  %908 = vmatpush2.msra.mxu0 0.0
  %909 = vmatprep.subr.mxu0 0.0
  %910 = vmatpush2.msra.mxu0 0.0
  %911 = vmatprep.subr.mxu0 0.0
  %912 = vmatpush2.msra.mxu0 0.0
  %913 = vmatprep.subr.mxu0 0.0
  %914 = vmatpush2.msra.mxu0 0.0
  %915 = vmatprep.subr.mxu0 0.0
  %916 = vmatpush2.msra.mxu0 0.0
  %917 = vmatprep.subr.mxu0 0.0
  %918 = vmatpush2.msra.mxu0 0.0
  %919 = vmatprep.subr.mxu0 0.0
  %920 = vmatpush2.msra.mxu0 0.0
  %921 = vmatprep.subr.mxu0 0.0
  %922 = vmatpush2.msra.mxu0 0.0
  %923 = vmatprep.subr.mxu0 0.0
  %924 = vmatpush2.msra.mxu0 0.0
  %925 = vmatprep.subr.mxu0 0.0
  %926 = vmatpush2.msra.mxu0 0.0
  %927 = vmatprep.subr.mxu0 0.0
  %928 = vmatpush2.msra.mxu0 0.0
  %929 = vmatprep.subr.mxu0 0.0
  %930 = vmatpush2.msra.mxu0 0.0
  %931 = vmatprep.subr.mxu0 0.0
  %932 = vmatpush2.msra.mxu0 0.0
  %933 = vmatprep.subr.mxu0 0.0
  %934 = vmatpush2.msra.mxu0 0.0
  %935 = vmatprep.subr.mxu0 0.0
  %936 = vmatpush2.msra.mxu0 0.0
  %937 = vmatprep.mubr.f32.mxu0 0.0
  %938 = vmatmul.mubr.f32.gmra.mxu0 %v868
  %v939 = vpop.f32.mrf.mxu0
  %v940 = vadd.f32 %v96, %v939
  %v941 = vpop.f32.mrf.mxu0
  %942 = vmatprep.mubr.f32.mxu0 0.0
  %943 = vmatmul.mubr.f32.gmra.mxu0 %v871
  %v944 = vpop.f32.mrf.mxu0
  %v945 = vadd.f32 %v96, %v944
  %v946 = vpop.f32.mrf.mxu0
  %947 = vdwg.mxu0
  %948 = vrot.lane.b32.xlu0 %v181, 32
  %v949 = vpop.permute.xlu0 %948
  %v951 = vsel %vm58, %v843, %v949
  %v953 = vsel %vm863, %v951, 0
  %955 = vmatprep.subr.mxu0 0.0
  %956 = vmatpush1.msra.mxu0 0.0
  %957 = vmatprep.subr.mxu0 0.0
  %958 = vmatpush1.msra.mxu0 0.0
  %959 = vmatprep.subr.mxu0 0.0
  %960 = vmatpush1.msra.mxu0 0.0
  %961 = vmatprep.subr.mxu0 0.0
  %962 = vmatpush1.msra.mxu0 0.0
  %963 = vmatprep.subr.mxu0 0.0
  %964 = vmatpush1.msra.mxu0 0.0
  %965 = vmatprep.subr.mxu0 0.0
  %966 = vmatpush1.msra.mxu0 0.0
  %967 = vmatprep.subr.mxu0 0.0
  %968 = vmatpush1.msra.mxu0 0.0
  %969 = vmatprep.subr.mxu0 0.0
  %970 = vmatpush1.msra.mxu0 0.0
  %971 = vmatprep.subr.mxu0 0.0
  %972 = vmatpush1.msra.mxu0 %v90
  %973 = vmatprep.subr.mxu0 0.0
  %974 = vmatpush1.msra.mxu0 %v89
  %975 = vmatprep.subr.mxu0 0.0
  %976 = vmatpush1.msra.mxu0 %v88
  %977 = vmatprep.subr.mxu0 0.0
  %978 = vmatpush1.msra.mxu0 %v87
  %979 = vmatprep.subr.mxu0 0.0
  %980 = vmatpush1.msra.mxu0 %v86
  %981 = vmatprep.subr.mxu0 0.0
  %982 = vmatpush1.msra.mxu0 %v85
  %983 = vmatprep.subr.mxu0 0.0
  %984 = vmatpush1.msra.mxu0 %v84
  %985 = vmatprep.subr.mxu0 0.0
  %986 = vmatpush1.msra.mxu0 %v83
  %987 = vmatprep.subr.mxu0 0.0
  %988 = vmatpush2.msra.mxu0 0.0
  %989 = vmatprep.subr.mxu0 0.0
  %990 = vmatpush2.msra.mxu0 0.0
  %991 = vmatprep.subr.mxu0 0.0
  %992 = vmatpush2.msra.mxu0 0.0
  %993 = vmatprep.subr.mxu0 0.0
  %994 = vmatpush2.msra.mxu0 0.0
  %995 = vmatprep.subr.mxu0 0.0
  %996 = vmatpush2.msra.mxu0 0.0
  %997 = vmatprep.subr.mxu0 0.0
  %998 = vmatpush2.msra.mxu0 0.0
  %999 = vmatprep.subr.mxu0 0.0
  %1000 = vmatpush2.msra.mxu0 0.0
  %1001 = vmatprep.subr.mxu0 0.0
  %1002 = vmatpush2.msra.mxu0 0.0
  %1003 = vmatprep.subr.mxu0 0.0
  %1004 = vmatpush2.msra.mxu0 0.0
  %1005 = vmatprep.subr.mxu0 0.0
  %1006 = vmatpush2.msra.mxu0 0.0
  %1007 = vmatprep.subr.mxu0 0.0
  %1008 = vmatpush2.msra.mxu0 0.0
  %1009 = vmatprep.subr.mxu0 0.0
  %1010 = vmatpush2.msra.mxu0 0.0
  %1011 = vmatprep.subr.mxu0 0.0
  %1012 = vmatpush2.msra.mxu0 0.0
  %1013 = vmatprep.subr.mxu0 0.0
  %1014 = vmatpush2.msra.mxu0 0.0
  %1015 = vmatprep.subr.mxu0 0.0
  %1016 = vmatpush2.msra.mxu0 0.0
  %1017 = vmatprep.subr.mxu0 0.0
  %1018 = vmatpush2.msra.mxu0 0.0
  %1019 = vmatprep.mubr.f32.mxu0 0.0
  %1020 = vmatmul.mubr.f32.gmra.mxu0 %v953
  %v1021 = vpop.f32.mrf.mxu0
  %v1022 = vadd.f32 %v103, %v1021
  %v1023 = vpop.f32.mrf.mxu0
  %1024 = vdwg.mxu0
  %v1025 = vld [vmem:[#allocation3] sm:$0xff]
  %v1026 = vld [vmem:[#allocation3 + $0x8] sm:$0xff]
  %v1027 = vmul.f32 %v940, %v178
  %v1028 = vmul.f32 %v945, %v178
  %v1029 = vxor.u32 %v1027, 2147483648
  %v1030 = vxor.u32 %v1028, 2147483648
  %v1031 = vmul.f32 %v1029, 1.442695
  %v1032 = vpow.pop %v1031
  %v1033 = vmul.f32 %v1030, 1.442695
  %v1034 = vpow.pop %v1033
  %v1035 = vadd.f32 %v1032, 1.0
  %v1036 = vadd.f32 %v1034, 1.0
  %v1037 = vrcp.pop %v1035
  %v1038 = vmul.f32 1.0, %v1037
  %v1039 = vrcp.pop %v1036
  %v1040 = vmul.f32 1.0, %v1039
  %v1041 = vmul.f32 %v1038, 2.0
  %v1042 = vmul.f32 %v1040, 2.0
  %v1043 = vsub.f32 %v1041, 1.0
  %v1044 = vsub.f32 %v1042, 1.0
  %1047 = vrot.lane.b32.xlu0 %v1025, 32
  %v1048 = vpop.permute.xlu0 %1047
  %1049 = vrot.lane.b32.xlu0 %v1026, 32
  %v1050 = vpop.permute.xlu0 %1049
  %v1053 = vmul.f32 %v1038, %v1048
  %v1054 = vmul.f32 %v1040, %v1050
  %1057 = vrot.lane.b32.xlu0 %v1043, 64
  %v1058 = vpop.permute.xlu0 %1057
  %1059 = vrot.lane.b32.xlu0 %v1044, 64
  %v1060 = vpop.permute.xlu0 %1059
  %v1063 = vmul.f32 %v1038, %v1058
  %v1064 = vmul.f32 %v1040, %v1060
  %1067 = vrot.lane.b32.xlu0 %v1063, 32
  %v1068 = vpop.permute.xlu0 %1067
  %1069 = vrot.lane.b32.xlu0 %v1064, 32
  %v1070 = vpop.permute.xlu0 %1069
  %v1073 = vadd.f32 %v1053, %v1068
  %v1074 = vadd.f32 %v1054, %v1070
  %v1075 = vtanh.pop %v1073
  %v1076 = vtanh.pop %v1074
  %1079 = vrot.lane.b32.xlu0 %v1075, 64
  %v1080 = vpop.permute.xlu0 %1079
  %1081 = vrot.lane.b32.xlu0 %v1076, 64
  %v1082 = vpop.permute.xlu0 %1081
  %v1085 = vmul.f32 %v1038, %v1080
  %v1086 = vmul.f32 %v1040, %v1082
  %v1087 = vld [vmem:[#allocation4] sm:$0xff]
  %v1088 = vmul.f32 %v1022, %v178
  %v1089 = vxor.u32 %v1088, 2147483648
  %v1090 = vmul.f32 %v1089, 1.442695
  %v1091 = vpow.pop %v1090
  %v1092 = vadd.f32 %v1091, 1.0
  %v1093 = vrcp.pop %v1092
  %v1094 = vmul.f32 1.0, %v1093
  %v1095 = vmul.f32 %v1094, 2.0
  %v1096 = vsub.f32 %v1095, 1.0
  %1098 = vrot.lane.b32.xlu0 %v1087, 32
  %v1099 = vpop.permute.xlu0 %1098
  %v1101 = vmul.f32 %v1094, %v1099
  %1103 = vrot.lane.b32.xlu0 %v1096, 64
  %v1104 = vpop.permute.xlu0 %1103
  %v1106 = vmul.f32 %v1094, %v1104
  %1108 = vrot.lane.b32.xlu0 %v1106, 32
  %v1109 = vpop.permute.xlu0 %1108
  %v1111 = vadd.f32 %v1101, %v1109
  %v1112 = vtanh.pop %v1111
  %1114 = vrot.lane.b32.xlu0 %v1112, 64
  %v1115 = vpop.permute.xlu0 %1114
  %v1117 = vmul.f32 %v1094, %v1115
  %1120 = vrot.lane.b32.xlu0 %v1085, 32
  %v1121 = vpop.permute.xlu0 %1120
  %1122 = vrot.lane.b32.xlu0 %v1086, 32
  %v1123 = vpop.permute.xlu0 %1122
  %1126 = vst.msk [vmem:[%s17] sm:$0xff] %vm58, %v1121
  %1127 = vst.msk [vmem:[%s17 + $0x8] sm:$0xff] %vm58, %v1123
  %1130 = vrot.lane.b32.xlu0 %v1073, 96
  %v1131 = vpop.permute.xlu0 %1130
  %1132 = vrot.lane.b32.xlu0 %v1074, 96
  %v1133 = vpop.permute.xlu0 %1132
  %1136 = vst.msk [vmem:[#allocation3] sm:$0xff] %vm58, %v1131
  %1137 = vst.msk [vmem:[#allocation3 + $0x8] sm:$0xff] %vm58, %v1133
  %1139 = vrot.lane.b32.xlu0 %v1117, 32
  %v1140 = vpop.permute.xlu0 %1139
  %1142 = vst.msk [vmem:[#allocation2] sm:$0xff] %vm58, %v1140
  %1144 = vrot.lane.b32.xlu0 %v1111, 96
  %v1145 = vpop.permute.xlu0 %1144
  %1147 = vst.msk [vmem:[#allocation4] sm:$0xff] %vm58, %v1145
  %v1148 = vld [vmem:[%s17] sm:$0xff]
  %v1149 = vld [vmem:[%s17 + $0x8] sm:$0xff]
  %v1150 = vld [vmem:[#allocation2] sm:$0xff]
  %v1152 = vsel %vm58, %v1149, 0
  %1154 = vmatprep.subr.mxu0 0.0
  %1155 = vmatpush1.msra.mxu0 0.0
  %1156 = vmatprep.subr.mxu0 0.0
  %1157 = vmatpush1.msra.mxu0 0.0
  %1158 = vmatprep.subr.mxu0 0.0
  %1159 = vmatpush1.msra.mxu0 0.0
  %1160 = vmatprep.subr.mxu0 0.0
  %1161 = vmatpush1.msra.mxu0 0.0
  %1162 = vmatprep.subr.mxu0 0.0
  %1163 = vmatpush1.msra.mxu0 0.0
  %1164 = vmatprep.subr.mxu0 0.0
  %1165 = vmatpush1.msra.mxu0 0.0
  %1166 = vmatprep.subr.mxu0 0.0
  %1167 = vmatpush1.msra.mxu0 0.0
  %1168 = vmatprep.subr.mxu0 0.0
  %1169 = vmatpush1.msra.mxu0 0.0
  %1170 = vmatprep.subr.mxu0 0.0
  %1171 = vmatpush1.msra.mxu0 0.0
  %1172 = vmatprep.subr.mxu0 0.0
  %1173 = vmatpush1.msra.mxu0 0.0
  %1174 = vmatprep.subr.mxu0 0.0
  %1175 = vmatpush1.msra.mxu0 0.0
  %1176 = vmatprep.subr.mxu0 0.0
  %1177 = vmatpush1.msra.mxu0 0.0
  %1178 = vmatprep.subr.mxu0 0.0
  %1179 = vmatpush1.msra.mxu0 %v128
  %1180 = vmatprep.subr.mxu0 0.0
  %1181 = vmatpush1.msra.mxu0 %v127
  %1182 = vmatprep.subr.mxu0 0.0
  %1183 = vmatpush1.msra.mxu0 %v126
  %1184 = vmatprep.subr.mxu0 0.0
  %1185 = vmatpush1.msra.mxu0 %v125
  %1186 = vmatprep.subr.mxu0 0.0
  %1187 = vmatpush2.msra.mxu0 0.0
  %1188 = vmatprep.subr.mxu0 0.0
  %1189 = vmatpush2.msra.mxu0 0.0
  %1190 = vmatprep.subr.mxu0 0.0
  %1191 = vmatpush2.msra.mxu0 0.0
  %1192 = vmatprep.subr.mxu0 0.0
  %1193 = vmatpush2.msra.mxu0 0.0
  %1194 = vmatprep.subr.mxu0 0.0
  %1195 = vmatpush2.msra.mxu0 0.0
  %1196 = vmatprep.subr.mxu0 0.0
  %1197 = vmatpush2.msra.mxu0 0.0
  %1198 = vmatprep.subr.mxu0 0.0
  %1199 = vmatpush2.msra.mxu0 0.0
  %1200 = vmatprep.subr.mxu0 0.0
  %1201 = vmatpush2.msra.mxu0 0.0
  %1202 = vmatprep.subr.mxu0 0.0
  %1203 = vmatpush2.msra.mxu0 0.0
  %1204 = vmatprep.subr.mxu0 0.0
  %1205 = vmatpush2.msra.mxu0 0.0
  %1206 = vmatprep.subr.mxu0 0.0
  %1207 = vmatpush2.msra.mxu0 0.0
  %1208 = vmatprep.subr.mxu0 0.0
  %1209 = vmatpush2.msra.mxu0 0.0
  %1210 = vmatprep.subr.mxu0 0.0
  %1211 = vmatpush2.msra.mxu0 0.0
  %1212 = vmatprep.subr.mxu0 0.0
  %1213 = vmatpush2.msra.mxu0 0.0
  %1214 = vmatprep.subr.mxu0 0.0
  %1215 = vmatpush2.msra.mxu0 0.0
  %1216 = vmatprep.subr.mxu0 0.0
  %1217 = vmatpush2.msra.mxu0 0.0
  %1218 = vmatprep.mubr.f32.mxu0 0.0
  %1219 = vmatmul.mubr.f32.gmra.mxu0 %v1152
  %v1220 = vpop.f32.mrf.mxu0
  %v1221 = vadd.f32 %v164, %v1220
  %v1222 = vpop.f32.mrf.mxu0
  %1223 = vdwg.mxu0
  %v1224 = vmax.f32 %v1221, 0.0
  %1225 = vmatprep.subr.mxu0 0.0
  %1226 = vmatpush1.msra.mxu0 %v144
  %1227 = vmatprep.subr.mxu0 0.0
  %1228 = vmatpush1.msra.mxu0 %v143
  %1229 = vmatprep.subr.mxu0 0.0
  %1230 = vmatpush1.msra.mxu0 %v142
  %1231 = vmatprep.subr.mxu0 0.0
  %1232 = vmatpush1.msra.mxu0 %v141
  %1233 = vmatprep.subr.mxu0 0.0
  %1234 = vmatpush1.msra.mxu0 %v140
  %1235 = vmatprep.subr.mxu0 0.0
  %1236 = vmatpush1.msra.mxu0 %v139
  %1237 = vmatprep.subr.mxu0 0.0
  %1238 = vmatpush1.msra.mxu0 %v138
  %1239 = vmatprep.subr.mxu0 0.0
  %1240 = vmatpush1.msra.mxu0 %v137
  %1241 = vmatprep.subr.mxu0 0.0
  %1242 = vmatpush1.msra.mxu0 %v136
  %1243 = vmatprep.subr.mxu0 0.0
  %1244 = vmatpush1.msra.mxu0 %v135
  %1245 = vmatprep.subr.mxu0 0.0
  %1246 = vmatpush1.msra.mxu0 %v134
  %1247 = vmatprep.subr.mxu0 0.0
  %1248 = vmatpush1.msra.mxu0 %v133
  %1249 = vmatprep.subr.mxu0 0.0
  %1250 = vmatpush1.msra.mxu0 %v132
  %1251 = vmatprep.subr.mxu0 0.0
  %1252 = vmatpush1.msra.mxu0 %v131
  %1253 = vmatprep.subr.mxu0 0.0
  %1254 = vmatpush1.msra.mxu0 %v130
  %1255 = vmatprep.subr.mxu0 0.0
  %1256 = vmatpush1.msra.mxu0 %v129
  %1257 = vmatprep.subr.mxu0 0.0
  %1258 = vmatpush2.msra.mxu0 0.0
  %1259 = vmatprep.subr.mxu0 0.0
  %1260 = vmatpush2.msra.mxu0 0.0
  %1261 = vmatprep.subr.mxu0 0.0
  %1262 = vmatpush2.msra.mxu0 0.0
  %1263 = vmatprep.subr.mxu0 0.0
  %1264 = vmatpush2.msra.mxu0 0.0
  %1265 = vmatprep.subr.mxu0 0.0
  %1266 = vmatpush2.msra.mxu0 0.0
  %1267 = vmatprep.subr.mxu0 0.0
  %1268 = vmatpush2.msra.mxu0 0.0
  %1269 = vmatprep.subr.mxu0 0.0
  %1270 = vmatpush2.msra.mxu0 0.0
  %1271 = vmatprep.subr.mxu0 0.0
  %1272 = vmatpush2.msra.mxu0 0.0
  %1273 = vmatprep.subr.mxu0 0.0
  %1274 = vmatpush2.msra.mxu0 0.0
  %1275 = vmatprep.subr.mxu0 0.0
  %1276 = vmatpush2.msra.mxu0 0.0
  %1277 = vmatprep.subr.mxu0 0.0
  %1278 = vmatpush2.msra.mxu0 0.0
  %1279 = vmatprep.subr.mxu0 0.0
  %1280 = vmatpush2.msra.mxu0 0.0
  %1281 = vmatprep.subr.mxu0 0.0
  %1282 = vmatpush2.msra.mxu0 0.0
  %1283 = vmatprep.subr.mxu0 0.0
  %1284 = vmatpush2.msra.mxu0 0.0
  %1285 = vmatprep.subr.mxu0 0.0
  %1286 = vmatpush2.msra.mxu0 0.0
  %1287 = vmatprep.subr.mxu0 0.0
  %1288 = vmatpush2.msra.mxu0 0.0
  %1289 = vmatprep.mubr.f32.mxu0 0.0
  %1290 = vmatmul.mubr.f32.gmra.mxu0 %v1224
  %v1291 = vpop.f32.mrf.mxu0
  %v1292 = vadd.f32 %v171, %v1291
  %v1293 = vpop.f32.mrf.mxu0
  %1294 = vdwg.mxu0
  %v1295 = vmax.f32 %v1292, 0.0
  %v1297 = vsel %vm58, %v1150, 0
  %1299 = vmatprep.subr.mxu0 0.0
  %1300 = vmatpush1.msra.mxu0 0.0
  %1301 = vmatprep.subr.mxu0 0.0
  %1302 = vmatpush1.msra.mxu0 0.0
  %1303 = vmatprep.subr.mxu0 0.0
  %1304 = vmatpush1.msra.mxu0 0.0
  %1305 = vmatprep.subr.mxu0 0.0
  %1306 = vmatpush1.msra.mxu0 0.0
  %1307 = vmatprep.subr.mxu0 0.0
  %1308 = vmatpush1.msra.mxu0 0.0
  %1309 = vmatprep.subr.mxu0 0.0
  %1310 = vmatpush1.msra.mxu0 0.0
  %1311 = vmatprep.subr.mxu0 0.0
  %1312 = vmatpush1.msra.mxu0 0.0
  %1313 = vmatprep.subr.mxu0 0.0
  %1314 = vmatpush1.msra.mxu0 0.0
  %1315 = vmatprep.subr.mxu0 0.0
  %1316 = vmatpush1.msra.mxu0 0.0
  %1317 = vmatprep.subr.mxu0 0.0
  %1318 = vmatpush1.msra.mxu0 0.0
  %1319 = vmatprep.subr.mxu0 0.0
  %1320 = vmatpush1.msra.mxu0 0.0
  %1321 = vmatprep.subr.mxu0 0.0
  %1322 = vmatpush1.msra.mxu0 0.0
  %1323 = vmatprep.subr.mxu0 0.0
  %1324 = vmatpush1.msra.mxu0 %v108
  %1325 = vmatprep.subr.mxu0 0.0
  %1326 = vmatpush1.msra.mxu0 %v107
  %1327 = vmatprep.subr.mxu0 0.0
  %1328 = vmatpush1.msra.mxu0 %v106
  %1329 = vmatprep.subr.mxu0 0.0
  %1330 = vmatpush1.msra.mxu0 %v105
  %1331 = vmatprep.subr.mxu0 0.0
  %1332 = vmatpush2.msra.mxu0 0.0
  %1333 = vmatprep.subr.mxu0 0.0
  %1334 = vmatpush2.msra.mxu0 0.0
  %1335 = vmatprep.subr.mxu0 0.0
  %1336 = vmatpush2.msra.mxu0 0.0
  %1337 = vmatprep.subr.mxu0 0.0
  %1338 = vmatpush2.msra.mxu0 0.0
  %1339 = vmatprep.subr.mxu0 0.0
  %1340 = vmatpush2.msra.mxu0 0.0
  %1341 = vmatprep.subr.mxu0 0.0
  %1342 = vmatpush2.msra.mxu0 0.0
  %1343 = vmatprep.subr.mxu0 0.0
  %1344 = vmatpush2.msra.mxu0 0.0
  %1345 = vmatprep.subr.mxu0 0.0
  %1346 = vmatpush2.msra.mxu0 0.0
  %1347 = vmatprep.subr.mxu0 0.0
  %1348 = vmatpush2.msra.mxu0 0.0
  %1349 = vmatprep.subr.mxu0 0.0
  %1350 = vmatpush2.msra.mxu0 0.0
  %1351 = vmatprep.subr.mxu0 0.0
  %1352 = vmatpush2.msra.mxu0 0.0
  %1353 = vmatprep.subr.mxu0 0.0
  %1354 = vmatpush2.msra.mxu0 0.0
  %1355 = vmatprep.subr.mxu0 0.0
  %1356 = vmatpush2.msra.mxu0 0.0
  %1357 = vmatprep.subr.mxu0 0.0
  %1358 = vmatpush2.msra.mxu0 0.0
  %1359 = vmatprep.subr.mxu0 0.0
  %1360 = vmatpush2.msra.mxu0 0.0
  %1361 = vmatprep.subr.mxu0 0.0
  %1362 = vmatpush2.msra.mxu0 0.0
  %1363 = vmatprep.mubr.f32.mxu0 0.0
  %1364 = vmatmul.mubr.f32.gmra.mxu0 %v1297
  %v1365 = vpop.f32.mrf.mxu0
  %v1366 = vadd.f32 %v150, %v1365
  %v1367 = vpop.f32.mrf.mxu0
  %1368 = vdwg.mxu0
  %v1369 = vmax.f32 %v1366, 0.0
  %1370 = vmatprep.subr.mxu0 0.0
  %1371 = vmatpush1.msra.mxu0 %v124
  %1372 = vmatprep.subr.mxu0 0.0
  %1373 = vmatpush1.msra.mxu0 %v123
  %1374 = vmatprep.subr.mxu0 0.0
  %1375 = vmatpush1.msra.mxu0 %v122
  %1376 = vmatprep.subr.mxu0 0.0
  %1377 = vmatpush1.msra.mxu0 %v121
  %1378 = vmatprep.subr.mxu0 0.0
  %1379 = vmatpush1.msra.mxu0 %v120
  %1380 = vmatprep.subr.mxu0 0.0
  %1381 = vmatpush1.msra.mxu0 %v119
  %1382 = vmatprep.subr.mxu0 0.0
  %1383 = vmatpush1.msra.mxu0 %v118
  %1384 = vmatprep.subr.mxu0 0.0
  %1385 = vmatpush1.msra.mxu0 %v117
  %1386 = vmatprep.subr.mxu0 0.0
  %1387 = vmatpush1.msra.mxu0 %v116
  %1388 = vmatprep.subr.mxu0 0.0
  %1389 = vmatpush1.msra.mxu0 %v115
  %1390 = vmatprep.subr.mxu0 0.0
  %1391 = vmatpush1.msra.mxu0 %v114
  %1392 = vmatprep.subr.mxu0 0.0
  %1393 = vmatpush1.msra.mxu0 %v113
  %1394 = vmatprep.subr.mxu0 0.0
  %1395 = vmatpush1.msra.mxu0 %v112
  %1396 = vmatprep.subr.mxu0 0.0
  %1397 = vmatpush1.msra.mxu0 %v111
  %1398 = vmatprep.subr.mxu0 0.0
  %1399 = vmatpush1.msra.mxu0 %v110
  %1400 = vmatprep.subr.mxu0 0.0
  %1401 = vmatpush1.msra.mxu0 %v109
  %1402 = vmatprep.subr.mxu0 0.0
  %1403 = vmatpush2.msra.mxu0 0.0
  %1404 = vmatprep.subr.mxu0 0.0
  %1405 = vmatpush2.msra.mxu0 0.0
  %1406 = vmatprep.subr.mxu0 0.0
  %1407 = vmatpush2.msra.mxu0 0.0
  %1408 = vmatprep.subr.mxu0 0.0
  %1409 = vmatpush2.msra.mxu0 0.0
  %1410 = vmatprep.subr.mxu0 0.0
  %1411 = vmatpush2.msra.mxu0 0.0
  %1412 = vmatprep.subr.mxu0 0.0
  %1413 = vmatpush2.msra.mxu0 0.0
  %1414 = vmatprep.subr.mxu0 0.0
  %1415 = vmatpush2.msra.mxu0 0.0
  %1416 = vmatprep.subr.mxu0 0.0
  %1417 = vmatpush2.msra.mxu0 0.0
  %1418 = vmatprep.subr.mxu0 0.0
  %1419 = vmatpush2.msra.mxu0 0.0
  %1420 = vmatprep.subr.mxu0 0.0
  %1421 = vmatpush2.msra.mxu0 0.0
  %1422 = vmatprep.subr.mxu0 0.0
  %1423 = vmatpush2.msra.mxu0 0.0
  %1424 = vmatprep.subr.mxu0 0.0
  %1425 = vmatpush2.msra.mxu0 0.0
  %1426 = vmatprep.subr.mxu0 0.0
  %1427 = vmatpush2.msra.mxu0 0.0
  %1428 = vmatprep.subr.mxu0 0.0
  %1429 = vmatpush2.msra.mxu0 0.0
  %1430 = vmatprep.subr.mxu0 0.0
  %1431 = vmatpush2.msra.mxu0 0.0
  %1432 = vmatprep.subr.mxu0 0.0
  %1433 = vmatpush2.msra.mxu0 0.0
  %1434 = vmatprep.mubr.f32.mxu0 0.0
  %1435 = vmatmul.mubr.f32.gmra.mxu0 %v1369
  %v1436 = vpop.f32.mrf.mxu0
  %v1437 = vadd.f32 %v157, %v1436
  %v1438 = vpop.f32.mrf.mxu0
  %1439 = vdwg.mxu0
  %v1440 = vmax.f32 %v1437, 0.0
  %1441 = vmatprep.subr.mxu0 0.0
  %1442 = vmatpush1.msra.mxu0 0.0
  %1443 = vmatprep.subr.mxu0 0.0
  %1444 = vmatpush1.msra.mxu0 0.0
  %1445 = vmatprep.subr.mxu0 0.0
  %1446 = vmatpush1.msra.mxu0 0.0
  %1447 = vmatprep.subr.mxu0 0.0
  %1448 = vmatpush1.msra.mxu0 0.0
  %1449 = vmatprep.subr.mxu0 0.0
  %1450 = vmatpush1.msra.mxu0 0.0
  %1451 = vmatprep.subr.mxu0 0.0
  %1452 = vmatpush1.msra.mxu0 0.0
  %1453 = vmatprep.subr.mxu0 0.0
  %1454 = vmatpush1.msra.mxu0 0.0
  %1455 = vmatprep.subr.mxu0 0.0
  %1456 = vmatpush1.msra.mxu0 0.0
  %1457 = vmatprep.subr.mxu0 0.0
  %1458 = vmatpush1.msra.mxu0 0.0
  %1459 = vmatprep.subr.mxu0 0.0
  %1460 = vmatpush1.msra.mxu0 0.0
  %1461 = vmatprep.subr.mxu0 0.0
  %1462 = vmatpush1.msra.mxu0 0.0
  %1463 = vmatprep.subr.mxu0 0.0
  %1464 = vmatpush1.msra.mxu0 0.0
  %1465 = vmatprep.subr.mxu0 0.0
  %1466 = vmatpush1.msra.mxu0 0.0
  %1467 = vmatprep.subr.mxu0 0.0
  %1468 = vmatpush1.msra.mxu0 0.0
  %1469 = vmatprep.subr.mxu0 0.0
  %1470 = vmatpush1.msra.mxu0 0.0
  %1471 = vmatprep.subr.mxu0 0.0
  %1472 = vmatpush1.msra.mxu0 %v1148
  %1473 = vmatprep.subr.mxu0 0.0
  %1474 = vmatpush2.msra.mxu0 0.0
  %1475 = vmatprep.subr.mxu0 0.0
  %1476 = vmatpush2.msra.mxu0 0.0
  %1477 = vmatprep.subr.mxu0 0.0
  %1478 = vmatpush2.msra.mxu0 0.0
  %1479 = vmatprep.subr.mxu0 0.0
  %1480 = vmatpush2.msra.mxu0 0.0
  %1481 = vmatprep.subr.mxu0 0.0
  %1482 = vmatpush2.msra.mxu0 0.0
  %1483 = vmatprep.subr.mxu0 0.0
  %1484 = vmatpush2.msra.mxu0 0.0
  %1485 = vmatprep.subr.mxu0 0.0
  %1486 = vmatpush2.msra.mxu0 0.0
  %1487 = vmatprep.subr.mxu0 0.0
  %1488 = vmatpush2.msra.mxu0 0.0
  %1489 = vmatprep.subr.mxu0 0.0
  %1490 = vmatpush2.msra.mxu0 0.0
  %1491 = vmatprep.subr.mxu0 0.0
  %1492 = vmatpush2.msra.mxu0 0.0
  %1493 = vmatprep.subr.mxu0 0.0
  %1494 = vmatpush2.msra.mxu0 0.0
  %1495 = vmatprep.subr.mxu0 0.0
  %1496 = vmatpush2.msra.mxu0 0.0
  %1497 = vmatprep.subr.mxu0 0.0
  %1498 = vmatpush2.msra.mxu0 0.0
  %1499 = vmatprep.subr.mxu0 0.0
  %1500 = vmatpush2.msra.mxu0 0.0
  %1501 = vmatprep.subr.mxu0 0.0
  %1502 = vmatpush2.msra.mxu0 0.0
  %1503 = vmatprep.subr.mxu0 0.0
  %1504 = vmatpush2.msra.mxu0 0.0
  %1505 = vmatprep.mubr.f32.mxu0 0.0
  %1506 = vmatmul.mubr.f32.gmra.mxu0 %v474
  %v1507 = vpop.f32.mrf.mxu0
  %v1508 = vadd.f32 0.0, %v1507
  %v1509 = vpop.f32.mrf.mxu0
  %1510 = vdwg.mxu0
  %v1512 = vsel %vm550, %v1440, 0
  %1514 = vmatprep.subr.mxu0 0.0
  %1515 = vmatpush1.msra.mxu0 0.0
  %1516 = vmatprep.subr.mxu0 0.0
  %1517 = vmatpush1.msra.mxu0 0.0
  %1518 = vmatprep.subr.mxu0 0.0
  %1519 = vmatpush1.msra.mxu0 0.0
  %1520 = vmatprep.subr.mxu0 0.0
  %1521 = vmatpush1.msra.mxu0 0.0
  %1522 = vmatprep.subr.mxu0 0.0
  %1523 = vmatpush1.msra.mxu0 0.0
  %1524 = vmatprep.subr.mxu0 0.0
  %1525 = vmatpush1.msra.mxu0 0.0
  %1526 = vmatprep.subr.mxu0 0.0
  %1527 = vmatpush1.msra.mxu0 0.0
  %1528 = vmatprep.subr.mxu0 0.0
  %1529 = vmatpush1.msra.mxu0 0.0
  %1530 = vmatprep.subr.mxu0 0.0
  %1531 = vmatpush1.msra.mxu0 0.0
  %1532 = vmatprep.subr.mxu0 0.0
  %1533 = vmatpush1.msra.mxu0 0.0
  %1534 = vmatprep.subr.mxu0 0.0
  %1535 = vmatpush1.msra.mxu0 0.0
  %1536 = vmatprep.subr.mxu0 0.0
  %1537 = vmatpush1.msra.mxu0 0.0
  %1538 = vmatprep.subr.mxu0 0.0
  %1539 = vmatpush1.msra.mxu0 0.0
  %1540 = vmatprep.subr.mxu0 0.0
  %1541 = vmatpush1.msra.mxu0 0.0
  %1542 = vmatprep.subr.mxu0 0.0
  %1543 = vmatpush1.msra.mxu0 0.0
  %1544 = vmatprep.subr.mxu0 0.0
  %1545 = vmatpush1.msra.mxu0 %v1512
  %1546 = vmatprep.subr.mxu0 0.0
  %1547 = vmatpush2.msra.mxu0 0.0
  %1548 = vmatprep.subr.mxu0 0.0
  %1549 = vmatpush2.msra.mxu0 0.0
  %1550 = vmatprep.subr.mxu0 0.0
  %1551 = vmatpush2.msra.mxu0 0.0
  %1552 = vmatprep.subr.mxu0 0.0
  %1553 = vmatpush2.msra.mxu0 0.0
  %1554 = vmatprep.subr.mxu0 0.0
  %1555 = vmatpush2.msra.mxu0 0.0
  %1556 = vmatprep.subr.mxu0 0.0
  %1557 = vmatpush2.msra.mxu0 0.0
  %1558 = vmatprep.subr.mxu0 0.0
  %1559 = vmatpush2.msra.mxu0 0.0
  %1560 = vmatprep.subr.mxu0 0.0
  %1561 = vmatpush2.msra.mxu0 0.0
  %1562 = vmatprep.subr.mxu0 0.0
  %1563 = vmatpush2.msra.mxu0 0.0
  %1564 = vmatprep.subr.mxu0 0.0
  %1565 = vmatpush2.msra.mxu0 0.0
  %1566 = vmatprep.subr.mxu0 0.0
  %1567 = vmatpush2.msra.mxu0 0.0
  %1568 = vmatprep.subr.mxu0 0.0
  %1569 = vmatpush2.msra.mxu0 0.0
  %1570 = vmatprep.subr.mxu0 0.0
  %1571 = vmatpush2.msra.mxu0 0.0
  %1572 = vmatprep.subr.mxu0 0.0
  %1573 = vmatpush2.msra.mxu0 0.0
  %1574 = vmatprep.subr.mxu0 0.0
  %1575 = vmatpush2.msra.mxu0 0.0
  %1576 = vmatprep.subr.mxu0 0.0
  %1577 = vmatpush2.msra.mxu0 0.0
  %1578 = vmatprep.mubr.f32.mxu0 0.0
  %1579 = vmatmul.mubr.f32.gmra.mxu0 %v548
  %v1580 = vpop.f32.mrf.mxu0
  %v1581 = vadd.f32 0.0, %v1580
  %v1582 = vpop.f32.mrf.mxu0
  %1583 = vdwg.mxu0
  %1584 = vmatprep.subr.mxu0 0.0
  %1585 = vmatpush1.msra.mxu0 0.0
  %1586 = vmatprep.subr.mxu0 0.0
  %1587 = vmatpush1.msra.mxu0 0.0
  %1588 = vmatprep.subr.mxu0 0.0
  %1589 = vmatpush1.msra.mxu0 0.0
  %1590 = vmatprep.subr.mxu0 0.0
  %1591 = vmatpush1.msra.mxu0 0.0
  %1592 = vmatprep.subr.mxu0 0.0
  %1593 = vmatpush1.msra.mxu0 0.0
  %1594 = vmatprep.subr.mxu0 0.0
  %1595 = vmatpush1.msra.mxu0 0.0
  %1596 = vmatprep.subr.mxu0 0.0
  %1597 = vmatpush1.msra.mxu0 0.0
  %1598 = vmatprep.subr.mxu0 0.0
  %1599 = vmatpush1.msra.mxu0 0.0
  %1600 = vmatprep.subr.mxu0 0.0
  %1601 = vmatpush1.msra.mxu0 0.0
  %1602 = vmatprep.subr.mxu0 0.0
  %1603 = vmatpush1.msra.mxu0 0.0
  %1604 = vmatprep.subr.mxu0 0.0
  %1605 = vmatpush1.msra.mxu0 0.0
  %1606 = vmatprep.subr.mxu0 0.0
  %1607 = vmatpush1.msra.mxu0 0.0
  %1608 = vmatprep.subr.mxu0 0.0
  %1609 = vmatpush1.msra.mxu0 0.0
  %1610 = vmatprep.subr.mxu0 0.0
  %1611 = vmatpush1.msra.mxu0 0.0
  %1612 = vmatprep.subr.mxu0 0.0
  %1613 = vmatpush1.msra.mxu0 0.0
  %1614 = vmatprep.subr.mxu0 0.0
  %1615 = vmatpush1.msra.mxu0 %v1149
  %1616 = vmatprep.subr.mxu0 0.0
  %1617 = vmatpush2.msra.mxu0 0.0
  %1618 = vmatprep.subr.mxu0 0.0
  %1619 = vmatpush2.msra.mxu0 0.0
  %1620 = vmatprep.subr.mxu0 0.0
  %1621 = vmatpush2.msra.mxu0 0.0
  %1622 = vmatprep.subr.mxu0 0.0
  %1623 = vmatpush2.msra.mxu0 0.0
  %1624 = vmatprep.subr.mxu0 0.0
  %1625 = vmatpush2.msra.mxu0 0.0
  %1626 = vmatprep.subr.mxu0 0.0
  %1627 = vmatpush2.msra.mxu0 0.0
  %1628 = vmatprep.subr.mxu0 0.0
  %1629 = vmatpush2.msra.mxu0 0.0
  %1630 = vmatprep.subr.mxu0 0.0
  %1631 = vmatpush2.msra.mxu0 0.0
  %1632 = vmatprep.subr.mxu0 0.0
  %1633 = vmatpush2.msra.mxu0 0.0
  %1634 = vmatprep.subr.mxu0 0.0
  %1635 = vmatpush2.msra.mxu0 0.0
  %1636 = vmatprep.subr.mxu0 0.0
  %1637 = vmatpush2.msra.mxu0 0.0
  %1638 = vmatprep.subr.mxu0 0.0
  %1639 = vmatpush2.msra.mxu0 0.0
  %1640 = vmatprep.subr.mxu0 0.0
  %1641 = vmatpush2.msra.mxu0 0.0
  %1642 = vmatprep.subr.mxu0 0.0
  %1643 = vmatpush2.msra.mxu0 0.0
  %1644 = vmatprep.subr.mxu0 0.0
  %1645 = vmatpush2.msra.mxu0 0.0
  %1646 = vmatprep.subr.mxu0 0.0
  %1647 = vmatpush2.msra.mxu0 0.0
  %1648 = vmatprep.mubr.f32.mxu0 0.0
  %1649 = vmatmul.mubr.f32.gmra.mxu0 %v625
  %v1650 = vpop.f32.mrf.mxu0
  %v1651 = vadd.f32 0.0, %v1650
  %v1652 = vpop.f32.mrf.mxu0
  %1653 = vdwg.mxu0
  %v1654 = vrot.slane %v1440, 4
  %v1655 = vsel %vm550, %v1654, 0
  %1657 = vmatprep.subr.mxu0 0.0
  %1658 = vmatpush1.msra.mxu0 0.0
  %1659 = vmatprep.subr.mxu0 0.0
  %1660 = vmatpush1.msra.mxu0 0.0
  %1661 = vmatprep.subr.mxu0 0.0
  %1662 = vmatpush1.msra.mxu0 0.0
  %1663 = vmatprep.subr.mxu0 0.0
  %1664 = vmatpush1.msra.mxu0 0.0
  %1665 = vmatprep.subr.mxu0 0.0
  %1666 = vmatpush1.msra.mxu0 0.0
  %1667 = vmatprep.subr.mxu0 0.0
  %1668 = vmatpush1.msra.mxu0 0.0
  %1669 = vmatprep.subr.mxu0 0.0
  %1670 = vmatpush1.msra.mxu0 0.0
  %1671 = vmatprep.subr.mxu0 0.0
  %1672 = vmatpush1.msra.mxu0 0.0
  %1673 = vmatprep.subr.mxu0 0.0
  %1674 = vmatpush1.msra.mxu0 0.0
  %1675 = vmatprep.subr.mxu0 0.0
  %1676 = vmatpush1.msra.mxu0 0.0
  %1677 = vmatprep.subr.mxu0 0.0
  %1678 = vmatpush1.msra.mxu0 0.0
  %1679 = vmatprep.subr.mxu0 0.0
  %1680 = vmatpush1.msra.mxu0 0.0
  %1681 = vmatprep.subr.mxu0 0.0
  %1682 = vmatpush1.msra.mxu0 0.0
  %1683 = vmatprep.subr.mxu0 0.0
  %1684 = vmatpush1.msra.mxu0 0.0
  %1685 = vmatprep.subr.mxu0 0.0
  %1686 = vmatpush1.msra.mxu0 0.0
  %1687 = vmatprep.subr.mxu0 0.0
  %1688 = vmatpush1.msra.mxu0 %v1655
  %1689 = vmatprep.subr.mxu0 0.0
  %1690 = vmatpush2.msra.mxu0 0.0
  %1691 = vmatprep.subr.mxu0 0.0
  %1692 = vmatpush2.msra.mxu0 0.0
  %1693 = vmatprep.subr.mxu0 0.0
  %1694 = vmatpush2.msra.mxu0 0.0
  %1695 = vmatprep.subr.mxu0 0.0
  %1696 = vmatpush2.msra.mxu0 0.0
  %1697 = vmatprep.subr.mxu0 0.0
  %1698 = vmatpush2.msra.mxu0 0.0
  %1699 = vmatprep.subr.mxu0 0.0
  %1700 = vmatpush2.msra.mxu0 0.0
  %1701 = vmatprep.subr.mxu0 0.0
  %1702 = vmatpush2.msra.mxu0 0.0
  %1703 = vmatprep.subr.mxu0 0.0
  %1704 = vmatpush2.msra.mxu0 0.0
  %1705 = vmatprep.subr.mxu0 0.0
  %1706 = vmatpush2.msra.mxu0 0.0
  %1707 = vmatprep.subr.mxu0 0.0
  %1708 = vmatpush2.msra.mxu0 0.0
  %1709 = vmatprep.subr.mxu0 0.0
  %1710 = vmatpush2.msra.mxu0 0.0
  %1711 = vmatprep.subr.mxu0 0.0
  %1712 = vmatpush2.msra.mxu0 0.0
  %1713 = vmatprep.subr.mxu0 0.0
  %1714 = vmatpush2.msra.mxu0 0.0
  %1715 = vmatprep.subr.mxu0 0.0
  %1716 = vmatpush2.msra.mxu0 0.0
  %1717 = vmatprep.subr.mxu0 0.0
  %1718 = vmatpush2.msra.mxu0 0.0
  %1719 = vmatprep.subr.mxu0 0.0
  %1720 = vmatpush2.msra.mxu0 0.0
  %1721 = vmatprep.mubr.f32.mxu0 0.0
  %1722 = vmatmul.mubr.f32.gmra.mxu0 %v699
  %v1723 = vpop.f32.mrf.mxu0
  %v1724 = vadd.f32 0.0, %v1723
  %v1725 = vpop.f32.mrf.mxu0
  %1726 = vdwg.mxu0
  %1727 = vmatprep.subr.mxu0 0.0
  %1728 = vmatpush1.msra.mxu0 0.0
  %1729 = vmatprep.subr.mxu0 0.0
  %1730 = vmatpush1.msra.mxu0 0.0
  %1731 = vmatprep.subr.mxu0 0.0
  %1732 = vmatpush1.msra.mxu0 0.0
  %1733 = vmatprep.subr.mxu0 0.0
  %1734 = vmatpush1.msra.mxu0 0.0
  %1735 = vmatprep.subr.mxu0 0.0
  %1736 = vmatpush1.msra.mxu0 0.0
  %1737 = vmatprep.subr.mxu0 0.0
  %1738 = vmatpush1.msra.mxu0 0.0
  %1739 = vmatprep.subr.mxu0 0.0
  %1740 = vmatpush1.msra.mxu0 0.0
  %1741 = vmatprep.subr.mxu0 0.0
  %1742 = vmatpush1.msra.mxu0 0.0
  %1743 = vmatprep.subr.mxu0 0.0
  %1744 = vmatpush1.msra.mxu0 0.0
  %1745 = vmatprep.subr.mxu0 0.0
  %1746 = vmatpush1.msra.mxu0 0.0
  %1747 = vmatprep.subr.mxu0 0.0
  %1748 = vmatpush1.msra.mxu0 0.0
  %1749 = vmatprep.subr.mxu0 0.0
  %1750 = vmatpush1.msra.mxu0 0.0
  %1751 = vmatprep.subr.mxu0 0.0
  %1752 = vmatpush1.msra.mxu0 0.0
  %1753 = vmatprep.subr.mxu0 0.0
  %1754 = vmatpush1.msra.mxu0 0.0
  %1755 = vmatprep.subr.mxu0 0.0
  %1756 = vmatpush1.msra.mxu0 0.0
  %1757 = vmatprep.subr.mxu0 0.0
  %1758 = vmatpush1.msra.mxu0 %v1295
  %1759 = vmatprep.subr.mxu0 0.0
  %1760 = vmatpush2.msra.mxu0 0.0
  %1761 = vmatprep.subr.mxu0 0.0
  %1762 = vmatpush2.msra.mxu0 0.0
  %1763 = vmatprep.subr.mxu0 0.0
  %1764 = vmatpush2.msra.mxu0 0.0
  %1765 = vmatprep.subr.mxu0 0.0
  %1766 = vmatpush2.msra.mxu0 0.0
  %1767 = vmatprep.subr.mxu0 0.0
  %1768 = vmatpush2.msra.mxu0 0.0
  %1769 = vmatprep.subr.mxu0 0.0
  %1770 = vmatpush2.msra.mxu0 0.0
  %1771 = vmatprep.subr.mxu0 0.0
  %1772 = vmatpush2.msra.mxu0 0.0
  %1773 = vmatprep.subr.mxu0 0.0
  %1774 = vmatpush2.msra.mxu0 0.0
  %1775 = vmatprep.subr.mxu0 0.0
  %1776 = vmatpush2.msra.mxu0 0.0
  %1777 = vmatprep.subr.mxu0 0.0
  %1778 = vmatpush2.msra.mxu0 0.0
  %1779 = vmatprep.subr.mxu0 0.0
  %1780 = vmatpush2.msra.mxu0 0.0
  %1781 = vmatprep.subr.mxu0 0.0
  %1782 = vmatpush2.msra.mxu0 0.0
  %1783 = vmatprep.subr.mxu0 0.0
  %1784 = vmatpush2.msra.mxu0 0.0
  %1785 = vmatprep.subr.mxu0 0.0
  %1786 = vmatpush2.msra.mxu0 0.0
  %1787 = vmatprep.subr.mxu0 0.0
  %1788 = vmatpush2.msra.mxu0 0.0
  %1789 = vmatprep.subr.mxu0 0.0
  %1790 = vmatpush2.msra.mxu0 0.0
  %1791 = vmatprep.mubr.f32.mxu0 0.0
  %1792 = vmatmul.mubr.f32.gmra.mxu0 %v774
  %v1793 = vpop.f32.mrf.mxu0
  %v1794 = vadd.f32 0.0, %v1793
  %v1795 = vpop.f32.mrf.mxu0
  %1796 = vdwg.mxu0
  %1799 = vrot.lane.b32.xlu0 %v1508, 32
  %v1800 = vpop.permute.xlu0 %1799
  %1801 = vrot.lane.b32.xlu0 %v1651, 32
  %v1802 = vpop.permute.xlu0 %1801
  %1806 = vrot.lane.b32.xlu0 %v1148, 64
  %v1807 = vpop.permute.xlu0 %1806
  %1808 = vrot.lane.b32.xlu0 %v1149, 64
  %v1809 = vpop.permute.xlu0 %1808
  %v1812 = vsel %vm58, %v1581, %v1800
  %v1813 = vsel %vm58, %v1724, %v1802
  %v1814 = vsel %vm863, %v1812, %v1807
  %v1815 = vsel %vm863, %v1813, %v1809
  %v1817 = vsel %vm866, %v1814, 0
  %v1820 = vsel %vm866, %v1815, 0
  %1822 = vmatprep.subr.mxu0 0.0
  %1823 = vmatpush1.msra.mxu0 0.0
  %1824 = vmatprep.subr.mxu0 0.0
  %1825 = vmatpush1.msra.mxu0 0.0
  %1826 = vmatprep.subr.mxu0 0.0
  %1827 = vmatpush1.msra.mxu0 0.0
  %1828 = vmatprep.subr.mxu0 0.0
  %1829 = vmatpush1.msra.mxu0 0.0
  %1830 = vmatprep.subr.mxu0 0.0
  %1831 = vmatpush1.msra.mxu0 %v82
  %1832 = vmatprep.subr.mxu0 0.0
  %1833 = vmatpush1.msra.mxu0 %v81
  %1834 = vmatprep.subr.mxu0 0.0
  %1835 = vmatpush1.msra.mxu0 %v80
  %1836 = vmatprep.subr.mxu0 0.0
  %1837 = vmatpush1.msra.mxu0 %v79
  %1838 = vmatprep.subr.mxu0 0.0
  %1839 = vmatpush1.msra.mxu0 %v78
  %1840 = vmatprep.subr.mxu0 0.0
  %1841 = vmatpush1.msra.mxu0 %v77
  %1842 = vmatprep.subr.mxu0 0.0
  %1843 = vmatpush1.msra.mxu0 %v76
  %1844 = vmatprep.subr.mxu0 0.0
  %1845 = vmatpush1.msra.mxu0 %v75
  %1846 = vmatprep.subr.mxu0 0.0
  %1847 = vmatpush1.msra.mxu0 %v74
  %1848 = vmatprep.subr.mxu0 0.0
  %1849 = vmatpush1.msra.mxu0 %v73
  %1850 = vmatprep.subr.mxu0 0.0
  %1851 = vmatpush1.msra.mxu0 %v72
  %1852 = vmatprep.subr.mxu0 0.0
  %1853 = vmatpush1.msra.mxu0 %v71
  %1854 = vmatprep.subr.mxu0 0.0
  %1855 = vmatpush2.msra.mxu0 0.0
  %1856 = vmatprep.subr.mxu0 0.0
  %1857 = vmatpush2.msra.mxu0 0.0
  %1858 = vmatprep.subr.mxu0 0.0
  %1859 = vmatpush2.msra.mxu0 0.0
  %1860 = vmatprep.subr.mxu0 0.0
  %1861 = vmatpush2.msra.mxu0 0.0
  %1862 = vmatprep.subr.mxu0 0.0
  %1863 = vmatpush2.msra.mxu0 0.0
  %1864 = vmatprep.subr.mxu0 0.0
  %1865 = vmatpush2.msra.mxu0 0.0
  %1866 = vmatprep.subr.mxu0 0.0
  %1867 = vmatpush2.msra.mxu0 0.0
  %1868 = vmatprep.subr.mxu0 0.0
  %1869 = vmatpush2.msra.mxu0 0.0
  %1870 = vmatprep.subr.mxu0 0.0
  %1871 = vmatpush2.msra.mxu0 0.0
  %1872 = vmatprep.subr.mxu0 0.0
  %1873 = vmatpush2.msra.mxu0 0.0
  %1874 = vmatprep.subr.mxu0 0.0
  %1875 = vmatpush2.msra.mxu0 0.0
  %1876 = vmatprep.subr.mxu0 0.0
  %1877 = vmatpush2.msra.mxu0 0.0
  %1878 = vmatprep.subr.mxu0 0.0
  %1879 = vmatpush2.msra.mxu0 0.0
  %1880 = vmatprep.subr.mxu0 0.0
  %1881 = vmatpush2.msra.mxu0 0.0
  %1882 = vmatprep.subr.mxu0 0.0
  %1883 = vmatpush2.msra.mxu0 0.0
  %1884 = vmatprep.subr.mxu0 0.0
  %1885 = vmatpush2.msra.mxu0 0.0
  %1886 = vmatprep.mubr.f32.mxu0 0.0
  %1887 = vmatmul.mubr.f32.gmra.mxu0 %v1817
  %v1888 = vpop.f32.mrf.mxu0
  %v1889 = vadd.f32 %v96, %v1888
  %v1890 = vpop.f32.mrf.mxu0
  %1891 = vmatprep.mubr.f32.mxu0 0.0
  %1892 = vmatmul.mubr.f32.gmra.mxu0 %v1820
  %v1893 = vpop.f32.mrf.mxu0
  %v1894 = vadd.f32 %v96, %v1893
  %v1895 = vpop.f32.mrf.mxu0
  %1896 = vdwg.mxu0
  %1897 = vrot.lane.b32.xlu0 %v1150, 32
  %v1898 = vpop.permute.xlu0 %1897
  %v1900 = vsel %vm58, %v1794, %v1898
  %v1902 = vsel %vm863, %v1900, 0
  %1904 = vmatprep.subr.mxu0 0.0
  %1905 = vmatpush1.msra.mxu0 0.0
  %1906 = vmatprep.subr.mxu0 0.0
  %1907 = vmatpush1.msra.mxu0 0.0
  %1908 = vmatprep.subr.mxu0 0.0
  %1909 = vmatpush1.msra.mxu0 0.0
  %1910 = vmatprep.subr.mxu0 0.0
  %1911 = vmatpush1.msra.mxu0 0.0
  %1912 = vmatprep.subr.mxu0 0.0
  %1913 = vmatpush1.msra.mxu0 0.0
  %1914 = vmatprep.subr.mxu0 0.0
  %1915 = vmatpush1.msra.mxu0 0.0
  %1916 = vmatprep.subr.mxu0 0.0
  %1917 = vmatpush1.msra.mxu0 0.0
  %1918 = vmatprep.subr.mxu0 0.0
  %1919 = vmatpush1.msra.mxu0 0.0
  %1920 = vmatprep.subr.mxu0 0.0
  %1921 = vmatpush1.msra.mxu0 %v90
  %1922 = vmatprep.subr.mxu0 0.0
  %1923 = vmatpush1.msra.mxu0 %v89
  %1924 = vmatprep.subr.mxu0 0.0
  %1925 = vmatpush1.msra.mxu0 %v88
  %1926 = vmatprep.subr.mxu0 0.0
  %1927 = vmatpush1.msra.mxu0 %v87
  %1928 = vmatprep.subr.mxu0 0.0
  %1929 = vmatpush1.msra.mxu0 %v86
  %1930 = vmatprep.subr.mxu0 0.0
  %1931 = vmatpush1.msra.mxu0 %v85
  %1932 = vmatprep.subr.mxu0 0.0
  %1933 = vmatpush1.msra.mxu0 %v84
  %1934 = vmatprep.subr.mxu0 0.0
  %1935 = vmatpush1.msra.mxu0 %v83
  %1936 = vmatprep.subr.mxu0 0.0
  %1937 = vmatpush2.msra.mxu0 0.0
  %1938 = vmatprep.subr.mxu0 0.0
  %1939 = vmatpush2.msra.mxu0 0.0
  %1940 = vmatprep.subr.mxu0 0.0
  %1941 = vmatpush2.msra.mxu0 0.0
  %1942 = vmatprep.subr.mxu0 0.0
  %1943 = vmatpush2.msra.mxu0 0.0
  %1944 = vmatprep.subr.mxu0 0.0
  %1945 = vmatpush2.msra.mxu0 0.0
  %1946 = vmatprep.subr.mxu0 0.0
  %1947 = vmatpush2.msra.mxu0 0.0
  %1948 = vmatprep.subr.mxu0 0.0
  %1949 = vmatpush2.msra.mxu0 0.0
  %1950 = vmatprep.subr.mxu0 0.0
  %1951 = vmatpush2.msra.mxu0 0.0
  %1952 = vmatprep.subr.mxu0 0.0
  %1953 = vmatpush2.msra.mxu0 0.0
  %1954 = vmatprep.subr.mxu0 0.0
  %1955 = vmatpush2.msra.mxu0 0.0
  %1956 = vmatprep.subr.mxu0 0.0
  %1957 = vmatpush2.msra.mxu0 0.0
  %1958 = vmatprep.subr.mxu0 0.0
  %1959 = vmatpush2.msra.mxu0 0.0
  %1960 = vmatprep.subr.mxu0 0.0
  %1961 = vmatpush2.msra.mxu0 0.0
  %1962 = vmatprep.subr.mxu0 0.0
  %1963 = vmatpush2.msra.mxu0 0.0
  %1964 = vmatprep.subr.mxu0 0.0
  %1965 = vmatpush2.msra.mxu0 0.0
  %1966 = vmatprep.subr.mxu0 0.0
  %1967 = vmatpush2.msra.mxu0 0.0
  %1968 = vmatprep.mubr.f32.mxu0 0.0
  %1969 = vmatmul.mubr.f32.gmra.mxu0 %v1902
  %v1970 = vpop.f32.mrf.mxu0
  %v1971 = vadd.f32 %v103, %v1970
  %v1972 = vpop.f32.mrf.mxu0
  %1973 = vdwg.mxu0
  %v1974 = vld [vmem:[#allocation3] sm:$0xff]
  %v1975 = vld [vmem:[#allocation3 + $0x8] sm:$0xff]
  %v1976 = vmul.f32 %v1889, %v178
  %v1977 = vmul.f32 %v1894, %v178
  %v1978 = vxor.u32 %v1976, 2147483648
  %v1979 = vxor.u32 %v1977, 2147483648
  %v1980 = vmul.f32 %v1978, 1.442695
  %v1981 = vpow.pop %v1980
  %v1982 = vmul.f32 %v1979, 1.442695
  %v1983 = vpow.pop %v1982
  %v1984 = vadd.f32 %v1981, 1.0
  %v1985 = vadd.f32 %v1983, 1.0
  %v1986 = vrcp.pop %v1984
  %v1987 = vmul.f32 1.0, %v1986
  %v1988 = vrcp.pop %v1985
  %v1989 = vmul.f32 1.0, %v1988
  %v1990 = vmul.f32 %v1987, 2.0
  %v1991 = vmul.f32 %v1989, 2.0
  %v1992 = vsub.f32 %v1990, 1.0
  %v1993 = vsub.f32 %v1991, 1.0
  %1996 = vrot.lane.b32.xlu0 %v1974, 32
  %v1997 = vpop.permute.xlu0 %1996
  %1998 = vrot.lane.b32.xlu0 %v1975, 32
  %v1999 = vpop.permute.xlu0 %1998
  %v2002 = vmul.f32 %v1987, %v1997
  %v2003 = vmul.f32 %v1989, %v1999
  %2006 = vrot.lane.b32.xlu0 %v1992, 64
  %v2007 = vpop.permute.xlu0 %2006
  %2008 = vrot.lane.b32.xlu0 %v1993, 64
  %v2009 = vpop.permute.xlu0 %2008
  %v2012 = vmul.f32 %v1987, %v2007
  %v2013 = vmul.f32 %v1989, %v2009
  %2016 = vrot.lane.b32.xlu0 %v2012, 32
  %v2017 = vpop.permute.xlu0 %2016
  %2018 = vrot.lane.b32.xlu0 %v2013, 32
  %v2019 = vpop.permute.xlu0 %2018
  %v2022 = vadd.f32 %v2002, %v2017
  %v2023 = vadd.f32 %v2003, %v2019
  %v2024 = vtanh.pop %v2022
  %v2025 = vtanh.pop %v2023
  %2028 = vrot.lane.b32.xlu0 %v2024, 64
  %v2029 = vpop.permute.xlu0 %2028
  %2030 = vrot.lane.b32.xlu0 %v2025, 64
  %v2031 = vpop.permute.xlu0 %2030
  %v2034 = vmul.f32 %v1987, %v2029
  %v2035 = vmul.f32 %v1989, %v2031
  %v2036 = vld [vmem:[#allocation4] sm:$0xff]
  %v2037 = vmul.f32 %v1971, %v178
  %v2038 = vxor.u32 %v2037, 2147483648
  %v2039 = vmul.f32 %v2038, 1.442695
  %v2040 = vpow.pop %v2039
  %v2041 = vadd.f32 %v2040, 1.0
  %v2042 = vrcp.pop %v2041
  %v2043 = vmul.f32 1.0, %v2042
  %v2044 = vmul.f32 %v2043, 2.0
  %v2045 = vsub.f32 %v2044, 1.0
  %2047 = vrot.lane.b32.xlu0 %v2036, 32
  %v2048 = vpop.permute.xlu0 %2047
  %v2050 = vmul.f32 %v2043, %v2048
  %2052 = vrot.lane.b32.xlu0 %v2045, 64
  %v2053 = vpop.permute.xlu0 %2052
  %v2055 = vmul.f32 %v2043, %v2053
  %2057 = vrot.lane.b32.xlu0 %v2055, 32
  %v2058 = vpop.permute.xlu0 %2057
  %v2060 = vadd.f32 %v2050, %v2058
  %v2061 = vtanh.pop %v2060
  %2063 = vrot.lane.b32.xlu0 %v2061, 64
  %v2064 = vpop.permute.xlu0 %2063
  %v2066 = vmul.f32 %v2043, %v2064
  %2069 = vrot.lane.b32.xlu0 %v2034, 32
  %v2070 = vpop.permute.xlu0 %2069
  %2071 = vrot.lane.b32.xlu0 %v2035, 32
  %v2072 = vpop.permute.xlu0 %2071
  %2075 = vst.msk [vmem:[%s17] sm:$0xff] %vm58, %v2070
  %2076 = vst.msk [vmem:[%s17 + $0x8] sm:$0xff] %vm58, %v2072
  %2079 = vrot.lane.b32.xlu0 %v2022, 96
  %v2080 = vpop.permute.xlu0 %2079
  %2081 = vrot.lane.b32.xlu0 %v2023, 96
  %v2082 = vpop.permute.xlu0 %2081
  %2085 = vst.msk [vmem:[#allocation3] sm:$0xff] %vm58, %v2080
  %2086 = vst.msk [vmem:[#allocation3 + $0x8] sm:$0xff] %vm58, %v2082
  %2088 = vrot.lane.b32.xlu0 %v2066, 32
  %v2089 = vpop.permute.xlu0 %2088
  %2091 = vst.msk [vmem:[#allocation2] sm:$0xff] %vm58, %v2089
  %2093 = vrot.lane.b32.xlu0 %v2060, 96
  %v2094 = vpop.permute.xlu0 %2093
  %2096 = vst.msk [vmem:[#allocation4] sm:$0xff] %vm58, %v2094
  %v2097 = vld [vmem:[%s17] sm:$0xff]
  %v2098 = vld [vmem:[%s17 + $0x8] sm:$0xff]
  %v2099 = vld [vmem:[#allocation2] sm:$0xff]
  %v2101 = vsel %vm58, %v2098, 0
  %2103 = vmatprep.subr.mxu0 0.0
  %2104 = vmatpush1.msra.mxu0 0.0
  %2105 = vmatprep.subr.mxu0 0.0
  %2106 = vmatpush1.msra.mxu0 0.0
  %2107 = vmatprep.subr.mxu0 0.0
  %2108 = vmatpush1.msra.mxu0 0.0
  %2109 = vmatprep.subr.mxu0 0.0
  %2110 = vmatpush1.msra.mxu0 0.0
  %2111 = vmatprep.subr.mxu0 0.0
  %2112 = vmatpush1.msra.mxu0 0.0
  %2113 = vmatprep.subr.mxu0 0.0
  %2114 = vmatpush1.msra.mxu0 0.0
  %2115 = vmatprep.subr.mxu0 0.0
  %2116 = vmatpush1.msra.mxu0 0.0
  %2117 = vmatprep.subr.mxu0 0.0
  %2118 = vmatpush1.msra.mxu0 0.0
  %2119 = vmatprep.subr.mxu0 0.0
  %2120 = vmatpush1.msra.mxu0 0.0
  %2121 = vmatprep.subr.mxu0 0.0
  %2122 = vmatpush1.msra.mxu0 0.0
  %2123 = vmatprep.subr.mxu0 0.0
  %2124 = vmatpush1.msra.mxu0 0.0
  %2125 = vmatprep.subr.mxu0 0.0
  %2126 = vmatpush1.msra.mxu0 0.0
  %2127 = vmatprep.subr.mxu0 0.0
  %2128 = vmatpush1.msra.mxu0 %v128
  %2129 = vmatprep.subr.mxu0 0.0
  %2130 = vmatpush1.msra.mxu0 %v127
  %2131 = vmatprep.subr.mxu0 0.0
  %2132 = vmatpush1.msra.mxu0 %v126
  %2133 = vmatprep.subr.mxu0 0.0
  %2134 = vmatpush1.msra.mxu0 %v125
  %2135 = vmatprep.subr.mxu0 0.0
  %2136 = vmatpush2.msra.mxu0 0.0
  %2137 = vmatprep.subr.mxu0 0.0
  %2138 = vmatpush2.msra.mxu0 0.0
  %2139 = vmatprep.subr.mxu0 0.0
  %2140 = vmatpush2.msra.mxu0 0.0
  %2141 = vmatprep.subr.mxu0 0.0
  %2142 = vmatpush2.msra.mxu0 0.0
  %2143 = vmatprep.subr.mxu0 0.0
  %2144 = vmatpush2.msra.mxu0 0.0
  %2145 = vmatprep.subr.mxu0 0.0
  %2146 = vmatpush2.msra.mxu0 0.0
  %2147 = vmatprep.subr.mxu0 0.0
  %2148 = vmatpush2.msra.mxu0 0.0
  %2149 = vmatprep.subr.mxu0 0.0
  %2150 = vmatpush2.msra.mxu0 0.0
  %2151 = vmatprep.subr.mxu0 0.0
  %2152 = vmatpush2.msra.mxu0 0.0
  %2153 = vmatprep.subr.mxu0 0.0
  %2154 = vmatpush2.msra.mxu0 0.0
  %2155 = vmatprep.subr.mxu0 0.0
  %2156 = vmatpush2.msra.mxu0 0.0
  %2157 = vmatprep.subr.mxu0 0.0
  %2158 = vmatpush2.msra.mxu0 0.0
  %2159 = vmatprep.subr.mxu0 0.0
  %2160 = vmatpush2.msra.mxu0 0.0
  %2161 = vmatprep.subr.mxu0 0.0
  %2162 = vmatpush2.msra.mxu0 0.0
  %2163 = vmatprep.subr.mxu0 0.0
  %2164 = vmatpush2.msra.mxu0 0.0
  %2165 = vmatprep.subr.mxu0 0.0
  %2166 = vmatpush2.msra.mxu0 0.0
  %2167 = vmatprep.mubr.f32.mxu0 0.0
  %2168 = vmatmul.mubr.f32.gmra.mxu0 %v2101
  %v2169 = vpop.f32.mrf.mxu0
  %v2170 = vadd.f32 %v164, %v2169
  %v2171 = vpop.f32.mrf.mxu0
  %2172 = vdwg.mxu0
  %v2173 = vmax.f32 %v2170, 0.0
  %2174 = vmatprep.subr.mxu0 0.0
  %2175 = vmatpush1.msra.mxu0 %v144
  %2176 = vmatprep.subr.mxu0 0.0
  %2177 = vmatpush1.msra.mxu0 %v143
  %2178 = vmatprep.subr.mxu0 0.0
  %2179 = vmatpush1.msra.mxu0 %v142
  %2180 = vmatprep.subr.mxu0 0.0
  %2181 = vmatpush1.msra.mxu0 %v141
  %2182 = vmatprep.subr.mxu0 0.0
  %2183 = vmatpush1.msra.mxu0 %v140
  %2184 = vmatprep.subr.mxu0 0.0
  %2185 = vmatpush1.msra.mxu0 %v139
  %2186 = vmatprep.subr.mxu0 0.0
  %2187 = vmatpush1.msra.mxu0 %v138
  %2188 = vmatprep.subr.mxu0 0.0
  %2189 = vmatpush1.msra.mxu0 %v137
  %2190 = vmatprep.subr.mxu0 0.0
  %2191 = vmatpush1.msra.mxu0 %v136
  %2192 = vmatprep.subr.mxu0 0.0
  %2193 = vmatpush1.msra.mxu0 %v135
  %2194 = vmatprep.subr.mxu0 0.0
  %2195 = vmatpush1.msra.mxu0 %v134
  %2196 = vmatprep.subr.mxu0 0.0
  %2197 = vmatpush1.msra.mxu0 %v133
  %2198 = vmatprep.subr.mxu0 0.0
  %2199 = vmatpush1.msra.mxu0 %v132
  %2200 = vmatprep.subr.mxu0 0.0
  %2201 = vmatpush1.msra.mxu0 %v131
  %2202 = vmatprep.subr.mxu0 0.0
  %2203 = vmatpush1.msra.mxu0 %v130
  %2204 = vmatprep.subr.mxu0 0.0
  %2205 = vmatpush1.msra.mxu0 %v129
  %2206 = vmatprep.subr.mxu0 0.0
  %2207 = vmatpush2.msra.mxu0 0.0
  %2208 = vmatprep.subr.mxu0 0.0
  %2209 = vmatpush2.msra.mxu0 0.0
  %2210 = vmatprep.subr.mxu0 0.0
  %2211 = vmatpush2.msra.mxu0 0.0
  %2212 = vmatprep.subr.mxu0 0.0
  %2213 = vmatpush2.msra.mxu0 0.0
  %2214 = vmatprep.subr.mxu0 0.0
  %2215 = vmatpush2.msra.mxu0 0.0
  %2216 = vmatprep.subr.mxu0 0.0
  %2217 = vmatpush2.msra.mxu0 0.0
  %2218 = vmatprep.subr.mxu0 0.0
  %2219 = vmatpush2.msra.mxu0 0.0
  %2220 = vmatprep.subr.mxu0 0.0
  %2221 = vmatpush2.msra.mxu0 0.0
  %2222 = vmatprep.subr.mxu0 0.0
  %2223 = vmatpush2.msra.mxu0 0.0
  %2224 = vmatprep.subr.mxu0 0.0
  %2225 = vmatpush2.msra.mxu0 0.0
  %2226 = vmatprep.subr.mxu0 0.0
  %2227 = vmatpush2.msra.mxu0 0.0
  %2228 = vmatprep.subr.mxu0 0.0
  %2229 = vmatpush2.msra.mxu0 0.0
  %2230 = vmatprep.subr.mxu0 0.0
  %2231 = vmatpush2.msra.mxu0 0.0
  %2232 = vmatprep.subr.mxu0 0.0
  %2233 = vmatpush2.msra.mxu0 0.0
  %2234 = vmatprep.subr.mxu0 0.0
  %2235 = vmatpush2.msra.mxu0 0.0
  %2236 = vmatprep.subr.mxu0 0.0
  %2237 = vmatpush2.msra.mxu0 0.0
  %2238 = vmatprep.mubr.f32.mxu0 0.0
  %2239 = vmatmul.mubr.f32.gmra.mxu0 %v2173
  %v2240 = vpop.f32.mrf.mxu0
  %v2241 = vadd.f32 %v171, %v2240
  %v2242 = vpop.f32.mrf.mxu0
  %2243 = vdwg.mxu0
  %v2244 = vmax.f32 %v2241, 0.0
  %v2246 = vsel %vm58, %v2099, 0
  %2248 = vmatprep.subr.mxu0 0.0
  %2249 = vmatpush1.msra.mxu0 0.0
  %2250 = vmatprep.subr.mxu0 0.0
  %2251 = vmatpush1.msra.mxu0 0.0
  %2252 = vmatprep.subr.mxu0 0.0
  %2253 = vmatpush1.msra.mxu0 0.0
  %2254 = vmatprep.subr.mxu0 0.0
  %2255 = vmatpush1.msra.mxu0 0.0
  %2256 = vmatprep.subr.mxu0 0.0
  %2257 = vmatpush1.msra.mxu0 0.0
  %2258 = vmatprep.subr.mxu0 0.0
  %2259 = vmatpush1.msra.mxu0 0.0
  %2260 = vmatprep.subr.mxu0 0.0
  %2261 = vmatpush1.msra.mxu0 0.0
  %2262 = vmatprep.subr.mxu0 0.0
  %2263 = vmatpush1.msra.mxu0 0.0
  %2264 = vmatprep.subr.mxu0 0.0
  %2265 = vmatpush1.msra.mxu0 0.0
  %2266 = vmatprep.subr.mxu0 0.0
  %2267 = vmatpush1.msra.mxu0 0.0
  %2268 = vmatprep.subr.mxu0 0.0
  %2269 = vmatpush1.msra.mxu0 0.0
  %2270 = vmatprep.subr.mxu0 0.0
  %2271 = vmatpush1.msra.mxu0 0.0
  %2272 = vmatprep.subr.mxu0 0.0
  %2273 = vmatpush1.msra.mxu0 %v108
  %2274 = vmatprep.subr.mxu0 0.0
  %2275 = vmatpush1.msra.mxu0 %v107
  %2276 = vmatprep.subr.mxu0 0.0
  %2277 = vmatpush1.msra.mxu0 %v106
  %2278 = vmatprep.subr.mxu0 0.0
  %2279 = vmatpush1.msra.mxu0 %v105
  %2280 = vmatprep.subr.mxu0 0.0
  %2281 = vmatpush2.msra.mxu0 0.0
  %2282 = vmatprep.subr.mxu0 0.0
  %2283 = vmatpush2.msra.mxu0 0.0
  %2284 = vmatprep.subr.mxu0 0.0
  %2285 = vmatpush2.msra.mxu0 0.0
  %2286 = vmatprep.subr.mxu0 0.0
  %2287 = vmatpush2.msra.mxu0 0.0
  %2288 = vmatprep.subr.mxu0 0.0
  %2289 = vmatpush2.msra.mxu0 0.0
  %2290 = vmatprep.subr.mxu0 0.0
  %2291 = vmatpush2.msra.mxu0 0.0
  %2292 = vmatprep.subr.mxu0 0.0
  %2293 = vmatpush2.msra.mxu0 0.0
  %2294 = vmatprep.subr.mxu0 0.0
  %2295 = vmatpush2.msra.mxu0 0.0
  %2296 = vmatprep.subr.mxu0 0.0
  %2297 = vmatpush2.msra.mxu0 0.0
  %2298 = vmatprep.subr.mxu0 0.0
  %2299 = vmatpush2.msra.mxu0 0.0
  %2300 = vmatprep.subr.mxu0 0.0
  %2301 = vmatpush2.msra.mxu0 0.0
  %2302 = vmatprep.subr.mxu0 0.0
  %2303 = vmatpush2.msra.mxu0 0.0
  %2304 = vmatprep.subr.mxu0 0.0
  %2305 = vmatpush2.msra.mxu0 0.0
  %2306 = vmatprep.subr.mxu0 0.0
  %2307 = vmatpush2.msra.mxu0 0.0
  %2308 = vmatprep.subr.mxu0 0.0
  %2309 = vmatpush2.msra.mxu0 0.0
  %2310 = vmatprep.subr.mxu0 0.0
  %2311 = vmatpush2.msra.mxu0 0.0
  %2312 = vmatprep.mubr.f32.mxu0 0.0
  %2313 = vmatmul.mubr.f32.gmra.mxu0 %v2246
  %v2314 = vpop.f32.mrf.mxu0
  %v2315 = vadd.f32 %v150, %v2314
  %v2316 = vpop.f32.mrf.mxu0
  %2317 = vdwg.mxu0
  %v2318 = vmax.f32 %v2315, 0.0
  %2319 = vmatprep.subr.mxu0 0.0
  %2320 = vmatpush1.msra.mxu0 %v124
  %2321 = vmatprep.subr.mxu0 0.0
  %2322 = vmatpush1.msra.mxu0 %v123
  %2323 = vmatprep.subr.mxu0 0.0
  %2324 = vmatpush1.msra.mxu0 %v122
  %2325 = vmatprep.subr.mxu0 0.0
  %2326 = vmatpush1.msra.mxu0 %v121
  %2327 = vmatprep.subr.mxu0 0.0
  %2328 = vmatpush1.msra.mxu0 %v120
  %2329 = vmatprep.subr.mxu0 0.0
  %2330 = vmatpush1.msra.mxu0 %v119
  %2331 = vmatprep.subr.mxu0 0.0
  %2332 = vmatpush1.msra.mxu0 %v118
  %2333 = vmatprep.subr.mxu0 0.0
  %2334 = vmatpush1.msra.mxu0 %v117
  %2335 = vmatprep.subr.mxu0 0.0
  %2336 = vmatpush1.msra.mxu0 %v116
  %2337 = vmatprep.subr.mxu0 0.0
  %2338 = vmatpush1.msra.mxu0 %v115
  %2339 = vmatprep.subr.mxu0 0.0
  %2340 = vmatpush1.msra.mxu0 %v114
  %2341 = vmatprep.subr.mxu0 0.0
  %2342 = vmatpush1.msra.mxu0 %v113
  %2343 = vmatprep.subr.mxu0 0.0
  %2344 = vmatpush1.msra.mxu0 %v112
  %2345 = vmatprep.subr.mxu0 0.0
  %2346 = vmatpush1.msra.mxu0 %v111
  %2347 = vmatprep.subr.mxu0 0.0
  %2348 = vmatpush1.msra.mxu0 %v110
  %2349 = vmatprep.subr.mxu0 0.0
  %2350 = vmatpush1.msra.mxu0 %v109
  %2351 = vmatprep.subr.mxu0 0.0
  %2352 = vmatpush2.msra.mxu0 0.0
  %2353 = vmatprep.subr.mxu0 0.0
  %2354 = vmatpush2.msra.mxu0 0.0
  %2355 = vmatprep.subr.mxu0 0.0
  %2356 = vmatpush2.msra.mxu0 0.0
  %2357 = vmatprep.subr.mxu0 0.0
  %2358 = vmatpush2.msra.mxu0 0.0
  %2359 = vmatprep.subr.mxu0 0.0
  %2360 = vmatpush2.msra.mxu0 0.0
  %2361 = vmatprep.subr.mxu0 0.0
  %2362 = vmatpush2.msra.mxu0 0.0
  %2363 = vmatprep.subr.mxu0 0.0
  %2364 = vmatpush2.msra.mxu0 0.0
  %2365 = vmatprep.subr.mxu0 0.0
  %2366 = vmatpush2.msra.mxu0 0.0
  %2367 = vmatprep.subr.mxu0 0.0
  %2368 = vmatpush2.msra.mxu0 0.0
  %2369 = vmatprep.subr.mxu0 0.0
  %2370 = vmatpush2.msra.mxu0 0.0
  %2371 = vmatprep.subr.mxu0 0.0
  %2372 = vmatpush2.msra.mxu0 0.0
  %2373 = vmatprep.subr.mxu0 0.0
  %2374 = vmatpush2.msra.mxu0 0.0
  %2375 = vmatprep.subr.mxu0 0.0
  %2376 = vmatpush2.msra.mxu0 0.0
  %2377 = vmatprep.subr.mxu0 0.0
  %2378 = vmatpush2.msra.mxu0 0.0
  %2379 = vmatprep.subr.mxu0 0.0
  %2380 = vmatpush2.msra.mxu0 0.0
  %2381 = vmatprep.subr.mxu0 0.0
  %2382 = vmatpush2.msra.mxu0 0.0
  %2383 = vmatprep.mubr.f32.mxu0 0.0
  %2384 = vmatmul.mubr.f32.gmra.mxu0 %v2318
  %v2385 = vpop.f32.mrf.mxu0
  %v2386 = vadd.f32 %v157, %v2385
  %v2387 = vpop.f32.mrf.mxu0
  %2388 = vdwg.mxu0
  %v2389 = vmax.f32 %v2386, 0.0
  %2390 = vmatprep.subr.mxu0 0.0
  %2391 = vmatpush1.msra.mxu0 0.0
  %2392 = vmatprep.subr.mxu0 0.0
  %2393 = vmatpush1.msra.mxu0 0.0
  %2394 = vmatprep.subr.mxu0 0.0
  %2395 = vmatpush1.msra.mxu0 0.0
  %2396 = vmatprep.subr.mxu0 0.0
  %2397 = vmatpush1.msra.mxu0 0.0
  %2398 = vmatprep.subr.mxu0 0.0
  %2399 = vmatpush1.msra.mxu0 0.0
  %2400 = vmatprep.subr.mxu0 0.0
  %2401 = vmatpush1.msra.mxu0 0.0
  %2402 = vmatprep.subr.mxu0 0.0
  %2403 = vmatpush1.msra.mxu0 0.0
  %2404 = vmatprep.subr.mxu0 0.0
  %2405 = vmatpush1.msra.mxu0 0.0
  %2406 = vmatprep.subr.mxu0 0.0
  %2407 = vmatpush1.msra.mxu0 0.0
  %2408 = vmatprep.subr.mxu0 0.0
  %2409 = vmatpush1.msra.mxu0 0.0
  %2410 = vmatprep.subr.mxu0 0.0
  %2411 = vmatpush1.msra.mxu0 0.0
  %2412 = vmatprep.subr.mxu0 0.0
  %2413 = vmatpush1.msra.mxu0 0.0
  %2414 = vmatprep.subr.mxu0 0.0
  %2415 = vmatpush1.msra.mxu0 0.0
  %2416 = vmatprep.subr.mxu0 0.0
  %2417 = vmatpush1.msra.mxu0 0.0
  %2418 = vmatprep.subr.mxu0 0.0
  %2419 = vmatpush1.msra.mxu0 0.0
  %2420 = vmatprep.subr.mxu0 0.0
  %2421 = vmatpush1.msra.mxu0 %v2097
  %2422 = vmatprep.subr.mxu0 0.0
  %2423 = vmatpush2.msra.mxu0 0.0
  %2424 = vmatprep.subr.mxu0 0.0
  %2425 = vmatpush2.msra.mxu0 0.0
  %2426 = vmatprep.subr.mxu0 0.0
  %2427 = vmatpush2.msra.mxu0 0.0
  %2428 = vmatprep.subr.mxu0 0.0
  %2429 = vmatpush2.msra.mxu0 0.0
  %2430 = vmatprep.subr.mxu0 0.0
  %2431 = vmatpush2.msra.mxu0 0.0
  %2432 = vmatprep.subr.mxu0 0.0
  %2433 = vmatpush2.msra.mxu0 0.0
  %2434 = vmatprep.subr.mxu0 0.0
  %2435 = vmatpush2.msra.mxu0 0.0
  %2436 = vmatprep.subr.mxu0 0.0
  %2437 = vmatpush2.msra.mxu0 0.0
  %2438 = vmatprep.subr.mxu0 0.0
  %2439 = vmatpush2.msra.mxu0 0.0
  %2440 = vmatprep.subr.mxu0 0.0
  %2441 = vmatpush2.msra.mxu0 0.0
  %2442 = vmatprep.subr.mxu0 0.0
  %2443 = vmatpush2.msra.mxu0 0.0
  %2444 = vmatprep.subr.mxu0 0.0
  %2445 = vmatpush2.msra.mxu0 0.0
  %2446 = vmatprep.subr.mxu0 0.0
  %2447 = vmatpush2.msra.mxu0 0.0
  %2448 = vmatprep.subr.mxu0 0.0
  %2449 = vmatpush2.msra.mxu0 0.0
  %2450 = vmatprep.subr.mxu0 0.0
  %2451 = vmatpush2.msra.mxu0 0.0
  %2452 = vmatprep.subr.mxu0 0.0
  %2453 = vmatpush2.msra.mxu0 0.0
  %2454 = vmatprep.mubr.f32.mxu0 0.0
  %2455 = vmatmul.mubr.f32.gmra.mxu0 %v474
  %v2456 = vpop.f32.mrf.mxu0
  %v2457 = vadd.f32 0.0, %v2456
  %v2458 = vpop.f32.mrf.mxu0
  %2459 = vdwg.mxu0
  %v2461 = vsel %vm550, %v2389, 0
  %2463 = vmatprep.subr.mxu0 0.0
  %2464 = vmatpush1.msra.mxu0 0.0
  %2465 = vmatprep.subr.mxu0 0.0
  %2466 = vmatpush1.msra.mxu0 0.0
  %2467 = vmatprep.subr.mxu0 0.0
  %2468 = vmatpush1.msra.mxu0 0.0
  %2469 = vmatprep.subr.mxu0 0.0
  %2470 = vmatpush1.msra.mxu0 0.0
  %2471 = vmatprep.subr.mxu0 0.0
  %2472 = vmatpush1.msra.mxu0 0.0
  %2473 = vmatprep.subr.mxu0 0.0
  %2474 = vmatpush1.msra.mxu0 0.0
  %2475 = vmatprep.subr.mxu0 0.0
  %2476 = vmatpush1.msra.mxu0 0.0
  %2477 = vmatprep.subr.mxu0 0.0
  %2478 = vmatpush1.msra.mxu0 0.0
  %2479 = vmatprep.subr.mxu0 0.0
  %2480 = vmatpush1.msra.mxu0 0.0
  %2481 = vmatprep.subr.mxu0 0.0
  %2482 = vmatpush1.msra.mxu0 0.0
  %2483 = vmatprep.subr.mxu0 0.0
  %2484 = vmatpush1.msra.mxu0 0.0
  %2485 = vmatprep.subr.mxu0 0.0
  %2486 = vmatpush1.msra.mxu0 0.0
  %2487 = vmatprep.subr.mxu0 0.0
  %2488 = vmatpush1.msra.mxu0 0.0
  %2489 = vmatprep.subr.mxu0 0.0
  %2490 = vmatpush1.msra.mxu0 0.0
  %2491 = vmatprep.subr.mxu0 0.0
  %2492 = vmatpush1.msra.mxu0 0.0
  %2493 = vmatprep.subr.mxu0 0.0
  %2494 = vmatpush1.msra.mxu0 %v2461
  %2495 = vmatprep.subr.mxu0 0.0
  %2496 = vmatpush2.msra.mxu0 0.0
  %2497 = vmatprep.subr.mxu0 0.0
  %2498 = vmatpush2.msra.mxu0 0.0
  %2499 = vmatprep.subr.mxu0 0.0
  %2500 = vmatpush2.msra.mxu0 0.0
  %2501 = vmatprep.subr.mxu0 0.0
  %2502 = vmatpush2.msra.mxu0 0.0
  %2503 = vmatprep.subr.mxu0 0.0
  %2504 = vmatpush2.msra.mxu0 0.0
  %2505 = vmatprep.subr.mxu0 0.0
  %2506 = vmatpush2.msra.mxu0 0.0
  %2507 = vmatprep.subr.mxu0 0.0
  %2508 = vmatpush2.msra.mxu0 0.0
  %2509 = vmatprep.subr.mxu0 0.0
  %2510 = vmatpush2.msra.mxu0 0.0
  %2511 = vmatprep.subr.mxu0 0.0
  %2512 = vmatpush2.msra.mxu0 0.0
  %2513 = vmatprep.subr.mxu0 0.0
  %2514 = vmatpush2.msra.mxu0 0.0
  %2515 = vmatprep.subr.mxu0 0.0
  %2516 = vmatpush2.msra.mxu0 0.0
  %2517 = vmatprep.subr.mxu0 0.0
  %2518 = vmatpush2.msra.mxu0 0.0
  %2519 = vmatprep.subr.mxu0 0.0
  %2520 = vmatpush2.msra.mxu0 0.0
  %2521 = vmatprep.subr.mxu0 0.0
  %2522 = vmatpush2.msra.mxu0 0.0
  %2523 = vmatprep.subr.mxu0 0.0
  %2524 = vmatpush2.msra.mxu0 0.0
  %2525 = vmatprep.subr.mxu0 0.0
  %2526 = vmatpush2.msra.mxu0 0.0
  %2527 = vmatprep.mubr.f32.mxu0 0.0
  %2528 = vmatmul.mubr.f32.gmra.mxu0 %v548
  %v2529 = vpop.f32.mrf.mxu0
  %v2530 = vadd.f32 0.0, %v2529
  %v2531 = vpop.f32.mrf.mxu0
  %2532 = vdwg.mxu0
  %2533 = vmatprep.subr.mxu0 0.0
  %2534 = vmatpush1.msra.mxu0 0.0
  %2535 = vmatprep.subr.mxu0 0.0
  %2536 = vmatpush1.msra.mxu0 0.0
  %2537 = vmatprep.subr.mxu0 0.0
  %2538 = vmatpush1.msra.mxu0 0.0
  %2539 = vmatprep.subr.mxu0 0.0
  %2540 = vmatpush1.msra.mxu0 0.0
  %2541 = vmatprep.subr.mxu0 0.0
  %2542 = vmatpush1.msra.mxu0 0.0
  %2543 = vmatprep.subr.mxu0 0.0
  %2544 = vmatpush1.msra.mxu0 0.0
  %2545 = vmatprep.subr.mxu0 0.0
  %2546 = vmatpush1.msra.mxu0 0.0
  %2547 = vmatprep.subr.mxu0 0.0
  %2548 = vmatpush1.msra.mxu0 0.0
  %2549 = vmatprep.subr.mxu0 0.0
  %2550 = vmatpush1.msra.mxu0 0.0
  %2551 = vmatprep.subr.mxu0 0.0
  %2552 = vmatpush1.msra.mxu0 0.0
  %2553 = vmatprep.subr.mxu0 0.0
  %2554 = vmatpush1.msra.mxu0 0.0
  %2555 = vmatprep.subr.mxu0 0.0
  %2556 = vmatpush1.msra.mxu0 0.0
  %2557 = vmatprep.subr.mxu0 0.0
  %2558 = vmatpush1.msra.mxu0 0.0
  %2559 = vmatprep.subr.mxu0 0.0
  %2560 = vmatpush1.msra.mxu0 0.0
  %2561 = vmatprep.subr.mxu0 0.0
  %2562 = vmatpush1.msra.mxu0 0.0
  %2563 = vmatprep.subr.mxu0 0.0
  %2564 = vmatpush1.msra.mxu0 %v2098
  %2565 = vmatprep.subr.mxu0 0.0
  %2566 = vmatpush2.msra.mxu0 0.0
  %2567 = vmatprep.subr.mxu0 0.0
  %2568 = vmatpush2.msra.mxu0 0.0
  %2569 = vmatprep.subr.mxu0 0.0
  %2570 = vmatpush2.msra.mxu0 0.0
  %2571 = vmatprep.subr.mxu0 0.0
  %2572 = vmatpush2.msra.mxu0 0.0
  %2573 = vmatprep.subr.mxu0 0.0
  %2574 = vmatpush2.msra.mxu0 0.0
  %2575 = vmatprep.subr.mxu0 0.0
  %2576 = vmatpush2.msra.mxu0 0.0
  %2577 = vmatprep.subr.mxu0 0.0
  %2578 = vmatpush2.msra.mxu0 0.0
  %2579 = vmatprep.subr.mxu0 0.0
  %2580 = vmatpush2.msra.mxu0 0.0
  %2581 = vmatprep.subr.mxu0 0.0
  %2582 = vmatpush2.msra.mxu0 0.0
  %2583 = vmatprep.subr.mxu0 0.0
  %2584 = vmatpush2.msra.mxu0 0.0
  %2585 = vmatprep.subr.mxu0 0.0
  %2586 = vmatpush2.msra.mxu0 0.0
  %2587 = vmatprep.subr.mxu0 0.0
  %2588 = vmatpush2.msra.mxu0 0.0
  %2589 = vmatprep.subr.mxu0 0.0
  %2590 = vmatpush2.msra.mxu0 0.0
  %2591 = vmatprep.subr.mxu0 0.0
  %2592 = vmatpush2.msra.mxu0 0.0
  %2593 = vmatprep.subr.mxu0 0.0
  %2594 = vmatpush2.msra.mxu0 0.0
  %2595 = vmatprep.subr.mxu0 0.0
  %2596 = vmatpush2.msra.mxu0 0.0
  %2597 = vmatprep.mubr.f32.mxu0 0.0
  %2598 = vmatmul.mubr.f32.gmra.mxu0 %v625
  %v2599 = vpop.f32.mrf.mxu0
  %v2600 = vadd.f32 0.0, %v2599
  %v2601 = vpop.f32.mrf.mxu0
  %2602 = vdwg.mxu0
  %v2603 = vrot.slane %v2389, 4
  %v2604 = vsel %vm550, %v2603, 0
  %2606 = vmatprep.subr.mxu0 0.0
  %2607 = vmatpush1.msra.mxu0 0.0
  %2608 = vmatprep.subr.mxu0 0.0
  %2609 = vmatpush1.msra.mxu0 0.0
  %2610 = vmatprep.subr.mxu0 0.0
  %2611 = vmatpush1.msra.mxu0 0.0
  %2612 = vmatprep.subr.mxu0 0.0
  %2613 = vmatpush1.msra.mxu0 0.0
  %2614 = vmatprep.subr.mxu0 0.0
  %2615 = vmatpush1.msra.mxu0 0.0
  %2616 = vmatprep.subr.mxu0 0.0
  %2617 = vmatpush1.msra.mxu0 0.0
  %2618 = vmatprep.subr.mxu0 0.0
  %2619 = vmatpush1.msra.mxu0 0.0
  %2620 = vmatprep.subr.mxu0 0.0
  %2621 = vmatpush1.msra.mxu0 0.0
  %2622 = vmatprep.subr.mxu0 0.0
  %2623 = vmatpush1.msra.mxu0 0.0
  %2624 = vmatprep.subr.mxu0 0.0
  %2625 = vmatpush1.msra.mxu0 0.0
  %2626 = vmatprep.subr.mxu0 0.0
  %2627 = vmatpush1.msra.mxu0 0.0
  %2628 = vmatprep.subr.mxu0 0.0
  %2629 = vmatpush1.msra.mxu0 0.0
  %2630 = vmatprep.subr.mxu0 0.0
  %2631 = vmatpush1.msra.mxu0 0.0
  %2632 = vmatprep.subr.mxu0 0.0
  %2633 = vmatpush1.msra.mxu0 0.0
  %2634 = vmatprep.subr.mxu0 0.0
  %2635 = vmatpush1.msra.mxu0 0.0
  %2636 = vmatprep.subr.mxu0 0.0
  %2637 = vmatpush1.msra.mxu0 %v2604
  %2638 = vmatprep.subr.mxu0 0.0
  %2639 = vmatpush2.msra.mxu0 0.0
  %2640 = vmatprep.subr.mxu0 0.0
  %2641 = vmatpush2.msra.mxu0 0.0
  %2642 = vmatprep.subr.mxu0 0.0
  %2643 = vmatpush2.msra.mxu0 0.0
  %2644 = vmatprep.subr.mxu0 0.0
  %2645 = vmatpush2.msra.mxu0 0.0
  %2646 = vmatprep.subr.mxu0 0.0
  %2647 = vmatpush2.msra.mxu0 0.0
  %2648 = vmatprep.subr.mxu0 0.0
  %2649 = vmatpush2.msra.mxu0 0.0
  %2650 = vmatprep.subr.mxu0 0.0
  %2651 = vmatpush2.msra.mxu0 0.0
  %2652 = vmatprep.subr.mxu0 0.0
  %2653 = vmatpush2.msra.mxu0 0.0
  %2654 = vmatprep.subr.mxu0 0.0
  %2655 = vmatpush2.msra.mxu0 0.0
  %2656 = vmatprep.subr.mxu0 0.0
  %2657 = vmatpush2.msra.mxu0 0.0
  %2658 = vmatprep.subr.mxu0 0.0
  %2659 = vmatpush2.msra.mxu0 0.0
  %2660 = vmatprep.subr.mxu0 0.0
  %2661 = vmatpush2.msra.mxu0 0.0
  %2662 = vmatprep.subr.mxu0 0.0
  %2663 = vmatpush2.msra.mxu0 0.0
  %2664 = vmatprep.subr.mxu0 0.0
  %2665 = vmatpush2.msra.mxu0 0.0
  %2666 = vmatprep.subr.mxu0 0.0
  %2667 = vmatpush2.msra.mxu0 0.0
  %2668 = vmatprep.subr.mxu0 0.0
  %2669 = vmatpush2.msra.mxu0 0.0
  %2670 = vmatprep.mubr.f32.mxu0 0.0
  %2671 = vmatmul.mubr.f32.gmra.mxu0 %v699
  %v2672 = vpop.f32.mrf.mxu0
  %v2673 = vadd.f32 0.0, %v2672
  %v2674 = vpop.f32.mrf.mxu0
  %2675 = vdwg.mxu0
  %2676 = vmatprep.subr.mxu0 0.0
  %2677 = vmatpush1.msra.mxu0 0.0
  %2678 = vmatprep.subr.mxu0 0.0
  %2679 = vmatpush1.msra.mxu0 0.0
  %2680 = vmatprep.subr.mxu0 0.0
  %2681 = vmatpush1.msra.mxu0 0.0
  %2682 = vmatprep.subr.mxu0 0.0
  %2683 = vmatpush1.msra.mxu0 0.0
  %2684 = vmatprep.subr.mxu0 0.0
  %2685 = vmatpush1.msra.mxu0 0.0
  %2686 = vmatprep.subr.mxu0 0.0
  %2687 = vmatpush1.msra.mxu0 0.0
  %2688 = vmatprep.subr.mxu0 0.0
  %2689 = vmatpush1.msra.mxu0 0.0
  %2690 = vmatprep.subr.mxu0 0.0
  %2691 = vmatpush1.msra.mxu0 0.0
  %2692 = vmatprep.subr.mxu0 0.0
  %2693 = vmatpush1.msra.mxu0 0.0
  %2694 = vmatprep.subr.mxu0 0.0
  %2695 = vmatpush1.msra.mxu0 0.0
  %2696 = vmatprep.subr.mxu0 0.0
  %2697 = vmatpush1.msra.mxu0 0.0
  %2698 = vmatprep.subr.mxu0 0.0
  %2699 = vmatpush1.msra.mxu0 0.0
  %2700 = vmatprep.subr.mxu0 0.0
  %2701 = vmatpush1.msra.mxu0 0.0
  %2702 = vmatprep.subr.mxu0 0.0
  %2703 = vmatpush1.msra.mxu0 0.0
  %2704 = vmatprep.subr.mxu0 0.0
  %2705 = vmatpush1.msra.mxu0 0.0
  %2706 = vmatprep.subr.mxu0 0.0
  %2707 = vmatpush1.msra.mxu0 %v2244
  %2708 = vmatprep.subr.mxu0 0.0
  %2709 = vmatpush2.msra.mxu0 0.0
  %2710 = vmatprep.subr.mxu0 0.0
  %2711 = vmatpush2.msra.mxu0 0.0
  %2712 = vmatprep.subr.mxu0 0.0
  %2713 = vmatpush2.msra.mxu0 0.0
  %2714 = vmatprep.subr.mxu0 0.0
  %2715 = vmatpush2.msra.mxu0 0.0
  %2716 = vmatprep.subr.mxu0 0.0
  %2717 = vmatpush2.msra.mxu0 0.0
  %2718 = vmatprep.subr.mxu0 0.0
  %2719 = vmatpush2.msra.mxu0 0.0
  %2720 = vmatprep.subr.mxu0 0.0
  %2721 = vmatpush2.msra.mxu0 0.0
  %2722 = vmatprep.subr.mxu0 0.0
  %2723 = vmatpush2.msra.mxu0 0.0
  %2724 = vmatprep.subr.mxu0 0.0
  %2725 = vmatpush2.msra.mxu0 0.0
  %2726 = vmatprep.subr.mxu0 0.0
  %2727 = vmatpush2.msra.mxu0 0.0
  %2728 = vmatprep.subr.mxu0 0.0
  %2729 = vmatpush2.msra.mxu0 0.0
  %2730 = vmatprep.subr.mxu0 0.0
  %2731 = vmatpush2.msra.mxu0 0.0
  %2732 = vmatprep.subr.mxu0 0.0
  %2733 = vmatpush2.msra.mxu0 0.0
  %2734 = vmatprep.subr.mxu0 0.0
  %2735 = vmatpush2.msra.mxu0 0.0
  %2736 = vmatprep.subr.mxu0 0.0
  %2737 = vmatpush2.msra.mxu0 0.0
  %2738 = vmatprep.subr.mxu0 0.0
  %2739 = vmatpush2.msra.mxu0 0.0
  %2740 = vmatprep.mubr.f32.mxu0 0.0
  %2741 = vmatmul.mubr.f32.gmra.mxu0 %v774
  %v2742 = vpop.f32.mrf.mxu0
  %v2743 = vadd.f32 0.0, %v2742
  %v2744 = vpop.f32.mrf.mxu0
  %2745 = vdwg.mxu0
  %2748 = vrot.lane.b32.xlu0 %v2457, 32
  %v2749 = vpop.permute.xlu0 %2748
  %2750 = vrot.lane.b32.xlu0 %v2600, 32
  %v2751 = vpop.permute.xlu0 %2750
  %2755 = vrot.lane.b32.xlu0 %v2097, 64
  %v2756 = vpop.permute.xlu0 %2755
  %2757 = vrot.lane.b32.xlu0 %v2098, 64
  %v2758 = vpop.permute.xlu0 %2757
  %v2761 = vsel %vm58, %v2530, %v2749
  %v2762 = vsel %vm58, %v2673, %v2751
  %v2763 = vsel %vm863, %v2761, %v2756
  %v2764 = vsel %vm863, %v2762, %v2758
  %v2766 = vsel %vm866, %v2763, 0
  %v2769 = vsel %vm866, %v2764, 0
  %2771 = vmatprep.subr.mxu0 0.0
  %2772 = vmatpush1.msra.mxu0 0.0
  %2773 = vmatprep.subr.mxu0 0.0
  %2774 = vmatpush1.msra.mxu0 0.0
  %2775 = vmatprep.subr.mxu0 0.0
  %2776 = vmatpush1.msra.mxu0 0.0
  %2777 = vmatprep.subr.mxu0 0.0
  %2778 = vmatpush1.msra.mxu0 0.0
  %2779 = vmatprep.subr.mxu0 0.0
  %2780 = vmatpush1.msra.mxu0 %v82
  %2781 = vmatprep.subr.mxu0 0.0
  %2782 = vmatpush1.msra.mxu0 %v81
  %2783 = vmatprep.subr.mxu0 0.0
  %2784 = vmatpush1.msra.mxu0 %v80
  %2785 = vmatprep.subr.mxu0 0.0
  %2786 = vmatpush1.msra.mxu0 %v79
  %2787 = vmatprep.subr.mxu0 0.0
  %2788 = vmatpush1.msra.mxu0 %v78
  %2789 = vmatprep.subr.mxu0 0.0
  %2790 = vmatpush1.msra.mxu0 %v77
  %2791 = vmatprep.subr.mxu0 0.0
  %2792 = vmatpush1.msra.mxu0 %v76
  %2793 = vmatprep.subr.mxu0 0.0
  %2794 = vmatpush1.msra.mxu0 %v75
  %2795 = vmatprep.subr.mxu0 0.0
  %2796 = vmatpush1.msra.mxu0 %v74
  %2797 = vmatprep.subr.mxu0 0.0
  %2798 = vmatpush1.msra.mxu0 %v73
  %2799 = vmatprep.subr.mxu0 0.0
  %2800 = vmatpush1.msra.mxu0 %v72
  %2801 = vmatprep.subr.mxu0 0.0
  %2802 = vmatpush1.msra.mxu0 %v71
  %2803 = vmatprep.subr.mxu0 0.0
  %2804 = vmatpush2.msra.mxu0 0.0
  %2805 = vmatprep.subr.mxu0 0.0
  %2806 = vmatpush2.msra.mxu0 0.0
  %2807 = vmatprep.subr.mxu0 0.0
  %2808 = vmatpush2.msra.mxu0 0.0
  %2809 = vmatprep.subr.mxu0 0.0
  %2810 = vmatpush2.msra.mxu0 0.0
  %2811 = vmatprep.subr.mxu0 0.0
  %2812 = vmatpush2.msra.mxu0 0.0
  %2813 = vmatprep.subr.mxu0 0.0
  %2814 = vmatpush2.msra.mxu0 0.0
  %2815 = vmatprep.subr.mxu0 0.0
  %2816 = vmatpush2.msra.mxu0 0.0
  %2817 = vmatprep.subr.mxu0 0.0
  %2818 = vmatpush2.msra.mxu0 0.0
  %2819 = vmatprep.subr.mxu0 0.0
  %2820 = vmatpush2.msra.mxu0 0.0
  %2821 = vmatprep.subr.mxu0 0.0
  %2822 = vmatpush2.msra.mxu0 0.0
  %2823 = vmatprep.subr.mxu0 0.0
  %2824 = vmatpush2.msra.mxu0 0.0
  %2825 = vmatprep.subr.mxu0 0.0
  %2826 = vmatpush2.msra.mxu0 0.0
  %2827 = vmatprep.subr.mxu0 0.0
  %2828 = vmatpush2.msra.mxu0 0.0
  %2829 = vmatprep.subr.mxu0 0.0
  %2830 = vmatpush2.msra.mxu0 0.0
  %2831 = vmatprep.subr.mxu0 0.0
  %2832 = vmatpush2.msra.mxu0 0.0
  %2833 = vmatprep.subr.mxu0 0.0
  %2834 = vmatpush2.msra.mxu0 0.0
  %2835 = vmatprep.mubr.f32.mxu0 0.0
  %2836 = vmatmul.mubr.f32.gmra.mxu0 %v2766
  %v2837 = vpop.f32.mrf.mxu0
  %v2838 = vadd.f32 %v96, %v2837
  %v2839 = vpop.f32.mrf.mxu0
  %2840 = vmatprep.mubr.f32.mxu0 0.0
  %2841 = vmatmul.mubr.f32.gmra.mxu0 %v2769
  %v2842 = vpop.f32.mrf.mxu0
  %v2843 = vadd.f32 %v96, %v2842
  %v2844 = vpop.f32.mrf.mxu0
  %2845 = vdwg.mxu0
  %2846 = vrot.lane.b32.xlu0 %v2099, 32
  %v2847 = vpop.permute.xlu0 %2846
  %v2849 = vsel %vm58, %v2743, %v2847
  %v2851 = vsel %vm863, %v2849, 0
  %2853 = vmatprep.subr.mxu0 0.0
  %2854 = vmatpush1.msra.mxu0 0.0
  %2855 = vmatprep.subr.mxu0 0.0
  %2856 = vmatpush1.msra.mxu0 0.0
  %2857 = vmatprep.subr.mxu0 0.0
  %2858 = vmatpush1.msra.mxu0 0.0
  %2859 = vmatprep.subr.mxu0 0.0
  %2860 = vmatpush1.msra.mxu0 0.0
  %2861 = vmatprep.subr.mxu0 0.0
  %2862 = vmatpush1.msra.mxu0 0.0
  %2863 = vmatprep.subr.mxu0 0.0
  %2864 = vmatpush1.msra.mxu0 0.0
  %2865 = vmatprep.subr.mxu0 0.0
  %2866 = vmatpush1.msra.mxu0 0.0
  %2867 = vmatprep.subr.mxu0 0.0
  %2868 = vmatpush1.msra.mxu0 0.0
  %2869 = vmatprep.subr.mxu0 0.0
  %2870 = vmatpush1.msra.mxu0 %v90
  %2871 = vmatprep.subr.mxu0 0.0
  %2872 = vmatpush1.msra.mxu0 %v89
  %2873 = vmatprep.subr.mxu0 0.0
  %2874 = vmatpush1.msra.mxu0 %v88
  %2875 = vmatprep.subr.mxu0 0.0
  %2876 = vmatpush1.msra.mxu0 %v87
  %2877 = vmatprep.subr.mxu0 0.0
  %2878 = vmatpush1.msra.mxu0 %v86
  %2879 = vmatprep.subr.mxu0 0.0
  %2880 = vmatpush1.msra.mxu0 %v85
  %2881 = vmatprep.subr.mxu0 0.0
  %2882 = vmatpush1.msra.mxu0 %v84
  %2883 = vmatprep.subr.mxu0 0.0
  %2884 = vmatpush1.msra.mxu0 %v83
  %2885 = vmatprep.subr.mxu0 0.0
  %2886 = vmatpush2.msra.mxu0 0.0
  %2887 = vmatprep.subr.mxu0 0.0
  %2888 = vmatpush2.msra.mxu0 0.0
  %2889 = vmatprep.subr.mxu0 0.0
  %2890 = vmatpush2.msra.mxu0 0.0
  %2891 = vmatprep.subr.mxu0 0.0
  %2892 = vmatpush2.msra.mxu0 0.0
  %2893 = vmatprep.subr.mxu0 0.0
  %2894 = vmatpush2.msra.mxu0 0.0
  %2895 = vmatprep.subr.mxu0 0.0
  %2896 = vmatpush2.msra.mxu0 0.0
  %2897 = vmatprep.subr.mxu0 0.0
  %2898 = vmatpush2.msra.mxu0 0.0
  %2899 = vmatprep.subr.mxu0 0.0
  %2900 = vmatpush2.msra.mxu0 0.0
  %2901 = vmatprep.subr.mxu0 0.0
  %2902 = vmatpush2.msra.mxu0 0.0
  %2903 = vmatprep.subr.mxu0 0.0
  %2904 = vmatpush2.msra.mxu0 0.0
  %2905 = vmatprep.subr.mxu0 0.0
  %2906 = vmatpush2.msra.mxu0 0.0
  %2907 = vmatprep.subr.mxu0 0.0
  %2908 = vmatpush2.msra.mxu0 0.0
  %2909 = vmatprep.subr.mxu0 0.0
  %2910 = vmatpush2.msra.mxu0 0.0
  %2911 = vmatprep.subr.mxu0 0.0
  %2912 = vmatpush2.msra.mxu0 0.0
  %2913 = vmatprep.subr.mxu0 0.0
  %2914 = vmatpush2.msra.mxu0 0.0
  %2915 = vmatprep.subr.mxu0 0.0
  %2916 = vmatpush2.msra.mxu0 0.0
  %2917 = vmatprep.mubr.f32.mxu0 0.0
  %2918 = vmatmul.mubr.f32.gmra.mxu0 %v2851
  %v2919 = vpop.f32.mrf.mxu0
  %v2920 = vadd.f32 %v103, %v2919
  %v2921 = vpop.f32.mrf.mxu0
  %2922 = vdwg.mxu0
  %v2923 = vld [vmem:[#allocation3] sm:$0xff]
  %v2924 = vld [vmem:[#allocation3 + $0x8] sm:$0xff]
  %v2925 = vmul.f32 %v2838, %v178
  %v2926 = vmul.f32 %v2843, %v178
  %v2927 = vxor.u32 %v2925, 2147483648
  %v2928 = vxor.u32 %v2926, 2147483648
  %v2929 = vmul.f32 %v2927, 1.442695
  %v2930 = vpow.pop %v2929
  %v2931 = vmul.f32 %v2928, 1.442695
  %v2932 = vpow.pop %v2931
  %v2933 = vadd.f32 %v2930, 1.0
  %v2934 = vadd.f32 %v2932, 1.0
  %v2935 = vrcp.pop %v2933
  %v2936 = vmul.f32 1.0, %v2935
  %v2937 = vrcp.pop %v2934
  %v2938 = vmul.f32 1.0, %v2937
  %v2939 = vmul.f32 %v2936, 2.0
  %v2940 = vmul.f32 %v2938, 2.0
  %v2941 = vsub.f32 %v2939, 1.0
  %v2942 = vsub.f32 %v2940, 1.0
  %2945 = vrot.lane.b32.xlu0 %v2923, 32
  %v2946 = vpop.permute.xlu0 %2945
  %2947 = vrot.lane.b32.xlu0 %v2924, 32
  %v2948 = vpop.permute.xlu0 %2947
  %v2951 = vmul.f32 %v2936, %v2946
  %v2952 = vmul.f32 %v2938, %v2948
  %2955 = vrot.lane.b32.xlu0 %v2941, 64
  %v2956 = vpop.permute.xlu0 %2955
  %2957 = vrot.lane.b32.xlu0 %v2942, 64
  %v2958 = vpop.permute.xlu0 %2957
  %v2961 = vmul.f32 %v2936, %v2956
  %v2962 = vmul.f32 %v2938, %v2958
  %2965 = vrot.lane.b32.xlu0 %v2961, 32
  %v2966 = vpop.permute.xlu0 %2965
  %2967 = vrot.lane.b32.xlu0 %v2962, 32
  %v2968 = vpop.permute.xlu0 %2967
  %v2971 = vadd.f32 %v2951, %v2966
  %v2972 = vadd.f32 %v2952, %v2968
  %v2973 = vtanh.pop %v2971
  %v2974 = vtanh.pop %v2972
  %2977 = vrot.lane.b32.xlu0 %v2973, 64
  %v2978 = vpop.permute.xlu0 %2977
  %2979 = vrot.lane.b32.xlu0 %v2974, 64
  %v2980 = vpop.permute.xlu0 %2979
  %v2983 = vmul.f32 %v2936, %v2978
  %v2984 = vmul.f32 %v2938, %v2980
  %v2985 = vld [vmem:[#allocation4] sm:$0xff]
  %v2986 = vmul.f32 %v2920, %v178
  %v2987 = vxor.u32 %v2986, 2147483648
  %v2988 = vmul.f32 %v2987, 1.442695
  %v2989 = vpow.pop %v2988
  %v2990 = vadd.f32 %v2989, 1.0
  %v2991 = vrcp.pop %v2990
  %v2992 = vmul.f32 1.0, %v2991
  %v2993 = vmul.f32 %v2992, 2.0
  %v2994 = vsub.f32 %v2993, 1.0
  %2996 = vrot.lane.b32.xlu0 %v2985, 32
  %v2997 = vpop.permute.xlu0 %2996
  %v2999 = vmul.f32 %v2992, %v2997
  %3001 = vrot.lane.b32.xlu0 %v2994, 64
  %v3002 = vpop.permute.xlu0 %3001
  %v3004 = vmul.f32 %v2992, %v3002
  %3006 = vrot.lane.b32.xlu0 %v3004, 32
  %v3007 = vpop.permute.xlu0 %3006
  %v3009 = vadd.f32 %v2999, %v3007
  %v3010 = vtanh.pop %v3009
  %3012 = vrot.lane.b32.xlu0 %v3010, 64
  %v3013 = vpop.permute.xlu0 %3012
  %v3015 = vmul.f32 %v2992, %v3013
  %3018 = vrot.lane.b32.xlu0 %v2983, 32
  %v3019 = vpop.permute.xlu0 %3018
  %3020 = vrot.lane.b32.xlu0 %v2984, 32
  %v3021 = vpop.permute.xlu0 %3020
  %3024 = vst.msk [vmem:[%s17] sm:$0xff] %vm58, %v3019
  %3025 = vst.msk [vmem:[%s17 + $0x8] sm:$0xff] %vm58, %v3021
  %3028 = vrot.lane.b32.xlu0 %v2971, 96
  %v3029 = vpop.permute.xlu0 %3028
  %3030 = vrot.lane.b32.xlu0 %v2972, 96
  %v3031 = vpop.permute.xlu0 %3030
  %3034 = vst.msk [vmem:[#allocation3] sm:$0xff] %vm58, %v3029
  %3035 = vst.msk [vmem:[#allocation3 + $0x8] sm:$0xff] %vm58, %v3031
  %3037 = vrot.lane.b32.xlu0 %v3015, 32
  %v3038 = vpop.permute.xlu0 %3037
  %3040 = vst.msk [vmem:[#allocation2] sm:$0xff] %vm58, %v3038
  %3042 = vrot.lane.b32.xlu0 %v3009, 96
  %v3043 = vpop.permute.xlu0 %3042
  %3045 = vst.msk [vmem:[#allocation4] sm:$0xff] %vm58, %v3043
  %v3046 = vld [vmem:[%s17] sm:$0xff]
  %v3047 = vld [vmem:[%s17 + $0x8] sm:$0xff]
  %v3048 = vld [vmem:[#allocation2] sm:$0xff]
  %v3050 = vsel %vm58, %v3047, 0
  %3052 = vmatprep.subr.mxu0 0.0
  %3053 = vmatpush1.msra.mxu0 0.0
  %3054 = vmatprep.subr.mxu0 0.0
  %3055 = vmatpush1.msra.mxu0 0.0
  %3056 = vmatprep.subr.mxu0 0.0
  %3057 = vmatpush1.msra.mxu0 0.0
  %3058 = vmatprep.subr.mxu0 0.0
  %3059 = vmatpush1.msra.mxu0 0.0
  %3060 = vmatprep.subr.mxu0 0.0
  %3061 = vmatpush1.msra.mxu0 0.0
  %3062 = vmatprep.subr.mxu0 0.0
  %3063 = vmatpush1.msra.mxu0 0.0
  %3064 = vmatprep.subr.mxu0 0.0
  %3065 = vmatpush1.msra.mxu0 0.0
  %3066 = vmatprep.subr.mxu0 0.0
  %3067 = vmatpush1.msra.mxu0 0.0
  %3068 = vmatprep.subr.mxu0 0.0
  %3069 = vmatpush1.msra.mxu0 0.0
  %3070 = vmatprep.subr.mxu0 0.0
  %3071 = vmatpush1.msra.mxu0 0.0
  %3072 = vmatprep.subr.mxu0 0.0
  %3073 = vmatpush1.msra.mxu0 0.0
  %3074 = vmatprep.subr.mxu0 0.0
  %3075 = vmatpush1.msra.mxu0 0.0
  %3076 = vmatprep.subr.mxu0 0.0
  %3077 = vmatpush1.msra.mxu0 %v128
  %3078 = vmatprep.subr.mxu0 0.0
  %3079 = vmatpush1.msra.mxu0 %v127
  %3080 = vmatprep.subr.mxu0 0.0
  %3081 = vmatpush1.msra.mxu0 %v126
  %3082 = vmatprep.subr.mxu0 0.0
  %3083 = vmatpush1.msra.mxu0 %v125
  %3084 = vmatprep.subr.mxu0 0.0
  %3085 = vmatpush2.msra.mxu0 0.0
  %3086 = vmatprep.subr.mxu0 0.0
  %3087 = vmatpush2.msra.mxu0 0.0
  %3088 = vmatprep.subr.mxu0 0.0
  %3089 = vmatpush2.msra.mxu0 0.0
  %3090 = vmatprep.subr.mxu0 0.0
  %3091 = vmatpush2.msra.mxu0 0.0
  %3092 = vmatprep.subr.mxu0 0.0
  %3093 = vmatpush2.msra.mxu0 0.0
  %3094 = vmatprep.subr.mxu0 0.0
  %3095 = vmatpush2.msra.mxu0 0.0
  %3096 = vmatprep.subr.mxu0 0.0
  %3097 = vmatpush2.msra.mxu0 0.0
  %3098 = vmatprep.subr.mxu0 0.0
  %3099 = vmatpush2.msra.mxu0 0.0
  %3100 = vmatprep.subr.mxu0 0.0
  %3101 = vmatpush2.msra.mxu0 0.0
  %3102 = vmatprep.subr.mxu0 0.0
  %3103 = vmatpush2.msra.mxu0 0.0
  %3104 = vmatprep.subr.mxu0 0.0
  %3105 = vmatpush2.msra.mxu0 0.0
  %3106 = vmatprep.subr.mxu0 0.0
  %3107 = vmatpush2.msra.mxu0 0.0
  %3108 = vmatprep.subr.mxu0 0.0
  %3109 = vmatpush2.msra.mxu0 0.0
  %3110 = vmatprep.subr.mxu0 0.0
  %3111 = vmatpush2.msra.mxu0 0.0
  %3112 = vmatprep.subr.mxu0 0.0
  %3113 = vmatpush2.msra.mxu0 0.0
  %3114 = vmatprep.subr.mxu0 0.0
  %3115 = vmatpush2.msra.mxu0 0.0
  %3116 = vmatprep.mubr.f32.mxu0 0.0
  %3117 = vmatmul.mubr.f32.gmra.mxu0 %v3050
  %v3118 = vpop.f32.mrf.mxu0
  %v3119 = vadd.f32 %v164, %v3118
  %v3120 = vpop.f32.mrf.mxu0
  %3121 = vdwg.mxu0
  %v3122 = vmax.f32 %v3119, 0.0
  %3123 = vmatprep.subr.mxu0 0.0
  %3124 = vmatpush1.msra.mxu0 %v144
  %3125 = vmatprep.subr.mxu0 0.0
  %3126 = vmatpush1.msra.mxu0 %v143
  %3127 = vmatprep.subr.mxu0 0.0
  %3128 = vmatpush1.msra.mxu0 %v142
  %3129 = vmatprep.subr.mxu0 0.0
  %3130 = vmatpush1.msra.mxu0 %v141
  %3131 = vmatprep.subr.mxu0 0.0
  %3132 = vmatpush1.msra.mxu0 %v140
  %3133 = vmatprep.subr.mxu0 0.0
  %3134 = vmatpush1.msra.mxu0 %v139
  %3135 = vmatprep.subr.mxu0 0.0
  %3136 = vmatpush1.msra.mxu0 %v138
  %3137 = vmatprep.subr.mxu0 0.0
  %3138 = vmatpush1.msra.mxu0 %v137
  %3139 = vmatprep.subr.mxu0 0.0
  %3140 = vmatpush1.msra.mxu0 %v136
  %3141 = vmatprep.subr.mxu0 0.0
  %3142 = vmatpush1.msra.mxu0 %v135
  %3143 = vmatprep.subr.mxu0 0.0
  %3144 = vmatpush1.msra.mxu0 %v134
  %3145 = vmatprep.subr.mxu0 0.0
  %3146 = vmatpush1.msra.mxu0 %v133
  %3147 = vmatprep.subr.mxu0 0.0
  %3148 = vmatpush1.msra.mxu0 %v132
  %3149 = vmatprep.subr.mxu0 0.0
  %3150 = vmatpush1.msra.mxu0 %v131
  %3151 = vmatprep.subr.mxu0 0.0
  %3152 = vmatpush1.msra.mxu0 %v130
  %3153 = vmatprep.subr.mxu0 0.0
  %3154 = vmatpush1.msra.mxu0 %v129
  %3155 = vmatprep.subr.mxu0 0.0
  %3156 = vmatpush2.msra.mxu0 0.0
  %3157 = vmatprep.subr.mxu0 0.0
  %3158 = vmatpush2.msra.mxu0 0.0
  %3159 = vmatprep.subr.mxu0 0.0
  %3160 = vmatpush2.msra.mxu0 0.0
  %3161 = vmatprep.subr.mxu0 0.0
  %3162 = vmatpush2.msra.mxu0 0.0
  %3163 = vmatprep.subr.mxu0 0.0
  %3164 = vmatpush2.msra.mxu0 0.0
  %3165 = vmatprep.subr.mxu0 0.0
  %3166 = vmatpush2.msra.mxu0 0.0
  %3167 = vmatprep.subr.mxu0 0.0
  %3168 = vmatpush2.msra.mxu0 0.0
  %3169 = vmatprep.subr.mxu0 0.0
  %3170 = vmatpush2.msra.mxu0 0.0
  %3171 = vmatprep.subr.mxu0 0.0
  %3172 = vmatpush2.msra.mxu0 0.0
  %3173 = vmatprep.subr.mxu0 0.0
  %3174 = vmatpush2.msra.mxu0 0.0
  %3175 = vmatprep.subr.mxu0 0.0
  %3176 = vmatpush2.msra.mxu0 0.0
  %3177 = vmatprep.subr.mxu0 0.0
  %3178 = vmatpush2.msra.mxu0 0.0
  %3179 = vmatprep.subr.mxu0 0.0
  %3180 = vmatpush2.msra.mxu0 0.0
  %3181 = vmatprep.subr.mxu0 0.0
  %3182 = vmatpush2.msra.mxu0 0.0
  %3183 = vmatprep.subr.mxu0 0.0
  %3184 = vmatpush2.msra.mxu0 0.0
  %3185 = vmatprep.subr.mxu0 0.0
  %3186 = vmatpush2.msra.mxu0 0.0
  %3187 = vmatprep.mubr.f32.mxu0 0.0
  %3188 = vmatmul.mubr.f32.gmra.mxu0 %v3122
  %v3189 = vpop.f32.mrf.mxu0
  %v3190 = vadd.f32 %v171, %v3189
  %v3191 = vpop.f32.mrf.mxu0
  %3192 = vdwg.mxu0
  %v3193 = vmax.f32 %v3190, 0.0
  %v3195 = vsel %vm58, %v3048, 0
  %3197 = vmatprep.subr.mxu0 0.0
  %3198 = vmatpush1.msra.mxu0 0.0
  %3199 = vmatprep.subr.mxu0 0.0
  %3200 = vmatpush1.msra.mxu0 0.0
  %3201 = vmatprep.subr.mxu0 0.0
  %3202 = vmatpush1.msra.mxu0 0.0
  %3203 = vmatprep.subr.mxu0 0.0
  %3204 = vmatpush1.msra.mxu0 0.0
  %3205 = vmatprep.subr.mxu0 0.0
  %3206 = vmatpush1.msra.mxu0 0.0
  %3207 = vmatprep.subr.mxu0 0.0
  %3208 = vmatpush1.msra.mxu0 0.0
  %3209 = vmatprep.subr.mxu0 0.0
  %3210 = vmatpush1.msra.mxu0 0.0
  %3211 = vmatprep.subr.mxu0 0.0
  %3212 = vmatpush1.msra.mxu0 0.0
  %3213 = vmatprep.subr.mxu0 0.0
  %3214 = vmatpush1.msra.mxu0 0.0
  %3215 = vmatprep.subr.mxu0 0.0
  %3216 = vmatpush1.msra.mxu0 0.0
  %3217 = vmatprep.subr.mxu0 0.0
  %3218 = vmatpush1.msra.mxu0 0.0
  %3219 = vmatprep.subr.mxu0 0.0
  %3220 = vmatpush1.msra.mxu0 0.0
  %3221 = vmatprep.subr.mxu0 0.0
  %3222 = vmatpush1.msra.mxu0 %v108
  %3223 = vmatprep.subr.mxu0 0.0
  %3224 = vmatpush1.msra.mxu0 %v107
  %3225 = vmatprep.subr.mxu0 0.0
  %3226 = vmatpush1.msra.mxu0 %v106
  %3227 = vmatprep.subr.mxu0 0.0
  %3228 = vmatpush1.msra.mxu0 %v105
  %3229 = vmatprep.subr.mxu0 0.0
  %3230 = vmatpush2.msra.mxu0 0.0
  %3231 = vmatprep.subr.mxu0 0.0
  %3232 = vmatpush2.msra.mxu0 0.0
  %3233 = vmatprep.subr.mxu0 0.0
  %3234 = vmatpush2.msra.mxu0 0.0
  %3235 = vmatprep.subr.mxu0 0.0
  %3236 = vmatpush2.msra.mxu0 0.0
  %3237 = vmatprep.subr.mxu0 0.0
  %3238 = vmatpush2.msra.mxu0 0.0
  %3239 = vmatprep.subr.mxu0 0.0
  %3240 = vmatpush2.msra.mxu0 0.0
  %3241 = vmatprep.subr.mxu0 0.0
  %3242 = vmatpush2.msra.mxu0 0.0
  %3243 = vmatprep.subr.mxu0 0.0
  %3244 = vmatpush2.msra.mxu0 0.0
  %3245 = vmatprep.subr.mxu0 0.0
  %3246 = vmatpush2.msra.mxu0 0.0
  %3247 = vmatprep.subr.mxu0 0.0
  %3248 = vmatpush2.msra.mxu0 0.0
  %3249 = vmatprep.subr.mxu0 0.0
  %3250 = vmatpush2.msra.mxu0 0.0
  %3251 = vmatprep.subr.mxu0 0.0
  %3252 = vmatpush2.msra.mxu0 0.0
  %3253 = vmatprep.subr.mxu0 0.0
  %3254 = vmatpush2.msra.mxu0 0.0
  %3255 = vmatprep.subr.mxu0 0.0
  %3256 = vmatpush2.msra.mxu0 0.0
  %3257 = vmatprep.subr.mxu0 0.0
  %3258 = vmatpush2.msra.mxu0 0.0
  %3259 = vmatprep.subr.mxu0 0.0
  %3260 = vmatpush2.msra.mxu0 0.0
  %3261 = vmatprep.mubr.f32.mxu0 0.0
  %3262 = vmatmul.mubr.f32.gmra.mxu0 %v3195
  %v3263 = vpop.f32.mrf.mxu0
  %v3264 = vadd.f32 %v150, %v3263
  %v3265 = vpop.f32.mrf.mxu0
  %3266 = vdwg.mxu0
  %v3267 = vmax.f32 %v3264, 0.0
  %3268 = vmatprep.subr.mxu0 0.0
  %3269 = vmatpush1.msra.mxu0 %v124
  %3270 = vmatprep.subr.mxu0 0.0
  %3271 = vmatpush1.msra.mxu0 %v123
  %3272 = vmatprep.subr.mxu0 0.0
  %3273 = vmatpush1.msra.mxu0 %v122
  %3274 = vmatprep.subr.mxu0 0.0
  %3275 = vmatpush1.msra.mxu0 %v121
  %3276 = vmatprep.subr.mxu0 0.0
  %3277 = vmatpush1.msra.mxu0 %v120
  %3278 = vmatprep.subr.mxu0 0.0
  %3279 = vmatpush1.msra.mxu0 %v119
  %3280 = vmatprep.subr.mxu0 0.0
  %3281 = vmatpush1.msra.mxu0 %v118
  %3282 = vmatprep.subr.mxu0 0.0
  %3283 = vmatpush1.msra.mxu0 %v117
  %3284 = vmatprep.subr.mxu0 0.0
  %3285 = vmatpush1.msra.mxu0 %v116
  %3286 = vmatprep.subr.mxu0 0.0
  %3287 = vmatpush1.msra.mxu0 %v115
  %3288 = vmatprep.subr.mxu0 0.0
  %3289 = vmatpush1.msra.mxu0 %v114
  %3290 = vmatprep.subr.mxu0 0.0
  %3291 = vmatpush1.msra.mxu0 %v113
  %3292 = vmatprep.subr.mxu0 0.0
  %3293 = vmatpush1.msra.mxu0 %v112
  %3294 = vmatprep.subr.mxu0 0.0
  %3295 = vmatpush1.msra.mxu0 %v111
  %3296 = vmatprep.subr.mxu0 0.0
  %3297 = vmatpush1.msra.mxu0 %v110
  %3298 = vmatprep.subr.mxu0 0.0
  %3299 = vmatpush1.msra.mxu0 %v109
  %3300 = vmatprep.subr.mxu0 0.0
  %3301 = vmatpush2.msra.mxu0 0.0
  %3302 = vmatprep.subr.mxu0 0.0
  %3303 = vmatpush2.msra.mxu0 0.0
  %3304 = vmatprep.subr.mxu0 0.0
  %3305 = vmatpush2.msra.mxu0 0.0
  %3306 = vmatprep.subr.mxu0 0.0
  %3307 = vmatpush2.msra.mxu0 0.0
  %3308 = vmatprep.subr.mxu0 0.0
  %3309 = vmatpush2.msra.mxu0 0.0
  %3310 = vmatprep.subr.mxu0 0.0
  %3311 = vmatpush2.msra.mxu0 0.0
  %3312 = vmatprep.subr.mxu0 0.0
  %3313 = vmatpush2.msra.mxu0 0.0
  %3314 = vmatprep.subr.mxu0 0.0
  %3315 = vmatpush2.msra.mxu0 0.0
  %3316 = vmatprep.subr.mxu0 0.0
  %3317 = vmatpush2.msra.mxu0 0.0
  %3318 = vmatprep.subr.mxu0 0.0
  %3319 = vmatpush2.msra.mxu0 0.0
  %3320 = vmatprep.subr.mxu0 0.0
  %3321 = vmatpush2.msra.mxu0 0.0
  %3322 = vmatprep.subr.mxu0 0.0
  %3323 = vmatpush2.msra.mxu0 0.0
  %3324 = vmatprep.subr.mxu0 0.0
  %3325 = vmatpush2.msra.mxu0 0.0
  %3326 = vmatprep.subr.mxu0 0.0
  %3327 = vmatpush2.msra.mxu0 0.0
  %3328 = vmatprep.subr.mxu0 0.0
  %3329 = vmatpush2.msra.mxu0 0.0
  %3330 = vmatprep.subr.mxu0 0.0
  %3331 = vmatpush2.msra.mxu0 0.0
  %3332 = vmatprep.mubr.f32.mxu0 0.0
  %3333 = vmatmul.mubr.f32.gmra.mxu0 %v3267
  %v3334 = vpop.f32.mrf.mxu0
  %v3335 = vadd.f32 %v157, %v3334
  %v3336 = vpop.f32.mrf.mxu0
  %3337 = vdwg.mxu0
  %v3338 = vmax.f32 %v3335, 0.0
  %3339 = vmatprep.subr.mxu0 0.0
  %3340 = vmatpush1.msra.mxu0 0.0
  %3341 = vmatprep.subr.mxu0 0.0
  %3342 = vmatpush1.msra.mxu0 0.0
  %3343 = vmatprep.subr.mxu0 0.0
  %3344 = vmatpush1.msra.mxu0 0.0
  %3345 = vmatprep.subr.mxu0 0.0
  %3346 = vmatpush1.msra.mxu0 0.0
  %3347 = vmatprep.subr.mxu0 0.0
  %3348 = vmatpush1.msra.mxu0 0.0
  %3349 = vmatprep.subr.mxu0 0.0
  %3350 = vmatpush1.msra.mxu0 0.0
  %3351 = vmatprep.subr.mxu0 0.0
  %3352 = vmatpush1.msra.mxu0 0.0
  %3353 = vmatprep.subr.mxu0 0.0
  %3354 = vmatpush1.msra.mxu0 0.0
  %3355 = vmatprep.subr.mxu0 0.0
  %3356 = vmatpush1.msra.mxu0 0.0
  %3357 = vmatprep.subr.mxu0 0.0
  %3358 = vmatpush1.msra.mxu0 0.0
  %3359 = vmatprep.subr.mxu0 0.0
  %3360 = vmatpush1.msra.mxu0 0.0
  %3361 = vmatprep.subr.mxu0 0.0
  %3362 = vmatpush1.msra.mxu0 0.0
  %3363 = vmatprep.subr.mxu0 0.0
  %3364 = vmatpush1.msra.mxu0 0.0
  %3365 = vmatprep.subr.mxu0 0.0
  %3366 = vmatpush1.msra.mxu0 0.0
  %3367 = vmatprep.subr.mxu0 0.0
  %3368 = vmatpush1.msra.mxu0 0.0
  %3369 = vmatprep.subr.mxu0 0.0
  %3370 = vmatpush1.msra.mxu0 %v3046
  %3371 = vmatprep.subr.mxu0 0.0
  %3372 = vmatpush2.msra.mxu0 0.0
  %3373 = vmatprep.subr.mxu0 0.0
  %3374 = vmatpush2.msra.mxu0 0.0
  %3375 = vmatprep.subr.mxu0 0.0
  %3376 = vmatpush2.msra.mxu0 0.0
  %3377 = vmatprep.subr.mxu0 0.0
  %3378 = vmatpush2.msra.mxu0 0.0
  %3379 = vmatprep.subr.mxu0 0.0
  %3380 = vmatpush2.msra.mxu0 0.0
  %3381 = vmatprep.subr.mxu0 0.0
  %3382 = vmatpush2.msra.mxu0 0.0
  %3383 = vmatprep.subr.mxu0 0.0
  %3384 = vmatpush2.msra.mxu0 0.0
  %3385 = vmatprep.subr.mxu0 0.0
  %3386 = vmatpush2.msra.mxu0 0.0
  %3387 = vmatprep.subr.mxu0 0.0
  %3388 = vmatpush2.msra.mxu0 0.0
  %3389 = vmatprep.subr.mxu0 0.0
  %3390 = vmatpush2.msra.mxu0 0.0
  %3391 = vmatprep.subr.mxu0 0.0
  %3392 = vmatpush2.msra.mxu0 0.0
  %3393 = vmatprep.subr.mxu0 0.0
  %3394 = vmatpush2.msra.mxu0 0.0
  %3395 = vmatprep.subr.mxu0 0.0
  %3396 = vmatpush2.msra.mxu0 0.0
  %3397 = vmatprep.subr.mxu0 0.0
  %3398 = vmatpush2.msra.mxu0 0.0
  %3399 = vmatprep.subr.mxu0 0.0
  %3400 = vmatpush2.msra.mxu0 0.0
  %3401 = vmatprep.subr.mxu0 0.0
  %3402 = vmatpush2.msra.mxu0 0.0
  %3403 = vmatprep.mubr.f32.mxu0 0.0
  %3404 = vmatmul.mubr.f32.gmra.mxu0 %v474
  %v3405 = vpop.f32.mrf.mxu0
  %v3406 = vadd.f32 0.0, %v3405
  %v3407 = vpop.f32.mrf.mxu0
  %3408 = vdwg.mxu0
  %v3410 = vsel %vm550, %v3338, 0
  %3412 = vmatprep.subr.mxu0 0.0
  %3413 = vmatpush1.msra.mxu0 0.0
  %3414 = vmatprep.subr.mxu0 0.0
  %3415 = vmatpush1.msra.mxu0 0.0
  %3416 = vmatprep.subr.mxu0 0.0
  %3417 = vmatpush1.msra.mxu0 0.0
  %3418 = vmatprep.subr.mxu0 0.0
  %3419 = vmatpush1.msra.mxu0 0.0
  %3420 = vmatprep.subr.mxu0 0.0
  %3421 = vmatpush1.msra.mxu0 0.0
  %3422 = vmatprep.subr.mxu0 0.0
  %3423 = vmatpush1.msra.mxu0 0.0
  %3424 = vmatprep.subr.mxu0 0.0
  %3425 = vmatpush1.msra.mxu0 0.0
  %3426 = vmatprep.subr.mxu0 0.0
  %3427 = vmatpush1.msra.mxu0 0.0
  %3428 = vmatprep.subr.mxu0 0.0
  %3429 = vmatpush1.msra.mxu0 0.0
  %3430 = vmatprep.subr.mxu0 0.0
  %3431 = vmatpush1.msra.mxu0 0.0
  %3432 = vmatprep.subr.mxu0 0.0
  %3433 = vmatpush1.msra.mxu0 0.0
  %3434 = vmatprep.subr.mxu0 0.0
  %3435 = vmatpush1.msra.mxu0 0.0
  %3436 = vmatprep.subr.mxu0 0.0
  %3437 = vmatpush1.msra.mxu0 0.0
  %3438 = vmatprep.subr.mxu0 0.0
  %3439 = vmatpush1.msra.mxu0 0.0
  %3440 = vmatprep.subr.mxu0 0.0
  %3441 = vmatpush1.msra.mxu0 0.0
  %3442 = vmatprep.subr.mxu0 0.0
  %3443 = vmatpush1.msra.mxu0 %v3410
  %3444 = vmatprep.subr.mxu0 0.0
  %3445 = vmatpush2.msra.mxu0 0.0
  %3446 = vmatprep.subr.mxu0 0.0
  %3447 = vmatpush2.msra.mxu0 0.0
  %3448 = vmatprep.subr.mxu0 0.0
  %3449 = vmatpush2.msra.mxu0 0.0
  %3450 = vmatprep.subr.mxu0 0.0
  %3451 = vmatpush2.msra.mxu0 0.0
  %3452 = vmatprep.subr.mxu0 0.0
  %3453 = vmatpush2.msra.mxu0 0.0
  %3454 = vmatprep.subr.mxu0 0.0
  %3455 = vmatpush2.msra.mxu0 0.0
  %3456 = vmatprep.subr.mxu0 0.0
  %3457 = vmatpush2.msra.mxu0 0.0
  %3458 = vmatprep.subr.mxu0 0.0
  %3459 = vmatpush2.msra.mxu0 0.0
  %3460 = vmatprep.subr.mxu0 0.0
  %3461 = vmatpush2.msra.mxu0 0.0
  %3462 = vmatprep.subr.mxu0 0.0
  %3463 = vmatpush2.msra.mxu0 0.0
  %3464 = vmatprep.subr.mxu0 0.0
  %3465 = vmatpush2.msra.mxu0 0.0
  %3466 = vmatprep.subr.mxu0 0.0
  %3467 = vmatpush2.msra.mxu0 0.0
  %3468 = vmatprep.subr.mxu0 0.0
  %3469 = vmatpush2.msra.mxu0 0.0
  %3470 = vmatprep.subr.mxu0 0.0
  %3471 = vmatpush2.msra.mxu0 0.0
  %3472 = vmatprep.subr.mxu0 0.0
  %3473 = vmatpush2.msra.mxu0 0.0
  %3474 = vmatprep.subr.mxu0 0.0
  %3475 = vmatpush2.msra.mxu0 0.0
  %3476 = vmatprep.mubr.f32.mxu0 0.0
  %3477 = vmatmul.mubr.f32.gmra.mxu0 %v548
  %v3478 = vpop.f32.mrf.mxu0
  %v3479 = vadd.f32 0.0, %v3478
  %v3480 = vpop.f32.mrf.mxu0
  %3481 = vdwg.mxu0
  %3482 = vmatprep.subr.mxu0 0.0
  %3483 = vmatpush1.msra.mxu0 0.0
  %3484 = vmatprep.subr.mxu0 0.0
  %3485 = vmatpush1.msra.mxu0 0.0
  %3486 = vmatprep.subr.mxu0 0.0
  %3487 = vmatpush1.msra.mxu0 0.0
  %3488 = vmatprep.subr.mxu0 0.0
  %3489 = vmatpush1.msra.mxu0 0.0
  %3490 = vmatprep.subr.mxu0 0.0
  %3491 = vmatpush1.msra.mxu0 0.0
  %3492 = vmatprep.subr.mxu0 0.0
  %3493 = vmatpush1.msra.mxu0 0.0
  %3494 = vmatprep.subr.mxu0 0.0
  %3495 = vmatpush1.msra.mxu0 0.0
  %3496 = vmatprep.subr.mxu0 0.0
  %3497 = vmatpush1.msra.mxu0 0.0
  %3498 = vmatprep.subr.mxu0 0.0
  %3499 = vmatpush1.msra.mxu0 0.0
  %3500 = vmatprep.subr.mxu0 0.0
  %3501 = vmatpush1.msra.mxu0 0.0
  %3502 = vmatprep.subr.mxu0 0.0
  %3503 = vmatpush1.msra.mxu0 0.0
  %3504 = vmatprep.subr.mxu0 0.0
  %3505 = vmatpush1.msra.mxu0 0.0
  %3506 = vmatprep.subr.mxu0 0.0
  %3507 = vmatpush1.msra.mxu0 0.0
  %3508 = vmatprep.subr.mxu0 0.0
  %3509 = vmatpush1.msra.mxu0 0.0
  %3510 = vmatprep.subr.mxu0 0.0
  %3511 = vmatpush1.msra.mxu0 0.0
  %3512 = vmatprep.subr.mxu0 0.0
  %3513 = vmatpush1.msra.mxu0 %v3047
  %3514 = vmatprep.subr.mxu0 0.0
  %3515 = vmatpush2.msra.mxu0 0.0
  %3516 = vmatprep.subr.mxu0 0.0
  %3517 = vmatpush2.msra.mxu0 0.0
  %3518 = vmatprep.subr.mxu0 0.0
  %3519 = vmatpush2.msra.mxu0 0.0
  %3520 = vmatprep.subr.mxu0 0.0
  %3521 = vmatpush2.msra.mxu0 0.0
  %3522 = vmatprep.subr.mxu0 0.0
  %3523 = vmatpush2.msra.mxu0 0.0
  %3524 = vmatprep.subr.mxu0 0.0
  %3525 = vmatpush2.msra.mxu0 0.0
  %3526 = vmatprep.subr.mxu0 0.0
  %3527 = vmatpush2.msra.mxu0 0.0
  %3528 = vmatprep.subr.mxu0 0.0
  %3529 = vmatpush2.msra.mxu0 0.0
  %3530 = vmatprep.subr.mxu0 0.0
  %3531 = vmatpush2.msra.mxu0 0.0
  %3532 = vmatprep.subr.mxu0 0.0
  %3533 = vmatpush2.msra.mxu0 0.0
  %3534 = vmatprep.subr.mxu0 0.0
  %3535 = vmatpush2.msra.mxu0 0.0
  %3536 = vmatprep.subr.mxu0 0.0
  %3537 = vmatpush2.msra.mxu0 0.0
  %3538 = vmatprep.subr.mxu0 0.0
  %3539 = vmatpush2.msra.mxu0 0.0
  %3540 = vmatprep.subr.mxu0 0.0
  %3541 = vmatpush2.msra.mxu0 0.0
  %3542 = vmatprep.subr.mxu0 0.0
  %3543 = vmatpush2.msra.mxu0 0.0
  %3544 = vmatprep.subr.mxu0 0.0
  %3545 = vmatpush2.msra.mxu0 0.0
  %3546 = vmatprep.mubr.f32.mxu0 0.0
  %3547 = vmatmul.mubr.f32.gmra.mxu0 %v625
  %v3548 = vpop.f32.mrf.mxu0
  %v3549 = vadd.f32 0.0, %v3548
  %v3550 = vpop.f32.mrf.mxu0
  %3551 = vdwg.mxu0
  %v3552 = vrot.slane %v3338, 4
  %v3553 = vsel %vm550, %v3552, 0
  %3555 = vmatprep.subr.mxu0 0.0
  %3556 = vmatpush1.msra.mxu0 0.0
  %3557 = vmatprep.subr.mxu0 0.0
  %3558 = vmatpush1.msra.mxu0 0.0
  %3559 = vmatprep.subr.mxu0 0.0
  %3560 = vmatpush1.msra.mxu0 0.0
  %3561 = vmatprep.subr.mxu0 0.0
  %3562 = vmatpush1.msra.mxu0 0.0
  %3563 = vmatprep.subr.mxu0 0.0
  %3564 = vmatpush1.msra.mxu0 0.0
  %3565 = vmatprep.subr.mxu0 0.0
  %3566 = vmatpush1.msra.mxu0 0.0
  %3567 = vmatprep.subr.mxu0 0.0
  %3568 = vmatpush1.msra.mxu0 0.0
  %3569 = vmatprep.subr.mxu0 0.0
  %3570 = vmatpush1.msra.mxu0 0.0
  %3571 = vmatprep.subr.mxu0 0.0
  %3572 = vmatpush1.msra.mxu0 0.0
  %3573 = vmatprep.subr.mxu0 0.0
  %3574 = vmatpush1.msra.mxu0 0.0
  %3575 = vmatprep.subr.mxu0 0.0
  %3576 = vmatpush1.msra.mxu0 0.0
  %3577 = vmatprep.subr.mxu0 0.0
  %3578 = vmatpush1.msra.mxu0 0.0
  %3579 = vmatprep.subr.mxu0 0.0
  %3580 = vmatpush1.msra.mxu0 0.0
  %3581 = vmatprep.subr.mxu0 0.0
  %3582 = vmatpush1.msra.mxu0 0.0
  %3583 = vmatprep.subr.mxu0 0.0
  %3584 = vmatpush1.msra.mxu0 0.0
  %3585 = vmatprep.subr.mxu0 0.0
  %3586 = vmatpush1.msra.mxu0 %v3553
  %3587 = vmatprep.subr.mxu0 0.0
  %3588 = vmatpush2.msra.mxu0 0.0
  %3589 = vmatprep.subr.mxu0 0.0
  %3590 = vmatpush2.msra.mxu0 0.0
  %3591 = vmatprep.subr.mxu0 0.0
  %3592 = vmatpush2.msra.mxu0 0.0
  %3593 = vmatprep.subr.mxu0 0.0
  %3594 = vmatpush2.msra.mxu0 0.0
  %3595 = vmatprep.subr.mxu0 0.0
  %3596 = vmatpush2.msra.mxu0 0.0
  %3597 = vmatprep.subr.mxu0 0.0
  %3598 = vmatpush2.msra.mxu0 0.0
  %3599 = vmatprep.subr.mxu0 0.0
  %3600 = vmatpush2.msra.mxu0 0.0
  %3601 = vmatprep.subr.mxu0 0.0
  %3602 = vmatpush2.msra.mxu0 0.0
  %3603 = vmatprep.subr.mxu0 0.0
  %3604 = vmatpush2.msra.mxu0 0.0
  %3605 = vmatprep.subr.mxu0 0.0
  %3606 = vmatpush2.msra.mxu0 0.0
  %3607 = vmatprep.subr.mxu0 0.0
  %3608 = vmatpush2.msra.mxu0 0.0
  %3609 = vmatprep.subr.mxu0 0.0
  %3610 = vmatpush2.msra.mxu0 0.0
  %3611 = vmatprep.subr.mxu0 0.0
  %3612 = vmatpush2.msra.mxu0 0.0
  %3613 = vmatprep.subr.mxu0 0.0
  %3614 = vmatpush2.msra.mxu0 0.0
  %3615 = vmatprep.subr.mxu0 0.0
  %3616 = vmatpush2.msra.mxu0 0.0
  %3617 = vmatprep.subr.mxu0 0.0
  %3618 = vmatpush2.msra.mxu0 0.0
  %3619 = vmatprep.mubr.f32.mxu0 0.0
  %3620 = vmatmul.mubr.f32.gmra.mxu0 %v699
  %v3621 = vpop.f32.mrf.mxu0
  %v3622 = vadd.f32 0.0, %v3621
  %v3623 = vpop.f32.mrf.mxu0
  %3624 = vdwg.mxu0
  %3625 = vmatprep.subr.mxu0 0.0
  %3626 = vmatpush1.msra.mxu0 0.0
  %3627 = vmatprep.subr.mxu0 0.0
  %3628 = vmatpush1.msra.mxu0 0.0
  %3629 = vmatprep.subr.mxu0 0.0
  %3630 = vmatpush1.msra.mxu0 0.0
  %3631 = vmatprep.subr.mxu0 0.0
  %3632 = vmatpush1.msra.mxu0 0.0
  %3633 = vmatprep.subr.mxu0 0.0
  %3634 = vmatpush1.msra.mxu0 0.0
  %3635 = vmatprep.subr.mxu0 0.0
  %3636 = vmatpush1.msra.mxu0 0.0
  %3637 = vmatprep.subr.mxu0 0.0
  %3638 = vmatpush1.msra.mxu0 0.0
  %3639 = vmatprep.subr.mxu0 0.0
  %3640 = vmatpush1.msra.mxu0 0.0
  %3641 = vmatprep.subr.mxu0 0.0
  %3642 = vmatpush1.msra.mxu0 0.0
  %3643 = vmatprep.subr.mxu0 0.0
  %3644 = vmatpush1.msra.mxu0 0.0
  %3645 = vmatprep.subr.mxu0 0.0
  %3646 = vmatpush1.msra.mxu0 0.0
  %3647 = vmatprep.subr.mxu0 0.0
  %3648 = vmatpush1.msra.mxu0 0.0
  %3649 = vmatprep.subr.mxu0 0.0
  %3650 = vmatpush1.msra.mxu0 0.0
  %3651 = vmatprep.subr.mxu0 0.0
  %3652 = vmatpush1.msra.mxu0 0.0
  %3653 = vmatprep.subr.mxu0 0.0
  %3654 = vmatpush1.msra.mxu0 0.0
  %3655 = vmatprep.subr.mxu0 0.0
  %3656 = vmatpush1.msra.mxu0 %v3193
  %3657 = vmatprep.subr.mxu0 0.0
  %3658 = vmatpush2.msra.mxu0 0.0
  %3659 = vmatprep.subr.mxu0 0.0
  %3660 = vmatpush2.msra.mxu0 0.0
  %3661 = vmatprep.subr.mxu0 0.0
  %3662 = vmatpush2.msra.mxu0 0.0
  %3663 = vmatprep.subr.mxu0 0.0
  %3664 = vmatpush2.msra.mxu0 0.0
  %3665 = vmatprep.subr.mxu0 0.0
  %3666 = vmatpush2.msra.mxu0 0.0
  %3667 = vmatprep.subr.mxu0 0.0
  %3668 = vmatpush2.msra.mxu0 0.0
  %3669 = vmatprep.subr.mxu0 0.0
  %3670 = vmatpush2.msra.mxu0 0.0
  %3671 = vmatprep.subr.mxu0 0.0
  %3672 = vmatpush2.msra.mxu0 0.0
  %3673 = vmatprep.subr.mxu0 0.0
  %3674 = vmatpush2.msra.mxu0 0.0
  %3675 = vmatprep.subr.mxu0 0.0
  %3676 = vmatpush2.msra.mxu0 0.0
  %3677 = vmatprep.subr.mxu0 0.0
  %3678 = vmatpush2.msra.mxu0 0.0
  %3679 = vmatprep.subr.mxu0 0.0
  %3680 = vmatpush2.msra.mxu0 0.0
  %3681 = vmatprep.subr.mxu0 0.0
  %3682 = vmatpush2.msra.mxu0 0.0
  %3683 = vmatprep.subr.mxu0 0.0
  %3684 = vmatpush2.msra.mxu0 0.0
  %3685 = vmatprep.subr.mxu0 0.0
  %3686 = vmatpush2.msra.mxu0 0.0
  %3687 = vmatprep.subr.mxu0 0.0
  %3688 = vmatpush2.msra.mxu0 0.0
  %3689 = vmatprep.mubr.f32.mxu0 0.0
  %3690 = vmatmul.mubr.f32.gmra.mxu0 %v774
  %v3691 = vpop.f32.mrf.mxu0
  %v3692 = vadd.f32 0.0, %v3691
  %v3693 = vpop.f32.mrf.mxu0
  %3694 = vdwg.mxu0
  %3697 = vrot.lane.b32.xlu0 %v3406, 32
  %v3698 = vpop.permute.xlu0 %3697
  %3699 = vrot.lane.b32.xlu0 %v3549, 32
  %v3700 = vpop.permute.xlu0 %3699
  %3704 = vrot.lane.b32.xlu0 %v3046, 64
  %v3705 = vpop.permute.xlu0 %3704
  %3706 = vrot.lane.b32.xlu0 %v3047, 64
  %v3707 = vpop.permute.xlu0 %3706
  %v3710 = vsel %vm58, %v3479, %v3698
  %v3711 = vsel %vm58, %v3622, %v3700
  %v3712 = vsel %vm863, %v3710, %v3705
  %v3713 = vsel %vm863, %v3711, %v3707
  %v3715 = vsel %vm866, %v3712, 0
  %v3718 = vsel %vm866, %v3713, 0
  %3720 = vmatprep.subr.mxu0 0.0
  %3721 = vmatpush1.msra.mxu0 0.0
  %3722 = vmatprep.subr.mxu0 0.0
  %3723 = vmatpush1.msra.mxu0 0.0
  %3724 = vmatprep.subr.mxu0 0.0
  %3725 = vmatpush1.msra.mxu0 0.0
  %3726 = vmatprep.subr.mxu0 0.0
  %3727 = vmatpush1.msra.mxu0 0.0
  %3728 = vmatprep.subr.mxu0 0.0
  %3729 = vmatpush1.msra.mxu0 %v82
  %3730 = vmatprep.subr.mxu0 0.0
  %3731 = vmatpush1.msra.mxu0 %v81
  %3732 = vmatprep.subr.mxu0 0.0
  %3733 = vmatpush1.msra.mxu0 %v80
  %3734 = vmatprep.subr.mxu0 0.0
  %3735 = vmatpush1.msra.mxu0 %v79
  %3736 = vmatprep.subr.mxu0 0.0
  %3737 = vmatpush1.msra.mxu0 %v78
  %3738 = vmatprep.subr.mxu0 0.0
  %3739 = vmatpush1.msra.mxu0 %v77
  %3740 = vmatprep.subr.mxu0 0.0
  %3741 = vmatpush1.msra.mxu0 %v76
  %3742 = vmatprep.subr.mxu0 0.0
  %3743 = vmatpush1.msra.mxu0 %v75
  %3744 = vmatprep.subr.mxu0 0.0
  %3745 = vmatpush1.msra.mxu0 %v74
  %3746 = vmatprep.subr.mxu0 0.0
  %3747 = vmatpush1.msra.mxu0 %v73
  %3748 = vmatprep.subr.mxu0 0.0
  %3749 = vmatpush1.msra.mxu0 %v72
  %3750 = vmatprep.subr.mxu0 0.0
  %3751 = vmatpush1.msra.mxu0 %v71
  %3752 = vmatprep.subr.mxu0 0.0
  %3753 = vmatpush2.msra.mxu0 0.0
  %3754 = vmatprep.subr.mxu0 0.0
  %3755 = vmatpush2.msra.mxu0 0.0
  %3756 = vmatprep.subr.mxu0 0.0
  %3757 = vmatpush2.msra.mxu0 0.0
  %3758 = vmatprep.subr.mxu0 0.0
  %3759 = vmatpush2.msra.mxu0 0.0
  %3760 = vmatprep.subr.mxu0 0.0
  %3761 = vmatpush2.msra.mxu0 0.0
  %3762 = vmatprep.subr.mxu0 0.0
  %3763 = vmatpush2.msra.mxu0 0.0
  %3764 = vmatprep.subr.mxu0 0.0
  %3765 = vmatpush2.msra.mxu0 0.0
  %3766 = vmatprep.subr.mxu0 0.0
  %3767 = vmatpush2.msra.mxu0 0.0
  %3768 = vmatprep.subr.mxu0 0.0
  %3769 = vmatpush2.msra.mxu0 0.0
  %3770 = vmatprep.subr.mxu0 0.0
  %3771 = vmatpush2.msra.mxu0 0.0
  %3772 = vmatprep.subr.mxu0 0.0
  %3773 = vmatpush2.msra.mxu0 0.0
  %3774 = vmatprep.subr.mxu0 0.0
  %3775 = vmatpush2.msra.mxu0 0.0
  %3776 = vmatprep.subr.mxu0 0.0
  %3777 = vmatpush2.msra.mxu0 0.0
  %3778 = vmatprep.subr.mxu0 0.0
  %3779 = vmatpush2.msra.mxu0 0.0
  %3780 = vmatprep.subr.mxu0 0.0
  %3781 = vmatpush2.msra.mxu0 0.0
  %3782 = vmatprep.subr.mxu0 0.0
  %3783 = vmatpush2.msra.mxu0 0.0
  %3784 = vmatprep.mubr.f32.mxu0 0.0
  %3785 = vmatmul.mubr.f32.gmra.mxu0 %v3715
  %v3786 = vpop.f32.mrf.mxu0
  %v3787 = vadd.f32 %v96, %v3786
  %v3788 = vpop.f32.mrf.mxu0
  %3789 = vmatprep.mubr.f32.mxu0 0.0
  %3790 = vmatmul.mubr.f32.gmra.mxu0 %v3718
  %v3791 = vpop.f32.mrf.mxu0
  %v3792 = vadd.f32 %v96, %v3791
  %v3793 = vpop.f32.mrf.mxu0
  %3794 = vdwg.mxu0
  %3795 = vrot.lane.b32.xlu0 %v3048, 32
  %v3796 = vpop.permute.xlu0 %3795
  %v3798 = vsel %vm58, %v3692, %v3796
  %v3800 = vsel %vm863, %v3798, 0
  %3802 = vmatprep.subr.mxu0 0.0
  %3803 = vmatpush1.msra.mxu0 0.0
  %3804 = vmatprep.subr.mxu0 0.0
  %3805 = vmatpush1.msra.mxu0 0.0
  %3806 = vmatprep.subr.mxu0 0.0
  %3807 = vmatpush1.msra.mxu0 0.0
  %3808 = vmatprep.subr.mxu0 0.0
  %3809 = vmatpush1.msra.mxu0 0.0
  %3810 = vmatprep.subr.mxu0 0.0
  %3811 = vmatpush1.msra.mxu0 0.0
  %3812 = vmatprep.subr.mxu0 0.0
  %3813 = vmatpush1.msra.mxu0 0.0
  %3814 = vmatprep.subr.mxu0 0.0
  %3815 = vmatpush1.msra.mxu0 0.0
  %3816 = vmatprep.subr.mxu0 0.0
  %3817 = vmatpush1.msra.mxu0 0.0
  %3818 = vmatprep.subr.mxu0 0.0
  %3819 = vmatpush1.msra.mxu0 %v90
  %3820 = vmatprep.subr.mxu0 0.0
  %3821 = vmatpush1.msra.mxu0 %v89
  %3822 = vmatprep.subr.mxu0 0.0
  %3823 = vmatpush1.msra.mxu0 %v88
  %3824 = vmatprep.subr.mxu0 0.0
  %3825 = vmatpush1.msra.mxu0 %v87
  %3826 = vmatprep.subr.mxu0 0.0
  %3827 = vmatpush1.msra.mxu0 %v86
  %3828 = vmatprep.subr.mxu0 0.0
  %3829 = vmatpush1.msra.mxu0 %v85
  %3830 = vmatprep.subr.mxu0 0.0
  %3831 = vmatpush1.msra.mxu0 %v84
  %3832 = vmatprep.subr.mxu0 0.0
  %3833 = vmatpush1.msra.mxu0 %v83
  %3834 = vmatprep.subr.mxu0 0.0
  %3835 = vmatpush2.msra.mxu0 0.0
  %3836 = vmatprep.subr.mxu0 0.0
  %3837 = vmatpush2.msra.mxu0 0.0
  %3838 = vmatprep.subr.mxu0 0.0
  %3839 = vmatpush2.msra.mxu0 0.0
  %3840 = vmatprep.subr.mxu0 0.0
  %3841 = vmatpush2.msra.mxu0 0.0
  %3842 = vmatprep.subr.mxu0 0.0
  %3843 = vmatpush2.msra.mxu0 0.0
  %3844 = vmatprep.subr.mxu0 0.0
  %3845 = vmatpush2.msra.mxu0 0.0
  %3846 = vmatprep.subr.mxu0 0.0
  %3847 = vmatpush2.msra.mxu0 0.0
  %3848 = vmatprep.subr.mxu0 0.0
  %3849 = vmatpush2.msra.mxu0 0.0
  %3850 = vmatprep.subr.mxu0 0.0
  %3851 = vmatpush2.msra.mxu0 0.0
  %3852 = vmatprep.subr.mxu0 0.0
  %3853 = vmatpush2.msra.mxu0 0.0
  %3854 = vmatprep.subr.mxu0 0.0
  %3855 = vmatpush2.msra.mxu0 0.0
  %3856 = vmatprep.subr.mxu0 0.0
  %3857 = vmatpush2.msra.mxu0 0.0
  %3858 = vmatprep.subr.mxu0 0.0
  %3859 = vmatpush2.msra.mxu0 0.0
  %3860 = vmatprep.subr.mxu0 0.0
  %3861 = vmatpush2.msra.mxu0 0.0
  %3862 = vmatprep.subr.mxu0 0.0
  %3863 = vmatpush2.msra.mxu0 0.0
  %3864 = vmatprep.subr.mxu0 0.0
  %3865 = vmatpush2.msra.mxu0 0.0
  %3866 = vmatprep.mubr.f32.mxu0 0.0
  %3867 = vmatmul.mubr.f32.gmra.mxu0 %v3800
  %v3868 = vpop.f32.mrf.mxu0
  %v3869 = vadd.f32 %v103, %v3868
  %v3870 = vpop.f32.mrf.mxu0
  %3871 = vdwg.mxu0
  %v3872 = vld [vmem:[#allocation3] sm:$0xff]
  %v3873 = vld [vmem:[#allocation3 + $0x8] sm:$0xff]
  %v3874 = vmul.f32 %v3787, %v178
  %v3875 = vmul.f32 %v3792, %v178
  %v3876 = vxor.u32 %v3874, 2147483648
  %v3877 = vxor.u32 %v3875, 2147483648
  %v3878 = vmul.f32 %v3876, 1.442695
  %v3879 = vpow.pop %v3878
  %v3880 = vmul.f32 %v3877, 1.442695
  %v3881 = vpow.pop %v3880
  %v3882 = vadd.f32 %v3879, 1.0
  %v3883 = vadd.f32 %v3881, 1.0
  %v3884 = vrcp.pop %v3882
  %v3885 = vmul.f32 1.0, %v3884
  %v3886 = vrcp.pop %v3883
  %v3887 = vmul.f32 1.0, %v3886
  %v3888 = vmul.f32 %v3885, 2.0
  %v3889 = vmul.f32 %v3887, 2.0
  %v3890 = vsub.f32 %v3888, 1.0
  %v3891 = vsub.f32 %v3889, 1.0
  %3894 = vrot.lane.b32.xlu0 %v3872, 32
  %v3895 = vpop.permute.xlu0 %3894
  %3896 = vrot.lane.b32.xlu0 %v3873, 32
  %v3897 = vpop.permute.xlu0 %3896
  %v3900 = vmul.f32 %v3885, %v3895
  %v3901 = vmul.f32 %v3887, %v3897
  %3904 = vrot.lane.b32.xlu0 %v3890, 64
  %v3905 = vpop.permute.xlu0 %3904
  %3906 = vrot.lane.b32.xlu0 %v3891, 64
  %v3907 = vpop.permute.xlu0 %3906
  %v3910 = vmul.f32 %v3885, %v3905
  %v3911 = vmul.f32 %v3887, %v3907
  %3914 = vrot.lane.b32.xlu0 %v3910, 32
  %v3915 = vpop.permute.xlu0 %3914
  %3916 = vrot.lane.b32.xlu0 %v3911, 32
  %v3917 = vpop.permute.xlu0 %3916
  %v3920 = vadd.f32 %v3900, %v3915
  %v3921 = vadd.f32 %v3901, %v3917
  %v3922 = vtanh.pop %v3920
  %v3923 = vtanh.pop %v3921
  %3926 = vrot.lane.b32.xlu0 %v3922, 64
  %v3927 = vpop.permute.xlu0 %3926
  %3928 = vrot.lane.b32.xlu0 %v3923, 64
  %v3929 = vpop.permute.xlu0 %3928
  %v3932 = vmul.f32 %v3885, %v3927
  %v3933 = vmul.f32 %v3887, %v3929
  %v3934 = vld [vmem:[#allocation4] sm:$0xff]
  %v3935 = vmul.f32 %v3869, %v178
  %v3936 = vxor.u32 %v3935, 2147483648
  %v3937 = vmul.f32 %v3936, 1.442695
  %v3938 = vpow.pop %v3937
  %v3939 = vadd.f32 %v3938, 1.0
  %v3940 = vrcp.pop %v3939
  %v3941 = vmul.f32 1.0, %v3940
  %v3942 = vmul.f32 %v3941, 2.0
  %v3943 = vsub.f32 %v3942, 1.0
  %3945 = vrot.lane.b32.xlu0 %v3934, 32
  %v3946 = vpop.permute.xlu0 %3945
  %v3948 = vmul.f32 %v3941, %v3946
  %3950 = vrot.lane.b32.xlu0 %v3943, 64
  %v3951 = vpop.permute.xlu0 %3950
  %v3953 = vmul.f32 %v3941, %v3951
  %3955 = vrot.lane.b32.xlu0 %v3953, 32
  %v3956 = vpop.permute.xlu0 %3955
  %v3958 = vadd.f32 %v3948, %v3956
  %v3959 = vtanh.pop %v3958
  %3961 = vrot.lane.b32.xlu0 %v3959, 64
  %v3962 = vpop.permute.xlu0 %3961
  %v3964 = vmul.f32 %v3941, %v3962
  %3967 = vrot.lane.b32.xlu0 %v3932, 32
  %v3968 = vpop.permute.xlu0 %3967
  %3969 = vrot.lane.b32.xlu0 %v3933, 32
  %v3970 = vpop.permute.xlu0 %3969
  %3973 = vst.msk [vmem:[%s17] sm:$0xff] %vm58, %v3968
  %3974 = vst.msk [vmem:[%s17 + $0x8] sm:$0xff] %vm58, %v3970
  %3977 = vrot.lane.b32.xlu0 %v3920, 96
  %v3978 = vpop.permute.xlu0 %3977
  %3979 = vrot.lane.b32.xlu0 %v3921, 96
  %v3980 = vpop.permute.xlu0 %3979
  %3983 = vst.msk [vmem:[#allocation3] sm:$0xff] %vm58, %v3978
  %3984 = vst.msk [vmem:[#allocation3 + $0x8] sm:$0xff] %vm58, %v3980
  %3986 = vrot.lane.b32.xlu0 %v3964, 32
  %v3987 = vpop.permute.xlu0 %3986
  %3989 = vst.msk [vmem:[#allocation2] sm:$0xff] %vm58, %v3987
  %3991 = vrot.lane.b32.xlu0 %v3958, 96
  %v3992 = vpop.permute.xlu0 %3991
  %3994 = vst.msk [vmem:[#allocation4] sm:$0xff] %vm58, %v3992
  %v3995 = vld [vmem:[%s17] sm:$0xff]
  %v3996 = vld [vmem:[%s17 + $0x8] sm:$0xff]
  %v3997 = vld [vmem:[#allocation2] sm:$0xff]
  %v3999 = vsel %vm58, %v3996, 0
  %4001 = vmatprep.subr.mxu0 0.0
  %4002 = vmatpush1.msra.mxu0 0.0
  %4003 = vmatprep.subr.mxu0 0.0
  %4004 = vmatpush1.msra.mxu0 0.0
  %4005 = vmatprep.subr.mxu0 0.0
  %4006 = vmatpush1.msra.mxu0 0.0
  %4007 = vmatprep.subr.mxu0 0.0
  %4008 = vmatpush1.msra.mxu0 0.0
  %4009 = vmatprep.subr.mxu0 0.0
  %4010 = vmatpush1.msra.mxu0 0.0
  %4011 = vmatprep.subr.mxu0 0.0
  %4012 = vmatpush1.msra.mxu0 0.0
  %4013 = vmatprep.subr.mxu0 0.0
  %4014 = vmatpush1.msra.mxu0 0.0
  %4015 = vmatprep.subr.mxu0 0.0
  %4016 = vmatpush1.msra.mxu0 0.0
  %4017 = vmatprep.subr.mxu0 0.0
  %4018 = vmatpush1.msra.mxu0 0.0
  %4019 = vmatprep.subr.mxu0 0.0
  %4020 = vmatpush1.msra.mxu0 0.0
  %4021 = vmatprep.subr.mxu0 0.0
  %4022 = vmatpush1.msra.mxu0 0.0
  %4023 = vmatprep.subr.mxu0 0.0
  %4024 = vmatpush1.msra.mxu0 0.0
  %4025 = vmatprep.subr.mxu0 0.0
  %4026 = vmatpush1.msra.mxu0 %v128
  %4027 = vmatprep.subr.mxu0 0.0
  %4028 = vmatpush1.msra.mxu0 %v127
  %4029 = vmatprep.subr.mxu0 0.0
  %4030 = vmatpush1.msra.mxu0 %v126
  %4031 = vmatprep.subr.mxu0 0.0
  %4032 = vmatpush1.msra.mxu0 %v125
  %4033 = vmatprep.subr.mxu0 0.0
  %4034 = vmatpush2.msra.mxu0 0.0
  %4035 = vmatprep.subr.mxu0 0.0
  %4036 = vmatpush2.msra.mxu0 0.0
  %4037 = vmatprep.subr.mxu0 0.0
  %4038 = vmatpush2.msra.mxu0 0.0
  %4039 = vmatprep.subr.mxu0 0.0
  %4040 = vmatpush2.msra.mxu0 0.0
  %4041 = vmatprep.subr.mxu0 0.0
  %4042 = vmatpush2.msra.mxu0 0.0
  %4043 = vmatprep.subr.mxu0 0.0
  %4044 = vmatpush2.msra.mxu0 0.0
  %4045 = vmatprep.subr.mxu0 0.0
  %4046 = vmatpush2.msra.mxu0 0.0
  %4047 = vmatprep.subr.mxu0 0.0
  %4048 = vmatpush2.msra.mxu0 0.0
  %4049 = vmatprep.subr.mxu0 0.0
  %4050 = vmatpush2.msra.mxu0 0.0
  %4051 = vmatprep.subr.mxu0 0.0
  %4052 = vmatpush2.msra.mxu0 0.0
  %4053 = vmatprep.subr.mxu0 0.0
  %4054 = vmatpush2.msra.mxu0 0.0
  %4055 = vmatprep.subr.mxu0 0.0
  %4056 = vmatpush2.msra.mxu0 0.0
  %4057 = vmatprep.subr.mxu0 0.0
  %4058 = vmatpush2.msra.mxu0 0.0
  %4059 = vmatprep.subr.mxu0 0.0
  %4060 = vmatpush2.msra.mxu0 0.0
  %4061 = vmatprep.subr.mxu0 0.0
  %4062 = vmatpush2.msra.mxu0 0.0
  %4063 = vmatprep.subr.mxu0 0.0
  %4064 = vmatpush2.msra.mxu0 0.0
  %4065 = vmatprep.mubr.f32.mxu0 0.0
  %4066 = vmatmul.mubr.f32.gmra.mxu0 %v3999
  %v4067 = vpop.f32.mrf.mxu0
  %v4068 = vadd.f32 %v164, %v4067
  %v4069 = vpop.f32.mrf.mxu0
  %4070 = vdwg.mxu0
  %v4071 = vmax.f32 %v4068, 0.0
  %4072 = vmatprep.subr.mxu0 0.0
  %4073 = vmatpush1.msra.mxu0 %v144
  %4074 = vmatprep.subr.mxu0 0.0
  %4075 = vmatpush1.msra.mxu0 %v143
  %4076 = vmatprep.subr.mxu0 0.0
  %4077 = vmatpush1.msra.mxu0 %v142
  %4078 = vmatprep.subr.mxu0 0.0
  %4079 = vmatpush1.msra.mxu0 %v141
  %4080 = vmatprep.subr.mxu0 0.0
  %4081 = vmatpush1.msra.mxu0 %v140
  %4082 = vmatprep.subr.mxu0 0.0
  %4083 = vmatpush1.msra.mxu0 %v139
  %4084 = vmatprep.subr.mxu0 0.0
  %4085 = vmatpush1.msra.mxu0 %v138
  %4086 = vmatprep.subr.mxu0 0.0
  %4087 = vmatpush1.msra.mxu0 %v137
  %4088 = vmatprep.subr.mxu0 0.0
  %4089 = vmatpush1.msra.mxu0 %v136
  %4090 = vmatprep.subr.mxu0 0.0
  %4091 = vmatpush1.msra.mxu0 %v135
  %4092 = vmatprep.subr.mxu0 0.0
  %4093 = vmatpush1.msra.mxu0 %v134
  %4094 = vmatprep.subr.mxu0 0.0
  %4095 = vmatpush1.msra.mxu0 %v133
  %4096 = vmatprep.subr.mxu0 0.0
  %4097 = vmatpush1.msra.mxu0 %v132
  %4098 = vmatprep.subr.mxu0 0.0
  %4099 = vmatpush1.msra.mxu0 %v131
  %4100 = vmatprep.subr.mxu0 0.0
  %4101 = vmatpush1.msra.mxu0 %v130
  %4102 = vmatprep.subr.mxu0 0.0
  %4103 = vmatpush1.msra.mxu0 %v129
  %4104 = vmatprep.subr.mxu0 0.0
  %4105 = vmatpush2.msra.mxu0 0.0
  %4106 = vmatprep.subr.mxu0 0.0
  %4107 = vmatpush2.msra.mxu0 0.0
  %4108 = vmatprep.subr.mxu0 0.0
  %4109 = vmatpush2.msra.mxu0 0.0
  %4110 = vmatprep.subr.mxu0 0.0
  %4111 = vmatpush2.msra.mxu0 0.0
  %4112 = vmatprep.subr.mxu0 0.0
  %4113 = vmatpush2.msra.mxu0 0.0
  %4114 = vmatprep.subr.mxu0 0.0
  %4115 = vmatpush2.msra.mxu0 0.0
  %4116 = vmatprep.subr.mxu0 0.0
  %4117 = vmatpush2.msra.mxu0 0.0
  %4118 = vmatprep.subr.mxu0 0.0
  %4119 = vmatpush2.msra.mxu0 0.0
  %4120 = vmatprep.subr.mxu0 0.0
  %4121 = vmatpush2.msra.mxu0 0.0
  %4122 = vmatprep.subr.mxu0 0.0
  %4123 = vmatpush2.msra.mxu0 0.0
  %4124 = vmatprep.subr.mxu0 0.0
  %4125 = vmatpush2.msra.mxu0 0.0
  %4126 = vmatprep.subr.mxu0 0.0
  %4127 = vmatpush2.msra.mxu0 0.0
  %4128 = vmatprep.subr.mxu0 0.0
  %4129 = vmatpush2.msra.mxu0 0.0
  %4130 = vmatprep.subr.mxu0 0.0
  %4131 = vmatpush2.msra.mxu0 0.0
  %4132 = vmatprep.subr.mxu0 0.0
  %4133 = vmatpush2.msra.mxu0 0.0
  %4134 = vmatprep.subr.mxu0 0.0
  %4135 = vmatpush2.msra.mxu0 0.0
  %4136 = vmatprep.mubr.f32.mxu0 0.0
  %4137 = vmatmul.mubr.f32.gmra.mxu0 %v4071
  %v4138 = vpop.f32.mrf.mxu0
  %v4139 = vadd.f32 %v171, %v4138
  %v4140 = vpop.f32.mrf.mxu0
  %4141 = vdwg.mxu0
  %v4142 = vmax.f32 %v4139, 0.0
  %v4144 = vsel %vm58, %v3997, 0
  %4146 = vmatprep.subr.mxu0 0.0
  %4147 = vmatpush1.msra.mxu0 0.0
  %4148 = vmatprep.subr.mxu0 0.0
  %4149 = vmatpush1.msra.mxu0 0.0
  %4150 = vmatprep.subr.mxu0 0.0
  %4151 = vmatpush1.msra.mxu0 0.0
  %4152 = vmatprep.subr.mxu0 0.0
  %4153 = vmatpush1.msra.mxu0 0.0
  %4154 = vmatprep.subr.mxu0 0.0
  %4155 = vmatpush1.msra.mxu0 0.0
  %4156 = vmatprep.subr.mxu0 0.0
  %4157 = vmatpush1.msra.mxu0 0.0
  %4158 = vmatprep.subr.mxu0 0.0
  %4159 = vmatpush1.msra.mxu0 0.0
  %4160 = vmatprep.subr.mxu0 0.0
  %4161 = vmatpush1.msra.mxu0 0.0
  %4162 = vmatprep.subr.mxu0 0.0
  %4163 = vmatpush1.msra.mxu0 0.0
  %4164 = vmatprep.subr.mxu0 0.0
  %4165 = vmatpush1.msra.mxu0 0.0
  %4166 = vmatprep.subr.mxu0 0.0
  %4167 = vmatpush1.msra.mxu0 0.0
  %4168 = vmatprep.subr.mxu0 0.0
  %4169 = vmatpush1.msra.mxu0 0.0
  %4170 = vmatprep.subr.mxu0 0.0
  %4171 = vmatpush1.msra.mxu0 %v108
  %4172 = vmatprep.subr.mxu0 0.0
  %4173 = vmatpush1.msra.mxu0 %v107
  %4174 = vmatprep.subr.mxu0 0.0
  %4175 = vmatpush1.msra.mxu0 %v106
  %4176 = vmatprep.subr.mxu0 0.0
  %4177 = vmatpush1.msra.mxu0 %v105
  %4178 = vmatprep.subr.mxu0 0.0
  %4179 = vmatpush2.msra.mxu0 0.0
  %4180 = vmatprep.subr.mxu0 0.0
  %4181 = vmatpush2.msra.mxu0 0.0
  %4182 = vmatprep.subr.mxu0 0.0
  %4183 = vmatpush2.msra.mxu0 0.0
  %4184 = vmatprep.subr.mxu0 0.0
  %4185 = vmatpush2.msra.mxu0 0.0
  %4186 = vmatprep.subr.mxu0 0.0
  %4187 = vmatpush2.msra.mxu0 0.0
  %4188 = vmatprep.subr.mxu0 0.0
  %4189 = vmatpush2.msra.mxu0 0.0
  %4190 = vmatprep.subr.mxu0 0.0
  %4191 = vmatpush2.msra.mxu0 0.0
  %4192 = vmatprep.subr.mxu0 0.0
  %4193 = vmatpush2.msra.mxu0 0.0
  %4194 = vmatprep.subr.mxu0 0.0
  %4195 = vmatpush2.msra.mxu0 0.0
  %4196 = vmatprep.subr.mxu0 0.0
  %4197 = vmatpush2.msra.mxu0 0.0
  %4198 = vmatprep.subr.mxu0 0.0
  %4199 = vmatpush2.msra.mxu0 0.0
  %4200 = vmatprep.subr.mxu0 0.0
  %4201 = vmatpush2.msra.mxu0 0.0
  %4202 = vmatprep.subr.mxu0 0.0
  %4203 = vmatpush2.msra.mxu0 0.0
  %4204 = vmatprep.subr.mxu0 0.0
  %4205 = vmatpush2.msra.mxu0 0.0
  %4206 = vmatprep.subr.mxu0 0.0
  %4207 = vmatpush2.msra.mxu0 0.0
  %4208 = vmatprep.subr.mxu0 0.0
  %4209 = vmatpush2.msra.mxu0 0.0
  %4210 = vmatprep.mubr.f32.mxu0 0.0
  %4211 = vmatmul.mubr.f32.gmra.mxu0 %v4144
  %v4212 = vpop.f32.mrf.mxu0
  %v4213 = vadd.f32 %v150, %v4212
  %v4214 = vpop.f32.mrf.mxu0
  %4215 = vdwg.mxu0
  %v4216 = vmax.f32 %v4213, 0.0
  %4217 = vmatprep.subr.mxu0 0.0
  %4218 = vmatpush1.msra.mxu0 %v124
  %4219 = vmatprep.subr.mxu0 0.0
  %4220 = vmatpush1.msra.mxu0 %v123
  %4221 = vmatprep.subr.mxu0 0.0
  %4222 = vmatpush1.msra.mxu0 %v122
  %4223 = vmatprep.subr.mxu0 0.0
  %4224 = vmatpush1.msra.mxu0 %v121
  %4225 = vmatprep.subr.mxu0 0.0
  %4226 = vmatpush1.msra.mxu0 %v120
  %4227 = vmatprep.subr.mxu0 0.0
  %4228 = vmatpush1.msra.mxu0 %v119
  %4229 = vmatprep.subr.mxu0 0.0
  %4230 = vmatpush1.msra.mxu0 %v118
  %4231 = vmatprep.subr.mxu0 0.0
  %4232 = vmatpush1.msra.mxu0 %v117
  %4233 = vmatprep.subr.mxu0 0.0
  %4234 = vmatpush1.msra.mxu0 %v116
  %4235 = vmatprep.subr.mxu0 0.0
  %4236 = vmatpush1.msra.mxu0 %v115
  %4237 = vmatprep.subr.mxu0 0.0
  %4238 = vmatpush1.msra.mxu0 %v114
  %4239 = vmatprep.subr.mxu0 0.0
  %4240 = vmatpush1.msra.mxu0 %v113
  %4241 = vmatprep.subr.mxu0 0.0
  %4242 = vmatpush1.msra.mxu0 %v112
  %4243 = vmatprep.subr.mxu0 0.0
  %4244 = vmatpush1.msra.mxu0 %v111
  %4245 = vmatprep.subr.mxu0 0.0
  %4246 = vmatpush1.msra.mxu0 %v110
  %4247 = vmatprep.subr.mxu0 0.0
  %4248 = vmatpush1.msra.mxu0 %v109
  %4249 = vmatprep.subr.mxu0 0.0
  %4250 = vmatpush2.msra.mxu0 0.0
  %4251 = vmatprep.subr.mxu0 0.0
  %4252 = vmatpush2.msra.mxu0 0.0
  %4253 = vmatprep.subr.mxu0 0.0
  %4254 = vmatpush2.msra.mxu0 0.0
  %4255 = vmatprep.subr.mxu0 0.0
  %4256 = vmatpush2.msra.mxu0 0.0
  %4257 = vmatprep.subr.mxu0 0.0
  %4258 = vmatpush2.msra.mxu0 0.0
  %4259 = vmatprep.subr.mxu0 0.0
  %4260 = vmatpush2.msra.mxu0 0.0
  %4261 = vmatprep.subr.mxu0 0.0
  %4262 = vmatpush2.msra.mxu0 0.0
  %4263 = vmatprep.subr.mxu0 0.0
  %4264 = vmatpush2.msra.mxu0 0.0
  %4265 = vmatprep.subr.mxu0 0.0
  %4266 = vmatpush2.msra.mxu0 0.0
  %4267 = vmatprep.subr.mxu0 0.0
  %4268 = vmatpush2.msra.mxu0 0.0
  %4269 = vmatprep.subr.mxu0 0.0
  %4270 = vmatpush2.msra.mxu0 0.0
  %4271 = vmatprep.subr.mxu0 0.0
  %4272 = vmatpush2.msra.mxu0 0.0
  %4273 = vmatprep.subr.mxu0 0.0
  %4274 = vmatpush2.msra.mxu0 0.0
  %4275 = vmatprep.subr.mxu0 0.0
  %4276 = vmatpush2.msra.mxu0 0.0
  %4277 = vmatprep.subr.mxu0 0.0
  %4278 = vmatpush2.msra.mxu0 0.0
  %4279 = vmatprep.subr.mxu0 0.0
  %4280 = vmatpush2.msra.mxu0 0.0
  %4281 = vmatprep.mubr.f32.mxu0 0.0
  %4282 = vmatmul.mubr.f32.gmra.mxu0 %v4216
  %v4283 = vpop.f32.mrf.mxu0
  %v4284 = vadd.f32 %v157, %v4283
  %v4285 = vpop.f32.mrf.mxu0
  %4286 = vdwg.mxu0
  %v4287 = vmax.f32 %v4284, 0.0
  %4288 = vmatprep.subr.mxu0 0.0
  %4289 = vmatpush1.msra.mxu0 0.0
  %4290 = vmatprep.subr.mxu0 0.0
  %4291 = vmatpush1.msra.mxu0 0.0
  %4292 = vmatprep.subr.mxu0 0.0
  %4293 = vmatpush1.msra.mxu0 0.0
  %4294 = vmatprep.subr.mxu0 0.0
  %4295 = vmatpush1.msra.mxu0 0.0
  %4296 = vmatprep.subr.mxu0 0.0
  %4297 = vmatpush1.msra.mxu0 0.0
  %4298 = vmatprep.subr.mxu0 0.0
  %4299 = vmatpush1.msra.mxu0 0.0
  %4300 = vmatprep.subr.mxu0 0.0
  %4301 = vmatpush1.msra.mxu0 0.0
  %4302 = vmatprep.subr.mxu0 0.0
  %4303 = vmatpush1.msra.mxu0 0.0
  %4304 = vmatprep.subr.mxu0 0.0
  %4305 = vmatpush1.msra.mxu0 0.0
  %4306 = vmatprep.subr.mxu0 0.0
  %4307 = vmatpush1.msra.mxu0 0.0
  %4308 = vmatprep.subr.mxu0 0.0
  %4309 = vmatpush1.msra.mxu0 0.0
  %4310 = vmatprep.subr.mxu0 0.0
  %4311 = vmatpush1.msra.mxu0 0.0
  %4312 = vmatprep.subr.mxu0 0.0
  %4313 = vmatpush1.msra.mxu0 0.0
  %4314 = vmatprep.subr.mxu0 0.0
  %4315 = vmatpush1.msra.mxu0 0.0
  %4316 = vmatprep.subr.mxu0 0.0
  %4317 = vmatpush1.msra.mxu0 0.0
  %4318 = vmatprep.subr.mxu0 0.0
  %4319 = vmatpush1.msra.mxu0 %v3995
  %4320 = vmatprep.subr.mxu0 0.0
  %4321 = vmatpush2.msra.mxu0 0.0
  %4322 = vmatprep.subr.mxu0 0.0
  %4323 = vmatpush2.msra.mxu0 0.0
  %4324 = vmatprep.subr.mxu0 0.0
  %4325 = vmatpush2.msra.mxu0 0.0
  %4326 = vmatprep.subr.mxu0 0.0
  %4327 = vmatpush2.msra.mxu0 0.0
  %4328 = vmatprep.subr.mxu0 0.0
  %4329 = vmatpush2.msra.mxu0 0.0
  %4330 = vmatprep.subr.mxu0 0.0
  %4331 = vmatpush2.msra.mxu0 0.0
  %4332 = vmatprep.subr.mxu0 0.0
  %4333 = vmatpush2.msra.mxu0 0.0
  %4334 = vmatprep.subr.mxu0 0.0
  %4335 = vmatpush2.msra.mxu0 0.0
  %4336 = vmatprep.subr.mxu0 0.0
  %4337 = vmatpush2.msra.mxu0 0.0
  %4338 = vmatprep.subr.mxu0 0.0
  %4339 = vmatpush2.msra.mxu0 0.0
  %4340 = vmatprep.subr.mxu0 0.0
  %4341 = vmatpush2.msra.mxu0 0.0
  %4342 = vmatprep.subr.mxu0 0.0
  %4343 = vmatpush2.msra.mxu0 0.0
  %4344 = vmatprep.subr.mxu0 0.0
  %4345 = vmatpush2.msra.mxu0 0.0
  %4346 = vmatprep.subr.mxu0 0.0
  %4347 = vmatpush2.msra.mxu0 0.0
  %4348 = vmatprep.subr.mxu0 0.0
  %4349 = vmatpush2.msra.mxu0 0.0
  %4350 = vmatprep.subr.mxu0 0.0
  %4351 = vmatpush2.msra.mxu0 0.0
  %4352 = vmatprep.mubr.f32.mxu0 0.0
  %4353 = vmatmul.mubr.f32.gmra.mxu0 %v474
  %v4354 = vpop.f32.mrf.mxu0
  %v4355 = vadd.f32 0.0, %v4354
  %v4356 = vpop.f32.mrf.mxu0
  %4357 = vdwg.mxu0
  %v4359 = vsel %vm550, %v4287, 0
  %4361 = vmatprep.subr.mxu0 0.0
  %4362 = vmatpush1.msra.mxu0 0.0
  %4363 = vmatprep.subr.mxu0 0.0
  %4364 = vmatpush1.msra.mxu0 0.0
  %4365 = vmatprep.subr.mxu0 0.0
  %4366 = vmatpush1.msra.mxu0 0.0
  %4367 = vmatprep.subr.mxu0 0.0
  %4368 = vmatpush1.msra.mxu0 0.0
  %4369 = vmatprep.subr.mxu0 0.0
  %4370 = vmatpush1.msra.mxu0 0.0
  %4371 = vmatprep.subr.mxu0 0.0
  %4372 = vmatpush1.msra.mxu0 0.0
  %4373 = vmatprep.subr.mxu0 0.0
  %4374 = vmatpush1.msra.mxu0 0.0
  %4375 = vmatprep.subr.mxu0 0.0
  %4376 = vmatpush1.msra.mxu0 0.0
  %4377 = vmatprep.subr.mxu0 0.0
  %4378 = vmatpush1.msra.mxu0 0.0
  %4379 = vmatprep.subr.mxu0 0.0
  %4380 = vmatpush1.msra.mxu0 0.0
  %4381 = vmatprep.subr.mxu0 0.0
  %4382 = vmatpush1.msra.mxu0 0.0
  %4383 = vmatprep.subr.mxu0 0.0
  %4384 = vmatpush1.msra.mxu0 0.0
  %4385 = vmatprep.subr.mxu0 0.0
  %4386 = vmatpush1.msra.mxu0 0.0
  %4387 = vmatprep.subr.mxu0 0.0
  %4388 = vmatpush1.msra.mxu0 0.0
  %4389 = vmatprep.subr.mxu0 0.0
  %4390 = vmatpush1.msra.mxu0 0.0
  %4391 = vmatprep.subr.mxu0 0.0
  %4392 = vmatpush1.msra.mxu0 %v4359
  %4393 = vmatprep.subr.mxu0 0.0
  %4394 = vmatpush2.msra.mxu0 0.0
  %4395 = vmatprep.subr.mxu0 0.0
  %4396 = vmatpush2.msra.mxu0 0.0
  %4397 = vmatprep.subr.mxu0 0.0
  %4398 = vmatpush2.msra.mxu0 0.0
  %4399 = vmatprep.subr.mxu0 0.0
  %4400 = vmatpush2.msra.mxu0 0.0
  %4401 = vmatprep.subr.mxu0 0.0
  %4402 = vmatpush2.msra.mxu0 0.0
  %4403 = vmatprep.subr.mxu0 0.0
  %4404 = vmatpush2.msra.mxu0 0.0
  %4405 = vmatprep.subr.mxu0 0.0
  %4406 = vmatpush2.msra.mxu0 0.0
  %4407 = vmatprep.subr.mxu0 0.0
  %4408 = vmatpush2.msra.mxu0 0.0
  %4409 = vmatprep.subr.mxu0 0.0
  %4410 = vmatpush2.msra.mxu0 0.0
  %4411 = vmatprep.subr.mxu0 0.0
  %4412 = vmatpush2.msra.mxu0 0.0
  %4413 = vmatprep.subr.mxu0 0.0
  %4414 = vmatpush2.msra.mxu0 0.0
  %4415 = vmatprep.subr.mxu0 0.0
  %4416 = vmatpush2.msra.mxu0 0.0
  %4417 = vmatprep.subr.mxu0 0.0
  %4418 = vmatpush2.msra.mxu0 0.0
  %4419 = vmatprep.subr.mxu0 0.0
  %4420 = vmatpush2.msra.mxu0 0.0
  %4421 = vmatprep.subr.mxu0 0.0
  %4422 = vmatpush2.msra.mxu0 0.0
  %4423 = vmatprep.subr.mxu0 0.0
  %4424 = vmatpush2.msra.mxu0 0.0
  %4425 = vmatprep.mubr.f32.mxu0 0.0
  %4426 = vmatmul.mubr.f32.gmra.mxu0 %v548
  %v4427 = vpop.f32.mrf.mxu0
  %v4428 = vadd.f32 0.0, %v4427
  %v4429 = vpop.f32.mrf.mxu0
  %4430 = vdwg.mxu0
  %4431 = vmatprep.subr.mxu0 0.0
  %4432 = vmatpush1.msra.mxu0 0.0
  %4433 = vmatprep.subr.mxu0 0.0
  %4434 = vmatpush1.msra.mxu0 0.0
  %4435 = vmatprep.subr.mxu0 0.0
  %4436 = vmatpush1.msra.mxu0 0.0
  %4437 = vmatprep.subr.mxu0 0.0
  %4438 = vmatpush1.msra.mxu0 0.0
  %4439 = vmatprep.subr.mxu0 0.0
  %4440 = vmatpush1.msra.mxu0 0.0
  %4441 = vmatprep.subr.mxu0 0.0
  %4442 = vmatpush1.msra.mxu0 0.0
  %4443 = vmatprep.subr.mxu0 0.0
  %4444 = vmatpush1.msra.mxu0 0.0
  %4445 = vmatprep.subr.mxu0 0.0
  %4446 = vmatpush1.msra.mxu0 0.0
  %4447 = vmatprep.subr.mxu0 0.0
  %4448 = vmatpush1.msra.mxu0 0.0
  %4449 = vmatprep.subr.mxu0 0.0
  %4450 = vmatpush1.msra.mxu0 0.0
  %4451 = vmatprep.subr.mxu0 0.0
  %4452 = vmatpush1.msra.mxu0 0.0
  %4453 = vmatprep.subr.mxu0 0.0
  %4454 = vmatpush1.msra.mxu0 0.0
  %4455 = vmatprep.subr.mxu0 0.0
  %4456 = vmatpush1.msra.mxu0 0.0
  %4457 = vmatprep.subr.mxu0 0.0
  %4458 = vmatpush1.msra.mxu0 0.0
  %4459 = vmatprep.subr.mxu0 0.0
  %4460 = vmatpush1.msra.mxu0 0.0
  %4461 = vmatprep.subr.mxu0 0.0
  %4462 = vmatpush1.msra.mxu0 %v3996
  %4463 = vmatprep.subr.mxu0 0.0
  %4464 = vmatpush2.msra.mxu0 0.0
  %4465 = vmatprep.subr.mxu0 0.0
  %4466 = vmatpush2.msra.mxu0 0.0
  %4467 = vmatprep.subr.mxu0 0.0
  %4468 = vmatpush2.msra.mxu0 0.0
  %4469 = vmatprep.subr.mxu0 0.0
  %4470 = vmatpush2.msra.mxu0 0.0
  %4471 = vmatprep.subr.mxu0 0.0
  %4472 = vmatpush2.msra.mxu0 0.0
  %4473 = vmatprep.subr.mxu0 0.0
  %4474 = vmatpush2.msra.mxu0 0.0
  %4475 = vmatprep.subr.mxu0 0.0
  %4476 = vmatpush2.msra.mxu0 0.0
  %4477 = vmatprep.subr.mxu0 0.0
  %4478 = vmatpush2.msra.mxu0 0.0
  %4479 = vmatprep.subr.mxu0 0.0
  %4480 = vmatpush2.msra.mxu0 0.0
  %4481 = vmatprep.subr.mxu0 0.0
  %4482 = vmatpush2.msra.mxu0 0.0
  %4483 = vmatprep.subr.mxu0 0.0
  %4484 = vmatpush2.msra.mxu0 0.0
  %4485 = vmatprep.subr.mxu0 0.0
  %4486 = vmatpush2.msra.mxu0 0.0
  %4487 = vmatprep.subr.mxu0 0.0
  %4488 = vmatpush2.msra.mxu0 0.0
  %4489 = vmatprep.subr.mxu0 0.0
  %4490 = vmatpush2.msra.mxu0 0.0
  %4491 = vmatprep.subr.mxu0 0.0
  %4492 = vmatpush2.msra.mxu0 0.0
  %4493 = vmatprep.subr.mxu0 0.0
  %4494 = vmatpush2.msra.mxu0 0.0
  %4495 = vmatprep.mubr.f32.mxu0 0.0
  %4496 = vmatmul.mubr.f32.gmra.mxu0 %v625
  %v4497 = vpop.f32.mrf.mxu0
  %v4498 = vadd.f32 0.0, %v4497
  %v4499 = vpop.f32.mrf.mxu0
  %4500 = vdwg.mxu0
  %v4501 = vrot.slane %v4287, 4
  %v4502 = vsel %vm550, %v4501, 0
  %4504 = vmatprep.subr.mxu0 0.0
  %4505 = vmatpush1.msra.mxu0 0.0
  %4506 = vmatprep.subr.mxu0 0.0
  %4507 = vmatpush1.msra.mxu0 0.0
  %4508 = vmatprep.subr.mxu0 0.0
  %4509 = vmatpush1.msra.mxu0 0.0
  %4510 = vmatprep.subr.mxu0 0.0
  %4511 = vmatpush1.msra.mxu0 0.0
  %4512 = vmatprep.subr.mxu0 0.0
  %4513 = vmatpush1.msra.mxu0 0.0
  %4514 = vmatprep.subr.mxu0 0.0
  %4515 = vmatpush1.msra.mxu0 0.0
  %4516 = vmatprep.subr.mxu0 0.0
  %4517 = vmatpush1.msra.mxu0 0.0
  %4518 = vmatprep.subr.mxu0 0.0
  %4519 = vmatpush1.msra.mxu0 0.0
  %4520 = vmatprep.subr.mxu0 0.0
  %4521 = vmatpush1.msra.mxu0 0.0
  %4522 = vmatprep.subr.mxu0 0.0
  %4523 = vmatpush1.msra.mxu0 0.0
  %4524 = vmatprep.subr.mxu0 0.0
  %4525 = vmatpush1.msra.mxu0 0.0
  %4526 = vmatprep.subr.mxu0 0.0
  %4527 = vmatpush1.msra.mxu0 0.0
  %4528 = vmatprep.subr.mxu0 0.0
  %4529 = vmatpush1.msra.mxu0 0.0
  %4530 = vmatprep.subr.mxu0 0.0
  %4531 = vmatpush1.msra.mxu0 0.0
  %4532 = vmatprep.subr.mxu0 0.0
  %4533 = vmatpush1.msra.mxu0 0.0
  %4534 = vmatprep.subr.mxu0 0.0
  %4535 = vmatpush1.msra.mxu0 %v4502
  %4536 = vmatprep.subr.mxu0 0.0
  %4537 = vmatpush2.msra.mxu0 0.0
  %4538 = vmatprep.subr.mxu0 0.0
  %4539 = vmatpush2.msra.mxu0 0.0
  %4540 = vmatprep.subr.mxu0 0.0
  %4541 = vmatpush2.msra.mxu0 0.0
  %4542 = vmatprep.subr.mxu0 0.0
  %4543 = vmatpush2.msra.mxu0 0.0
  %4544 = vmatprep.subr.mxu0 0.0
  %4545 = vmatpush2.msra.mxu0 0.0
  %4546 = vmatprep.subr.mxu0 0.0
  %4547 = vmatpush2.msra.mxu0 0.0
  %4548 = vmatprep.subr.mxu0 0.0
  %4549 = vmatpush2.msra.mxu0 0.0
  %4550 = vmatprep.subr.mxu0 0.0
  %4551 = vmatpush2.msra.mxu0 0.0
  %4552 = vmatprep.subr.mxu0 0.0
  %4553 = vmatpush2.msra.mxu0 0.0
  %4554 = vmatprep.subr.mxu0 0.0
  %4555 = vmatpush2.msra.mxu0 0.0
  %4556 = vmatprep.subr.mxu0 0.0
  %4557 = vmatpush2.msra.mxu0 0.0
  %4558 = vmatprep.subr.mxu0 0.0
  %4559 = vmatpush2.msra.mxu0 0.0
  %4560 = vmatprep.subr.mxu0 0.0
  %4561 = vmatpush2.msra.mxu0 0.0
  %4562 = vmatprep.subr.mxu0 0.0
  %4563 = vmatpush2.msra.mxu0 0.0
  %4564 = vmatprep.subr.mxu0 0.0
  %4565 = vmatpush2.msra.mxu0 0.0
  %4566 = vmatprep.subr.mxu0 0.0
  %4567 = vmatpush2.msra.mxu0 0.0
  %4568 = vmatprep.mubr.f32.mxu0 0.0
  %4569 = vmatmul.mubr.f32.gmra.mxu0 %v699
  %v4570 = vpop.f32.mrf.mxu0
  %v4571 = vadd.f32 0.0, %v4570
  %v4572 = vpop.f32.mrf.mxu0
  %4573 = vdwg.mxu0
  %4574 = vmatprep.subr.mxu0 0.0
  %4575 = vmatpush1.msra.mxu0 0.0
  %4576 = vmatprep.subr.mxu0 0.0
  %4577 = vmatpush1.msra.mxu0 0.0
  %4578 = vmatprep.subr.mxu0 0.0
  %4579 = vmatpush1.msra.mxu0 0.0
  %4580 = vmatprep.subr.mxu0 0.0
  %4581 = vmatpush1.msra.mxu0 0.0
  %4582 = vmatprep.subr.mxu0 0.0
  %4583 = vmatpush1.msra.mxu0 0.0
  %4584 = vmatprep.subr.mxu0 0.0
  %4585 = vmatpush1.msra.mxu0 0.0
  %4586 = vmatprep.subr.mxu0 0.0
  %4587 = vmatpush1.msra.mxu0 0.0
  %4588 = vmatprep.subr.mxu0 0.0
  %4589 = vmatpush1.msra.mxu0 0.0
  %4590 = vmatprep.subr.mxu0 0.0
  %4591 = vmatpush1.msra.mxu0 0.0
  %4592 = vmatprep.subr.mxu0 0.0
  %4593 = vmatpush1.msra.mxu0 0.0
  %4594 = vmatprep.subr.mxu0 0.0
  %4595 = vmatpush1.msra.mxu0 0.0
  %4596 = vmatprep.subr.mxu0 0.0
  %4597 = vmatpush1.msra.mxu0 0.0
  %4598 = vmatprep.subr.mxu0 0.0
  %4599 = vmatpush1.msra.mxu0 0.0
  %4600 = vmatprep.subr.mxu0 0.0
  %4601 = vmatpush1.msra.mxu0 0.0
  %4602 = vmatprep.subr.mxu0 0.0
  %4603 = vmatpush1.msra.mxu0 0.0
  %4604 = vmatprep.subr.mxu0 0.0
  %4605 = vmatpush1.msra.mxu0 %v4142
  %4606 = vmatprep.subr.mxu0 0.0
  %4607 = vmatpush2.msra.mxu0 0.0
  %4608 = vmatprep.subr.mxu0 0.0
  %4609 = vmatpush2.msra.mxu0 0.0
  %4610 = vmatprep.subr.mxu0 0.0
  %4611 = vmatpush2.msra.mxu0 0.0
  %4612 = vmatprep.subr.mxu0 0.0
  %4613 = vmatpush2.msra.mxu0 0.0
  %4614 = vmatprep.subr.mxu0 0.0
  %4615 = vmatpush2.msra.mxu0 0.0
  %4616 = vmatprep.subr.mxu0 0.0
  %4617 = vmatpush2.msra.mxu0 0.0
  %4618 = vmatprep.subr.mxu0 0.0
  %4619 = vmatpush2.msra.mxu0 0.0
  %4620 = vmatprep.subr.mxu0 0.0
  %4621 = vmatpush2.msra.mxu0 0.0
  %4622 = vmatprep.subr.mxu0 0.0
  %4623 = vmatpush2.msra.mxu0 0.0
  %4624 = vmatprep.subr.mxu0 0.0
  %4625 = vmatpush2.msra.mxu0 0.0
  %4626 = vmatprep.subr.mxu0 0.0
  %4627 = vmatpush2.msra.mxu0 0.0
  %4628 = vmatprep.subr.mxu0 0.0
  %4629 = vmatpush2.msra.mxu0 0.0
  %4630 = vmatprep.subr.mxu0 0.0
  %4631 = vmatpush2.msra.mxu0 0.0
  %4632 = vmatprep.subr.mxu0 0.0
  %4633 = vmatpush2.msra.mxu0 0.0
  %4634 = vmatprep.subr.mxu0 0.0
  %4635 = vmatpush2.msra.mxu0 0.0
  %4636 = vmatprep.subr.mxu0 0.0
  %4637 = vmatpush2.msra.mxu0 0.0
  %4638 = vmatprep.mubr.f32.mxu0 0.0
  %4639 = vmatmul.mubr.f32.gmra.mxu0 %v774
  %v4640 = vpop.f32.mrf.mxu0
  %v4641 = vadd.f32 0.0, %v4640
  %v4642 = vpop.f32.mrf.mxu0
  %4643 = vdwg.mxu0
  %4646 = vrot.lane.b32.xlu0 %v4355, 32
  %v4647 = vpop.permute.xlu0 %4646
  %4648 = vrot.lane.b32.xlu0 %v4498, 32
  %v4649 = vpop.permute.xlu0 %4648
  %4653 = vrot.lane.b32.xlu0 %v3995, 64
  %v4654 = vpop.permute.xlu0 %4653
  %4655 = vrot.lane.b32.xlu0 %v3996, 64
  %v4656 = vpop.permute.xlu0 %4655
  %v4659 = vsel %vm58, %v4428, %v4647
  %v4660 = vsel %vm58, %v4571, %v4649
  %v4661 = vsel %vm863, %v4659, %v4654
  %v4662 = vsel %vm863, %v4660, %v4656
  %v4664 = vsel %vm866, %v4661, 0
  %v4667 = vsel %vm866, %v4662, 0
  %4669 = vmatprep.subr.mxu0 0.0
  %4670 = vmatpush1.msra.mxu0 0.0
  %4671 = vmatprep.subr.mxu0 0.0
  %4672 = vmatpush1.msra.mxu0 0.0
  %4673 = vmatprep.subr.mxu0 0.0
  %4674 = vmatpush1.msra.mxu0 0.0
  %4675 = vmatprep.subr.mxu0 0.0
  %4676 = vmatpush1.msra.mxu0 0.0
  %4677 = vmatprep.subr.mxu0 0.0
  %4678 = vmatpush1.msra.mxu0 %v82
  %4679 = vmatprep.subr.mxu0 0.0
  %4680 = vmatpush1.msra.mxu0 %v81
  %4681 = vmatprep.subr.mxu0 0.0
  %4682 = vmatpush1.msra.mxu0 %v80
  %4683 = vmatprep.subr.mxu0 0.0
  %4684 = vmatpush1.msra.mxu0 %v79
  %4685 = vmatprep.subr.mxu0 0.0
  %4686 = vmatpush1.msra.mxu0 %v78
  %4687 = vmatprep.subr.mxu0 0.0
  %4688 = vmatpush1.msra.mxu0 %v77
  %4689 = vmatprep.subr.mxu0 0.0
  %4690 = vmatpush1.msra.mxu0 %v76
  %4691 = vmatprep.subr.mxu0 0.0
  %4692 = vmatpush1.msra.mxu0 %v75
  %4693 = vmatprep.subr.mxu0 0.0
  %4694 = vmatpush1.msra.mxu0 %v74
  %4695 = vmatprep.subr.mxu0 0.0
  %4696 = vmatpush1.msra.mxu0 %v73
  %4697 = vmatprep.subr.mxu0 0.0
  %4698 = vmatpush1.msra.mxu0 %v72
  %4699 = vmatprep.subr.mxu0 0.0
  %4700 = vmatpush1.msra.mxu0 %v71
  %4701 = vmatprep.subr.mxu0 0.0
  %4702 = vmatpush2.msra.mxu0 0.0
  %4703 = vmatprep.subr.mxu0 0.0
  %4704 = vmatpush2.msra.mxu0 0.0
  %4705 = vmatprep.subr.mxu0 0.0
  %4706 = vmatpush2.msra.mxu0 0.0
  %4707 = vmatprep.subr.mxu0 0.0
  %4708 = vmatpush2.msra.mxu0 0.0
  %4709 = vmatprep.subr.mxu0 0.0
  %4710 = vmatpush2.msra.mxu0 0.0
  %4711 = vmatprep.subr.mxu0 0.0
  %4712 = vmatpush2.msra.mxu0 0.0
  %4713 = vmatprep.subr.mxu0 0.0
  %4714 = vmatpush2.msra.mxu0 0.0
  %4715 = vmatprep.subr.mxu0 0.0
  %4716 = vmatpush2.msra.mxu0 0.0
  %4717 = vmatprep.subr.mxu0 0.0
  %4718 = vmatpush2.msra.mxu0 0.0
  %4719 = vmatprep.subr.mxu0 0.0
  %4720 = vmatpush2.msra.mxu0 0.0
  %4721 = vmatprep.subr.mxu0 0.0
  %4722 = vmatpush2.msra.mxu0 0.0
  %4723 = vmatprep.subr.mxu0 0.0
  %4724 = vmatpush2.msra.mxu0 0.0
  %4725 = vmatprep.subr.mxu0 0.0
  %4726 = vmatpush2.msra.mxu0 0.0
  %4727 = vmatprep.subr.mxu0 0.0
  %4728 = vmatpush2.msra.mxu0 0.0
  %4729 = vmatprep.subr.mxu0 0.0
  %4730 = vmatpush2.msra.mxu0 0.0
  %4731 = vmatprep.subr.mxu0 0.0
  %4732 = vmatpush2.msra.mxu0 0.0
  %4733 = vmatprep.mubr.f32.mxu0 0.0
  %4734 = vmatmul.mubr.f32.gmra.mxu0 %v4664
  %v4735 = vpop.f32.mrf.mxu0
  %v4736 = vadd.f32 %v96, %v4735
  %v4737 = vpop.f32.mrf.mxu0
  %4738 = vmatprep.mubr.f32.mxu0 0.0
  %4739 = vmatmul.mubr.f32.gmra.mxu0 %v4667
  %v4740 = vpop.f32.mrf.mxu0
  %v4741 = vadd.f32 %v96, %v4740
  %v4742 = vpop.f32.mrf.mxu0
  %4743 = vdwg.mxu0
  %4744 = vrot.lane.b32.xlu0 %v3997, 32
  %v4745 = vpop.permute.xlu0 %4744
  %v4747 = vsel %vm58, %v4641, %v4745
  %v4749 = vsel %vm863, %v4747, 0
  %4751 = vmatprep.subr.mxu0 0.0
  %4752 = vmatpush1.msra.mxu0 0.0
  %4753 = vmatprep.subr.mxu0 0.0
  %4754 = vmatpush1.msra.mxu0 0.0
  %4755 = vmatprep.subr.mxu0 0.0
  %4756 = vmatpush1.msra.mxu0 0.0
  %4757 = vmatprep.subr.mxu0 0.0
  %4758 = vmatpush1.msra.mxu0 0.0
  %4759 = vmatprep.subr.mxu0 0.0
  %4760 = vmatpush1.msra.mxu0 0.0
  %4761 = vmatprep.subr.mxu0 0.0
  %4762 = vmatpush1.msra.mxu0 0.0
  %4763 = vmatprep.subr.mxu0 0.0
  %4764 = vmatpush1.msra.mxu0 0.0
  %4765 = vmatprep.subr.mxu0 0.0
  %4766 = vmatpush1.msra.mxu0 0.0
  %4767 = vmatprep.subr.mxu0 0.0
  %4768 = vmatpush1.msra.mxu0 %v90
  %4769 = vmatprep.subr.mxu0 0.0
  %4770 = vmatpush1.msra.mxu0 %v89
  %4771 = vmatprep.subr.mxu0 0.0
  %4772 = vmatpush1.msra.mxu0 %v88
  %4773 = vmatprep.subr.mxu0 0.0
  %4774 = vmatpush1.msra.mxu0 %v87
  %4775 = vmatprep.subr.mxu0 0.0
  %4776 = vmatpush1.msra.mxu0 %v86
  %4777 = vmatprep.subr.mxu0 0.0
  %4778 = vmatpush1.msra.mxu0 %v85
  %4779 = vmatprep.subr.mxu0 0.0
  %4780 = vmatpush1.msra.mxu0 %v84
  %4781 = vmatprep.subr.mxu0 0.0
  %4782 = vmatpush1.msra.mxu0 %v83
  %4783 = vmatprep.subr.mxu0 0.0
  %4784 = vmatpush2.msra.mxu0 0.0
  %4785 = vmatprep.subr.mxu0 0.0
  %4786 = vmatpush2.msra.mxu0 0.0
  %4787 = vmatprep.subr.mxu0 0.0
  %4788 = vmatpush2.msra.mxu0 0.0
  %4789 = vmatprep.subr.mxu0 0.0
  %4790 = vmatpush2.msra.mxu0 0.0
  %4791 = vmatprep.subr.mxu0 0.0
  %4792 = vmatpush2.msra.mxu0 0.0
  %4793 = vmatprep.subr.mxu0 0.0
  %4794 = vmatpush2.msra.mxu0 0.0
  %4795 = vmatprep.subr.mxu0 0.0
  %4796 = vmatpush2.msra.mxu0 0.0
  %4797 = vmatprep.subr.mxu0 0.0
  %4798 = vmatpush2.msra.mxu0 0.0
  %4799 = vmatprep.subr.mxu0 0.0
  %4800 = vmatpush2.msra.mxu0 0.0
  %4801 = vmatprep.subr.mxu0 0.0
  %4802 = vmatpush2.msra.mxu0 0.0
  %4803 = vmatprep.subr.mxu0 0.0
  %4804 = vmatpush2.msra.mxu0 0.0
  %4805 = vmatprep.subr.mxu0 0.0
  %4806 = vmatpush2.msra.mxu0 0.0
  %4807 = vmatprep.subr.mxu0 0.0
  %4808 = vmatpush2.msra.mxu0 0.0
  %4809 = vmatprep.subr.mxu0 0.0
  %4810 = vmatpush2.msra.mxu0 0.0
  %4811 = vmatprep.subr.mxu0 0.0
  %4812 = vmatpush2.msra.mxu0 0.0
  %4813 = vmatprep.subr.mxu0 0.0
  %4814 = vmatpush2.msra.mxu0 0.0
  %4815 = vmatprep.mubr.f32.mxu0 0.0
  %4816 = vmatmul.mubr.f32.gmra.mxu0 %v4749
  %v4817 = vpop.f32.mrf.mxu0
  %v4818 = vadd.f32 %v103, %v4817
  %v4819 = vpop.f32.mrf.mxu0
  %4820 = vdwg.mxu0
  %v4821 = vld [vmem:[#allocation3] sm:$0xff]
  %v4822 = vld [vmem:[#allocation3 + $0x8] sm:$0xff]
  %v4823 = vmul.f32 %v4736, %v178
  %v4824 = vmul.f32 %v4741, %v178
  %v4825 = vxor.u32 %v4823, 2147483648
  %v4826 = vxor.u32 %v4824, 2147483648
  %v4827 = vmul.f32 %v4825, 1.442695
  %v4828 = vpow.pop %v4827
  %v4829 = vmul.f32 %v4826, 1.442695
  %v4830 = vpow.pop %v4829
  %v4831 = vadd.f32 %v4828, 1.0
  %v4832 = vadd.f32 %v4830, 1.0
  %v4833 = vrcp.pop %v4831
  %v4834 = vmul.f32 1.0, %v4833
  %v4835 = vrcp.pop %v4832
  %v4836 = vmul.f32 1.0, %v4835
  %v4837 = vmul.f32 %v4834, 2.0
  %v4838 = vmul.f32 %v4836, 2.0
  %v4839 = vsub.f32 %v4837, 1.0
  %v4840 = vsub.f32 %v4838, 1.0
  %4843 = vrot.lane.b32.xlu0 %v4821, 32
  %v4844 = vpop.permute.xlu0 %4843
  %4845 = vrot.lane.b32.xlu0 %v4822, 32
  %v4846 = vpop.permute.xlu0 %4845
  %v4849 = vmul.f32 %v4834, %v4844
  %v4850 = vmul.f32 %v4836, %v4846
  %4853 = vrot.lane.b32.xlu0 %v4839, 64
  %v4854 = vpop.permute.xlu0 %4853
  %4855 = vrot.lane.b32.xlu0 %v4840, 64
  %v4856 = vpop.permute.xlu0 %4855
  %v4859 = vmul.f32 %v4834, %v4854
  %v4860 = vmul.f32 %v4836, %v4856
  %4863 = vrot.lane.b32.xlu0 %v4859, 32
  %v4864 = vpop.permute.xlu0 %4863
  %4865 = vrot.lane.b32.xlu0 %v4860, 32
  %v4866 = vpop.permute.xlu0 %4865
  %v4869 = vadd.f32 %v4849, %v4864
  %v4870 = vadd.f32 %v4850, %v4866
  %v4871 = vtanh.pop %v4869
  %v4872 = vtanh.pop %v4870
  %4875 = vrot.lane.b32.xlu0 %v4871, 64
  %v4876 = vpop.permute.xlu0 %4875
  %4877 = vrot.lane.b32.xlu0 %v4872, 64
  %v4878 = vpop.permute.xlu0 %4877
  %v4881 = vmul.f32 %v4834, %v4876
  %v4882 = vmul.f32 %v4836, %v4878
  %v4883 = vld [vmem:[#allocation4] sm:$0xff]
  %v4884 = vmul.f32 %v4818, %v178
  %v4885 = vxor.u32 %v4884, 2147483648
  %v4886 = vmul.f32 %v4885, 1.442695
  %v4887 = vpow.pop %v4886
  %v4888 = vadd.f32 %v4887, 1.0
  %v4889 = vrcp.pop %v4888
  %v4890 = vmul.f32 1.0, %v4889
  %v4891 = vmul.f32 %v4890, 2.0
  %v4892 = vsub.f32 %v4891, 1.0
  %4894 = vrot.lane.b32.xlu0 %v4883, 32
  %v4895 = vpop.permute.xlu0 %4894
  %v4897 = vmul.f32 %v4890, %v4895
  %4899 = vrot.lane.b32.xlu0 %v4892, 64
  %v4900 = vpop.permute.xlu0 %4899
  %v4902 = vmul.f32 %v4890, %v4900
  %4904 = vrot.lane.b32.xlu0 %v4902, 32
  %v4905 = vpop.permute.xlu0 %4904
  %v4907 = vadd.f32 %v4897, %v4905
  %v4908 = vtanh.pop %v4907
  %4910 = vrot.lane.b32.xlu0 %v4908, 64
  %v4911 = vpop.permute.xlu0 %4910
  %v4913 = vmul.f32 %v4890, %v4911
  %4916 = vrot.lane.b32.xlu0 %v4881, 32
  %v4917 = vpop.permute.xlu0 %4916
  %4918 = vrot.lane.b32.xlu0 %v4882, 32
  %v4919 = vpop.permute.xlu0 %4918
  %4922 = vst.msk [vmem:[%s17] sm:$0xff] %vm58, %v4917
  %4923 = vst.msk [vmem:[%s17 + $0x8] sm:$0xff] %vm58, %v4919
  %4926 = vrot.lane.b32.xlu0 %v4869, 96
  %v4927 = vpop.permute.xlu0 %4926
  %4928 = vrot.lane.b32.xlu0 %v4870, 96
  %v4929 = vpop.permute.xlu0 %4928
  %4932 = vst.msk [vmem:[#allocation3] sm:$0xff] %vm58, %v4927
  %4933 = vst.msk [vmem:[#allocation3 + $0x8] sm:$0xff] %vm58, %v4929
  %4935 = vrot.lane.b32.xlu0 %v4913, 32
  %v4936 = vpop.permute.xlu0 %4935
  %4938 = vst.msk [vmem:[#allocation2] sm:$0xff] %vm58, %v4936
  %4940 = vrot.lane.b32.xlu0 %v4907, 96
  %v4941 = vpop.permute.xlu0 %4940
  %4943 = vst.msk [vmem:[#allocation4] sm:$0xff] %vm58, %v4941
  %v4944 = vld [vmem:[%s17] sm:$0xff]
  %v4945 = vld [vmem:[%s17 + $0x8] sm:$0xff]
  %v4946 = vld [vmem:[#allocation2] sm:$0xff]
  %v4948 = vsel %vm58, %v4945, 0
  %4950 = vmatprep.subr.mxu0 0.0
  %4951 = vmatpush1.msra.mxu0 0.0
  %4952 = vmatprep.subr.mxu0 0.0
  %4953 = vmatpush1.msra.mxu0 0.0
  %4954 = vmatprep.subr.mxu0 0.0
  %4955 = vmatpush1.msra.mxu0 0.0
  %4956 = vmatprep.subr.mxu0 0.0
  %4957 = vmatpush1.msra.mxu0 0.0
  %4958 = vmatprep.subr.mxu0 0.0
  %4959 = vmatpush1.msra.mxu0 0.0
  %4960 = vmatprep.subr.mxu0 0.0
  %4961 = vmatpush1.msra.mxu0 0.0
  %4962 = vmatprep.subr.mxu0 0.0
  %4963 = vmatpush1.msra.mxu0 0.0
  %4964 = vmatprep.subr.mxu0 0.0
  %4965 = vmatpush1.msra.mxu0 0.0
  %4966 = vmatprep.subr.mxu0 0.0
  %4967 = vmatpush1.msra.mxu0 0.0
  %4968 = vmatprep.subr.mxu0 0.0
  %4969 = vmatpush1.msra.mxu0 0.0
  %4970 = vmatprep.subr.mxu0 0.0
  %4971 = vmatpush1.msra.mxu0 0.0
  %4972 = vmatprep.subr.mxu0 0.0
  %4973 = vmatpush1.msra.mxu0 0.0
  %4974 = vmatprep.subr.mxu0 0.0
  %4975 = vmatpush1.msra.mxu0 %v128
  %4976 = vmatprep.subr.mxu0 0.0
  %4977 = vmatpush1.msra.mxu0 %v127
  %4978 = vmatprep.subr.mxu0 0.0
  %4979 = vmatpush1.msra.mxu0 %v126
  %4980 = vmatprep.subr.mxu0 0.0
  %4981 = vmatpush1.msra.mxu0 %v125
  %4982 = vmatprep.subr.mxu0 0.0
  %4983 = vmatpush2.msra.mxu0 0.0
  %4984 = vmatprep.subr.mxu0 0.0
  %4985 = vmatpush2.msra.mxu0 0.0
  %4986 = vmatprep.subr.mxu0 0.0
  %4987 = vmatpush2.msra.mxu0 0.0
  %4988 = vmatprep.subr.mxu0 0.0
  %4989 = vmatpush2.msra.mxu0 0.0
  %4990 = vmatprep.subr.mxu0 0.0
  %4991 = vmatpush2.msra.mxu0 0.0
  %4992 = vmatprep.subr.mxu0 0.0
  %4993 = vmatpush2.msra.mxu0 0.0
  %4994 = vmatprep.subr.mxu0 0.0
  %4995 = vmatpush2.msra.mxu0 0.0
  %4996 = vmatprep.subr.mxu0 0.0
  %4997 = vmatpush2.msra.mxu0 0.0
  %4998 = vmatprep.subr.mxu0 0.0
  %4999 = vmatpush2.msra.mxu0 0.0
  %5000 = vmatprep.subr.mxu0 0.0
  %5001 = vmatpush2.msra.mxu0 0.0
  %5002 = vmatprep.subr.mxu0 0.0
  %5003 = vmatpush2.msra.mxu0 0.0
  %5004 = vmatprep.subr.mxu0 0.0
  %5005 = vmatpush2.msra.mxu0 0.0
  %5006 = vmatprep.subr.mxu0 0.0
  %5007 = vmatpush2.msra.mxu0 0.0
  %5008 = vmatprep.subr.mxu0 0.0
  %5009 = vmatpush2.msra.mxu0 0.0
  %5010 = vmatprep.subr.mxu0 0.0
  %5011 = vmatpush2.msra.mxu0 0.0
  %5012 = vmatprep.subr.mxu0 0.0
  %5013 = vmatpush2.msra.mxu0 0.0
  %5014 = vmatprep.mubr.f32.mxu0 0.0
  %5015 = vmatmul.mubr.f32.gmra.mxu0 %v4948
  %v5016 = vpop.f32.mrf.mxu0
  %v5017 = vadd.f32 %v164, %v5016
  %v5018 = vpop.f32.mrf.mxu0
  %5019 = vdwg.mxu0
  %v5020 = vmax.f32 %v5017, 0.0
  %5021 = vmatprep.subr.mxu0 0.0
  %5022 = vmatpush1.msra.mxu0 %v144
  %5023 = vmatprep.subr.mxu0 0.0
  %5024 = vmatpush1.msra.mxu0 %v143
  %5025 = vmatprep.subr.mxu0 0.0
  %5026 = vmatpush1.msra.mxu0 %v142
  %5027 = vmatprep.subr.mxu0 0.0
  %5028 = vmatpush1.msra.mxu0 %v141
  %5029 = vmatprep.subr.mxu0 0.0
  %5030 = vmatpush1.msra.mxu0 %v140
  %5031 = vmatprep.subr.mxu0 0.0
  %5032 = vmatpush1.msra.mxu0 %v139
  %5033 = vmatprep.subr.mxu0 0.0
  %5034 = vmatpush1.msra.mxu0 %v138
  %5035 = vmatprep.subr.mxu0 0.0
  %5036 = vmatpush1.msra.mxu0 %v137
  %5037 = vmatprep.subr.mxu0 0.0
  %5038 = vmatpush1.msra.mxu0 %v136
  %5039 = vmatprep.subr.mxu0 0.0
  %5040 = vmatpush1.msra.mxu0 %v135
  %5041 = vmatprep.subr.mxu0 0.0
  %5042 = vmatpush1.msra.mxu0 %v134
  %5043 = vmatprep.subr.mxu0 0.0
  %5044 = vmatpush1.msra.mxu0 %v133
  %5045 = vmatprep.subr.mxu0 0.0
  %5046 = vmatpush1.msra.mxu0 %v132
  %5047 = vmatprep.subr.mxu0 0.0
  %5048 = vmatpush1.msra.mxu0 %v131
  %5049 = vmatprep.subr.mxu0 0.0
  %5050 = vmatpush1.msra.mxu0 %v130
  %5051 = vmatprep.subr.mxu0 0.0
  %5052 = vmatpush1.msra.mxu0 %v129
  %5053 = vmatprep.subr.mxu0 0.0
  %5054 = vmatpush2.msra.mxu0 0.0
  %5055 = vmatprep.subr.mxu0 0.0
  %5056 = vmatpush2.msra.mxu0 0.0
  %5057 = vmatprep.subr.mxu0 0.0
  %5058 = vmatpush2.msra.mxu0 0.0
  %5059 = vmatprep.subr.mxu0 0.0
  %5060 = vmatpush2.msra.mxu0 0.0
  %5061 = vmatprep.subr.mxu0 0.0
  %5062 = vmatpush2.msra.mxu0 0.0
  %5063 = vmatprep.subr.mxu0 0.0
  %5064 = vmatpush2.msra.mxu0 0.0
  %5065 = vmatprep.subr.mxu0 0.0
  %5066 = vmatpush2.msra.mxu0 0.0
  %5067 = vmatprep.subr.mxu0 0.0
  %5068 = vmatpush2.msra.mxu0 0.0
  %5069 = vmatprep.subr.mxu0 0.0
  %5070 = vmatpush2.msra.mxu0 0.0
  %5071 = vmatprep.subr.mxu0 0.0
  %5072 = vmatpush2.msra.mxu0 0.0
  %5073 = vmatprep.subr.mxu0 0.0
  %5074 = vmatpush2.msra.mxu0 0.0
  %5075 = vmatprep.subr.mxu0 0.0
  %5076 = vmatpush2.msra.mxu0 0.0
  %5077 = vmatprep.subr.mxu0 0.0
  %5078 = vmatpush2.msra.mxu0 0.0
  %5079 = vmatprep.subr.mxu0 0.0
  %5080 = vmatpush2.msra.mxu0 0.0
  %5081 = vmatprep.subr.mxu0 0.0
  %5082 = vmatpush2.msra.mxu0 0.0
  %5083 = vmatprep.subr.mxu0 0.0
  %5084 = vmatpush2.msra.mxu0 0.0
  %5085 = vmatprep.mubr.f32.mxu0 0.0
  %5086 = vmatmul.mubr.f32.gmra.mxu0 %v5020
  %v5087 = vpop.f32.mrf.mxu0
  %v5088 = vadd.f32 %v171, %v5087
  %v5089 = vpop.f32.mrf.mxu0
  %5090 = vdwg.mxu0
  %v5091 = vmax.f32 %v5088, 0.0
  %v5093 = vsel %vm58, %v4946, 0
  %5095 = vmatprep.subr.mxu0 0.0
  %5096 = vmatpush1.msra.mxu0 0.0
  %5097 = vmatprep.subr.mxu0 0.0
  %5098 = vmatpush1.msra.mxu0 0.0
  %5099 = vmatprep.subr.mxu0 0.0
  %5100 = vmatpush1.msra.mxu0 0.0
  %5101 = vmatprep.subr.mxu0 0.0
  %5102 = vmatpush1.msra.mxu0 0.0
  %5103 = vmatprep.subr.mxu0 0.0
  %5104 = vmatpush1.msra.mxu0 0.0
  %5105 = vmatprep.subr.mxu0 0.0
  %5106 = vmatpush1.msra.mxu0 0.0
  %5107 = vmatprep.subr.mxu0 0.0
  %5108 = vmatpush1.msra.mxu0 0.0
  %5109 = vmatprep.subr.mxu0 0.0
  %5110 = vmatpush1.msra.mxu0 0.0
  %5111 = vmatprep.subr.mxu0 0.0
  %5112 = vmatpush1.msra.mxu0 0.0
  %5113 = vmatprep.subr.mxu0 0.0
  %5114 = vmatpush1.msra.mxu0 0.0
  %5115 = vmatprep.subr.mxu0 0.0
  %5116 = vmatpush1.msra.mxu0 0.0
  %5117 = vmatprep.subr.mxu0 0.0
  %5118 = vmatpush1.msra.mxu0 0.0
  %5119 = vmatprep.subr.mxu0 0.0
  %5120 = vmatpush1.msra.mxu0 %v108
  %5121 = vmatprep.subr.mxu0 0.0
  %5122 = vmatpush1.msra.mxu0 %v107
  %5123 = vmatprep.subr.mxu0 0.0
  %5124 = vmatpush1.msra.mxu0 %v106
  %5125 = vmatprep.subr.mxu0 0.0
  %5126 = vmatpush1.msra.mxu0 %v105
  %5127 = vmatprep.subr.mxu0 0.0
  %5128 = vmatpush2.msra.mxu0 0.0
  %5129 = vmatprep.subr.mxu0 0.0
  %5130 = vmatpush2.msra.mxu0 0.0
  %5131 = vmatprep.subr.mxu0 0.0
  %5132 = vmatpush2.msra.mxu0 0.0
  %5133 = vmatprep.subr.mxu0 0.0
  %5134 = vmatpush2.msra.mxu0 0.0
  %5135 = vmatprep.subr.mxu0 0.0
  %5136 = vmatpush2.msra.mxu0 0.0
  %5137 = vmatprep.subr.mxu0 0.0
  %5138 = vmatpush2.msra.mxu0 0.0
  %5139 = vmatprep.subr.mxu0 0.0
  %5140 = vmatpush2.msra.mxu0 0.0
  %5141 = vmatprep.subr.mxu0 0.0
  %5142 = vmatpush2.msra.mxu0 0.0
  %5143 = vmatprep.subr.mxu0 0.0
  %5144 = vmatpush2.msra.mxu0 0.0
  %5145 = vmatprep.subr.mxu0 0.0
  %5146 = vmatpush2.msra.mxu0 0.0
  %5147 = vmatprep.subr.mxu0 0.0
  %5148 = vmatpush2.msra.mxu0 0.0
  %5149 = vmatprep.subr.mxu0 0.0
  %5150 = vmatpush2.msra.mxu0 0.0
  %5151 = vmatprep.subr.mxu0 0.0
  %5152 = vmatpush2.msra.mxu0 0.0
  %5153 = vmatprep.subr.mxu0 0.0
  %5154 = vmatpush2.msra.mxu0 0.0
  %5155 = vmatprep.subr.mxu0 0.0
  %5156 = vmatpush2.msra.mxu0 0.0
  %5157 = vmatprep.subr.mxu0 0.0
  %5158 = vmatpush2.msra.mxu0 0.0
  %5159 = vmatprep.mubr.f32.mxu0 0.0
  %5160 = vmatmul.mubr.f32.gmra.mxu0 %v5093
  %v5161 = vpop.f32.mrf.mxu0
  %v5162 = vadd.f32 %v150, %v5161
  %v5163 = vpop.f32.mrf.mxu0
  %5164 = vdwg.mxu0
  %v5165 = vmax.f32 %v5162, 0.0
  %5166 = vmatprep.subr.mxu0 0.0
  %5167 = vmatpush1.msra.mxu0 %v124
  %5168 = vmatprep.subr.mxu0 0.0
  %5169 = vmatpush1.msra.mxu0 %v123
  %5170 = vmatprep.subr.mxu0 0.0
  %5171 = vmatpush1.msra.mxu0 %v122
  %5172 = vmatprep.subr.mxu0 0.0
  %5173 = vmatpush1.msra.mxu0 %v121
  %5174 = vmatprep.subr.mxu0 0.0
  %5175 = vmatpush1.msra.mxu0 %v120
  %5176 = vmatprep.subr.mxu0 0.0
  %5177 = vmatpush1.msra.mxu0 %v119
  %5178 = vmatprep.subr.mxu0 0.0
  %5179 = vmatpush1.msra.mxu0 %v118
  %5180 = vmatprep.subr.mxu0 0.0
  %5181 = vmatpush1.msra.mxu0 %v117
  %5182 = vmatprep.subr.mxu0 0.0
  %5183 = vmatpush1.msra.mxu0 %v116
  %5184 = vmatprep.subr.mxu0 0.0
  %5185 = vmatpush1.msra.mxu0 %v115
  %5186 = vmatprep.subr.mxu0 0.0
  %5187 = vmatpush1.msra.mxu0 %v114
  %5188 = vmatprep.subr.mxu0 0.0
  %5189 = vmatpush1.msra.mxu0 %v113
  %5190 = vmatprep.subr.mxu0 0.0
  %5191 = vmatpush1.msra.mxu0 %v112
  %5192 = vmatprep.subr.mxu0 0.0
  %5193 = vmatpush1.msra.mxu0 %v111
  %5194 = vmatprep.subr.mxu0 0.0
  %5195 = vmatpush1.msra.mxu0 %v110
  %5196 = vmatprep.subr.mxu0 0.0
  %5197 = vmatpush1.msra.mxu0 %v109
  %5198 = vmatprep.subr.mxu0 0.0
  %5199 = vmatpush2.msra.mxu0 0.0
  %5200 = vmatprep.subr.mxu0 0.0
  %5201 = vmatpush2.msra.mxu0 0.0
  %5202 = vmatprep.subr.mxu0 0.0
  %5203 = vmatpush2.msra.mxu0 0.0
  %5204 = vmatprep.subr.mxu0 0.0
  %5205 = vmatpush2.msra.mxu0 0.0
  %5206 = vmatprep.subr.mxu0 0.0
  %5207 = vmatpush2.msra.mxu0 0.0
  %5208 = vmatprep.subr.mxu0 0.0
  %5209 = vmatpush2.msra.mxu0 0.0
  %5210 = vmatprep.subr.mxu0 0.0
  %5211 = vmatpush2.msra.mxu0 0.0
  %5212 = vmatprep.subr.mxu0 0.0
  %5213 = vmatpush2.msra.mxu0 0.0
  %5214 = vmatprep.subr.mxu0 0.0
  %5215 = vmatpush2.msra.mxu0 0.0
  %5216 = vmatprep.subr.mxu0 0.0
  %5217 = vmatpush2.msra.mxu0 0.0
  %5218 = vmatprep.subr.mxu0 0.0
  %5219 = vmatpush2.msra.mxu0 0.0
  %5220 = vmatprep.subr.mxu0 0.0
  %5221 = vmatpush2.msra.mxu0 0.0
  %5222 = vmatprep.subr.mxu0 0.0
  %5223 = vmatpush2.msra.mxu0 0.0
  %5224 = vmatprep.subr.mxu0 0.0
  %5225 = vmatpush2.msra.mxu0 0.0
  %5226 = vmatprep.subr.mxu0 0.0
  %5227 = vmatpush2.msra.mxu0 0.0
  %5228 = vmatprep.subr.mxu0 0.0
  %5229 = vmatpush2.msra.mxu0 0.0
  %5230 = vmatprep.mubr.f32.mxu0 0.0
  %5231 = vmatmul.mubr.f32.gmra.mxu0 %v5165
  %v5232 = vpop.f32.mrf.mxu0
  %v5233 = vadd.f32 %v157, %v5232
  %v5234 = vpop.f32.mrf.mxu0
  %5235 = vdwg.mxu0
  %v5236 = vmax.f32 %v5233, 0.0
  %5237 = vmatprep.subr.mxu0 0.0
  %5238 = vmatpush1.msra.mxu0 0.0
  %5239 = vmatprep.subr.mxu0 0.0
  %5240 = vmatpush1.msra.mxu0 0.0
  %5241 = vmatprep.subr.mxu0 0.0
  %5242 = vmatpush1.msra.mxu0 0.0
  %5243 = vmatprep.subr.mxu0 0.0
  %5244 = vmatpush1.msra.mxu0 0.0
  %5245 = vmatprep.subr.mxu0 0.0
  %5246 = vmatpush1.msra.mxu0 0.0
  %5247 = vmatprep.subr.mxu0 0.0
  %5248 = vmatpush1.msra.mxu0 0.0
  %5249 = vmatprep.subr.mxu0 0.0
  %5250 = vmatpush1.msra.mxu0 0.0
  %5251 = vmatprep.subr.mxu0 0.0
  %5252 = vmatpush1.msra.mxu0 0.0
  %5253 = vmatprep.subr.mxu0 0.0
  %5254 = vmatpush1.msra.mxu0 0.0
  %5255 = vmatprep.subr.mxu0 0.0
  %5256 = vmatpush1.msra.mxu0 0.0
  %5257 = vmatprep.subr.mxu0 0.0
  %5258 = vmatpush1.msra.mxu0 0.0
  %5259 = vmatprep.subr.mxu0 0.0
  %5260 = vmatpush1.msra.mxu0 0.0
  %5261 = vmatprep.subr.mxu0 0.0
  %5262 = vmatpush1.msra.mxu0 0.0
  %5263 = vmatprep.subr.mxu0 0.0
  %5264 = vmatpush1.msra.mxu0 0.0
  %5265 = vmatprep.subr.mxu0 0.0
  %5266 = vmatpush1.msra.mxu0 0.0
  %5267 = vmatprep.subr.mxu0 0.0
  %5268 = vmatpush1.msra.mxu0 %v4944
  %5269 = vmatprep.subr.mxu0 0.0
  %5270 = vmatpush2.msra.mxu0 0.0
  %5271 = vmatprep.subr.mxu0 0.0
  %5272 = vmatpush2.msra.mxu0 0.0
  %5273 = vmatprep.subr.mxu0 0.0
  %5274 = vmatpush2.msra.mxu0 0.0
  %5275 = vmatprep.subr.mxu0 0.0
  %5276 = vmatpush2.msra.mxu0 0.0
  %5277 = vmatprep.subr.mxu0 0.0
  %5278 = vmatpush2.msra.mxu0 0.0
  %5279 = vmatprep.subr.mxu0 0.0
  %5280 = vmatpush2.msra.mxu0 0.0
  %5281 = vmatprep.subr.mxu0 0.0
  %5282 = vmatpush2.msra.mxu0 0.0
  %5283 = vmatprep.subr.mxu0 0.0
  %5284 = vmatpush2.msra.mxu0 0.0
  %5285 = vmatprep.subr.mxu0 0.0
  %5286 = vmatpush2.msra.mxu0 0.0
  %5287 = vmatprep.subr.mxu0 0.0
  %5288 = vmatpush2.msra.mxu0 0.0
  %5289 = vmatprep.subr.mxu0 0.0
  %5290 = vmatpush2.msra.mxu0 0.0
  %5291 = vmatprep.subr.mxu0 0.0
  %5292 = vmatpush2.msra.mxu0 0.0
  %5293 = vmatprep.subr.mxu0 0.0
  %5294 = vmatpush2.msra.mxu0 0.0
  %5295 = vmatprep.subr.mxu0 0.0
  %5296 = vmatpush2.msra.mxu0 0.0
  %5297 = vmatprep.subr.mxu0 0.0
  %5298 = vmatpush2.msra.mxu0 0.0
  %5299 = vmatprep.subr.mxu0 0.0
  %5300 = vmatpush2.msra.mxu0 0.0
  %5301 = vmatprep.mubr.f32.mxu0 0.0
  %5302 = vmatmul.mubr.f32.gmra.mxu0 %v474
  %v5303 = vpop.f32.mrf.mxu0
  %v5304 = vadd.f32 0.0, %v5303
  %v5305 = vpop.f32.mrf.mxu0
  %5306 = vdwg.mxu0
  %v5308 = vsel %vm550, %v5236, 0
  %5310 = vmatprep.subr.mxu0 0.0
  %5311 = vmatpush1.msra.mxu0 0.0
  %5312 = vmatprep.subr.mxu0 0.0
  %5313 = vmatpush1.msra.mxu0 0.0
  %5314 = vmatprep.subr.mxu0 0.0
  %5315 = vmatpush1.msra.mxu0 0.0
  %5316 = vmatprep.subr.mxu0 0.0
  %5317 = vmatpush1.msra.mxu0 0.0
  %5318 = vmatprep.subr.mxu0 0.0
  %5319 = vmatpush1.msra.mxu0 0.0
  %5320 = vmatprep.subr.mxu0 0.0
  %5321 = vmatpush1.msra.mxu0 0.0
  %5322 = vmatprep.subr.mxu0 0.0
  %5323 = vmatpush1.msra.mxu0 0.0
  %5324 = vmatprep.subr.mxu0 0.0
  %5325 = vmatpush1.msra.mxu0 0.0
  %5326 = vmatprep.subr.mxu0 0.0
  %5327 = vmatpush1.msra.mxu0 0.0
  %5328 = vmatprep.subr.mxu0 0.0
  %5329 = vmatpush1.msra.mxu0 0.0
  %5330 = vmatprep.subr.mxu0 0.0
  %5331 = vmatpush1.msra.mxu0 0.0
  %5332 = vmatprep.subr.mxu0 0.0
  %5333 = vmatpush1.msra.mxu0 0.0
  %5334 = vmatprep.subr.mxu0 0.0
  %5335 = vmatpush1.msra.mxu0 0.0
  %5336 = vmatprep.subr.mxu0 0.0
  %5337 = vmatpush1.msra.mxu0 0.0
  %5338 = vmatprep.subr.mxu0 0.0
  %5339 = vmatpush1.msra.mxu0 0.0
  %5340 = vmatprep.subr.mxu0 0.0
  %5341 = vmatpush1.msra.mxu0 %v5308
  %5342 = vmatprep.subr.mxu0 0.0
  %5343 = vmatpush2.msra.mxu0 0.0
  %5344 = vmatprep.subr.mxu0 0.0
  %5345 = vmatpush2.msra.mxu0 0.0
  %5346 = vmatprep.subr.mxu0 0.0
  %5347 = vmatpush2.msra.mxu0 0.0
  %5348 = vmatprep.subr.mxu0 0.0
  %5349 = vmatpush2.msra.mxu0 0.0
  %5350 = vmatprep.subr.mxu0 0.0
  %5351 = vmatpush2.msra.mxu0 0.0
  %5352 = vmatprep.subr.mxu0 0.0
  %5353 = vmatpush2.msra.mxu0 0.0
  %5354 = vmatprep.subr.mxu0 0.0
  %5355 = vmatpush2.msra.mxu0 0.0
  %5356 = vmatprep.subr.mxu0 0.0
  %5357 = vmatpush2.msra.mxu0 0.0
  %5358 = vmatprep.subr.mxu0 0.0
  %5359 = vmatpush2.msra.mxu0 0.0
  %5360 = vmatprep.subr.mxu0 0.0
  %5361 = vmatpush2.msra.mxu0 0.0
  %5362 = vmatprep.subr.mxu0 0.0
  %5363 = vmatpush2.msra.mxu0 0.0
  %5364 = vmatprep.subr.mxu0 0.0
  %5365 = vmatpush2.msra.mxu0 0.0
  %5366 = vmatprep.subr.mxu0 0.0
  %5367 = vmatpush2.msra.mxu0 0.0
  %5368 = vmatprep.subr.mxu0 0.0
  %5369 = vmatpush2.msra.mxu0 0.0
  %5370 = vmatprep.subr.mxu0 0.0
  %5371 = vmatpush2.msra.mxu0 0.0
  %5372 = vmatprep.subr.mxu0 0.0
  %5373 = vmatpush2.msra.mxu0 0.0
  %5374 = vmatprep.mubr.f32.mxu0 0.0
  %5375 = vmatmul.mubr.f32.gmra.mxu0 %v548
  %v5376 = vpop.f32.mrf.mxu0
  %v5377 = vadd.f32 0.0, %v5376
  %v5378 = vpop.f32.mrf.mxu0
  %5379 = vdwg.mxu0
  %5380 = vmatprep.subr.mxu0 0.0
  %5381 = vmatpush1.msra.mxu0 0.0
  %5382 = vmatprep.subr.mxu0 0.0
  %5383 = vmatpush1.msra.mxu0 0.0
  %5384 = vmatprep.subr.mxu0 0.0
  %5385 = vmatpush1.msra.mxu0 0.0
  %5386 = vmatprep.subr.mxu0 0.0
  %5387 = vmatpush1.msra.mxu0 0.0
  %5388 = vmatprep.subr.mxu0 0.0
  %5389 = vmatpush1.msra.mxu0 0.0
  %5390 = vmatprep.subr.mxu0 0.0
  %5391 = vmatpush1.msra.mxu0 0.0
  %5392 = vmatprep.subr.mxu0 0.0
  %5393 = vmatpush1.msra.mxu0 0.0
  %5394 = vmatprep.subr.mxu0 0.0
  %5395 = vmatpush1.msra.mxu0 0.0
  %5396 = vmatprep.subr.mxu0 0.0
  %5397 = vmatpush1.msra.mxu0 0.0
  %5398 = vmatprep.subr.mxu0 0.0
  %5399 = vmatpush1.msra.mxu0 0.0
  %5400 = vmatprep.subr.mxu0 0.0
  %5401 = vmatpush1.msra.mxu0 0.0
  %5402 = vmatprep.subr.mxu0 0.0
  %5403 = vmatpush1.msra.mxu0 0.0
  %5404 = vmatprep.subr.mxu0 0.0
  %5405 = vmatpush1.msra.mxu0 0.0
  %5406 = vmatprep.subr.mxu0 0.0
  %5407 = vmatpush1.msra.mxu0 0.0
  %5408 = vmatprep.subr.mxu0 0.0
  %5409 = vmatpush1.msra.mxu0 0.0
  %5410 = vmatprep.subr.mxu0 0.0
  %5411 = vmatpush1.msra.mxu0 %v4945
  %5412 = vmatprep.subr.mxu0 0.0
  %5413 = vmatpush2.msra.mxu0 0.0
  %5414 = vmatprep.subr.mxu0 0.0
  %5415 = vmatpush2.msra.mxu0 0.0
  %5416 = vmatprep.subr.mxu0 0.0
  %5417 = vmatpush2.msra.mxu0 0.0
  %5418 = vmatprep.subr.mxu0 0.0
  %5419 = vmatpush2.msra.mxu0 0.0
  %5420 = vmatprep.subr.mxu0 0.0
  %5421 = vmatpush2.msra.mxu0 0.0
  %5422 = vmatprep.subr.mxu0 0.0
  %5423 = vmatpush2.msra.mxu0 0.0
  %5424 = vmatprep.subr.mxu0 0.0
  %5425 = vmatpush2.msra.mxu0 0.0
  %5426 = vmatprep.subr.mxu0 0.0
  %5427 = vmatpush2.msra.mxu0 0.0
  %5428 = vmatprep.subr.mxu0 0.0
  %5429 = vmatpush2.msra.mxu0 0.0
  %5430 = vmatprep.subr.mxu0 0.0
  %5431 = vmatpush2.msra.mxu0 0.0
  %5432 = vmatprep.subr.mxu0 0.0
  %5433 = vmatpush2.msra.mxu0 0.0
  %5434 = vmatprep.subr.mxu0 0.0
  %5435 = vmatpush2.msra.mxu0 0.0
  %5436 = vmatprep.subr.mxu0 0.0
  %5437 = vmatpush2.msra.mxu0 0.0
  %5438 = vmatprep.subr.mxu0 0.0
  %5439 = vmatpush2.msra.mxu0 0.0
  %5440 = vmatprep.subr.mxu0 0.0
  %5441 = vmatpush2.msra.mxu0 0.0
  %5442 = vmatprep.subr.mxu0 0.0
  %5443 = vmatpush2.msra.mxu0 0.0
  %5444 = vmatprep.mubr.f32.mxu0 0.0
  %5445 = vmatmul.mubr.f32.gmra.mxu0 %v625
  %v5446 = vpop.f32.mrf.mxu0
  %v5447 = vadd.f32 0.0, %v5446
  %v5448 = vpop.f32.mrf.mxu0
  %5449 = vdwg.mxu0
  %v5450 = vrot.slane %v5236, 4
  %v5451 = vsel %vm550, %v5450, 0
  %5453 = vmatprep.subr.mxu0 0.0
  %5454 = vmatpush1.msra.mxu0 0.0
  %5455 = vmatprep.subr.mxu0 0.0
  %5456 = vmatpush1.msra.mxu0 0.0
  %5457 = vmatprep.subr.mxu0 0.0
  %5458 = vmatpush1.msra.mxu0 0.0
  %5459 = vmatprep.subr.mxu0 0.0
  %5460 = vmatpush1.msra.mxu0 0.0
  %5461 = vmatprep.subr.mxu0 0.0
  %5462 = vmatpush1.msra.mxu0 0.0
  %5463 = vmatprep.subr.mxu0 0.0
  %5464 = vmatpush1.msra.mxu0 0.0
  %5465 = vmatprep.subr.mxu0 0.0
  %5466 = vmatpush1.msra.mxu0 0.0
  %5467 = vmatprep.subr.mxu0 0.0
  %5468 = vmatpush1.msra.mxu0 0.0
  %5469 = vmatprep.subr.mxu0 0.0
  %5470 = vmatpush1.msra.mxu0 0.0
  %5471 = vmatprep.subr.mxu0 0.0
  %5472 = vmatpush1.msra.mxu0 0.0
  %5473 = vmatprep.subr.mxu0 0.0
  %5474 = vmatpush1.msra.mxu0 0.0
  %5475 = vmatprep.subr.mxu0 0.0
  %5476 = vmatpush1.msra.mxu0 0.0
  %5477 = vmatprep.subr.mxu0 0.0
  %5478 = vmatpush1.msra.mxu0 0.0
  %5479 = vmatprep.subr.mxu0 0.0
  %5480 = vmatpush1.msra.mxu0 0.0
  %5481 = vmatprep.subr.mxu0 0.0
  %5482 = vmatpush1.msra.mxu0 0.0
  %5483 = vmatprep.subr.mxu0 0.0
  %5484 = vmatpush1.msra.mxu0 %v5451
  %5485 = vmatprep.subr.mxu0 0.0
  %5486 = vmatpush2.msra.mxu0 0.0
  %5487 = vmatprep.subr.mxu0 0.0
  %5488 = vmatpush2.msra.mxu0 0.0
  %5489 = vmatprep.subr.mxu0 0.0
  %5490 = vmatpush2.msra.mxu0 0.0
  %5491 = vmatprep.subr.mxu0 0.0
  %5492 = vmatpush2.msra.mxu0 0.0
  %5493 = vmatprep.subr.mxu0 0.0
  %5494 = vmatpush2.msra.mxu0 0.0
  %5495 = vmatprep.subr.mxu0 0.0
  %5496 = vmatpush2.msra.mxu0 0.0
  %5497 = vmatprep.subr.mxu0 0.0
  %5498 = vmatpush2.msra.mxu0 0.0
  %5499 = vmatprep.subr.mxu0 0.0
  %5500 = vmatpush2.msra.mxu0 0.0
  %5501 = vmatprep.subr.mxu0 0.0
  %5502 = vmatpush2.msra.mxu0 0.0
  %5503 = vmatprep.subr.mxu0 0.0
  %5504 = vmatpush2.msra.mxu0 0.0
  %5505 = vmatprep.subr.mxu0 0.0
  %5506 = vmatpush2.msra.mxu0 0.0
  %5507 = vmatprep.subr.mxu0 0.0
  %5508 = vmatpush2.msra.mxu0 0.0
  %5509 = vmatprep.subr.mxu0 0.0
  %5510 = vmatpush2.msra.mxu0 0.0
  %5511 = vmatprep.subr.mxu0 0.0
  %5512 = vmatpush2.msra.mxu0 0.0
  %5513 = vmatprep.subr.mxu0 0.0
  %5514 = vmatpush2.msra.mxu0 0.0
  %5515 = vmatprep.subr.mxu0 0.0
  %5516 = vmatpush2.msra.mxu0 0.0
  %5517 = vmatprep.mubr.f32.mxu0 0.0
  %5518 = vmatmul.mubr.f32.gmra.mxu0 %v699
  %v5519 = vpop.f32.mrf.mxu0
  %v5520 = vadd.f32 0.0, %v5519
  %v5521 = vpop.f32.mrf.mxu0
  %5522 = vdwg.mxu0
  %5523 = vmatprep.subr.mxu0 0.0
  %5524 = vmatpush1.msra.mxu0 0.0
  %5525 = vmatprep.subr.mxu0 0.0
  %5526 = vmatpush1.msra.mxu0 0.0
  %5527 = vmatprep.subr.mxu0 0.0
  %5528 = vmatpush1.msra.mxu0 0.0
  %5529 = vmatprep.subr.mxu0 0.0
  %5530 = vmatpush1.msra.mxu0 0.0
  %5531 = vmatprep.subr.mxu0 0.0
  %5532 = vmatpush1.msra.mxu0 0.0
  %5533 = vmatprep.subr.mxu0 0.0
  %5534 = vmatpush1.msra.mxu0 0.0
  %5535 = vmatprep.subr.mxu0 0.0
  %5536 = vmatpush1.msra.mxu0 0.0
  %5537 = vmatprep.subr.mxu0 0.0
  %5538 = vmatpush1.msra.mxu0 0.0
  %5539 = vmatprep.subr.mxu0 0.0
  %5540 = vmatpush1.msra.mxu0 0.0
  %5541 = vmatprep.subr.mxu0 0.0
  %5542 = vmatpush1.msra.mxu0 0.0
  %5543 = vmatprep.subr.mxu0 0.0
  %5544 = vmatpush1.msra.mxu0 0.0
  %5545 = vmatprep.subr.mxu0 0.0
  %5546 = vmatpush1.msra.mxu0 0.0
  %5547 = vmatprep.subr.mxu0 0.0
  %5548 = vmatpush1.msra.mxu0 0.0
  %5549 = vmatprep.subr.mxu0 0.0
  %5550 = vmatpush1.msra.mxu0 0.0
  %5551 = vmatprep.subr.mxu0 0.0
  %5552 = vmatpush1.msra.mxu0 0.0
  %5553 = vmatprep.subr.mxu0 0.0
  %5554 = vmatpush1.msra.mxu0 %v5091
  %5555 = vmatprep.subr.mxu0 0.0
  %5556 = vmatpush2.msra.mxu0 0.0
  %5557 = vmatprep.subr.mxu0 0.0
  %5558 = vmatpush2.msra.mxu0 0.0
  %5559 = vmatprep.subr.mxu0 0.0
  %5560 = vmatpush2.msra.mxu0 0.0
  %5561 = vmatprep.subr.mxu0 0.0
  %5562 = vmatpush2.msra.mxu0 0.0
  %5563 = vmatprep.subr.mxu0 0.0
  %5564 = vmatpush2.msra.mxu0 0.0
  %5565 = vmatprep.subr.mxu0 0.0
  %5566 = vmatpush2.msra.mxu0 0.0
  %5567 = vmatprep.subr.mxu0 0.0
  %5568 = vmatpush2.msra.mxu0 0.0
  %5569 = vmatprep.subr.mxu0 0.0
  %5570 = vmatpush2.msra.mxu0 0.0
  %5571 = vmatprep.subr.mxu0 0.0
  %5572 = vmatpush2.msra.mxu0 0.0
  %5573 = vmatprep.subr.mxu0 0.0
  %5574 = vmatpush2.msra.mxu0 0.0
  %5575 = vmatprep.subr.mxu0 0.0
  %5576 = vmatpush2.msra.mxu0 0.0
  %5577 = vmatprep.subr.mxu0 0.0
  %5578 = vmatpush2.msra.mxu0 0.0
  %5579 = vmatprep.subr.mxu0 0.0
  %5580 = vmatpush2.msra.mxu0 0.0
  %5581 = vmatprep.subr.mxu0 0.0
  %5582 = vmatpush2.msra.mxu0 0.0
  %5583 = vmatprep.subr.mxu0 0.0
  %5584 = vmatpush2.msra.mxu0 0.0
  %5585 = vmatprep.subr.mxu0 0.0
  %5586 = vmatpush2.msra.mxu0 0.0
  %5587 = vmatprep.mubr.f32.mxu0 0.0
  %5588 = vmatmul.mubr.f32.gmra.mxu0 %v774
  %v5589 = vpop.f32.mrf.mxu0
  %v5590 = vadd.f32 0.0, %v5589
  %v5591 = vpop.f32.mrf.mxu0
  %5592 = vdwg.mxu0
  %5595 = vrot.lane.b32.xlu0 %v5304, 32
  %v5596 = vpop.permute.xlu0 %5595
  %5597 = vrot.lane.b32.xlu0 %v5447, 32
  %v5598 = vpop.permute.xlu0 %5597
  %5602 = vrot.lane.b32.xlu0 %v4944, 64
  %v5603 = vpop.permute.xlu0 %5602
  %5604 = vrot.lane.b32.xlu0 %v4945, 64
  %v5605 = vpop.permute.xlu0 %5604
  %v5608 = vsel %vm58, %v5377, %v5596
  %v5609 = vsel %vm58, %v5520, %v5598
  %v5610 = vsel %vm863, %v5608, %v5603
  %v5611 = vsel %vm863, %v5609, %v5605
  %v5613 = vsel %vm866, %v5610, 0
  %v5616 = vsel %vm866, %v5611, 0
  %5618 = vmatprep.subr.mxu0 0.0
  %5619 = vmatpush1.msra.mxu0 0.0
  %5620 = vmatprep.subr.mxu0 0.0
  %5621 = vmatpush1.msra.mxu0 0.0
  %5622 = vmatprep.subr.mxu0 0.0
  %5623 = vmatpush1.msra.mxu0 0.0
  %5624 = vmatprep.subr.mxu0 0.0
  %5625 = vmatpush1.msra.mxu0 0.0
  %5626 = vmatprep.subr.mxu0 0.0
  %5627 = vmatpush1.msra.mxu0 %v82
  %5628 = vmatprep.subr.mxu0 0.0
  %5629 = vmatpush1.msra.mxu0 %v81
  %5630 = vmatprep.subr.mxu0 0.0
  %5631 = vmatpush1.msra.mxu0 %v80
  %5632 = vmatprep.subr.mxu0 0.0
  %5633 = vmatpush1.msra.mxu0 %v79
  %5634 = vmatprep.subr.mxu0 0.0
  %5635 = vmatpush1.msra.mxu0 %v78
  %5636 = vmatprep.subr.mxu0 0.0
  %5637 = vmatpush1.msra.mxu0 %v77
  %5638 = vmatprep.subr.mxu0 0.0
  %5639 = vmatpush1.msra.mxu0 %v76
  %5640 = vmatprep.subr.mxu0 0.0
  %5641 = vmatpush1.msra.mxu0 %v75
  %5642 = vmatprep.subr.mxu0 0.0
  %5643 = vmatpush1.msra.mxu0 %v74
  %5644 = vmatprep.subr.mxu0 0.0
  %5645 = vmatpush1.msra.mxu0 %v73
  %5646 = vmatprep.subr.mxu0 0.0
  %5647 = vmatpush1.msra.mxu0 %v72
  %5648 = vmatprep.subr.mxu0 0.0
  %5649 = vmatpush1.msra.mxu0 %v71
  %5650 = vmatprep.subr.mxu0 0.0
  %5651 = vmatpush2.msra.mxu0 0.0
  %5652 = vmatprep.subr.mxu0 0.0
  %5653 = vmatpush2.msra.mxu0 0.0
  %5654 = vmatprep.subr.mxu0 0.0
  %5655 = vmatpush2.msra.mxu0 0.0
  %5656 = vmatprep.subr.mxu0 0.0
  %5657 = vmatpush2.msra.mxu0 0.0
  %5658 = vmatprep.subr.mxu0 0.0
  %5659 = vmatpush2.msra.mxu0 0.0
  %5660 = vmatprep.subr.mxu0 0.0
  %5661 = vmatpush2.msra.mxu0 0.0
  %5662 = vmatprep.subr.mxu0 0.0
  %5663 = vmatpush2.msra.mxu0 0.0
  %5664 = vmatprep.subr.mxu0 0.0
  %5665 = vmatpush2.msra.mxu0 0.0
  %5666 = vmatprep.subr.mxu0 0.0
  %5667 = vmatpush2.msra.mxu0 0.0
  %5668 = vmatprep.subr.mxu0 0.0
  %5669 = vmatpush2.msra.mxu0 0.0
  %5670 = vmatprep.subr.mxu0 0.0
  %5671 = vmatpush2.msra.mxu0 0.0
  %5672 = vmatprep.subr.mxu0 0.0
  %5673 = vmatpush2.msra.mxu0 0.0
  %5674 = vmatprep.subr.mxu0 0.0
  %5675 = vmatpush2.msra.mxu0 0.0
  %5676 = vmatprep.subr.mxu0 0.0
  %5677 = vmatpush2.msra.mxu0 0.0
  %5678 = vmatprep.subr.mxu0 0.0
  %5679 = vmatpush2.msra.mxu0 0.0
  %5680 = vmatprep.subr.mxu0 0.0
  %5681 = vmatpush2.msra.mxu0 0.0
  %5682 = vmatprep.mubr.f32.mxu0 0.0
  %5683 = vmatmul.mubr.f32.gmra.mxu0 %v5613
  %v5684 = vpop.f32.mrf.mxu0
  %v5685 = vadd.f32 %v96, %v5684
  %v5686 = vpop.f32.mrf.mxu0
  %5687 = vmatprep.mubr.f32.mxu0 0.0
  %5688 = vmatmul.mubr.f32.gmra.mxu0 %v5616
  %v5689 = vpop.f32.mrf.mxu0
  %v5690 = vadd.f32 %v96, %v5689
  %v5691 = vpop.f32.mrf.mxu0
  %5692 = vdwg.mxu0
  %5693 = vrot.lane.b32.xlu0 %v4946, 32
  %v5694 = vpop.permute.xlu0 %5693
  %v5696 = vsel %vm58, %v5590, %v5694
  %v5698 = vsel %vm863, %v5696, 0
  %5700 = vmatprep.subr.mxu0 0.0
  %5701 = vmatpush1.msra.mxu0 0.0
  %5702 = vmatprep.subr.mxu0 0.0
  %5703 = vmatpush1.msra.mxu0 0.0
  %5704 = vmatprep.subr.mxu0 0.0
  %5705 = vmatpush1.msra.mxu0 0.0
  %5706 = vmatprep.subr.mxu0 0.0
  %5707 = vmatpush1.msra.mxu0 0.0
  %5708 = vmatprep.subr.mxu0 0.0
  %5709 = vmatpush1.msra.mxu0 0.0
  %5710 = vmatprep.subr.mxu0 0.0
  %5711 = vmatpush1.msra.mxu0 0.0
  %5712 = vmatprep.subr.mxu0 0.0
  %5713 = vmatpush1.msra.mxu0 0.0
  %5714 = vmatprep.subr.mxu0 0.0
  %5715 = vmatpush1.msra.mxu0 0.0
  %5716 = vmatprep.subr.mxu0 0.0
  %5717 = vmatpush1.msra.mxu0 %v90
  %5718 = vmatprep.subr.mxu0 0.0
  %5719 = vmatpush1.msra.mxu0 %v89
  %5720 = vmatprep.subr.mxu0 0.0
  %5721 = vmatpush1.msra.mxu0 %v88
  %5722 = vmatprep.subr.mxu0 0.0
  %5723 = vmatpush1.msra.mxu0 %v87
  %5724 = vmatprep.subr.mxu0 0.0
  %5725 = vmatpush1.msra.mxu0 %v86
  %5726 = vmatprep.subr.mxu0 0.0
  %5727 = vmatpush1.msra.mxu0 %v85
  %5728 = vmatprep.subr.mxu0 0.0
  %5729 = vmatpush1.msra.mxu0 %v84
  %5730 = vmatprep.subr.mxu0 0.0
  %5731 = vmatpush1.msra.mxu0 %v83
  %5732 = vmatprep.subr.mxu0 0.0
  %5733 = vmatpush2.msra.mxu0 0.0
  %5734 = vmatprep.subr.mxu0 0.0
  %5735 = vmatpush2.msra.mxu0 0.0
  %5736 = vmatprep.subr.mxu0 0.0
  %5737 = vmatpush2.msra.mxu0 0.0
  %5738 = vmatprep.subr.mxu0 0.0
  %5739 = vmatpush2.msra.mxu0 0.0
  %5740 = vmatprep.subr.mxu0 0.0
  %5741 = vmatpush2.msra.mxu0 0.0
  %5742 = vmatprep.subr.mxu0 0.0
  %5743 = vmatpush2.msra.mxu0 0.0
  %5744 = vmatprep.subr.mxu0 0.0
  %5745 = vmatpush2.msra.mxu0 0.0
  %5746 = vmatprep.subr.mxu0 0.0
  %5747 = vmatpush2.msra.mxu0 0.0
  %5748 = vmatprep.subr.mxu0 0.0
  %5749 = vmatpush2.msra.mxu0 0.0
  %5750 = vmatprep.subr.mxu0 0.0
  %5751 = vmatpush2.msra.mxu0 0.0
  %5752 = vmatprep.subr.mxu0 0.0
  %5753 = vmatpush2.msra.mxu0 0.0
  %5754 = vmatprep.subr.mxu0 0.0
  %5755 = vmatpush2.msra.mxu0 0.0
  %5756 = vmatprep.subr.mxu0 0.0
  %5757 = vmatpush2.msra.mxu0 0.0
  %5758 = vmatprep.subr.mxu0 0.0
  %5759 = vmatpush2.msra.mxu0 0.0
  %5760 = vmatprep.subr.mxu0 0.0
  %5761 = vmatpush2.msra.mxu0 0.0
  %5762 = vmatprep.subr.mxu0 0.0
  %5763 = vmatpush2.msra.mxu0 0.0
  %5764 = vmatprep.mubr.f32.mxu0 0.0
  %5765 = vmatmul.mubr.f32.gmra.mxu0 %v5698
  %v5766 = vpop.f32.mrf.mxu0
  %v5767 = vadd.f32 %v103, %v5766
  %v5768 = vpop.f32.mrf.mxu0
  %5769 = vdwg.mxu0
  %v5770 = vld [vmem:[#allocation3] sm:$0xff]
  %v5771 = vld [vmem:[#allocation3 + $0x8] sm:$0xff]
  %v5772 = vmul.f32 %v5685, %v178
  %v5773 = vmul.f32 %v5690, %v178
  %v5774 = vxor.u32 %v5772, 2147483648
  %v5775 = vxor.u32 %v5773, 2147483648
  %v5776 = vmul.f32 %v5774, 1.442695
  %v5777 = vpow.pop %v5776
  %v5778 = vmul.f32 %v5775, 1.442695
  %v5779 = vpow.pop %v5778
  %v5780 = vadd.f32 %v5777, 1.0
  %v5781 = vadd.f32 %v5779, 1.0
  %v5782 = vrcp.pop %v5780
  %v5783 = vmul.f32 1.0, %v5782
  %v5784 = vrcp.pop %v5781
  %v5785 = vmul.f32 1.0, %v5784
  %v5786 = vmul.f32 %v5783, 2.0
  %v5787 = vmul.f32 %v5785, 2.0
  %v5788 = vsub.f32 %v5786, 1.0
  %v5789 = vsub.f32 %v5787, 1.0
  %5792 = vrot.lane.b32.xlu0 %v5770, 32
  %v5793 = vpop.permute.xlu0 %5792
  %5794 = vrot.lane.b32.xlu0 %v5771, 32
  %v5795 = vpop.permute.xlu0 %5794
  %v5798 = vmul.f32 %v5783, %v5793
  %v5799 = vmul.f32 %v5785, %v5795
  %5802 = vrot.lane.b32.xlu0 %v5788, 64
  %v5803 = vpop.permute.xlu0 %5802
  %5804 = vrot.lane.b32.xlu0 %v5789, 64
  %v5805 = vpop.permute.xlu0 %5804
  %v5808 = vmul.f32 %v5783, %v5803
  %v5809 = vmul.f32 %v5785, %v5805
  %5812 = vrot.lane.b32.xlu0 %v5808, 32
  %v5813 = vpop.permute.xlu0 %5812
  %5814 = vrot.lane.b32.xlu0 %v5809, 32
  %v5815 = vpop.permute.xlu0 %5814
  %v5818 = vadd.f32 %v5798, %v5813
  %v5819 = vadd.f32 %v5799, %v5815
  %v5820 = vtanh.pop %v5818
  %v5821 = vtanh.pop %v5819
  %5824 = vrot.lane.b32.xlu0 %v5820, 64
  %v5825 = vpop.permute.xlu0 %5824
  %5826 = vrot.lane.b32.xlu0 %v5821, 64
  %v5827 = vpop.permute.xlu0 %5826
  %v5830 = vmul.f32 %v5783, %v5825
  %v5831 = vmul.f32 %v5785, %v5827
  %v5832 = vld [vmem:[#allocation4] sm:$0xff]
  %v5833 = vmul.f32 %v5767, %v178
  %v5834 = vxor.u32 %v5833, 2147483648
  %v5835 = vmul.f32 %v5834, 1.442695
  %v5836 = vpow.pop %v5835
  %v5837 = vadd.f32 %v5836, 1.0
  %v5838 = vrcp.pop %v5837
  %v5839 = vmul.f32 1.0, %v5838
  %v5840 = vmul.f32 %v5839, 2.0
  %v5841 = vsub.f32 %v5840, 1.0
  %5843 = vrot.lane.b32.xlu0 %v5832, 32
  %v5844 = vpop.permute.xlu0 %5843
  %v5846 = vmul.f32 %v5839, %v5844
  %5848 = vrot.lane.b32.xlu0 %v5841, 64
  %v5849 = vpop.permute.xlu0 %5848
  %v5851 = vmul.f32 %v5839, %v5849
  %5853 = vrot.lane.b32.xlu0 %v5851, 32
  %v5854 = vpop.permute.xlu0 %5853
  %v5856 = vadd.f32 %v5846, %v5854
  %v5857 = vtanh.pop %v5856
  %5859 = vrot.lane.b32.xlu0 %v5857, 64
  %v5860 = vpop.permute.xlu0 %5859
  %v5862 = vmul.f32 %v5839, %v5860
  %5865 = vrot.lane.b32.xlu0 %v5830, 32
  %v5866 = vpop.permute.xlu0 %5865
  %5867 = vrot.lane.b32.xlu0 %v5831, 32
  %v5868 = vpop.permute.xlu0 %5867
  %5871 = vst.msk [vmem:[%s17] sm:$0xff] %vm58, %v5866
  %5872 = vst.msk [vmem:[%s17 + $0x8] sm:$0xff] %vm58, %v5868
  %5875 = vrot.lane.b32.xlu0 %v5818, 96
  %v5876 = vpop.permute.xlu0 %5875
  %5877 = vrot.lane.b32.xlu0 %v5819, 96
  %v5878 = vpop.permute.xlu0 %5877
  %5881 = vst.msk [vmem:[#allocation3] sm:$0xff] %vm58, %v5876
  %5882 = vst.msk [vmem:[#allocation3 + $0x8] sm:$0xff] %vm58, %v5878
  %5884 = vrot.lane.b32.xlu0 %v5862, 32
  %v5885 = vpop.permute.xlu0 %5884
  %5887 = vst.msk [vmem:[#allocation2] sm:$0xff] %vm58, %v5885
  %5889 = vrot.lane.b32.xlu0 %v5856, 96
  %v5890 = vpop.permute.xlu0 %5889
  %5892 = vst.msk [vmem:[#allocation4] sm:$0xff] %vm58, %v5890
  %v5893 = vld [vmem:[%s17] sm:$0xff]
  %v5894 = vld [vmem:[%s17 + $0x8] sm:$0xff]
  %v5895 = vld [vmem:[#allocation2] sm:$0xff]
  %v5897 = vsel %vm58, %v5894, 0
  %5899 = vmatprep.subr.mxu0 0.0
  %5900 = vmatpush1.msra.mxu0 0.0
  %5901 = vmatprep.subr.mxu0 0.0
  %5902 = vmatpush1.msra.mxu0 0.0
  %5903 = vmatprep.subr.mxu0 0.0
  %5904 = vmatpush1.msra.mxu0 0.0
  %5905 = vmatprep.subr.mxu0 0.0
  %5906 = vmatpush1.msra.mxu0 0.0
  %5907 = vmatprep.subr.mxu0 0.0
  %5908 = vmatpush1.msra.mxu0 0.0
  %5909 = vmatprep.subr.mxu0 0.0
  %5910 = vmatpush1.msra.mxu0 0.0
  %5911 = vmatprep.subr.mxu0 0.0
  %5912 = vmatpush1.msra.mxu0 0.0
  %5913 = vmatprep.subr.mxu0 0.0
  %5914 = vmatpush1.msra.mxu0 0.0
  %5915 = vmatprep.subr.mxu0 0.0
  %5916 = vmatpush1.msra.mxu0 0.0
  %5917 = vmatprep.subr.mxu0 0.0
  %5918 = vmatpush1.msra.mxu0 0.0
  %5919 = vmatprep.subr.mxu0 0.0
  %5920 = vmatpush1.msra.mxu0 0.0
  %5921 = vmatprep.subr.mxu0 0.0
  %5922 = vmatpush1.msra.mxu0 0.0
  %5923 = vmatprep.subr.mxu0 0.0
  %5924 = vmatpush1.msra.mxu0 %v128
  %5925 = vmatprep.subr.mxu0 0.0
  %5926 = vmatpush1.msra.mxu0 %v127
  %5927 = vmatprep.subr.mxu0 0.0
  %5928 = vmatpush1.msra.mxu0 %v126
  %5929 = vmatprep.subr.mxu0 0.0
  %5930 = vmatpush1.msra.mxu0 %v125
  %5931 = vmatprep.subr.mxu0 0.0
  %5932 = vmatpush2.msra.mxu0 0.0
  %5933 = vmatprep.subr.mxu0 0.0
  %5934 = vmatpush2.msra.mxu0 0.0
  %5935 = vmatprep.subr.mxu0 0.0
  %5936 = vmatpush2.msra.mxu0 0.0
  %5937 = vmatprep.subr.mxu0 0.0
  %5938 = vmatpush2.msra.mxu0 0.0
  %5939 = vmatprep.subr.mxu0 0.0
  %5940 = vmatpush2.msra.mxu0 0.0
  %5941 = vmatprep.subr.mxu0 0.0
  %5942 = vmatpush2.msra.mxu0 0.0
  %5943 = vmatprep.subr.mxu0 0.0
  %5944 = vmatpush2.msra.mxu0 0.0
  %5945 = vmatprep.subr.mxu0 0.0
  %5946 = vmatpush2.msra.mxu0 0.0
  %5947 = vmatprep.subr.mxu0 0.0
  %5948 = vmatpush2.msra.mxu0 0.0
  %5949 = vmatprep.subr.mxu0 0.0
  %5950 = vmatpush2.msra.mxu0 0.0
  %5951 = vmatprep.subr.mxu0 0.0
  %5952 = vmatpush2.msra.mxu0 0.0
  %5953 = vmatprep.subr.mxu0 0.0
  %5954 = vmatpush2.msra.mxu0 0.0
  %5955 = vmatprep.subr.mxu0 0.0
  %5956 = vmatpush2.msra.mxu0 0.0
  %5957 = vmatprep.subr.mxu0 0.0
  %5958 = vmatpush2.msra.mxu0 0.0
  %5959 = vmatprep.subr.mxu0 0.0
  %5960 = vmatpush2.msra.mxu0 0.0
  %5961 = vmatprep.subr.mxu0 0.0
  %5962 = vmatpush2.msra.mxu0 0.0
  %5963 = vmatprep.mubr.f32.mxu0 0.0
  %5964 = vmatmul.mubr.f32.gmra.mxu0 %v5897
  %v5965 = vpop.f32.mrf.mxu0
  %v5966 = vadd.f32 %v164, %v5965
  %v5967 = vpop.f32.mrf.mxu0
  %5968 = vdwg.mxu0
  %v5969 = vmax.f32 %v5966, 0.0
  %5970 = vmatprep.subr.mxu0 0.0
  %5971 = vmatpush1.msra.mxu0 %v144
  %5972 = vmatprep.subr.mxu0 0.0
  %5973 = vmatpush1.msra.mxu0 %v143
  %5974 = vmatprep.subr.mxu0 0.0
  %5975 = vmatpush1.msra.mxu0 %v142
  %5976 = vmatprep.subr.mxu0 0.0
  %5977 = vmatpush1.msra.mxu0 %v141
  %5978 = vmatprep.subr.mxu0 0.0
  %5979 = vmatpush1.msra.mxu0 %v140
  %5980 = vmatprep.subr.mxu0 0.0
  %5981 = vmatpush1.msra.mxu0 %v139
  %5982 = vmatprep.subr.mxu0 0.0
  %5983 = vmatpush1.msra.mxu0 %v138
  %5984 = vmatprep.subr.mxu0 0.0
  %5985 = vmatpush1.msra.mxu0 %v137
  %5986 = vmatprep.subr.mxu0 0.0
  %5987 = vmatpush1.msra.mxu0 %v136
  %5988 = vmatprep.subr.mxu0 0.0
  %5989 = vmatpush1.msra.mxu0 %v135
  %5990 = vmatprep.subr.mxu0 0.0
  %5991 = vmatpush1.msra.mxu0 %v134
  %5992 = vmatprep.subr.mxu0 0.0
  %5993 = vmatpush1.msra.mxu0 %v133
  %5994 = vmatprep.subr.mxu0 0.0
  %5995 = vmatpush1.msra.mxu0 %v132
  %5996 = vmatprep.subr.mxu0 0.0
  %5997 = vmatpush1.msra.mxu0 %v131
  %5998 = vmatprep.subr.mxu0 0.0
  %5999 = vmatpush1.msra.mxu0 %v130
  %6000 = vmatprep.subr.mxu0 0.0
  %6001 = vmatpush1.msra.mxu0 %v129
  %6002 = vmatprep.subr.mxu0 0.0
  %6003 = vmatpush2.msra.mxu0 0.0
  %6004 = vmatprep.subr.mxu0 0.0
  %6005 = vmatpush2.msra.mxu0 0.0
  %6006 = vmatprep.subr.mxu0 0.0
  %6007 = vmatpush2.msra.mxu0 0.0
  %6008 = vmatprep.subr.mxu0 0.0
  %6009 = vmatpush2.msra.mxu0 0.0
  %6010 = vmatprep.subr.mxu0 0.0
  %6011 = vmatpush2.msra.mxu0 0.0
  %6012 = vmatprep.subr.mxu0 0.0
  %6013 = vmatpush2.msra.mxu0 0.0
  %6014 = vmatprep.subr.mxu0 0.0
  %6015 = vmatpush2.msra.mxu0 0.0
  %6016 = vmatprep.subr.mxu0 0.0
  %6017 = vmatpush2.msra.mxu0 0.0
  %6018 = vmatprep.subr.mxu0 0.0
  %6019 = vmatpush2.msra.mxu0 0.0
  %6020 = vmatprep.subr.mxu0 0.0
  %6021 = vmatpush2.msra.mxu0 0.0
  %6022 = vmatprep.subr.mxu0 0.0
  %6023 = vmatpush2.msra.mxu0 0.0
  %6024 = vmatprep.subr.mxu0 0.0
  %6025 = vmatpush2.msra.mxu0 0.0
  %6026 = vmatprep.subr.mxu0 0.0
  %6027 = vmatpush2.msra.mxu0 0.0
  %6028 = vmatprep.subr.mxu0 0.0
  %6029 = vmatpush2.msra.mxu0 0.0
  %6030 = vmatprep.subr.mxu0 0.0
  %6031 = vmatpush2.msra.mxu0 0.0
  %6032 = vmatprep.subr.mxu0 0.0
  %6033 = vmatpush2.msra.mxu0 0.0
  %6034 = vmatprep.mubr.f32.mxu0 0.0
  %6035 = vmatmul.mubr.f32.gmra.mxu0 %v5969
  %v6036 = vpop.f32.mrf.mxu0
  %v6037 = vadd.f32 %v171, %v6036
  %v6038 = vpop.f32.mrf.mxu0
  %6039 = vdwg.mxu0
  %v6040 = vmax.f32 %v6037, 0.0
  %v6042 = vsel %vm58, %v5895, 0
  %6044 = vmatprep.subr.mxu0 0.0
  %6045 = vmatpush1.msra.mxu0 0.0
  %6046 = vmatprep.subr.mxu0 0.0
  %6047 = vmatpush1.msra.mxu0 0.0
  %6048 = vmatprep.subr.mxu0 0.0
  %6049 = vmatpush1.msra.mxu0 0.0
  %6050 = vmatprep.subr.mxu0 0.0
  %6051 = vmatpush1.msra.mxu0 0.0
  %6052 = vmatprep.subr.mxu0 0.0
  %6053 = vmatpush1.msra.mxu0 0.0
  %6054 = vmatprep.subr.mxu0 0.0
  %6055 = vmatpush1.msra.mxu0 0.0
  %6056 = vmatprep.subr.mxu0 0.0
  %6057 = vmatpush1.msra.mxu0 0.0
  %6058 = vmatprep.subr.mxu0 0.0
  %6059 = vmatpush1.msra.mxu0 0.0
  %6060 = vmatprep.subr.mxu0 0.0
  %6061 = vmatpush1.msra.mxu0 0.0
  %6062 = vmatprep.subr.mxu0 0.0
  %6063 = vmatpush1.msra.mxu0 0.0
  %6064 = vmatprep.subr.mxu0 0.0
  %6065 = vmatpush1.msra.mxu0 0.0
  %6066 = vmatprep.subr.mxu0 0.0
  %6067 = vmatpush1.msra.mxu0 0.0
  %6068 = vmatprep.subr.mxu0 0.0
  %6069 = vmatpush1.msra.mxu0 %v108
  %6070 = vmatprep.subr.mxu0 0.0
  %6071 = vmatpush1.msra.mxu0 %v107
  %6072 = vmatprep.subr.mxu0 0.0
  %6073 = vmatpush1.msra.mxu0 %v106
  %6074 = vmatprep.subr.mxu0 0.0
  %6075 = vmatpush1.msra.mxu0 %v105
  %6076 = vmatprep.subr.mxu0 0.0
  %6077 = vmatpush2.msra.mxu0 0.0
  %6078 = vmatprep.subr.mxu0 0.0
  %6079 = vmatpush2.msra.mxu0 0.0
  %6080 = vmatprep.subr.mxu0 0.0
  %6081 = vmatpush2.msra.mxu0 0.0
  %6082 = vmatprep.subr.mxu0 0.0
  %6083 = vmatpush2.msra.mxu0 0.0
  %6084 = vmatprep.subr.mxu0 0.0
  %6085 = vmatpush2.msra.mxu0 0.0
  %6086 = vmatprep.subr.mxu0 0.0
  %6087 = vmatpush2.msra.mxu0 0.0
  %6088 = vmatprep.subr.mxu0 0.0
  %6089 = vmatpush2.msra.mxu0 0.0
  %6090 = vmatprep.subr.mxu0 0.0
  %6091 = vmatpush2.msra.mxu0 0.0
  %6092 = vmatprep.subr.mxu0 0.0
  %6093 = vmatpush2.msra.mxu0 0.0
  %6094 = vmatprep.subr.mxu0 0.0
  %6095 = vmatpush2.msra.mxu0 0.0
  %6096 = vmatprep.subr.mxu0 0.0
  %6097 = vmatpush2.msra.mxu0 0.0
  %6098 = vmatprep.subr.mxu0 0.0
  %6099 = vmatpush2.msra.mxu0 0.0
  %6100 = vmatprep.subr.mxu0 0.0
  %6101 = vmatpush2.msra.mxu0 0.0
  %6102 = vmatprep.subr.mxu0 0.0
  %6103 = vmatpush2.msra.mxu0 0.0
  %6104 = vmatprep.subr.mxu0 0.0
  %6105 = vmatpush2.msra.mxu0 0.0
  %6106 = vmatprep.subr.mxu0 0.0
  %6107 = vmatpush2.msra.mxu0 0.0
  %6108 = vmatprep.mubr.f32.mxu0 0.0
  %6109 = vmatmul.mubr.f32.gmra.mxu0 %v6042
  %v6110 = vpop.f32.mrf.mxu0
  %v6111 = vadd.f32 %v150, %v6110
  %v6112 = vpop.f32.mrf.mxu0
  %6113 = vdwg.mxu0
  %v6114 = vmax.f32 %v6111, 0.0
  %6115 = vmatprep.subr.mxu0 0.0
  %6116 = vmatpush1.msra.mxu0 %v124
  %6117 = vmatprep.subr.mxu0 0.0
  %6118 = vmatpush1.msra.mxu0 %v123
  %6119 = vmatprep.subr.mxu0 0.0
  %6120 = vmatpush1.msra.mxu0 %v122
  %6121 = vmatprep.subr.mxu0 0.0
  %6122 = vmatpush1.msra.mxu0 %v121
  %6123 = vmatprep.subr.mxu0 0.0
  %6124 = vmatpush1.msra.mxu0 %v120
  %6125 = vmatprep.subr.mxu0 0.0
  %6126 = vmatpush1.msra.mxu0 %v119
  %6127 = vmatprep.subr.mxu0 0.0
  %6128 = vmatpush1.msra.mxu0 %v118
  %6129 = vmatprep.subr.mxu0 0.0
  %6130 = vmatpush1.msra.mxu0 %v117
  %6131 = vmatprep.subr.mxu0 0.0
  %6132 = vmatpush1.msra.mxu0 %v116
  %6133 = vmatprep.subr.mxu0 0.0
  %6134 = vmatpush1.msra.mxu0 %v115
  %6135 = vmatprep.subr.mxu0 0.0
  %6136 = vmatpush1.msra.mxu0 %v114
  %6137 = vmatprep.subr.mxu0 0.0
  %6138 = vmatpush1.msra.mxu0 %v113
  %6139 = vmatprep.subr.mxu0 0.0
  %6140 = vmatpush1.msra.mxu0 %v112
  %6141 = vmatprep.subr.mxu0 0.0
  %6142 = vmatpush1.msra.mxu0 %v111
  %6143 = vmatprep.subr.mxu0 0.0
  %6144 = vmatpush1.msra.mxu0 %v110
  %6145 = vmatprep.subr.mxu0 0.0
  %6146 = vmatpush1.msra.mxu0 %v109
  %6147 = vmatprep.subr.mxu0 0.0
  %6148 = vmatpush2.msra.mxu0 0.0
  %6149 = vmatprep.subr.mxu0 0.0
  %6150 = vmatpush2.msra.mxu0 0.0
  %6151 = vmatprep.subr.mxu0 0.0
  %6152 = vmatpush2.msra.mxu0 0.0
  %6153 = vmatprep.subr.mxu0 0.0
  %6154 = vmatpush2.msra.mxu0 0.0
  %6155 = vmatprep.subr.mxu0 0.0
  %6156 = vmatpush2.msra.mxu0 0.0
  %6157 = vmatprep.subr.mxu0 0.0
  %6158 = vmatpush2.msra.mxu0 0.0
  %6159 = vmatprep.subr.mxu0 0.0
  %6160 = vmatpush2.msra.mxu0 0.0
  %6161 = vmatprep.subr.mxu0 0.0
  %6162 = vmatpush2.msra.mxu0 0.0
  %6163 = vmatprep.subr.mxu0 0.0
  %6164 = vmatpush2.msra.mxu0 0.0
  %6165 = vmatprep.subr.mxu0 0.0
  %6166 = vmatpush2.msra.mxu0 0.0
  %6167 = vmatprep.subr.mxu0 0.0
  %6168 = vmatpush2.msra.mxu0 0.0
  %6169 = vmatprep.subr.mxu0 0.0
  %6170 = vmatpush2.msra.mxu0 0.0
  %6171 = vmatprep.subr.mxu0 0.0
  %6172 = vmatpush2.msra.mxu0 0.0
  %6173 = vmatprep.subr.mxu0 0.0
  %6174 = vmatpush2.msra.mxu0 0.0
  %6175 = vmatprep.subr.mxu0 0.0
  %6176 = vmatpush2.msra.mxu0 0.0
  %6177 = vmatprep.subr.mxu0 0.0
  %6178 = vmatpush2.msra.mxu0 0.0
  %6179 = vmatprep.mubr.f32.mxu0 0.0
  %6180 = vmatmul.mubr.f32.gmra.mxu0 %v6114
  %v6181 = vpop.f32.mrf.mxu0
  %v6182 = vadd.f32 %v157, %v6181
  %v6183 = vpop.f32.mrf.mxu0
  %6184 = vdwg.mxu0
  %v6185 = vmax.f32 %v6182, 0.0
  %6186 = vmatprep.subr.mxu0 0.0
  %6187 = vmatpush1.msra.mxu0 0.0
  %6188 = vmatprep.subr.mxu0 0.0
  %6189 = vmatpush1.msra.mxu0 0.0
  %6190 = vmatprep.subr.mxu0 0.0
  %6191 = vmatpush1.msra.mxu0 0.0
  %6192 = vmatprep.subr.mxu0 0.0
  %6193 = vmatpush1.msra.mxu0 0.0
  %6194 = vmatprep.subr.mxu0 0.0
  %6195 = vmatpush1.msra.mxu0 0.0
  %6196 = vmatprep.subr.mxu0 0.0
  %6197 = vmatpush1.msra.mxu0 0.0
  %6198 = vmatprep.subr.mxu0 0.0
  %6199 = vmatpush1.msra.mxu0 0.0
  %6200 = vmatprep.subr.mxu0 0.0
  %6201 = vmatpush1.msra.mxu0 0.0
  %6202 = vmatprep.subr.mxu0 0.0
  %6203 = vmatpush1.msra.mxu0 0.0
  %6204 = vmatprep.subr.mxu0 0.0
  %6205 = vmatpush1.msra.mxu0 0.0
  %6206 = vmatprep.subr.mxu0 0.0
  %6207 = vmatpush1.msra.mxu0 0.0
  %6208 = vmatprep.subr.mxu0 0.0
  %6209 = vmatpush1.msra.mxu0 0.0
  %6210 = vmatprep.subr.mxu0 0.0
  %6211 = vmatpush1.msra.mxu0 0.0
  %6212 = vmatprep.subr.mxu0 0.0
  %6213 = vmatpush1.msra.mxu0 0.0
  %6214 = vmatprep.subr.mxu0 0.0
  %6215 = vmatpush1.msra.mxu0 0.0
  %6216 = vmatprep.subr.mxu0 0.0
  %6217 = vmatpush1.msra.mxu0 %v5893
  %6218 = vmatprep.subr.mxu0 0.0
  %6219 = vmatpush2.msra.mxu0 0.0
  %6220 = vmatprep.subr.mxu0 0.0
  %6221 = vmatpush2.msra.mxu0 0.0
  %6222 = vmatprep.subr.mxu0 0.0
  %6223 = vmatpush2.msra.mxu0 0.0
  %6224 = vmatprep.subr.mxu0 0.0
  %6225 = vmatpush2.msra.mxu0 0.0
  %6226 = vmatprep.subr.mxu0 0.0
  %6227 = vmatpush2.msra.mxu0 0.0
  %6228 = vmatprep.subr.mxu0 0.0
  %6229 = vmatpush2.msra.mxu0 0.0
  %6230 = vmatprep.subr.mxu0 0.0
  %6231 = vmatpush2.msra.mxu0 0.0
  %6232 = vmatprep.subr.mxu0 0.0
  %6233 = vmatpush2.msra.mxu0 0.0
  %6234 = vmatprep.subr.mxu0 0.0
  %6235 = vmatpush2.msra.mxu0 0.0
  %6236 = vmatprep.subr.mxu0 0.0
  %6237 = vmatpush2.msra.mxu0 0.0
  %6238 = vmatprep.subr.mxu0 0.0
  %6239 = vmatpush2.msra.mxu0 0.0
  %6240 = vmatprep.subr.mxu0 0.0
  %6241 = vmatpush2.msra.mxu0 0.0
  %6242 = vmatprep.subr.mxu0 0.0
  %6243 = vmatpush2.msra.mxu0 0.0
  %6244 = vmatprep.subr.mxu0 0.0
  %6245 = vmatpush2.msra.mxu0 0.0
  %6246 = vmatprep.subr.mxu0 0.0
  %6247 = vmatpush2.msra.mxu0 0.0
  %6248 = vmatprep.subr.mxu0 0.0
  %6249 = vmatpush2.msra.mxu0 0.0
  %6250 = vmatprep.mubr.f32.mxu0 0.0
  %6251 = vmatmul.mubr.f32.gmra.mxu0 %v474
  %v6252 = vpop.f32.mrf.mxu0
  %v6253 = vadd.f32 0.0, %v6252
  %v6254 = vpop.f32.mrf.mxu0
  %6255 = vdwg.mxu0
  %v6257 = vsel %vm550, %v6185, 0
  %6259 = vmatprep.subr.mxu0 0.0
  %6260 = vmatpush1.msra.mxu0 0.0
  %6261 = vmatprep.subr.mxu0 0.0
  %6262 = vmatpush1.msra.mxu0 0.0
  %6263 = vmatprep.subr.mxu0 0.0
  %6264 = vmatpush1.msra.mxu0 0.0
  %6265 = vmatprep.subr.mxu0 0.0
  %6266 = vmatpush1.msra.mxu0 0.0
  %6267 = vmatprep.subr.mxu0 0.0
  %6268 = vmatpush1.msra.mxu0 0.0
  %6269 = vmatprep.subr.mxu0 0.0
  %6270 = vmatpush1.msra.mxu0 0.0
  %6271 = vmatprep.subr.mxu0 0.0
  %6272 = vmatpush1.msra.mxu0 0.0
  %6273 = vmatprep.subr.mxu0 0.0
  %6274 = vmatpush1.msra.mxu0 0.0
  %6275 = vmatprep.subr.mxu0 0.0
  %6276 = vmatpush1.msra.mxu0 0.0
  %6277 = vmatprep.subr.mxu0 0.0
  %6278 = vmatpush1.msra.mxu0 0.0
  %6279 = vmatprep.subr.mxu0 0.0
  %6280 = vmatpush1.msra.mxu0 0.0
  %6281 = vmatprep.subr.mxu0 0.0
  %6282 = vmatpush1.msra.mxu0 0.0
  %6283 = vmatprep.subr.mxu0 0.0
  %6284 = vmatpush1.msra.mxu0 0.0
  %6285 = vmatprep.subr.mxu0 0.0
  %6286 = vmatpush1.msra.mxu0 0.0
  %6287 = vmatprep.subr.mxu0 0.0
  %6288 = vmatpush1.msra.mxu0 0.0
  %6289 = vmatprep.subr.mxu0 0.0
  %6290 = vmatpush1.msra.mxu0 %v6257
  %6291 = vmatprep.subr.mxu0 0.0
  %6292 = vmatpush2.msra.mxu0 0.0
  %6293 = vmatprep.subr.mxu0 0.0
  %6294 = vmatpush2.msra.mxu0 0.0
  %6295 = vmatprep.subr.mxu0 0.0
  %6296 = vmatpush2.msra.mxu0 0.0
  %6297 = vmatprep.subr.mxu0 0.0
  %6298 = vmatpush2.msra.mxu0 0.0
  %6299 = vmatprep.subr.mxu0 0.0
  %6300 = vmatpush2.msra.mxu0 0.0
  %6301 = vmatprep.subr.mxu0 0.0
  %6302 = vmatpush2.msra.mxu0 0.0
  %6303 = vmatprep.subr.mxu0 0.0
  %6304 = vmatpush2.msra.mxu0 0.0
  %6305 = vmatprep.subr.mxu0 0.0
  %6306 = vmatpush2.msra.mxu0 0.0
  %6307 = vmatprep.subr.mxu0 0.0
  %6308 = vmatpush2.msra.mxu0 0.0
  %6309 = vmatprep.subr.mxu0 0.0
  %6310 = vmatpush2.msra.mxu0 0.0
  %6311 = vmatprep.subr.mxu0 0.0
  %6312 = vmatpush2.msra.mxu0 0.0
  %6313 = vmatprep.subr.mxu0 0.0
  %6314 = vmatpush2.msra.mxu0 0.0
  %6315 = vmatprep.subr.mxu0 0.0
  %6316 = vmatpush2.msra.mxu0 0.0
  %6317 = vmatprep.subr.mxu0 0.0
  %6318 = vmatpush2.msra.mxu0 0.0
  %6319 = vmatprep.subr.mxu0 0.0
  %6320 = vmatpush2.msra.mxu0 0.0
  %6321 = vmatprep.subr.mxu0 0.0
  %6322 = vmatpush2.msra.mxu0 0.0
  %6323 = vmatprep.mubr.f32.mxu0 0.0
  %6324 = vmatmul.mubr.f32.gmra.mxu0 %v548
  %v6325 = vpop.f32.mrf.mxu0
  %v6326 = vadd.f32 0.0, %v6325
  %v6327 = vpop.f32.mrf.mxu0
  %6328 = vdwg.mxu0
  %6329 = vmatprep.subr.mxu0 0.0
  %6330 = vmatpush1.msra.mxu0 0.0
  %6331 = vmatprep.subr.mxu0 0.0
  %6332 = vmatpush1.msra.mxu0 0.0
  %6333 = vmatprep.subr.mxu0 0.0
  %6334 = vmatpush1.msra.mxu0 0.0
  %6335 = vmatprep.subr.mxu0 0.0
  %6336 = vmatpush1.msra.mxu0 0.0
  %6337 = vmatprep.subr.mxu0 0.0
  %6338 = vmatpush1.msra.mxu0 0.0
  %6339 = vmatprep.subr.mxu0 0.0
  %6340 = vmatpush1.msra.mxu0 0.0
  %6341 = vmatprep.subr.mxu0 0.0
  %6342 = vmatpush1.msra.mxu0 0.0
  %6343 = vmatprep.subr.mxu0 0.0
  %6344 = vmatpush1.msra.mxu0 0.0
  %6345 = vmatprep.subr.mxu0 0.0
  %6346 = vmatpush1.msra.mxu0 0.0
  %6347 = vmatprep.subr.mxu0 0.0
  %6348 = vmatpush1.msra.mxu0 0.0
  %6349 = vmatprep.subr.mxu0 0.0
  %6350 = vmatpush1.msra.mxu0 0.0
  %6351 = vmatprep.subr.mxu0 0.0
  %6352 = vmatpush1.msra.mxu0 0.0
  %6353 = vmatprep.subr.mxu0 0.0
  %6354 = vmatpush1.msra.mxu0 0.0
  %6355 = vmatprep.subr.mxu0 0.0
  %6356 = vmatpush1.msra.mxu0 0.0
  %6357 = vmatprep.subr.mxu0 0.0
  %6358 = vmatpush1.msra.mxu0 0.0
  %6359 = vmatprep.subr.mxu0 0.0
  %6360 = vmatpush1.msra.mxu0 %v5894
  %6361 = vmatprep.subr.mxu0 0.0
  %6362 = vmatpush2.msra.mxu0 0.0
  %6363 = vmatprep.subr.mxu0 0.0
  %6364 = vmatpush2.msra.mxu0 0.0
  %6365 = vmatprep.subr.mxu0 0.0
  %6366 = vmatpush2.msra.mxu0 0.0
  %6367 = vmatprep.subr.mxu0 0.0
  %6368 = vmatpush2.msra.mxu0 0.0
  %6369 = vmatprep.subr.mxu0 0.0
  %6370 = vmatpush2.msra.mxu0 0.0
  %6371 = vmatprep.subr.mxu0 0.0
  %6372 = vmatpush2.msra.mxu0 0.0
  %6373 = vmatprep.subr.mxu0 0.0
  %6374 = vmatpush2.msra.mxu0 0.0
  %6375 = vmatprep.subr.mxu0 0.0
  %6376 = vmatpush2.msra.mxu0 0.0
  %6377 = vmatprep.subr.mxu0 0.0
  %6378 = vmatpush2.msra.mxu0 0.0
  %6379 = vmatprep.subr.mxu0 0.0
  %6380 = vmatpush2.msra.mxu0 0.0
  %6381 = vmatprep.subr.mxu0 0.0
  %6382 = vmatpush2.msra.mxu0 0.0
  %6383 = vmatprep.subr.mxu0 0.0
  %6384 = vmatpush2.msra.mxu0 0.0
  %6385 = vmatprep.subr.mxu0 0.0
  %6386 = vmatpush2.msra.mxu0 0.0
  %6387 = vmatprep.subr.mxu0 0.0
  %6388 = vmatpush2.msra.mxu0 0.0
  %6389 = vmatprep.subr.mxu0 0.0
  %6390 = vmatpush2.msra.mxu0 0.0
  %6391 = vmatprep.subr.mxu0 0.0
  %6392 = vmatpush2.msra.mxu0 0.0
  %6393 = vmatprep.mubr.f32.mxu0 0.0
  %6394 = vmatmul.mubr.f32.gmra.mxu0 %v625
  %v6395 = vpop.f32.mrf.mxu0
  %v6396 = vadd.f32 0.0, %v6395
  %v6397 = vpop.f32.mrf.mxu0
  %6398 = vdwg.mxu0
  %v6399 = vrot.slane %v6185, 4
  %v6400 = vsel %vm550, %v6399, 0
  %6402 = vmatprep.subr.mxu0 0.0
  %6403 = vmatpush1.msra.mxu0 0.0
  %6404 = vmatprep.subr.mxu0 0.0
  %6405 = vmatpush1.msra.mxu0 0.0
  %6406 = vmatprep.subr.mxu0 0.0
  %6407 = vmatpush1.msra.mxu0 0.0
  %6408 = vmatprep.subr.mxu0 0.0
  %6409 = vmatpush1.msra.mxu0 0.0
  %6410 = vmatprep.subr.mxu0 0.0
  %6411 = vmatpush1.msra.mxu0 0.0
  %6412 = vmatprep.subr.mxu0 0.0
  %6413 = vmatpush1.msra.mxu0 0.0
  %6414 = vmatprep.subr.mxu0 0.0
  %6415 = vmatpush1.msra.mxu0 0.0
  %6416 = vmatprep.subr.mxu0 0.0
  %6417 = vmatpush1.msra.mxu0 0.0
  %6418 = vmatprep.subr.mxu0 0.0
  %6419 = vmatpush1.msra.mxu0 0.0
  %6420 = vmatprep.subr.mxu0 0.0
  %6421 = vmatpush1.msra.mxu0 0.0
  %6422 = vmatprep.subr.mxu0 0.0
  %6423 = vmatpush1.msra.mxu0 0.0
  %6424 = vmatprep.subr.mxu0 0.0
  %6425 = vmatpush1.msra.mxu0 0.0
  %6426 = vmatprep.subr.mxu0 0.0
  %6427 = vmatpush1.msra.mxu0 0.0
  %6428 = vmatprep.subr.mxu0 0.0
  %6429 = vmatpush1.msra.mxu0 0.0
  %6430 = vmatprep.subr.mxu0 0.0
  %6431 = vmatpush1.msra.mxu0 0.0
  %6432 = vmatprep.subr.mxu0 0.0
  %6433 = vmatpush1.msra.mxu0 %v6400
  %6434 = vmatprep.subr.mxu0 0.0
  %6435 = vmatpush2.msra.mxu0 0.0
  %6436 = vmatprep.subr.mxu0 0.0
  %6437 = vmatpush2.msra.mxu0 0.0
  %6438 = vmatprep.subr.mxu0 0.0
  %6439 = vmatpush2.msra.mxu0 0.0
  %6440 = vmatprep.subr.mxu0 0.0
  %6441 = vmatpush2.msra.mxu0 0.0
  %6442 = vmatprep.subr.mxu0 0.0
  %6443 = vmatpush2.msra.mxu0 0.0
  %6444 = vmatprep.subr.mxu0 0.0
  %6445 = vmatpush2.msra.mxu0 0.0
  %6446 = vmatprep.subr.mxu0 0.0
  %6447 = vmatpush2.msra.mxu0 0.0
  %6448 = vmatprep.subr.mxu0 0.0
  %6449 = vmatpush2.msra.mxu0 0.0
  %6450 = vmatprep.subr.mxu0 0.0
  %6451 = vmatpush2.msra.mxu0 0.0
  %6452 = vmatprep.subr.mxu0 0.0
  %6453 = vmatpush2.msra.mxu0 0.0
  %6454 = vmatprep.subr.mxu0 0.0
  %6455 = vmatpush2.msra.mxu0 0.0
  %6456 = vmatprep.subr.mxu0 0.0
  %6457 = vmatpush2.msra.mxu0 0.0
  %6458 = vmatprep.subr.mxu0 0.0
  %6459 = vmatpush2.msra.mxu0 0.0
  %6460 = vmatprep.subr.mxu0 0.0
  %6461 = vmatpush2.msra.mxu0 0.0
  %6462 = vmatprep.subr.mxu0 0.0
  %6463 = vmatpush2.msra.mxu0 0.0
  %6464 = vmatprep.subr.mxu0 0.0
  %6465 = vmatpush2.msra.mxu0 0.0
  %6466 = vmatprep.mubr.f32.mxu0 0.0
  %6467 = vmatmul.mubr.f32.gmra.mxu0 %v699
  %v6468 = vpop.f32.mrf.mxu0
  %v6469 = vadd.f32 0.0, %v6468
  %v6470 = vpop.f32.mrf.mxu0
  %6471 = vdwg.mxu0
  %6472 = vmatprep.subr.mxu0 0.0
  %6473 = vmatpush1.msra.mxu0 0.0
  %6474 = vmatprep.subr.mxu0 0.0
  %6475 = vmatpush1.msra.mxu0 0.0
  %6476 = vmatprep.subr.mxu0 0.0
  %6477 = vmatpush1.msra.mxu0 0.0
  %6478 = vmatprep.subr.mxu0 0.0
  %6479 = vmatpush1.msra.mxu0 0.0
  %6480 = vmatprep.subr.mxu0 0.0
  %6481 = vmatpush1.msra.mxu0 0.0
  %6482 = vmatprep.subr.mxu0 0.0
  %6483 = vmatpush1.msra.mxu0 0.0
  %6484 = vmatprep.subr.mxu0 0.0
  %6485 = vmatpush1.msra.mxu0 0.0
  %6486 = vmatprep.subr.mxu0 0.0
  %6487 = vmatpush1.msra.mxu0 0.0
  %6488 = vmatprep.subr.mxu0 0.0
  %6489 = vmatpush1.msra.mxu0 0.0
  %6490 = vmatprep.subr.mxu0 0.0
  %6491 = vmatpush1.msra.mxu0 0.0
  %6492 = vmatprep.subr.mxu0 0.0
  %6493 = vmatpush1.msra.mxu0 0.0
  %6494 = vmatprep.subr.mxu0 0.0
  %6495 = vmatpush1.msra.mxu0 0.0
  %6496 = vmatprep.subr.mxu0 0.0
  %6497 = vmatpush1.msra.mxu0 0.0
  %6498 = vmatprep.subr.mxu0 0.0
  %6499 = vmatpush1.msra.mxu0 0.0
  %6500 = vmatprep.subr.mxu0 0.0
  %6501 = vmatpush1.msra.mxu0 0.0
  %6502 = vmatprep.subr.mxu0 0.0
  %6503 = vmatpush1.msra.mxu0 %v6040
  %6504 = vmatprep.subr.mxu0 0.0
  %6505 = vmatpush2.msra.mxu0 0.0
  %6506 = vmatprep.subr.mxu0 0.0
  %6507 = vmatpush2.msra.mxu0 0.0
  %6508 = vmatprep.subr.mxu0 0.0
  %6509 = vmatpush2.msra.mxu0 0.0
  %6510 = vmatprep.subr.mxu0 0.0
  %6511 = vmatpush2.msra.mxu0 0.0
  %6512 = vmatprep.subr.mxu0 0.0
  %6513 = vmatpush2.msra.mxu0 0.0
  %6514 = vmatprep.subr.mxu0 0.0
  %6515 = vmatpush2.msra.mxu0 0.0
  %6516 = vmatprep.subr.mxu0 0.0
  %6517 = vmatpush2.msra.mxu0 0.0
  %6518 = vmatprep.subr.mxu0 0.0
  %6519 = vmatpush2.msra.mxu0 0.0
  %6520 = vmatprep.subr.mxu0 0.0
  %6521 = vmatpush2.msra.mxu0 0.0
  %6522 = vmatprep.subr.mxu0 0.0
  %6523 = vmatpush2.msra.mxu0 0.0
  %6524 = vmatprep.subr.mxu0 0.0
  %6525 = vmatpush2.msra.mxu0 0.0
  %6526 = vmatprep.subr.mxu0 0.0
  %6527 = vmatpush2.msra.mxu0 0.0
  %6528 = vmatprep.subr.mxu0 0.0
  %6529 = vmatpush2.msra.mxu0 0.0
  %6530 = vmatprep.subr.mxu0 0.0
  %6531 = vmatpush2.msra.mxu0 0.0
  %6532 = vmatprep.subr.mxu0 0.0
  %6533 = vmatpush2.msra.mxu0 0.0
  %6534 = vmatprep.subr.mxu0 0.0
  %6535 = vmatpush2.msra.mxu0 0.0
  %6536 = vmatprep.mubr.f32.mxu0 0.0
  %6537 = vmatmul.mubr.f32.gmra.mxu0 %v774
  %v6538 = vpop.f32.mrf.mxu0
  %v6539 = vadd.f32 0.0, %v6538
  %v6540 = vpop.f32.mrf.mxu0
  %6541 = vdwg.mxu0
  %6544 = vrot.lane.b32.xlu0 %v6253, 32
  %v6545 = vpop.permute.xlu0 %6544
  %6546 = vrot.lane.b32.xlu0 %v6396, 32
  %v6547 = vpop.permute.xlu0 %6546
  %6551 = vrot.lane.b32.xlu0 %v5893, 64
  %v6552 = vpop.permute.xlu0 %6551
  %6553 = vrot.lane.b32.xlu0 %v5894, 64
  %v6554 = vpop.permute.xlu0 %6553
  %v6557 = vsel %vm58, %v6326, %v6545
  %v6558 = vsel %vm58, %v6469, %v6547
  %v6559 = vsel %vm863, %v6557, %v6552
  %v6560 = vsel %vm863, %v6558, %v6554
  %v6562 = vsel %vm866, %v6559, 0
  %v6565 = vsel %vm866, %v6560, 0
  %6567 = vmatprep.subr.mxu0 0.0
  %6568 = vmatpush1.msra.mxu0 0.0
  %6569 = vmatprep.subr.mxu0 0.0
  %6570 = vmatpush1.msra.mxu0 0.0
  %6571 = vmatprep.subr.mxu0 0.0
  %6572 = vmatpush1.msra.mxu0 0.0
  %6573 = vmatprep.subr.mxu0 0.0
  %6574 = vmatpush1.msra.mxu0 0.0
  %6575 = vmatprep.subr.mxu0 0.0
  %6576 = vmatpush1.msra.mxu0 %v82
  %6577 = vmatprep.subr.mxu0 0.0
  %6578 = vmatpush1.msra.mxu0 %v81
  %6579 = vmatprep.subr.mxu0 0.0
  %6580 = vmatpush1.msra.mxu0 %v80
  %6581 = vmatprep.subr.mxu0 0.0
  %6582 = vmatpush1.msra.mxu0 %v79
  %6583 = vmatprep.subr.mxu0 0.0
  %6584 = vmatpush1.msra.mxu0 %v78
  %6585 = vmatprep.subr.mxu0 0.0
  %6586 = vmatpush1.msra.mxu0 %v77
  %6587 = vmatprep.subr.mxu0 0.0
  %6588 = vmatpush1.msra.mxu0 %v76
  %6589 = vmatprep.subr.mxu0 0.0
  %6590 = vmatpush1.msra.mxu0 %v75
  %6591 = vmatprep.subr.mxu0 0.0
  %6592 = vmatpush1.msra.mxu0 %v74
  %6593 = vmatprep.subr.mxu0 0.0
  %6594 = vmatpush1.msra.mxu0 %v73
  %6595 = vmatprep.subr.mxu0 0.0
  %6596 = vmatpush1.msra.mxu0 %v72
  %6597 = vmatprep.subr.mxu0 0.0
  %6598 = vmatpush1.msra.mxu0 %v71
  %6599 = vmatprep.subr.mxu0 0.0
  %6600 = vmatpush2.msra.mxu0 0.0
  %6601 = vmatprep.subr.mxu0 0.0
  %6602 = vmatpush2.msra.mxu0 0.0
  %6603 = vmatprep.subr.mxu0 0.0
  %6604 = vmatpush2.msra.mxu0 0.0
  %6605 = vmatprep.subr.mxu0 0.0
  %6606 = vmatpush2.msra.mxu0 0.0
  %6607 = vmatprep.subr.mxu0 0.0
  %6608 = vmatpush2.msra.mxu0 0.0
  %6609 = vmatprep.subr.mxu0 0.0
  %6610 = vmatpush2.msra.mxu0 0.0
  %6611 = vmatprep.subr.mxu0 0.0
  %6612 = vmatpush2.msra.mxu0 0.0
  %6613 = vmatprep.subr.mxu0 0.0
  %6614 = vmatpush2.msra.mxu0 0.0
  %6615 = vmatprep.subr.mxu0 0.0
  %6616 = vmatpush2.msra.mxu0 0.0
  %6617 = vmatprep.subr.mxu0 0.0
  %6618 = vmatpush2.msra.mxu0 0.0
  %6619 = vmatprep.subr.mxu0 0.0
  %6620 = vmatpush2.msra.mxu0 0.0
  %6621 = vmatprep.subr.mxu0 0.0
  %6622 = vmatpush2.msra.mxu0 0.0
  %6623 = vmatprep.subr.mxu0 0.0
  %6624 = vmatpush2.msra.mxu0 0.0
  %6625 = vmatprep.subr.mxu0 0.0
  %6626 = vmatpush2.msra.mxu0 0.0
  %6627 = vmatprep.subr.mxu0 0.0
  %6628 = vmatpush2.msra.mxu0 0.0
  %6629 = vmatprep.subr.mxu0 0.0
  %6630 = vmatpush2.msra.mxu0 0.0
  %6631 = vmatprep.mubr.f32.mxu0 0.0
  %6632 = vmatmul.mubr.f32.gmra.mxu0 %v6562
  %v6633 = vpop.f32.mrf.mxu0
  %v6634 = vadd.f32 %v96, %v6633
  %v6635 = vpop.f32.mrf.mxu0
  %6636 = vmatprep.mubr.f32.mxu0 0.0
  %6637 = vmatmul.mubr.f32.gmra.mxu0 %v6565
  %v6638 = vpop.f32.mrf.mxu0
  %v6639 = vadd.f32 %v96, %v6638
  %v6640 = vpop.f32.mrf.mxu0
  %6641 = vdwg.mxu0
  %6642 = vrot.lane.b32.xlu0 %v5895, 32
  %v6643 = vpop.permute.xlu0 %6642
  %v6645 = vsel %vm58, %v6539, %v6643
  %v6647 = vsel %vm863, %v6645, 0
  %6649 = vmatprep.subr.mxu0 0.0
  %6650 = vmatpush1.msra.mxu0 0.0
  %6651 = vmatprep.subr.mxu0 0.0
  %6652 = vmatpush1.msra.mxu0 0.0
  %6653 = vmatprep.subr.mxu0 0.0
  %6654 = vmatpush1.msra.mxu0 0.0
  %6655 = vmatprep.subr.mxu0 0.0
  %6656 = vmatpush1.msra.mxu0 0.0
  %6657 = vmatprep.subr.mxu0 0.0
  %6658 = vmatpush1.msra.mxu0 0.0
  %6659 = vmatprep.subr.mxu0 0.0
  %6660 = vmatpush1.msra.mxu0 0.0
  %6661 = vmatprep.subr.mxu0 0.0
  %6662 = vmatpush1.msra.mxu0 0.0
  %6663 = vmatprep.subr.mxu0 0.0
  %6664 = vmatpush1.msra.mxu0 0.0
  %6665 = vmatprep.subr.mxu0 0.0
  %6666 = vmatpush1.msra.mxu0 %v90
  %6667 = vmatprep.subr.mxu0 0.0
  %6668 = vmatpush1.msra.mxu0 %v89
  %6669 = vmatprep.subr.mxu0 0.0
  %6670 = vmatpush1.msra.mxu0 %v88
  %6671 = vmatprep.subr.mxu0 0.0
  %6672 = vmatpush1.msra.mxu0 %v87
  %6673 = vmatprep.subr.mxu0 0.0
  %6674 = vmatpush1.msra.mxu0 %v86
  %6675 = vmatprep.subr.mxu0 0.0
  %6676 = vmatpush1.msra.mxu0 %v85
  %6677 = vmatprep.subr.mxu0 0.0
  %6678 = vmatpush1.msra.mxu0 %v84
  %6679 = vmatprep.subr.mxu0 0.0
  %6680 = vmatpush1.msra.mxu0 %v83
  %6681 = vmatprep.subr.mxu0 0.0
  %6682 = vmatpush2.msra.mxu0 0.0
  %6683 = vmatprep.subr.mxu0 0.0
  %6684 = vmatpush2.msra.mxu0 0.0
  %6685 = vmatprep.subr.mxu0 0.0
  %6686 = vmatpush2.msra.mxu0 0.0
  %6687 = vmatprep.subr.mxu0 0.0
  %6688 = vmatpush2.msra.mxu0 0.0
  %6689 = vmatprep.subr.mxu0 0.0
  %6690 = vmatpush2.msra.mxu0 0.0
  %6691 = vmatprep.subr.mxu0 0.0
  %6692 = vmatpush2.msra.mxu0 0.0
  %6693 = vmatprep.subr.mxu0 0.0
  %6694 = vmatpush2.msra.mxu0 0.0
  %6695 = vmatprep.subr.mxu0 0.0
  %6696 = vmatpush2.msra.mxu0 0.0
  %6697 = vmatprep.subr.mxu0 0.0
  %6698 = vmatpush2.msra.mxu0 0.0
  %6699 = vmatprep.subr.mxu0 0.0
  %6700 = vmatpush2.msra.mxu0 0.0
  %6701 = vmatprep.subr.mxu0 0.0
  %6702 = vmatpush2.msra.mxu0 0.0
  %6703 = vmatprep.subr.mxu0 0.0
  %6704 = vmatpush2.msra.mxu0 0.0
  %6705 = vmatprep.subr.mxu0 0.0
  %6706 = vmatpush2.msra.mxu0 0.0
  %6707 = vmatprep.subr.mxu0 0.0
  %6708 = vmatpush2.msra.mxu0 0.0
  %6709 = vmatprep.subr.mxu0 0.0
  %6710 = vmatpush2.msra.mxu0 0.0
  %6711 = vmatprep.subr.mxu0 0.0
  %6712 = vmatpush2.msra.mxu0 0.0
  %6713 = vmatprep.mubr.f32.mxu0 0.0
  %6714 = vmatmul.mubr.f32.gmra.mxu0 %v6647
  %v6715 = vpop.f32.mrf.mxu0
  %v6716 = vadd.f32 %v103, %v6715
  %v6717 = vpop.f32.mrf.mxu0
  %6718 = vdwg.mxu0
  %v6719 = vld [vmem:[#allocation3] sm:$0xff]
  %v6720 = vld [vmem:[#allocation3 + $0x8] sm:$0xff]
  %v6721 = vmul.f32 %v6634, %v178
  %v6722 = vmul.f32 %v6639, %v178
  %v6723 = vxor.u32 %v6721, 2147483648
  %v6724 = vxor.u32 %v6722, 2147483648
  %v6725 = vmul.f32 %v6723, 1.442695
  %v6726 = vpow.pop %v6725
  %v6727 = vmul.f32 %v6724, 1.442695
  %v6728 = vpow.pop %v6727
  %v6729 = vadd.f32 %v6726, 1.0
  %v6730 = vadd.f32 %v6728, 1.0
  %v6731 = vrcp.pop %v6729
  %v6732 = vmul.f32 1.0, %v6731
  %v6733 = vrcp.pop %v6730
  %v6734 = vmul.f32 1.0, %v6733
  %v6735 = vmul.f32 %v6732, 2.0
  %v6736 = vmul.f32 %v6734, 2.0
  %v6737 = vsub.f32 %v6735, 1.0
  %v6738 = vsub.f32 %v6736, 1.0
  %6741 = vrot.lane.b32.xlu0 %v6719, 32
  %v6742 = vpop.permute.xlu0 %6741
  %6743 = vrot.lane.b32.xlu0 %v6720, 32
  %v6744 = vpop.permute.xlu0 %6743
  %v6747 = vmul.f32 %v6732, %v6742
  %v6748 = vmul.f32 %v6734, %v6744
  %6751 = vrot.lane.b32.xlu0 %v6737, 64
  %v6752 = vpop.permute.xlu0 %6751
  %6753 = vrot.lane.b32.xlu0 %v6738, 64
  %v6754 = vpop.permute.xlu0 %6753
  %v6757 = vmul.f32 %v6732, %v6752
  %v6758 = vmul.f32 %v6734, %v6754
  %6761 = vrot.lane.b32.xlu0 %v6757, 32
  %v6762 = vpop.permute.xlu0 %6761
  %6763 = vrot.lane.b32.xlu0 %v6758, 32
  %v6764 = vpop.permute.xlu0 %6763
  %v6767 = vadd.f32 %v6747, %v6762
  %v6768 = vadd.f32 %v6748, %v6764
  %v6769 = vtanh.pop %v6767
  %v6770 = vtanh.pop %v6768
  %6773 = vrot.lane.b32.xlu0 %v6769, 64
  %v6774 = vpop.permute.xlu0 %6773
  %6775 = vrot.lane.b32.xlu0 %v6770, 64
  %v6776 = vpop.permute.xlu0 %6775
  %v6779 = vmul.f32 %v6732, %v6774
  %v6780 = vmul.f32 %v6734, %v6776
  %v6781 = vld [vmem:[#allocation4] sm:$0xff]
  %v6782 = vmul.f32 %v6716, %v178
  %v6783 = vxor.u32 %v6782, 2147483648
  %v6784 = vmul.f32 %v6783, 1.442695
  %v6785 = vpow.pop %v6784
  %v6786 = vadd.f32 %v6785, 1.0
  %v6787 = vrcp.pop %v6786
  %v6788 = vmul.f32 1.0, %v6787
  %v6789 = vmul.f32 %v6788, 2.0
  %v6790 = vsub.f32 %v6789, 1.0
  %6792 = vrot.lane.b32.xlu0 %v6781, 32
  %v6793 = vpop.permute.xlu0 %6792
  %v6795 = vmul.f32 %v6788, %v6793
  %6797 = vrot.lane.b32.xlu0 %v6790, 64
  %v6798 = vpop.permute.xlu0 %6797
  %v6800 = vmul.f32 %v6788, %v6798
  %6802 = vrot.lane.b32.xlu0 %v6800, 32
  %v6803 = vpop.permute.xlu0 %6802
  %v6805 = vadd.f32 %v6795, %v6803
  %v6806 = vtanh.pop %v6805
  %6808 = vrot.lane.b32.xlu0 %v6806, 64
  %v6809 = vpop.permute.xlu0 %6808
  %v6811 = vmul.f32 %v6788, %v6809
  %6814 = vrot.lane.b32.xlu0 %v6779, 32
  %v6815 = vpop.permute.xlu0 %6814
  %6816 = vrot.lane.b32.xlu0 %v6780, 32
  %v6817 = vpop.permute.xlu0 %6816
  %6820 = vst.msk [vmem:[%s17] sm:$0xff] %vm58, %v6815
  %6821 = vst.msk [vmem:[%s17 + $0x8] sm:$0xff] %vm58, %v6817
  %6824 = vrot.lane.b32.xlu0 %v6767, 96
  %v6825 = vpop.permute.xlu0 %6824
  %6826 = vrot.lane.b32.xlu0 %v6768, 96
  %v6827 = vpop.permute.xlu0 %6826
  %6830 = vst.msk [vmem:[#allocation3] sm:$0xff] %vm58, %v6825
  %6831 = vst.msk [vmem:[#allocation3 + $0x8] sm:$0xff] %vm58, %v6827
  %6833 = vrot.lane.b32.xlu0 %v6811, 32
  %v6834 = vpop.permute.xlu0 %6833
  %6836 = vst.msk [vmem:[#allocation2] sm:$0xff] %vm58, %v6834
  %6838 = vrot.lane.b32.xlu0 %v6805, 96
  %v6839 = vpop.permute.xlu0 %6838
  %6841 = vst.msk [vmem:[#allocation4] sm:$0xff] %vm58, %v6839
  %v6842 = vld [vmem:[%s17] sm:$0xff]
  %v6843 = vld [vmem:[%s17 + $0x8] sm:$0xff]
  %v6844 = vld [vmem:[#allocation2] sm:$0xff]
  %v6846 = vsel %vm58, %v6843, 0
  %6848 = vmatprep.subr.mxu0 0.0
  %6849 = vmatpush1.msra.mxu0 0.0
  %6850 = vmatprep.subr.mxu0 0.0
  %6851 = vmatpush1.msra.mxu0 0.0
  %6852 = vmatprep.subr.mxu0 0.0
  %6853 = vmatpush1.msra.mxu0 0.0
  %6854 = vmatprep.subr.mxu0 0.0
  %6855 = vmatpush1.msra.mxu0 0.0
  %6856 = vmatprep.subr.mxu0 0.0
  %6857 = vmatpush1.msra.mxu0 0.0
  %6858 = vmatprep.subr.mxu0 0.0
  %6859 = vmatpush1.msra.mxu0 0.0
  %6860 = vmatprep.subr.mxu0 0.0
  %6861 = vmatpush1.msra.mxu0 0.0
  %6862 = vmatprep.subr.mxu0 0.0
  %6863 = vmatpush1.msra.mxu0 0.0
  %6864 = vmatprep.subr.mxu0 0.0
  %6865 = vmatpush1.msra.mxu0 0.0
  %6866 = vmatprep.subr.mxu0 0.0
  %6867 = vmatpush1.msra.mxu0 0.0
  %6868 = vmatprep.subr.mxu0 0.0
  %6869 = vmatpush1.msra.mxu0 0.0
  %6870 = vmatprep.subr.mxu0 0.0
  %6871 = vmatpush1.msra.mxu0 0.0
  %6872 = vmatprep.subr.mxu0 0.0
  %6873 = vmatpush1.msra.mxu0 %v128
  %6874 = vmatprep.subr.mxu0 0.0
  %6875 = vmatpush1.msra.mxu0 %v127
  %6876 = vmatprep.subr.mxu0 0.0
  %6877 = vmatpush1.msra.mxu0 %v126
  %6878 = vmatprep.subr.mxu0 0.0
  %6879 = vmatpush1.msra.mxu0 %v125
  %6880 = vmatprep.subr.mxu0 0.0
  %6881 = vmatpush2.msra.mxu0 0.0
  %6882 = vmatprep.subr.mxu0 0.0
  %6883 = vmatpush2.msra.mxu0 0.0
  %6884 = vmatprep.subr.mxu0 0.0
  %6885 = vmatpush2.msra.mxu0 0.0
  %6886 = vmatprep.subr.mxu0 0.0
  %6887 = vmatpush2.msra.mxu0 0.0
  %6888 = vmatprep.subr.mxu0 0.0
  %6889 = vmatpush2.msra.mxu0 0.0
  %6890 = vmatprep.subr.mxu0 0.0
  %6891 = vmatpush2.msra.mxu0 0.0
  %6892 = vmatprep.subr.mxu0 0.0
  %6893 = vmatpush2.msra.mxu0 0.0
  %6894 = vmatprep.subr.mxu0 0.0
  %6895 = vmatpush2.msra.mxu0 0.0
  %6896 = vmatprep.subr.mxu0 0.0
  %6897 = vmatpush2.msra.mxu0 0.0
  %6898 = vmatprep.subr.mxu0 0.0
  %6899 = vmatpush2.msra.mxu0 0.0
  %6900 = vmatprep.subr.mxu0 0.0
  %6901 = vmatpush2.msra.mxu0 0.0
  %6902 = vmatprep.subr.mxu0 0.0
  %6903 = vmatpush2.msra.mxu0 0.0
  %6904 = vmatprep.subr.mxu0 0.0
  %6905 = vmatpush2.msra.mxu0 0.0
  %6906 = vmatprep.subr.mxu0 0.0
  %6907 = vmatpush2.msra.mxu0 0.0
  %6908 = vmatprep.subr.mxu0 0.0
  %6909 = vmatpush2.msra.mxu0 0.0
  %6910 = vmatprep.subr.mxu0 0.0
  %6911 = vmatpush2.msra.mxu0 0.0
  %6912 = vmatprep.mubr.f32.mxu0 0.0
  %6913 = vmatmul.mubr.f32.gmra.mxu0 %v6846
  %v6914 = vpop.f32.mrf.mxu0
  %v6915 = vadd.f32 %v164, %v6914
  %v6916 = vpop.f32.mrf.mxu0
  %6917 = vdwg.mxu0
  %v6918 = vmax.f32 %v6915, 0.0
  %6919 = vmatprep.subr.mxu0 0.0
  %6920 = vmatpush1.msra.mxu0 %v144
  %6921 = vmatprep.subr.mxu0 0.0
  %6922 = vmatpush1.msra.mxu0 %v143
  %6923 = vmatprep.subr.mxu0 0.0
  %6924 = vmatpush1.msra.mxu0 %v142
  %6925 = vmatprep.subr.mxu0 0.0
  %6926 = vmatpush1.msra.mxu0 %v141
  %6927 = vmatprep.subr.mxu0 0.0
  %6928 = vmatpush1.msra.mxu0 %v140
  %6929 = vmatprep.subr.mxu0 0.0
  %6930 = vmatpush1.msra.mxu0 %v139
  %6931 = vmatprep.subr.mxu0 0.0
  %6932 = vmatpush1.msra.mxu0 %v138
  %6933 = vmatprep.subr.mxu0 0.0
  %6934 = vmatpush1.msra.mxu0 %v137
  %6935 = vmatprep.subr.mxu0 0.0
  %6936 = vmatpush1.msra.mxu0 %v136
  %6937 = vmatprep.subr.mxu0 0.0
  %6938 = vmatpush1.msra.mxu0 %v135
  %6939 = vmatprep.subr.mxu0 0.0
  %6940 = vmatpush1.msra.mxu0 %v134
  %6941 = vmatprep.subr.mxu0 0.0
  %6942 = vmatpush1.msra.mxu0 %v133
  %6943 = vmatprep.subr.mxu0 0.0
  %6944 = vmatpush1.msra.mxu0 %v132
  %6945 = vmatprep.subr.mxu0 0.0
  %6946 = vmatpush1.msra.mxu0 %v131
  %6947 = vmatprep.subr.mxu0 0.0
  %6948 = vmatpush1.msra.mxu0 %v130
  %6949 = vmatprep.subr.mxu0 0.0
  %6950 = vmatpush1.msra.mxu0 %v129
  %6951 = vmatprep.subr.mxu0 0.0
  %6952 = vmatpush2.msra.mxu0 0.0
  %6953 = vmatprep.subr.mxu0 0.0
  %6954 = vmatpush2.msra.mxu0 0.0
  %6955 = vmatprep.subr.mxu0 0.0
  %6956 = vmatpush2.msra.mxu0 0.0
  %6957 = vmatprep.subr.mxu0 0.0
  %6958 = vmatpush2.msra.mxu0 0.0
  %6959 = vmatprep.subr.mxu0 0.0
  %6960 = vmatpush2.msra.mxu0 0.0
  %6961 = vmatprep.subr.mxu0 0.0
  %6962 = vmatpush2.msra.mxu0 0.0
  %6963 = vmatprep.subr.mxu0 0.0
  %6964 = vmatpush2.msra.mxu0 0.0
  %6965 = vmatprep.subr.mxu0 0.0
  %6966 = vmatpush2.msra.mxu0 0.0
  %6967 = vmatprep.subr.mxu0 0.0
  %6968 = vmatpush2.msra.mxu0 0.0
  %6969 = vmatprep.subr.mxu0 0.0
  %6970 = vmatpush2.msra.mxu0 0.0
  %6971 = vmatprep.subr.mxu0 0.0
  %6972 = vmatpush2.msra.mxu0 0.0
  %6973 = vmatprep.subr.mxu0 0.0
  %6974 = vmatpush2.msra.mxu0 0.0
  %6975 = vmatprep.subr.mxu0 0.0
  %6976 = vmatpush2.msra.mxu0 0.0
  %6977 = vmatprep.subr.mxu0 0.0
  %6978 = vmatpush2.msra.mxu0 0.0
  %6979 = vmatprep.subr.mxu0 0.0
  %6980 = vmatpush2.msra.mxu0 0.0
  %6981 = vmatprep.subr.mxu0 0.0
  %6982 = vmatpush2.msra.mxu0 0.0
  %6983 = vmatprep.mubr.f32.mxu0 0.0
  %6984 = vmatmul.mubr.f32.gmra.mxu0 %v6918
  %v6985 = vpop.f32.mrf.mxu0
  %v6986 = vadd.f32 %v171, %v6985
  %v6987 = vpop.f32.mrf.mxu0
  %6988 = vdwg.mxu0
  %v6989 = vmax.f32 %v6986, 0.0
  %v6991 = vsel %vm58, %v6844, 0
  %6993 = vmatprep.subr.mxu0 0.0
  %6994 = vmatpush1.msra.mxu0 0.0
  %6995 = vmatprep.subr.mxu0 0.0
  %6996 = vmatpush1.msra.mxu0 0.0
  %6997 = vmatprep.subr.mxu0 0.0
  %6998 = vmatpush1.msra.mxu0 0.0
  %6999 = vmatprep.subr.mxu0 0.0
  %7000 = vmatpush1.msra.mxu0 0.0
  %7001 = vmatprep.subr.mxu0 0.0
  %7002 = vmatpush1.msra.mxu0 0.0
  %7003 = vmatprep.subr.mxu0 0.0
  %7004 = vmatpush1.msra.mxu0 0.0
  %7005 = vmatprep.subr.mxu0 0.0
  %7006 = vmatpush1.msra.mxu0 0.0
  %7007 = vmatprep.subr.mxu0 0.0
  %7008 = vmatpush1.msra.mxu0 0.0
  %7009 = vmatprep.subr.mxu0 0.0
  %7010 = vmatpush1.msra.mxu0 0.0
  %7011 = vmatprep.subr.mxu0 0.0
  %7012 = vmatpush1.msra.mxu0 0.0
  %7013 = vmatprep.subr.mxu0 0.0
  %7014 = vmatpush1.msra.mxu0 0.0
  %7015 = vmatprep.subr.mxu0 0.0
  %7016 = vmatpush1.msra.mxu0 0.0
  %7017 = vmatprep.subr.mxu0 0.0
  %7018 = vmatpush1.msra.mxu0 %v108
  %7019 = vmatprep.subr.mxu0 0.0
  %7020 = vmatpush1.msra.mxu0 %v107
  %7021 = vmatprep.subr.mxu0 0.0
  %7022 = vmatpush1.msra.mxu0 %v106
  %7023 = vmatprep.subr.mxu0 0.0
  %7024 = vmatpush1.msra.mxu0 %v105
  %7025 = vmatprep.subr.mxu0 0.0
  %7026 = vmatpush2.msra.mxu0 0.0
  %7027 = vmatprep.subr.mxu0 0.0
  %7028 = vmatpush2.msra.mxu0 0.0
  %7029 = vmatprep.subr.mxu0 0.0
  %7030 = vmatpush2.msra.mxu0 0.0
  %7031 = vmatprep.subr.mxu0 0.0
  %7032 = vmatpush2.msra.mxu0 0.0
  %7033 = vmatprep.subr.mxu0 0.0
  %7034 = vmatpush2.msra.mxu0 0.0
  %7035 = vmatprep.subr.mxu0 0.0
  %7036 = vmatpush2.msra.mxu0 0.0
  %7037 = vmatprep.subr.mxu0 0.0
  %7038 = vmatpush2.msra.mxu0 0.0
  %7039 = vmatprep.subr.mxu0 0.0
  %7040 = vmatpush2.msra.mxu0 0.0
  %7041 = vmatprep.subr.mxu0 0.0
  %7042 = vmatpush2.msra.mxu0 0.0
  %7043 = vmatprep.subr.mxu0 0.0
  %7044 = vmatpush2.msra.mxu0 0.0
  %7045 = vmatprep.subr.mxu0 0.0
  %7046 = vmatpush2.msra.mxu0 0.0
  %7047 = vmatprep.subr.mxu0 0.0
  %7048 = vmatpush2.msra.mxu0 0.0
  %7049 = vmatprep.subr.mxu0 0.0
  %7050 = vmatpush2.msra.mxu0 0.0
  %7051 = vmatprep.subr.mxu0 0.0
  %7052 = vmatpush2.msra.mxu0 0.0
  %7053 = vmatprep.subr.mxu0 0.0
  %7054 = vmatpush2.msra.mxu0 0.0
  %7055 = vmatprep.subr.mxu0 0.0
  %7056 = vmatpush2.msra.mxu0 0.0
  %7057 = vmatprep.mubr.f32.mxu0 0.0
  %7058 = vmatmul.mubr.f32.gmra.mxu0 %v6991
  %v7059 = vpop.f32.mrf.mxu0
  %v7060 = vadd.f32 %v150, %v7059
  %v7061 = vpop.f32.mrf.mxu0
  %7062 = vdwg.mxu0
  %v7063 = vmax.f32 %v7060, 0.0
  %7064 = vmatprep.subr.mxu0 0.0
  %7065 = vmatpush1.msra.mxu0 %v124
  %7066 = vmatprep.subr.mxu0 0.0
  %7067 = vmatpush1.msra.mxu0 %v123
  %7068 = vmatprep.subr.mxu0 0.0
  %7069 = vmatpush1.msra.mxu0 %v122
  %7070 = vmatprep.subr.mxu0 0.0
  %7071 = vmatpush1.msra.mxu0 %v121
  %7072 = vmatprep.subr.mxu0 0.0
  %7073 = vmatpush1.msra.mxu0 %v120
  %7074 = vmatprep.subr.mxu0 0.0
  %7075 = vmatpush1.msra.mxu0 %v119
  %7076 = vmatprep.subr.mxu0 0.0
  %7077 = vmatpush1.msra.mxu0 %v118
  %7078 = vmatprep.subr.mxu0 0.0
  %7079 = vmatpush1.msra.mxu0 %v117
  %7080 = vmatprep.subr.mxu0 0.0
  %7081 = vmatpush1.msra.mxu0 %v116
  %7082 = vmatprep.subr.mxu0 0.0
  %7083 = vmatpush1.msra.mxu0 %v115
  %7084 = vmatprep.subr.mxu0 0.0
  %7085 = vmatpush1.msra.mxu0 %v114
  %7086 = vmatprep.subr.mxu0 0.0
  %7087 = vmatpush1.msra.mxu0 %v113
  %7088 = vmatprep.subr.mxu0 0.0
  %7089 = vmatpush1.msra.mxu0 %v112
  %7090 = vmatprep.subr.mxu0 0.0
  %7091 = vmatpush1.msra.mxu0 %v111
  %7092 = vmatprep.subr.mxu0 0.0
  %7093 = vmatpush1.msra.mxu0 %v110
  %7094 = vmatprep.subr.mxu0 0.0
  %7095 = vmatpush1.msra.mxu0 %v109
  %7096 = vmatprep.subr.mxu0 0.0
  %7097 = vmatpush2.msra.mxu0 0.0
  %7098 = vmatprep.subr.mxu0 0.0
  %7099 = vmatpush2.msra.mxu0 0.0
  %7100 = vmatprep.subr.mxu0 0.0
  %7101 = vmatpush2.msra.mxu0 0.0
  %7102 = vmatprep.subr.mxu0 0.0
  %7103 = vmatpush2.msra.mxu0 0.0
  %7104 = vmatprep.subr.mxu0 0.0
  %7105 = vmatpush2.msra.mxu0 0.0
  %7106 = vmatprep.subr.mxu0 0.0
  %7107 = vmatpush2.msra.mxu0 0.0
  %7108 = vmatprep.subr.mxu0 0.0
  %7109 = vmatpush2.msra.mxu0 0.0
  %7110 = vmatprep.subr.mxu0 0.0
  %7111 = vmatpush2.msra.mxu0 0.0
  %7112 = vmatprep.subr.mxu0 0.0
  %7113 = vmatpush2.msra.mxu0 0.0
  %7114 = vmatprep.subr.mxu0 0.0
  %7115 = vmatpush2.msra.mxu0 0.0
  %7116 = vmatprep.subr.mxu0 0.0
  %7117 = vmatpush2.msra.mxu0 0.0
  %7118 = vmatprep.subr.mxu0 0.0
  %7119 = vmatpush2.msra.mxu0 0.0
  %7120 = vmatprep.subr.mxu0 0.0
  %7121 = vmatpush2.msra.mxu0 0.0
  %7122 = vmatprep.subr.mxu0 0.0
  %7123 = vmatpush2.msra.mxu0 0.0
  %7124 = vmatprep.subr.mxu0 0.0
  %7125 = vmatpush2.msra.mxu0 0.0
  %7126 = vmatprep.subr.mxu0 0.0
  %7127 = vmatpush2.msra.mxu0 0.0
  %7128 = vmatprep.mubr.f32.mxu0 0.0
  %7129 = vmatmul.mubr.f32.gmra.mxu0 %v7063
  %v7130 = vpop.f32.mrf.mxu0
  %v7131 = vadd.f32 %v157, %v7130
  %v7132 = vpop.f32.mrf.mxu0
  %7133 = vdwg.mxu0
  %v7134 = vmax.f32 %v7131, 0.0
  %7135 = vmatprep.subr.mxu0 0.0
  %7136 = vmatpush1.msra.mxu0 0.0
  %7137 = vmatprep.subr.mxu0 0.0
  %7138 = vmatpush1.msra.mxu0 0.0
  %7139 = vmatprep.subr.mxu0 0.0
  %7140 = vmatpush1.msra.mxu0 0.0
  %7141 = vmatprep.subr.mxu0 0.0
  %7142 = vmatpush1.msra.mxu0 0.0
  %7143 = vmatprep.subr.mxu0 0.0
  %7144 = vmatpush1.msra.mxu0 0.0
  %7145 = vmatprep.subr.mxu0 0.0
  %7146 = vmatpush1.msra.mxu0 0.0
  %7147 = vmatprep.subr.mxu0 0.0
  %7148 = vmatpush1.msra.mxu0 0.0
  %7149 = vmatprep.subr.mxu0 0.0
  %7150 = vmatpush1.msra.mxu0 0.0
  %7151 = vmatprep.subr.mxu0 0.0
  %7152 = vmatpush1.msra.mxu0 0.0
  %7153 = vmatprep.subr.mxu0 0.0
  %7154 = vmatpush1.msra.mxu0 0.0
  %7155 = vmatprep.subr.mxu0 0.0
  %7156 = vmatpush1.msra.mxu0 0.0
  %7157 = vmatprep.subr.mxu0 0.0
  %7158 = vmatpush1.msra.mxu0 0.0
  %7159 = vmatprep.subr.mxu0 0.0
  %7160 = vmatpush1.msra.mxu0 0.0
  %7161 = vmatprep.subr.mxu0 0.0
  %7162 = vmatpush1.msra.mxu0 0.0
  %7163 = vmatprep.subr.mxu0 0.0
  %7164 = vmatpush1.msra.mxu0 0.0
  %7165 = vmatprep.subr.mxu0 0.0
  %7166 = vmatpush1.msra.mxu0 %v6842
  %7167 = vmatprep.subr.mxu0 0.0
  %7168 = vmatpush2.msra.mxu0 0.0
  %7169 = vmatprep.subr.mxu0 0.0
  %7170 = vmatpush2.msra.mxu0 0.0
  %7171 = vmatprep.subr.mxu0 0.0
  %7172 = vmatpush2.msra.mxu0 0.0
  %7173 = vmatprep.subr.mxu0 0.0
  %7174 = vmatpush2.msra.mxu0 0.0
  %7175 = vmatprep.subr.mxu0 0.0
  %7176 = vmatpush2.msra.mxu0 0.0
  %7177 = vmatprep.subr.mxu0 0.0
  %7178 = vmatpush2.msra.mxu0 0.0
  %7179 = vmatprep.subr.mxu0 0.0
  %7180 = vmatpush2.msra.mxu0 0.0
  %7181 = vmatprep.subr.mxu0 0.0
  %7182 = vmatpush2.msra.mxu0 0.0
  %7183 = vmatprep.subr.mxu0 0.0
  %7184 = vmatpush2.msra.mxu0 0.0
  %7185 = vmatprep.subr.mxu0 0.0
  %7186 = vmatpush2.msra.mxu0 0.0
  %7187 = vmatprep.subr.mxu0 0.0
  %7188 = vmatpush2.msra.mxu0 0.0
  %7189 = vmatprep.subr.mxu0 0.0
  %7190 = vmatpush2.msra.mxu0 0.0
  %7191 = vmatprep.subr.mxu0 0.0
  %7192 = vmatpush2.msra.mxu0 0.0
  %7193 = vmatprep.subr.mxu0 0.0
  %7194 = vmatpush2.msra.mxu0 0.0
  %7195 = vmatprep.subr.mxu0 0.0
  %7196 = vmatpush2.msra.mxu0 0.0
  %7197 = vmatprep.subr.mxu0 0.0
  %7198 = vmatpush2.msra.mxu0 0.0
  %7199 = vmatprep.mubr.f32.mxu0 0.0
  %7200 = vmatmul.mubr.f32.gmra.mxu0 %v474
  %v7201 = vpop.f32.mrf.mxu0
  %v7202 = vadd.f32 0.0, %v7201
  %v7203 = vpop.f32.mrf.mxu0
  %7204 = vdwg.mxu0
  %v7206 = vsel %vm550, %v7134, 0
  %7208 = vmatprep.subr.mxu0 0.0
  %7209 = vmatpush1.msra.mxu0 0.0
  %7210 = vmatprep.subr.mxu0 0.0
  %7211 = vmatpush1.msra.mxu0 0.0
  %7212 = vmatprep.subr.mxu0 0.0
  %7213 = vmatpush1.msra.mxu0 0.0
  %7214 = vmatprep.subr.mxu0 0.0
  %7215 = vmatpush1.msra.mxu0 0.0
  %7216 = vmatprep.subr.mxu0 0.0
  %7217 = vmatpush1.msra.mxu0 0.0
  %7218 = vmatprep.subr.mxu0 0.0
  %7219 = vmatpush1.msra.mxu0 0.0
  %7220 = vmatprep.subr.mxu0 0.0
  %7221 = vmatpush1.msra.mxu0 0.0
  %7222 = vmatprep.subr.mxu0 0.0
  %7223 = vmatpush1.msra.mxu0 0.0
  %7224 = vmatprep.subr.mxu0 0.0
  %7225 = vmatpush1.msra.mxu0 0.0
  %7226 = vmatprep.subr.mxu0 0.0
  %7227 = vmatpush1.msra.mxu0 0.0
  %7228 = vmatprep.subr.mxu0 0.0
  %7229 = vmatpush1.msra.mxu0 0.0
  %7230 = vmatprep.subr.mxu0 0.0
  %7231 = vmatpush1.msra.mxu0 0.0
  %7232 = vmatprep.subr.mxu0 0.0
  %7233 = vmatpush1.msra.mxu0 0.0
  %7234 = vmatprep.subr.mxu0 0.0
  %7235 = vmatpush1.msra.mxu0 0.0
  %7236 = vmatprep.subr.mxu0 0.0
  %7237 = vmatpush1.msra.mxu0 0.0
  %7238 = vmatprep.subr.mxu0 0.0
  %7239 = vmatpush1.msra.mxu0 %v7206
  %7240 = vmatprep.subr.mxu0 0.0
  %7241 = vmatpush2.msra.mxu0 0.0
  %7242 = vmatprep.subr.mxu0 0.0
  %7243 = vmatpush2.msra.mxu0 0.0
  %7244 = vmatprep.subr.mxu0 0.0
  %7245 = vmatpush2.msra.mxu0 0.0
  %7246 = vmatprep.subr.mxu0 0.0
  %7247 = vmatpush2.msra.mxu0 0.0
  %7248 = vmatprep.subr.mxu0 0.0
  %7249 = vmatpush2.msra.mxu0 0.0
  %7250 = vmatprep.subr.mxu0 0.0
  %7251 = vmatpush2.msra.mxu0 0.0
  %7252 = vmatprep.subr.mxu0 0.0
  %7253 = vmatpush2.msra.mxu0 0.0
  %7254 = vmatprep.subr.mxu0 0.0
  %7255 = vmatpush2.msra.mxu0 0.0
  %7256 = vmatprep.subr.mxu0 0.0
  %7257 = vmatpush2.msra.mxu0 0.0
  %7258 = vmatprep.subr.mxu0 0.0
  %7259 = vmatpush2.msra.mxu0 0.0
  %7260 = vmatprep.subr.mxu0 0.0
  %7261 = vmatpush2.msra.mxu0 0.0
  %7262 = vmatprep.subr.mxu0 0.0
  %7263 = vmatpush2.msra.mxu0 0.0
  %7264 = vmatprep.subr.mxu0 0.0
  %7265 = vmatpush2.msra.mxu0 0.0
  %7266 = vmatprep.subr.mxu0 0.0
  %7267 = vmatpush2.msra.mxu0 0.0
  %7268 = vmatprep.subr.mxu0 0.0
  %7269 = vmatpush2.msra.mxu0 0.0
  %7270 = vmatprep.subr.mxu0 0.0
  %7271 = vmatpush2.msra.mxu0 0.0
  %7272 = vmatprep.mubr.f32.mxu0 0.0
  %7273 = vmatmul.mubr.f32.gmra.mxu0 %v548
  %v7274 = vpop.f32.mrf.mxu0
  %v7275 = vadd.f32 0.0, %v7274
  %v7276 = vpop.f32.mrf.mxu0
  %7277 = vdwg.mxu0
  %7278 = vmatprep.subr.mxu0 0.0
  %7279 = vmatpush1.msra.mxu0 0.0
  %7280 = vmatprep.subr.mxu0 0.0
  %7281 = vmatpush1.msra.mxu0 0.0
  %7282 = vmatprep.subr.mxu0 0.0
  %7283 = vmatpush1.msra.mxu0 0.0
  %7284 = vmatprep.subr.mxu0 0.0
  %7285 = vmatpush1.msra.mxu0 0.0
  %7286 = vmatprep.subr.mxu0 0.0
  %7287 = vmatpush1.msra.mxu0 0.0
  %7288 = vmatprep.subr.mxu0 0.0
  %7289 = vmatpush1.msra.mxu0 0.0
  %7290 = vmatprep.subr.mxu0 0.0
  %7291 = vmatpush1.msra.mxu0 0.0
  %7292 = vmatprep.subr.mxu0 0.0
  %7293 = vmatpush1.msra.mxu0 0.0
  %7294 = vmatprep.subr.mxu0 0.0
  %7295 = vmatpush1.msra.mxu0 0.0
  %7296 = vmatprep.subr.mxu0 0.0
  %7297 = vmatpush1.msra.mxu0 0.0
  %7298 = vmatprep.subr.mxu0 0.0
  %7299 = vmatpush1.msra.mxu0 0.0
  %7300 = vmatprep.subr.mxu0 0.0
  %7301 = vmatpush1.msra.mxu0 0.0
  %7302 = vmatprep.subr.mxu0 0.0
  %7303 = vmatpush1.msra.mxu0 0.0
  %7304 = vmatprep.subr.mxu0 0.0
  %7305 = vmatpush1.msra.mxu0 0.0
  %7306 = vmatprep.subr.mxu0 0.0
  %7307 = vmatpush1.msra.mxu0 0.0
  %7308 = vmatprep.subr.mxu0 0.0
  %7309 = vmatpush1.msra.mxu0 %v6843
  %7310 = vmatprep.subr.mxu0 0.0
  %7311 = vmatpush2.msra.mxu0 0.0
  %7312 = vmatprep.subr.mxu0 0.0
  %7313 = vmatpush2.msra.mxu0 0.0
  %7314 = vmatprep.subr.mxu0 0.0
  %7315 = vmatpush2.msra.mxu0 0.0
  %7316 = vmatprep.subr.mxu0 0.0
  %7317 = vmatpush2.msra.mxu0 0.0
  %7318 = vmatprep.subr.mxu0 0.0
  %7319 = vmatpush2.msra.mxu0 0.0
  %7320 = vmatprep.subr.mxu0 0.0
  %7321 = vmatpush2.msra.mxu0 0.0
  %7322 = vmatprep.subr.mxu0 0.0
  %7323 = vmatpush2.msra.mxu0 0.0
  %7324 = vmatprep.subr.mxu0 0.0
  %7325 = vmatpush2.msra.mxu0 0.0
  %7326 = vmatprep.subr.mxu0 0.0
  %7327 = vmatpush2.msra.mxu0 0.0
  %7328 = vmatprep.subr.mxu0 0.0
  %7329 = vmatpush2.msra.mxu0 0.0
  %7330 = vmatprep.subr.mxu0 0.0
  %7331 = vmatpush2.msra.mxu0 0.0
  %7332 = vmatprep.subr.mxu0 0.0
  %7333 = vmatpush2.msra.mxu0 0.0
  %7334 = vmatprep.subr.mxu0 0.0
  %7335 = vmatpush2.msra.mxu0 0.0
  %7336 = vmatprep.subr.mxu0 0.0
  %7337 = vmatpush2.msra.mxu0 0.0
  %7338 = vmatprep.subr.mxu0 0.0
  %7339 = vmatpush2.msra.mxu0 0.0
  %7340 = vmatprep.subr.mxu0 0.0
  %7341 = vmatpush2.msra.mxu0 0.0
  %7342 = vmatprep.mubr.f32.mxu0 0.0
  %7343 = vmatmul.mubr.f32.gmra.mxu0 %v625
  %v7344 = vpop.f32.mrf.mxu0
  %v7345 = vadd.f32 0.0, %v7344
  %v7346 = vpop.f32.mrf.mxu0
  %7347 = vdwg.mxu0
  %v7348 = vrot.slane %v7134, 4
  %v7349 = vsel %vm550, %v7348, 0
  %7351 = vmatprep.subr.mxu0 0.0
  %7352 = vmatpush1.msra.mxu0 0.0
  %7353 = vmatprep.subr.mxu0 0.0
  %7354 = vmatpush1.msra.mxu0 0.0
  %7355 = vmatprep.subr.mxu0 0.0
  %7356 = vmatpush1.msra.mxu0 0.0
  %7357 = vmatprep.subr.mxu0 0.0
  %7358 = vmatpush1.msra.mxu0 0.0
  %7359 = vmatprep.subr.mxu0 0.0
  %7360 = vmatpush1.msra.mxu0 0.0
  %7361 = vmatprep.subr.mxu0 0.0
  %7362 = vmatpush1.msra.mxu0 0.0
  %7363 = vmatprep.subr.mxu0 0.0
  %7364 = vmatpush1.msra.mxu0 0.0
  %7365 = vmatprep.subr.mxu0 0.0
  %7366 = vmatpush1.msra.mxu0 0.0
  %7367 = vmatprep.subr.mxu0 0.0
  %7368 = vmatpush1.msra.mxu0 0.0
  %7369 = vmatprep.subr.mxu0 0.0
  %7370 = vmatpush1.msra.mxu0 0.0
  %7371 = vmatprep.subr.mxu0 0.0
  %7372 = vmatpush1.msra.mxu0 0.0
  %7373 = vmatprep.subr.mxu0 0.0
  %7374 = vmatpush1.msra.mxu0 0.0
  %7375 = vmatprep.subr.mxu0 0.0
  %7376 = vmatpush1.msra.mxu0 0.0
  %7377 = vmatprep.subr.mxu0 0.0
  %7378 = vmatpush1.msra.mxu0 0.0
  %7379 = vmatprep.subr.mxu0 0.0
  %7380 = vmatpush1.msra.mxu0 0.0
  %7381 = vmatprep.subr.mxu0 0.0
  %7382 = vmatpush1.msra.mxu0 %v7349
  %7383 = vmatprep.subr.mxu0 0.0
  %7384 = vmatpush2.msra.mxu0 0.0
  %7385 = vmatprep.subr.mxu0 0.0
  %7386 = vmatpush2.msra.mxu0 0.0
  %7387 = vmatprep.subr.mxu0 0.0
  %7388 = vmatpush2.msra.mxu0 0.0
  %7389 = vmatprep.subr.mxu0 0.0
  %7390 = vmatpush2.msra.mxu0 0.0
  %7391 = vmatprep.subr.mxu0 0.0
  %7392 = vmatpush2.msra.mxu0 0.0
  %7393 = vmatprep.subr.mxu0 0.0
  %7394 = vmatpush2.msra.mxu0 0.0
  %7395 = vmatprep.subr.mxu0 0.0
  %7396 = vmatpush2.msra.mxu0 0.0
  %7397 = vmatprep.subr.mxu0 0.0
  %7398 = vmatpush2.msra.mxu0 0.0
  %7399 = vmatprep.subr.mxu0 0.0
  %7400 = vmatpush2.msra.mxu0 0.0
  %7401 = vmatprep.subr.mxu0 0.0
  %7402 = vmatpush2.msra.mxu0 0.0
  %7403 = vmatprep.subr.mxu0 0.0
  %7404 = vmatpush2.msra.mxu0 0.0
  %7405 = vmatprep.subr.mxu0 0.0
  %7406 = vmatpush2.msra.mxu0 0.0
  %7407 = vmatprep.subr.mxu0 0.0
  %7408 = vmatpush2.msra.mxu0 0.0
  %7409 = vmatprep.subr.mxu0 0.0
  %7410 = vmatpush2.msra.mxu0 0.0
  %7411 = vmatprep.subr.mxu0 0.0
  %7412 = vmatpush2.msra.mxu0 0.0
  %7413 = vmatprep.subr.mxu0 0.0
  %7414 = vmatpush2.msra.mxu0 0.0
  %7415 = vmatprep.mubr.f32.mxu0 0.0
  %7416 = vmatmul.mubr.f32.gmra.mxu0 %v699
  %v7417 = vpop.f32.mrf.mxu0
  %v7418 = vadd.f32 0.0, %v7417
  %v7419 = vpop.f32.mrf.mxu0
  %7420 = vdwg.mxu0
  %7421 = vmatprep.subr.mxu0 0.0
  %7422 = vmatpush1.msra.mxu0 0.0
  %7423 = vmatprep.subr.mxu0 0.0
  %7424 = vmatpush1.msra.mxu0 0.0
  %7425 = vmatprep.subr.mxu0 0.0
  %7426 = vmatpush1.msra.mxu0 0.0
  %7427 = vmatprep.subr.mxu0 0.0
  %7428 = vmatpush1.msra.mxu0 0.0
  %7429 = vmatprep.subr.mxu0 0.0
  %7430 = vmatpush1.msra.mxu0 0.0
  %7431 = vmatprep.subr.mxu0 0.0
  %7432 = vmatpush1.msra.mxu0 0.0
  %7433 = vmatprep.subr.mxu0 0.0
  %7434 = vmatpush1.msra.mxu0 0.0
  %7435 = vmatprep.subr.mxu0 0.0
  %7436 = vmatpush1.msra.mxu0 0.0
  %7437 = vmatprep.subr.mxu0 0.0
  %7438 = vmatpush1.msra.mxu0 0.0
  %7439 = vmatprep.subr.mxu0 0.0
  %7440 = vmatpush1.msra.mxu0 0.0
  %7441 = vmatprep.subr.mxu0 0.0
  %7442 = vmatpush1.msra.mxu0 0.0
  %7443 = vmatprep.subr.mxu0 0.0
  %7444 = vmatpush1.msra.mxu0 0.0
  %7445 = vmatprep.subr.mxu0 0.0
  %7446 = vmatpush1.msra.mxu0 0.0
  %7447 = vmatprep.subr.mxu0 0.0
  %7448 = vmatpush1.msra.mxu0 0.0
  %7449 = vmatprep.subr.mxu0 0.0
  %7450 = vmatpush1.msra.mxu0 0.0
  %7451 = vmatprep.subr.mxu0 0.0
  %7452 = vmatpush1.msra.mxu0 %v6989
  %7453 = vmatprep.subr.mxu0 0.0
  %7454 = vmatpush2.msra.mxu0 0.0
  %7455 = vmatprep.subr.mxu0 0.0
  %7456 = vmatpush2.msra.mxu0 0.0
  %7457 = vmatprep.subr.mxu0 0.0
  %7458 = vmatpush2.msra.mxu0 0.0
  %7459 = vmatprep.subr.mxu0 0.0
  %7460 = vmatpush2.msra.mxu0 0.0
  %7461 = vmatprep.subr.mxu0 0.0
  %7462 = vmatpush2.msra.mxu0 0.0
  %7463 = vmatprep.subr.mxu0 0.0
  %7464 = vmatpush2.msra.mxu0 0.0
  %7465 = vmatprep.subr.mxu0 0.0
  %7466 = vmatpush2.msra.mxu0 0.0
  %7467 = vmatprep.subr.mxu0 0.0
  %7468 = vmatpush2.msra.mxu0 0.0
  %7469 = vmatprep.subr.mxu0 0.0
  %7470 = vmatpush2.msra.mxu0 0.0
  %7471 = vmatprep.subr.mxu0 0.0
  %7472 = vmatpush2.msra.mxu0 0.0
  %7473 = vmatprep.subr.mxu0 0.0
  %7474 = vmatpush2.msra.mxu0 0.0
  %7475 = vmatprep.subr.mxu0 0.0
  %7476 = vmatpush2.msra.mxu0 0.0
  %7477 = vmatprep.subr.mxu0 0.0
  %7478 = vmatpush2.msra.mxu0 0.0
  %7479 = vmatprep.subr.mxu0 0.0
  %7480 = vmatpush2.msra.mxu0 0.0
  %7481 = vmatprep.subr.mxu0 0.0
  %7482 = vmatpush2.msra.mxu0 0.0
  %7483 = vmatprep.subr.mxu0 0.0
  %7484 = vmatpush2.msra.mxu0 0.0
  %7485 = vmatprep.mubr.f32.mxu0 0.0
  %7486 = vmatmul.mubr.f32.gmra.mxu0 %v774
  %v7487 = vpop.f32.mrf.mxu0
  %v7488 = vadd.f32 0.0, %v7487
  %v7489 = vpop.f32.mrf.mxu0
  %7490 = vdwg.mxu0
  %7493 = vrot.lane.b32.xlu0 %v7202, 32
  %v7494 = vpop.permute.xlu0 %7493
  %7495 = vrot.lane.b32.xlu0 %v7345, 32
  %v7496 = vpop.permute.xlu0 %7495
  %7500 = vrot.lane.b32.xlu0 %v6842, 64
  %v7501 = vpop.permute.xlu0 %7500
  %7502 = vrot.lane.b32.xlu0 %v6843, 64
  %v7503 = vpop.permute.xlu0 %7502
  %v7506 = vsel %vm58, %v7275, %v7494
  %v7507 = vsel %vm58, %v7418, %v7496
  %v7508 = vsel %vm863, %v7506, %v7501
  %v7509 = vsel %vm863, %v7507, %v7503
  %v7511 = vsel %vm866, %v7508, 0
  %v7514 = vsel %vm866, %v7509, 0
  %7516 = vmatprep.subr.mxu0 0.0
  %7517 = vmatpush1.msra.mxu0 0.0
  %7518 = vmatprep.subr.mxu0 0.0
  %7519 = vmatpush1.msra.mxu0 0.0
  %7520 = vmatprep.subr.mxu0 0.0
  %7521 = vmatpush1.msra.mxu0 0.0
  %7522 = vmatprep.subr.mxu0 0.0
  %7523 = vmatpush1.msra.mxu0 0.0
  %7524 = vmatprep.subr.mxu0 0.0
  %7525 = vmatpush1.msra.mxu0 %v82
  %7526 = vmatprep.subr.mxu0 0.0
  %7527 = vmatpush1.msra.mxu0 %v81
  %7528 = vmatprep.subr.mxu0 0.0
  %7529 = vmatpush1.msra.mxu0 %v80
  %7530 = vmatprep.subr.mxu0 0.0
  %7531 = vmatpush1.msra.mxu0 %v79
  %7532 = vmatprep.subr.mxu0 0.0
  %7533 = vmatpush1.msra.mxu0 %v78
  %7534 = vmatprep.subr.mxu0 0.0
  %7535 = vmatpush1.msra.mxu0 %v77
  %7536 = vmatprep.subr.mxu0 0.0
  %7537 = vmatpush1.msra.mxu0 %v76
  %7538 = vmatprep.subr.mxu0 0.0
  %7539 = vmatpush1.msra.mxu0 %v75
  %7540 = vmatprep.subr.mxu0 0.0
  %7541 = vmatpush1.msra.mxu0 %v74
  %7542 = vmatprep.subr.mxu0 0.0
  %7543 = vmatpush1.msra.mxu0 %v73
  %7544 = vmatprep.subr.mxu0 0.0
  %7545 = vmatpush1.msra.mxu0 %v72
  %7546 = vmatprep.subr.mxu0 0.0
  %7547 = vmatpush1.msra.mxu0 %v71
  %7548 = vmatprep.subr.mxu0 0.0
  %7549 = vmatpush2.msra.mxu0 0.0
  %7550 = vmatprep.subr.mxu0 0.0
  %7551 = vmatpush2.msra.mxu0 0.0
  %7552 = vmatprep.subr.mxu0 0.0
  %7553 = vmatpush2.msra.mxu0 0.0
  %7554 = vmatprep.subr.mxu0 0.0
  %7555 = vmatpush2.msra.mxu0 0.0
  %7556 = vmatprep.subr.mxu0 0.0
  %7557 = vmatpush2.msra.mxu0 0.0
  %7558 = vmatprep.subr.mxu0 0.0
  %7559 = vmatpush2.msra.mxu0 0.0
  %7560 = vmatprep.subr.mxu0 0.0
  %7561 = vmatpush2.msra.mxu0 0.0
  %7562 = vmatprep.subr.mxu0 0.0
  %7563 = vmatpush2.msra.mxu0 0.0
  %7564 = vmatprep.subr.mxu0 0.0
  %7565 = vmatpush2.msra.mxu0 0.0
  %7566 = vmatprep.subr.mxu0 0.0
  %7567 = vmatpush2.msra.mxu0 0.0
  %7568 = vmatprep.subr.mxu0 0.0
  %7569 = vmatpush2.msra.mxu0 0.0
  %7570 = vmatprep.subr.mxu0 0.0
  %7571 = vmatpush2.msra.mxu0 0.0
  %7572 = vmatprep.subr.mxu0 0.0
  %7573 = vmatpush2.msra.mxu0 0.0
  %7574 = vmatprep.subr.mxu0 0.0
  %7575 = vmatpush2.msra.mxu0 0.0
  %7576 = vmatprep.subr.mxu0 0.0
  %7577 = vmatpush2.msra.mxu0 0.0
  %7578 = vmatprep.subr.mxu0 0.0
  %7579 = vmatpush2.msra.mxu0 0.0
  %7580 = vmatprep.mubr.f32.mxu0 0.0
  %7581 = vmatmul.mubr.f32.gmra.mxu0 %v7511
  %v7582 = vpop.f32.mrf.mxu0
  %v7583 = vadd.f32 %v96, %v7582
  %v7584 = vpop.f32.mrf.mxu0
  %7585 = vmatprep.mubr.f32.mxu0 0.0
  %7586 = vmatmul.mubr.f32.gmra.mxu0 %v7514
  %v7587 = vpop.f32.mrf.mxu0
  %v7588 = vadd.f32 %v96, %v7587
  %v7589 = vpop.f32.mrf.mxu0
  %7590 = vdwg.mxu0
  %7591 = vrot.lane.b32.xlu0 %v6844, 32
  %v7592 = vpop.permute.xlu0 %7591
  %v7594 = vsel %vm58, %v7488, %v7592
  %v7596 = vsel %vm863, %v7594, 0
  %7598 = vmatprep.subr.mxu0 0.0
  %7599 = vmatpush1.msra.mxu0 0.0
  %7600 = vmatprep.subr.mxu0 0.0
  %7601 = vmatpush1.msra.mxu0 0.0
  %7602 = vmatprep.subr.mxu0 0.0
  %7603 = vmatpush1.msra.mxu0 0.0
  %7604 = vmatprep.subr.mxu0 0.0
  %7605 = vmatpush1.msra.mxu0 0.0
  %7606 = vmatprep.subr.mxu0 0.0
  %7607 = vmatpush1.msra.mxu0 0.0
  %7608 = vmatprep.subr.mxu0 0.0
  %7609 = vmatpush1.msra.mxu0 0.0
  %7610 = vmatprep.subr.mxu0 0.0
  %7611 = vmatpush1.msra.mxu0 0.0
  %7612 = vmatprep.subr.mxu0 0.0
  %7613 = vmatpush1.msra.mxu0 0.0
  %7614 = vmatprep.subr.mxu0 0.0
  %7615 = vmatpush1.msra.mxu0 %v90
  %7616 = vmatprep.subr.mxu0 0.0
  %7617 = vmatpush1.msra.mxu0 %v89
  %7618 = vmatprep.subr.mxu0 0.0
  %7619 = vmatpush1.msra.mxu0 %v88
  %7620 = vmatprep.subr.mxu0 0.0
  %7621 = vmatpush1.msra.mxu0 %v87
  %7622 = vmatprep.subr.mxu0 0.0
  %7623 = vmatpush1.msra.mxu0 %v86
  %7624 = vmatprep.subr.mxu0 0.0
  %7625 = vmatpush1.msra.mxu0 %v85
  %7626 = vmatprep.subr.mxu0 0.0
  %7627 = vmatpush1.msra.mxu0 %v84
  %7628 = vmatprep.subr.mxu0 0.0
  %7629 = vmatpush1.msra.mxu0 %v83
  %7630 = vmatprep.subr.mxu0 0.0
  %7631 = vmatpush2.msra.mxu0 0.0
  %7632 = vmatprep.subr.mxu0 0.0
  %7633 = vmatpush2.msra.mxu0 0.0
  %7634 = vmatprep.subr.mxu0 0.0
  %7635 = vmatpush2.msra.mxu0 0.0
  %7636 = vmatprep.subr.mxu0 0.0
  %7637 = vmatpush2.msra.mxu0 0.0
  %7638 = vmatprep.subr.mxu0 0.0
  %7639 = vmatpush2.msra.mxu0 0.0
  %7640 = vmatprep.subr.mxu0 0.0
  %7641 = vmatpush2.msra.mxu0 0.0
  %7642 = vmatprep.subr.mxu0 0.0
  %7643 = vmatpush2.msra.mxu0 0.0
  %7644 = vmatprep.subr.mxu0 0.0
  %7645 = vmatpush2.msra.mxu0 0.0
  %7646 = vmatprep.subr.mxu0 0.0
  %7647 = vmatpush2.msra.mxu0 0.0
  %7648 = vmatprep.subr.mxu0 0.0
  %7649 = vmatpush2.msra.mxu0 0.0
  %7650 = vmatprep.subr.mxu0 0.0
  %7651 = vmatpush2.msra.mxu0 0.0
  %7652 = vmatprep.subr.mxu0 0.0
  %7653 = vmatpush2.msra.mxu0 0.0
  %7654 = vmatprep.subr.mxu0 0.0
  %7655 = vmatpush2.msra.mxu0 0.0
  %7656 = vmatprep.subr.mxu0 0.0
  %7657 = vmatpush2.msra.mxu0 0.0
  %7658 = vmatprep.subr.mxu0 0.0
  %7659 = vmatpush2.msra.mxu0 0.0
  %7660 = vmatprep.subr.mxu0 0.0
  %7661 = vmatpush2.msra.mxu0 0.0
  %7662 = vmatprep.mubr.f32.mxu0 0.0
  %7663 = vmatmul.mubr.f32.gmra.mxu0 %v7596
  %v7664 = vpop.f32.mrf.mxu0
  %v7665 = vadd.f32 %v103, %v7664
  %v7666 = vpop.f32.mrf.mxu0
  %7667 = vdwg.mxu0
  %v7668 = vld [vmem:[#allocation3] sm:$0xff]
  %v7669 = vld [vmem:[#allocation3 + $0x8] sm:$0xff]
  %v7670 = vmul.f32 %v7583, %v178
  %v7671 = vmul.f32 %v7588, %v178
  %v7672 = vxor.u32 %v7670, 2147483648
  %v7673 = vxor.u32 %v7671, 2147483648
  %v7674 = vmul.f32 %v7672, 1.442695
  %v7675 = vpow.pop %v7674
  %v7676 = vmul.f32 %v7673, 1.442695
  %v7677 = vpow.pop %v7676
  %v7678 = vadd.f32 %v7675, 1.0
  %v7679 = vadd.f32 %v7677, 1.0
  %v7680 = vrcp.pop %v7678
  %v7681 = vmul.f32 1.0, %v7680
  %v7682 = vrcp.pop %v7679
  %v7683 = vmul.f32 1.0, %v7682
  %v7684 = vmul.f32 %v7681, 2.0
  %v7685 = vmul.f32 %v7683, 2.0
  %v7686 = vsub.f32 %v7684, 1.0
  %v7687 = vsub.f32 %v7685, 1.0
  %7690 = vrot.lane.b32.xlu0 %v7668, 32
  %v7691 = vpop.permute.xlu0 %7690
  %7692 = vrot.lane.b32.xlu0 %v7669, 32
  %v7693 = vpop.permute.xlu0 %7692
  %v7696 = vmul.f32 %v7681, %v7691
  %v7697 = vmul.f32 %v7683, %v7693
  %7700 = vrot.lane.b32.xlu0 %v7686, 64
  %v7701 = vpop.permute.xlu0 %7700
  %7702 = vrot.lane.b32.xlu0 %v7687, 64
  %v7703 = vpop.permute.xlu0 %7702
  %v7706 = vmul.f32 %v7681, %v7701
  %v7707 = vmul.f32 %v7683, %v7703
  %7710 = vrot.lane.b32.xlu0 %v7706, 32
  %v7711 = vpop.permute.xlu0 %7710
  %7712 = vrot.lane.b32.xlu0 %v7707, 32
  %v7713 = vpop.permute.xlu0 %7712
  %v7716 = vadd.f32 %v7696, %v7711
  %v7717 = vadd.f32 %v7697, %v7713
  %v7718 = vtanh.pop %v7716
  %v7719 = vtanh.pop %v7717
  %7722 = vrot.lane.b32.xlu0 %v7718, 64
  %v7723 = vpop.permute.xlu0 %7722
  %7724 = vrot.lane.b32.xlu0 %v7719, 64
  %v7725 = vpop.permute.xlu0 %7724
  %v7728 = vmul.f32 %v7681, %v7723
  %v7729 = vmul.f32 %v7683, %v7725
  %v7730 = vld [vmem:[#allocation4] sm:$0xff]
  %v7731 = vmul.f32 %v7665, %v178
  %v7732 = vxor.u32 %v7731, 2147483648
  %v7733 = vmul.f32 %v7732, 1.442695
  %v7734 = vpow.pop %v7733
  %v7735 = vadd.f32 %v7734, 1.0
  %v7736 = vrcp.pop %v7735
  %v7737 = vmul.f32 1.0, %v7736
  %v7738 = vmul.f32 %v7737, 2.0
  %v7739 = vsub.f32 %v7738, 1.0
  %7741 = vrot.lane.b32.xlu0 %v7730, 32
  %v7742 = vpop.permute.xlu0 %7741
  %v7744 = vmul.f32 %v7737, %v7742
  %7746 = vrot.lane.b32.xlu0 %v7739, 64
  %v7747 = vpop.permute.xlu0 %7746
  %v7749 = vmul.f32 %v7737, %v7747
  %7751 = vrot.lane.b32.xlu0 %v7749, 32
  %v7752 = vpop.permute.xlu0 %7751
  %v7754 = vadd.f32 %v7744, %v7752
  %v7755 = vtanh.pop %v7754
  %7757 = vrot.lane.b32.xlu0 %v7755, 64
  %v7758 = vpop.permute.xlu0 %7757
  %v7760 = vmul.f32 %v7737, %v7758
  %7763 = vrot.lane.b32.xlu0 %v7728, 32
  %v7764 = vpop.permute.xlu0 %7763
  %7765 = vrot.lane.b32.xlu0 %v7729, 32
  %v7766 = vpop.permute.xlu0 %7765
  %7769 = vst.msk [vmem:[%s17] sm:$0xff] %vm58, %v7764
  %7770 = vst.msk [vmem:[%s17 + $0x8] sm:$0xff] %vm58, %v7766
  %7773 = vrot.lane.b32.xlu0 %v7716, 96
  %v7774 = vpop.permute.xlu0 %7773
  %7775 = vrot.lane.b32.xlu0 %v7717, 96
  %v7776 = vpop.permute.xlu0 %7775
  %7779 = vst.msk [vmem:[#allocation3] sm:$0xff] %vm58, %v7774
  %7780 = vst.msk [vmem:[#allocation3 + $0x8] sm:$0xff] %vm58, %v7776
  %7782 = vrot.lane.b32.xlu0 %v7760, 32
  %v7783 = vpop.permute.xlu0 %7782
  %7785 = vst.msk [vmem:[#allocation2] sm:$0xff] %vm58, %v7783
  %7787 = vrot.lane.b32.xlu0 %v7754, 96
  %v7788 = vpop.permute.xlu0 %7787
  %7790 = vst.msk [vmem:[#allocation4] sm:$0xff] %vm58, %v7788
  // Predicated region
  $region70: #{rec_gnn_forward.1} parent=0 // pred_check
    _
  $region71: #{rec_gnn_forward.1} parent=0 // pred_check_branch
    %7792 = sbr.rel (0) target = $region73
  $region72: #{rec_gnn_forward.1} parent=0 // pred_region
    _
  $region73: #{rec_gnn_forward.1} parent=0 // pred_fallthru
    _
  // Predicated region
  $region74: #{rec_gnn_forward.1} parent=0 // pred_check
    _
  $region75: #{rec_gnn_forward.1} parent=0 // pred_check_branch
    %7794 = sbr.rel (0) target = $region77
  $region76: #{rec_gnn_forward.1} parent=0 // pred_region
    _
  $region77: #{rec_gnn_forward.1} parent=0 // pred_fallthru
    _

</llo_original>
